<compile_context>
chip_gen: v7x
topology: tpu7x:2x2x1
jax: 0.10.0
libtpu: 0.0.40
codegen_flags: <defaults>
</compile_context>

<pallas_src>
import jax
import jax.numpy as jnp
from jax.experimental import pallas as pl
from jax.experimental.pallas import tpu as pltpu

D_IN = 768        # text-modality input features (Linear(768, d_model))
D = 256           # d_model (module default)
H = 8             # attention heads
HD = D // H       # head dim = 32
LN_EPS = 1e-5

# Row offsets inside w_slab ([D_IN + D + D, D], bf16): fc1_w | fc2_w | out_proj_w
FC1_OFF = 0
FC2_OFF = D_IN
OUTP_OFF = D_IN + D

# Row indices inside bias_slab (f32 [8, D_IN]); 256-wide entries live in lanes [:D].
ROW_IN_PROJ_B = 0     # full 768 lanes (3*D)
ROW_FC1_B = 1
ROW_LN_G = 2
ROW_LN_B = 3
ROW_FC2_B = 4
ROW_OUT_B = 5


# ---------------------------------------------------------------------------
# Pallas kernel: whole forward (fc -> MHA -> mean over slots) in one grid step
# ---------------------------------------------------------------------------
def perception_encoder_kernel(x_ref, w_ref, inw_ref, b_ref, out_ref):
    B, S, _ = x_ref.shape

    # --- unpack parameter slabs with static slices (no in-kernel reshapes) ---
    fc1_w = w_ref[FC1_OFF:FC1_OFF + D_IN, :]              # [768, 256] bf16
    fc2_w = w_ref[FC2_OFF:FC2_OFF + D, :]                 # [256, 256] bf16
    in_proj_w = inw_ref[...]                               # [256, 768] bf16

    in_proj_b = b_ref[ROW_IN_PROJ_B:ROW_IN_PROJ_B + 1, :]  # [1, 768] f32
    fc1_b = b_ref[ROW_FC1_B:ROW_FC1_B + 1, :D]             # [1, 256]
    ln_g = b_ref[ROW_LN_G:ROW_LN_G + 1, :D]
    ln_b = b_ref[ROW_LN_B:ROW_LN_B + 1, :D]
    fc2_b = b_ref[ROW_FC2_B:ROW_FC2_B + 1, :D]
    out_b = b_ref[ROW_OUT_B:ROW_OUT_B + 1, :D]

    x_all = x_ref[...]                                      # [B, S, 768] f32 (one load)
    scale = 1.0 / (HD ** 0.5)
    acc = jnp.zeros((B, D), jnp.float32)

    for s in range(S):                                      # S is tiny; unrolled at trace time
        x_slot = x_all[:, s, :]                             # [B, 768] static slice

        # fc: Linear(768->256) -> LayerNorm -> ReLU -> Dropout(identity) -> Linear(256->256)
        h = jnp.dot(x_slot.astype(jnp.bfloat16), fc1_w,
                    preferred_element_type=jnp.float32) + fc1_b
        mu = jnp.mean(h, axis=-1, keepdims=True)
        var = jnp.mean((h - mu) ** 2, axis=-1, keepdims=True)
        h = (h - mu) * jax.lax.rsqrt(var + LN_EPS) * ln_g + ln_b
        h = jnp.maximum(h, 0.0)
        enc = jnp.dot(h.astype(jnp.bfloat16), fc2_w,
                      preferred_element_type=jnp.float32) + fc2_b          # [B, 256]

        # MHA (batch_first=False): attention over the B axis within this slot.
        qkv = jnp.dot(enc.astype(jnp.bfloat16), in_proj_w,
                      preferred_element_type=jnp.float32) + in_proj_b      # [B, 768]
        q = qkv[:, :D] * scale
        k = qkv[:, D:2 * D]
        v = qkv[:, 2 * D:]

        att = jnp.zeros((B, D), jnp.float32)
        for hh in range(H):                                 # unrolled, static lane slices
            lo, hi = hh * HD, (hh + 1) * HD
            qh = q[:, lo:hi]                                # [B, 32] f32
            kh = k[:, lo:hi]
            vh = v[:, lo:hi]
            # scores = qh @ kh.T  (NT matmul, f32)
            sc = jax.lax.dot_general(qh, kh, (((1,), (1,)), ((), ())),
                                     preferred_element_type=jnp.float32)   # [B, B]
            m = jnp.max(sc, axis=-1, keepdims=True)
            e = jnp.exp(sc - m)
            p = e * pl.reciprocal(jnp.sum(e, axis=-1, keepdims=True), approx=True)
            ctx = jnp.dot(p, vh, preferred_element_type=jnp.float32)       # [B, 32]
            # out_proj folded in per head: att += ctx @ out_proj_w[h*HD:(h+1)*HD, :]
            ow_h = w_ref[OUTP_OFF + lo:OUTP_OFF + hi, :]                   # [32, 256] bf16
            att = att + jnp.dot(ctx.astype(jnp.bfloat16), ow_h,
                                preferred_element_type=jnp.float32)
        acc = acc + att + out_b

    # attended.mean(dim=1) fused into the kernel.
    out_ref[...] = (acc * (1.0 / S)).astype(out_ref.dtype)


# ---------------------------------------------------------------------------
# Wrapper
# ---------------------------------------------------------------------------
@jax.jit
def perception_encoder(x, params):
    # Mirror the module's dim handling: 2-D input -> unsqueeze(1).
    if x.ndim == 2:
        x = x[:, None, :]
    B, S, F = x.shape
    assert F == D_IN, (F, D_IN)

    w_slab = params["w_slab"]
    in_proj_w = params["in_proj_w"]
    bias_slab = params["bias_slab"]

    return pl.pallas_call(
        perception_encoder_kernel,
        out_shape=jax.ShapeDtypeStruct((B, D), jnp.float32),
        grid=(1,),
        in_specs=[
            pl.BlockSpec((B, S, D_IN), lambda i: (0, 0, 0)),
            pl.BlockSpec(w_slab.shape, lambda i: (0, 0)),
            pl.BlockSpec(in_proj_w.shape, lambda i: (0, 0)),
            pl.BlockSpec(bias_slab.shape, lambda i: (0, 0)),
        ],
        out_specs=pl.BlockSpec((B, D), lambda i: (0, 0)),
        compiler_params=pltpu.CompilerParams(
            dimension_semantics=("arbitrary",),
            vmem_limit_bytes=16 << 20),
    )(x, w_slab, in_proj_w, bias_slab)


# ---------------------------------------------------------------------------
# Pure-JAX reference (f32 activations, exact softmax division, standard
# head reshape/transpose formulation) using the same packed parameters.
# ---------------------------------------------------------------------------
def _reference(x, params):
    if x.ndim == 2:
        x = x[:, None, :]
    B, S, _ = x.shape

    w_slab = params["w_slab"].astype(jnp.float32)
    fc1_w = w_slab[:D_IN]
    fc2_w = w_slab[D_IN:D_IN + D]
    out_w = w_slab[D_IN + D:]
    in_w = params["in_proj_w"].astype(jnp.float32)
    b = params["bias_slab"]
    in_b = b[ROW_IN_PROJ_B, :]
    fc1_b = b[ROW_FC1_B, :D]
    ln_g = b[ROW_LN_G, :D]
    ln_b = b[ROW_LN_B, :D]
    fc2_b = b[ROW_FC2_B, :D]
    out_b = b[ROW_OUT_B, :D]

    outs = []
    for s in range(S):
        xs = x[:, s, :]
        h = xs @ fc1_w + fc1_b
        mu = h.mean(-1, keepdims=True)
        var = ((h - mu) ** 2).mean(-1, keepdims=True)
        h = jnp.maximum((h - mu) * jax.lax.rsqrt(var + LN_EPS) * ln_g + ln_b, 0.0)
        enc = h @ fc2_w + fc2_b

        qkv = enc @ in_w + in_b
        q, k, v = qkv[:, :D], qkv[:, D:2 * D], qkv[:, 2 * D:]
        qh = q.reshape(B, H, HD).transpose(1, 0, 2) / (HD ** 0.5)
        kh = k.reshape(B, H, HD).transpose(1, 0, 2)
        vh = v.reshape(B, H, HD).transpose(1, 0, 2)
        sc = jnp.einsum('hqd,hkd->hqk', qh, kh)
        p = jax.nn.softmax(sc, axis=-1)
        ctx = jnp.einsum('hqk,hkd->hqd', p, vh)
        cat = ctx.transpose(1, 0, 2).reshape(B, D)
        outs.append(cat @ out_w + out_b)
    return jnp.mean(jnp.stack(outs, 0), axis=0)


# ---------------------------------------------------------------------------
# Deterministic parameter construction (synthetic, no checkpoint), packed.
# ---------------------------------------------------------------------------
def make_params(key):
    ks = jax.random.split(key, 8)
    s = 0.05

    def w(k_, shape):
        return jax.random.normal(k_, shape, jnp.float32) * s

    fc1_w = w(ks[0], (D_IN, D))            # stored [in, out]: y = x @ W
    fc1_b = w(ks[1], (D,))
    ln_g = jnp.ones((D,), jnp.float32)
    ln_b = jnp.zeros((D,), jnp.float32)
    fc2_w = w(ks[2], (D, D))
    fc2_b = w(ks[3], (D,))
    in_proj_w = w(ks[4], (D, 3 * D))       # columns: [q | k | v]
    in_proj_b = w(ks[5], (3 * D,))
    out_proj_w = w(ks[6], (D, D))
    out_proj_b = w(ks[7], (D,))

    # Pack: one bf16 weight slab (all N=256 matrices), one bf16 in_proj, one f32 bias slab.
    w_slab = jnp.concatenate([fc1_w, fc2_w, out_proj_w], axis=0).astype(jnp.bfloat16)

    def pad_row(v):
        return jnp.pad(v, (0, D_IN - v.shape[0]))

    bias_slab = jnp.stack([
        in_proj_b,                 # row 0, full 768
        pad_row(fc1_b),            # row 1
        pad_row(ln_g),             # row 2
        pad_row(ln_b),             # row 3
        pad_row(fc2_b),            # row 4
        pad_row(out_proj_b),       # row 5
        jnp.zeros((D_IN,), jnp.float32),
        jnp.zeros((D_IN,), jnp.float32),
    ], axis=0)                     # [8, 768] f32

    return {
        "w_slab": w_slab,                                   # [1280, 256] bf16
        "in_proj_w": in_proj_w.astype(jnp.bfloat16),        # [256, 768]  bf16
        "bias_slab": bias_slab,                             # [8, 768]    f32
    }


if __name__ == "__main__":
    key = jax.random.PRNGKey(0)
    kx, kp = jax.random.split(key)

    B, S = 8, 2   # B is also the attention sequence length (batch_first=False quirk)
    x = jax.random.normal(kx, (B, S, D_IN), jnp.float32)
    params = make_params(kp)

    out = jax.block_until_ready(perception_encoder(x, params))
    assert out.shape == (B, D), out.shape

    ref = jax.block_until_ready(_reference(x, params))
    err = float(jnp.max(jnp.abs(out - ref)))
    assert jnp.allclose(out, ref, rtol=2e-2, atol=2e-2), err

    # Also exercise the 2-D input path (x.dim() == 2 -> unsqueeze(1)).
    x2 = x[:, 0, :]
    out2 = jax.block_until_ready(perception_encoder(x2, params))
    ref2 = jax.block_until_ready(_reference(x2, params))
    assert out2.shape == (B, D), out2.shape
    assert jnp.allclose(out2, ref2, rtol=2e-2, atol=2e-2), float(jnp.max(jnp.abs(out2 - ref2)))

    print("KERNEL_OK")
</pallas_src>

<mosaic_0001>
module attributes {stable_mosaic.version = 11 : i64} {
  func.func @perception_encoder_kernel(%arg0: i32, %arg1: memref<8x2x768xf32, #tpu.memory_space<vmem>>, %arg2: memref<1280x256xbf16, #tpu.memory_space<vmem>>, %arg3: memref<256x768xbf16, #tpu.memory_space<vmem>>, %arg4: memref<8x768xf32, #tpu.memory_space<vmem>>, %arg5: memref<8x256xf32, #tpu.memory_space<vmem>>) attributes {dimension_semantics = [#tpu.dimension_semantics<arbitrary>], iteration_bounds = array<i64: 1>, scalar_prefetch = 0 : i64, scratch_operands = 0 : i64, tpu.core_type = #tpu.core_type<tc>, window_params = [{pipeline_mode = #tpu.pipeline_mode<synchronous>, transform_indices = @transform_0, window_bounds = array<i64: 8, 2, 768>}, {pipeline_mode = #tpu.pipeline_mode<synchronous>, transform_indices = @transform_1, window_bounds = array<i64: 1280, 256>}, {pipeline_mode = #tpu.pipeline_mode<synchronous>, transform_indices = @transform_2, window_bounds = array<i64: 256, 768>}, {pipeline_mode = #tpu.pipeline_mode<synchronous>, transform_indices = @transform_3, window_bounds = array<i64: 8, 768>}, {pipeline_mode = #tpu.pipeline_mode<synchronous>, transform_indices = @transform_4, window_bounds = array<i64: 8, 256>}]} {
    %c0 = arith.constant 0 : index
    %c0_0 = arith.constant 0 : index
    %0 = vector.load %arg2[%c0, %c0_0] : memref<1280x256xbf16, #tpu.memory_space<vmem>>, vector<768x256xbf16>
    %c768 = arith.constant 768 : index
    %c0_1 = arith.constant 0 : index
    %1 = vector.load %arg2[%c768, %c0_1] : memref<1280x256xbf16, #tpu.memory_space<vmem>>, vector<256x256xbf16>
    %c0_2 = arith.constant 0 : index
    %c0_3 = arith.constant 0 : index
    %2 = vector.load %arg3[%c0_2, %c0_3] : memref<256x768xbf16, #tpu.memory_space<vmem>>, vector<256x768xbf16>
    %c0_4 = arith.constant 0 : index
    %c0_5 = arith.constant 0 : index
    %3 = vector.load %arg4[%c0_4, %c0_5] : memref<8x768xf32, #tpu.memory_space<vmem>>, vector<1x768xf32>
    %c1 = arith.constant 1 : index
    %c0_6 = arith.constant 0 : index
    %4 = vector.load %arg4[%c1, %c0_6] : memref<8x768xf32, #tpu.memory_space<vmem>>, vector<1x256xf32>
    %c2 = arith.constant 2 : index
    %c0_7 = arith.constant 0 : index
    %5 = vector.load %arg4[%c2, %c0_7] : memref<8x768xf32, #tpu.memory_space<vmem>>, vector<1x256xf32>
    %c3 = arith.constant 3 : index
    %c0_8 = arith.constant 0 : index
    %6 = vector.load %arg4[%c3, %c0_8] : memref<8x768xf32, #tpu.memory_space<vmem>>, vector<1x256xf32>
    %c4 = arith.constant 4 : index
    %c0_9 = arith.constant 0 : index
    %7 = vector.load %arg4[%c4, %c0_9] : memref<8x768xf32, #tpu.memory_space<vmem>>, vector<1x256xf32>
    %c5 = arith.constant 5 : index
    %c0_10 = arith.constant 0 : index
    %8 = vector.load %arg4[%c5, %c0_10] : memref<8x768xf32, #tpu.memory_space<vmem>>, vector<1x256xf32>
    %c0_11 = arith.constant 0 : index
    %c0_12 = arith.constant 0 : index
    %c0_13 = arith.constant 0 : index
    %9 = vector.load %arg1[%c0_11, %c0_12, %c0_13] : memref<8x2x768xf32, #tpu.memory_space<vmem>>, vector<8x2x768xf32>
    %cst = arith.constant 0.000000e+00 : f32
    %10 = vector.broadcast %cst : f32 to vector<8x256xf32>
    %11 = vector.extract_strided_slice %9 {offsets = [0, 0, 0], sizes = [8, 1, 768], strides = [1, 1, 1]} : vector<8x2x768xf32> to vector<8x1x768xf32>
    %12 = vector.shape_cast %11 : vector<8x1x768xf32> to vector<8x768xf32>
    %13 = arith.truncf %12 : vector<8x768xf32> to vector<8x768xbf16>
    %cst_14 = arith.constant dense<0.000000e+00> : vector<8x256xf32>
    %14 = tpu.matmul %13, %0, %cst_14 {dimension_numbers = #tpu.dot_dimension_numbers<[1], [0], [0], [1], [0, 0, 1, 1], [], []>} : vector<8x768xbf16>, vector<768x256xbf16>, vector<8x256xf32> -> vector<8x256xf32>
    %15 = vector.broadcast %4 : vector<1x256xf32> to vector<8x256xf32>
    %16 = arith.addf %14, %15 : vector<8x256xf32>
    %cst_15 = arith.constant dense<0.000000e+00> : vector<8xf32>
    %17 = vector.multi_reduction <add>, %16, %cst_15 [1] : vector<8x256xf32> to vector<8xf32>
    %18 = vector.shape_cast %17 : vector<8xf32> to vector<8x1xf32>
    %cst_16 = arith.constant 2.560000e+02 : f32
    %19 = vector.broadcast %cst_16 : f32 to vector<8x1xf32>
    %20 = arith.divf %18, %19 : vector<8x1xf32>
    %21 = vector.broadcast %20 : vector<8x1xf32> to vector<8x256xf32>
    %22 = arith.subf %16, %21 : vector<8x256xf32>
    %23 = arith.mulf %22, %22 : vector<8x256xf32>
    %cst_17 = arith.constant dense<0.000000e+00> : vector<8xf32>
    %24 = vector.multi_reduction <add>, %23, %cst_17 [1] : vector<8x256xf32> to vector<8xf32>
    %25 = vector.shape_cast %24 : vector<8xf32> to vector<8x1xf32>
    %cst_18 = arith.constant 2.560000e+02 : f32
    %26 = vector.broadcast %cst_18 : f32 to vector<8x1xf32>
    %27 = arith.divf %25, %26 : vector<8x1xf32>
    %28 = vector.broadcast %20 : vector<8x1xf32> to vector<8x256xf32>
    %29 = arith.subf %16, %28 : vector<8x256xf32>
    %cst_19 = arith.constant 9.99999974E-6 : f32
    %30 = vector.broadcast %cst_19 : f32 to vector<8x1xf32>
    %31 = arith.addf %27, %30 : vector<8x1xf32>
    %32 = math.rsqrt %31 : vector<8x1xf32>
    %33 = vector.broadcast %32 : vector<8x1xf32> to vector<8x256xf32>
    %34 = arith.mulf %29, %33 : vector<8x256xf32>
    %35 = vector.broadcast %5 : vector<1x256xf32> to vector<8x256xf32>
    %36 = arith.mulf %34, %35 : vector<8x256xf32>
    %37 = vector.broadcast %6 : vector<1x256xf32> to vector<8x256xf32>
    %38 = arith.addf %36, %37 : vector<8x256xf32>
    %cst_20 = arith.constant 0.000000e+00 : f32
    %39 = vector.broadcast %cst_20 : f32 to vector<8x256xf32>
    %40 = arith.maximumf %38, %39 : vector<8x256xf32>
    %41 = arith.truncf %40 : vector<8x256xf32> to vector<8x256xbf16>
    %cst_21 = arith.constant dense<0.000000e+00> : vector<8x256xf32>
    %42 = tpu.matmul %41, %1, %cst_21 {dimension_numbers = #tpu.dot_dimension_numbers<[1], [0], [0], [1], [0, 0, 1, 1], [], []>} : vector<8x256xbf16>, vector<256x256xbf16>, vector<8x256xf32> -> vector<8x256xf32>
    %43 = vector.broadcast %7 : vector<1x256xf32> to vector<8x256xf32>
    %44 = arith.addf %42, %43 : vector<8x256xf32>
    %45 = arith.truncf %44 : vector<8x256xf32> to vector<8x256xbf16>
    %cst_22 = arith.constant dense<0.000000e+00> : vector<8x768xf32>
    %46 = tpu.matmul %45, %2, %cst_22 {dimension_numbers = #tpu.dot_dimension_numbers<[1], [0], [0], [1], [0, 0, 1, 1], [], []>} : vector<8x256xbf16>, vector<256x768xbf16>, vector<8x768xf32> -> vector<8x768xf32>
    %47 = vector.broadcast %3 : vector<1x768xf32> to vector<8x768xf32>
    %48 = arith.addf %46, %47 : vector<8x768xf32>
    %49 = vector.extract_strided_slice %48 {offsets = [0, 0], sizes = [8, 256], strides = [1, 1]} : vector<8x768xf32> to vector<8x256xf32>
    %cst_23 = arith.constant 0.176776692 : f32
    %50 = vector.broadcast %cst_23 : f32 to vector<8x256xf32>
    %51 = arith.mulf %49, %50 : vector<8x256xf32>
    %52 = vector.extract_strided_slice %48 {offsets = [0, 256], sizes = [8, 256], strides = [1, 1]} : vector<8x768xf32> to vector<8x256xf32>
    %53 = vector.extract_strided_slice %48 {offsets = [0, 512], sizes = [8, 256], strides = [1, 1]} : vector<8x768xf32> to vector<8x256xf32>
    %cst_24 = arith.constant 0.000000e+00 : f32
    %54 = vector.broadcast %cst_24 : f32 to vector<8x256xf32>
    %55 = vector.extract_strided_slice %51 {offsets = [0, 0], sizes = [8, 32], strides = [1, 1]} : vector<8x256xf32> to vector<8x32xf32>
    %56 = vector.extract_strided_slice %52 {offsets = [0, 0], sizes = [8, 32], strides = [1, 1]} : vector<8x256xf32> to vector<8x32xf32>
    %57 = vector.extract_strided_slice %53 {offsets = [0, 0], sizes = [8, 32], strides = [1, 1]} : vector<8x256xf32> to vector<8x32xf32>
    %cst_25 = arith.constant dense<0.000000e+00> : vector<8x8xf32>
    %58 = tpu.matmul %55, %56, %cst_25 {dimension_numbers = #tpu.dot_dimension_numbers<[1], [1], [0], [0], [0, 0, 1, 0], [], []>} : vector<8x32xf32>, vector<8x32xf32>, vector<8x8xf32> -> vector<8x8xf32>
    %cst_26 = arith.constant dense<0xFF800000> : vector<8xf32>
    %59 = vector.multi_reduction <maximumf>, %58, %cst_26 [1] : vector<8x8xf32> to vector<8xf32>
    %60 = vector.shape_cast %59 : vector<8xf32> to vector<8x1xf32>
    %61 = vector.broadcast %60 : vector<8x1xf32> to vector<8x8xf32>
    %62 = arith.subf %58, %61 : vector<8x8xf32>
    %63 = math.exp %62 : vector<8x8xf32>
    %cst_27 = arith.constant dense<0.000000e+00> : vector<8xf32>
    %64 = vector.multi_reduction <add>, %63, %cst_27 [1] : vector<8x8xf32> to vector<8xf32>
    %65 = vector.shape_cast %64 : vector<8xf32> to vector<8x1xf32>
    %66 = tpu.reciprocal %65 {approx = true} : vector<8x1xf32> -> vector<8x1xf32>
    %67 = vector.broadcast %66 : vector<8x1xf32> to vector<8x8xf32>
    %68 = arith.mulf %63, %67 : vector<8x8xf32>
    %cst_28 = arith.constant dense<0.000000e+00> : vector<8x32xf32>
    %69 = tpu.matmul %68, %57, %cst_28 {dimension_numbers = #tpu.dot_dimension_numbers<[1], [0], [0], [1], [0, 0, 1, 1], [], []>} : vector<8x8xf32>, vector<8x32xf32>, vector<8x32xf32> -> vector<8x32xf32>
    %c1024 = arith.constant 1024 : index
    %c0_29 = arith.constant 0 : index
    %70 = vector.load %arg2[%c1024, %c0_29] : memref<1280x256xbf16, #tpu.memory_space<vmem>>, vector<32x256xbf16>
    %71 = arith.truncf %69 : vector<8x32xf32> to vector<8x32xbf16>
    %cst_30 = arith.constant dense<0.000000e+00> : vector<8x256xf32>
    %72 = tpu.matmul %71, %70, %cst_30 {dimension_numbers = #tpu.dot_dimension_numbers<[1], [0], [0], [1], [0, 0, 1, 1], [], []>} : vector<8x32xbf16>, vector<32x256xbf16>, vector<8x256xf32> -> vector<8x256xf32>
    %73 = arith.addf %54, %72 : vector<8x256xf32>
    %74 = vector.extract_strided_slice %51 {offsets = [0, 32], sizes = [8, 32], strides = [1, 1]} : vector<8x256xf32> to vector<8x32xf32>
    %75 = vector.extract_strided_slice %52 {offsets = [0, 32], sizes = [8, 32], strides = [1, 1]} : vector<8x256xf32> to vector<8x32xf32>
    %76 = vector.extract_strided_slice %53 {offsets = [0, 32], sizes = [8, 32], strides = [1, 1]} : vector<8x256xf32> to vector<8x32xf32>
    %cst_31 = arith.constant dense<0.000000e+00> : vector<8x8xf32>
    %77 = tpu.matmul %74, %75, %cst_31 {dimension_numbers = #tpu.dot_dimension_numbers<[1], [1], [0], [0], [0, 0, 1, 0], [], []>} : vector<8x32xf32>, vector<8x32xf32>, vector<8x8xf32> -> vector<8x8xf32>
    %cst_32 = arith.constant dense<0xFF800000> : vector<8xf32>
    %78 = vector.multi_reduction <maximumf>, %77, %cst_32 [1] : vector<8x8xf32> to vector<8xf32>
    %79 = vector.shape_cast %78 : vector<8xf32> to vector<8x1xf32>
    %80 = vector.broadcast %79 : vector<8x1xf32> to vector<8x8xf32>
    %81 = arith.subf %77, %80 : vector<8x8xf32>
    %82 = math.exp %81 : vector<8x8xf32>
    %cst_33 = arith.constant dense<0.000000e+00> : vector<8xf32>
    %83 = vector.multi_reduction <add>, %82, %cst_33 [1] : vector<8x8xf32> to vector<8xf32>
    %84 = vector.shape_cast %83 : vector<8xf32> to vector<8x1xf32>
    %85 = tpu.reciprocal %84 {approx = true} : vector<8x1xf32> -> vector<8x1xf32>
    %86 = vector.broadcast %85 : vector<8x1xf32> to vector<8x8xf32>
    %87 = arith.mulf %82, %86 : vector<8x8xf32>
    %cst_34 = arith.constant dense<0.000000e+00> : vector<8x32xf32>
    %88 = tpu.matmul %87, %76, %cst_34 {dimension_numbers = #tpu.dot_dimension_numbers<[1], [0], [0], [1], [0, 0, 1, 1], [], []>} : vector<8x8xf32>, vector<8x32xf32>, vector<8x32xf32> -> vector<8x32xf32>
    %c1056 = arith.constant 1056 : index
    %c0_35 = arith.constant 0 : index
    %89 = vector.load %arg2[%c1056, %c0_35] : memref<1280x256xbf16, #tpu.memory_space<vmem>>, vector<32x256xbf16>
    %90 = arith.truncf %88 : vector<8x32xf32> to vector<8x32xbf16>
    %cst_36 = arith.constant dense<0.000000e+00> : vector<8x256xf32>
    %91 = tpu.matmul %90, %89, %cst_36 {dimension_numbers = #tpu.dot_dimension_numbers<[1], [0], [0], [1], [0, 0, 1, 1], [], []>} : vector<8x32xbf16>, vector<32x256xbf16>, vector<8x256xf32> -> vector<8x256xf32>
    %92 = arith.addf %73, %91 : vector<8x256xf32>
    %93 = vector.extract_strided_slice %51 {offsets = [0, 64], sizes = [8, 32], strides = [1, 1]} : vector<8x256xf32> to vector<8x32xf32>
    %94 = vector.extract_strided_slice %52 {offsets = [0, 64], sizes = [8, 32], strides = [1, 1]} : vector<8x256xf32> to vector<8x32xf32>
    %95 = vector.extract_strided_slice %53 {offsets = [0, 64], sizes = [8, 32], strides = [1, 1]} : vector<8x256xf32> to vector<8x32xf32>
    %cst_37 = arith.constant dense<0.000000e+00> : vector<8x8xf32>
    %96 = tpu.matmul %93, %94, %cst_37 {dimension_numbers = #tpu.dot_dimension_numbers<[1], [1], [0], [0], [0, 0, 1, 0], [], []>} : vector<8x32xf32>, vector<8x32xf32>, vector<8x8xf32> -> vector<8x8xf32>
    %cst_38 = arith.constant dense<0xFF800000> : vector<8xf32>
    %97 = vector.multi_reduction <maximumf>, %96, %cst_38 [1] : vector<8x8xf32> to vector<8xf32>
    %98 = vector.shape_cast %97 : vector<8xf32> to vector<8x1xf32>
    %99 = vector.broadcast %98 : vector<8x1xf32> to vector<8x8xf32>
    %100 = arith.subf %96, %99 : vector<8x8xf32>
    %101 = math.exp %100 : vector<8x8xf32>
    %cst_39 = arith.constant dense<0.000000e+00> : vector<8xf32>
    %102 = vector.multi_reduction <add>, %101, %cst_39 [1] : vector<8x8xf32> to vector<8xf32>
    %103 = vector.shape_cast %102 : vector<8xf32> to vector<8x1xf32>
    %104 = tpu.reciprocal %103 {approx = true} : vector<8x1xf32> -> vector<8x1xf32>
    %105 = vector.broadcast %104 : vector<8x1xf32> to vector<8x8xf32>
    %106 = arith.mulf %101, %105 : vector<8x8xf32>
    %cst_40 = arith.constant dense<0.000000e+00> : vector<8x32xf32>
    %107 = tpu.matmul %106, %95, %cst_40 {dimension_numbers = #tpu.dot_dimension_numbers<[1], [0], [0], [1], [0, 0, 1, 1], [], []>} : vector<8x8xf32>, vector<8x32xf32>, vector<8x32xf32> -> vector<8x32xf32>
    %c1088 = arith.constant 1088 : index
    %c0_41 = arith.constant 0 : index
    %108 = vector.load %arg2[%c1088, %c0_41] : memref<1280x256xbf16, #tpu.memory_space<vmem>>, vector<32x256xbf16>
    %109 = arith.truncf %107 : vector<8x32xf32> to vector<8x32xbf16>
    %cst_42 = arith.constant dense<0.000000e+00> : vector<8x256xf32>
    %110 = tpu.matmul %109, %108, %cst_42 {dimension_numbers = #tpu.dot_dimension_numbers<[1], [0], [0], [1], [0, 0, 1, 1], [], []>} : vector<8x32xbf16>, vector<32x256xbf16>, vector<8x256xf32> -> vector<8x256xf32>
    %111 = arith.addf %92, %110 : vector<8x256xf32>
    %112 = vector.extract_strided_slice %51 {offsets = [0, 96], sizes = [8, 32], strides = [1, 1]} : vector<8x256xf32> to vector<8x32xf32>
    %113 = vector.extract_strided_slice %52 {offsets = [0, 96], sizes = [8, 32], strides = [1, 1]} : vector<8x256xf32> to vector<8x32xf32>
    %114 = vector.extract_strided_slice %53 {offsets = [0, 96], sizes = [8, 32], strides = [1, 1]} : vector<8x256xf32> to vector<8x32xf32>
    %cst_43 = arith.constant dense<0.000000e+00> : vector<8x8xf32>
    %115 = tpu.matmul %112, %113, %cst_43 {dimension_numbers = #tpu.dot_dimension_numbers<[1], [1], [0], [0], [0, 0, 1, 0], [], []>} : vector<8x32xf32>, vector<8x32xf32>, vector<8x8xf32> -> vector<8x8xf32>
    %cst_44 = arith.constant dense<0xFF800000> : vector<8xf32>
    %116 = vector.multi_reduction <maximumf>, %115, %cst_44 [1] : vector<8x8xf32> to vector<8xf32>
    %117 = vector.shape_cast %116 : vector<8xf32> to vector<8x1xf32>
    %118 = vector.broadcast %117 : vector<8x1xf32> to vector<8x8xf32>
    %119 = arith.subf %115, %118 : vector<8x8xf32>
    %120 = math.exp %119 : vector<8x8xf32>
    %cst_45 = arith.constant dense<0.000000e+00> : vector<8xf32>
    %121 = vector.multi_reduction <add>, %120, %cst_45 [1] : vector<8x8xf32> to vector<8xf32>
    %122 = vector.shape_cast %121 : vector<8xf32> to vector<8x1xf32>
    %123 = tpu.reciprocal %122 {approx = true} : vector<8x1xf32> -> vector<8x1xf32>
    %124 = vector.broadcast %123 : vector<8x1xf32> to vector<8x8xf32>
    %125 = arith.mulf %120, %124 : vector<8x8xf32>
    %cst_46 = arith.constant dense<0.000000e+00> : vector<8x32xf32>
    %126 = tpu.matmul %125, %114, %cst_46 {dimension_numbers = #tpu.dot_dimension_numbers<[1], [0], [0], [1], [0, 0, 1, 1], [], []>} : vector<8x8xf32>, vector<8x32xf32>, vector<8x32xf32> -> vector<8x32xf32>
    %c1120 = arith.constant 1120 : index
    %c0_47 = arith.constant 0 : index
    %127 = vector.load %arg2[%c1120, %c0_47] : memref<1280x256xbf16, #tpu.memory_space<vmem>>, vector<32x256xbf16>
    %128 = arith.truncf %126 : vector<8x32xf32> to vector<8x32xbf16>
    %cst_48 = arith.constant dense<0.000000e+00> : vector<8x256xf32>
    %129 = tpu.matmul %128, %127, %cst_48 {dimension_numbers = #tpu.dot_dimension_numbers<[1], [0], [0], [1], [0, 0, 1, 1], [], []>} : vector<8x32xbf16>, vector<32x256xbf16>, vector<8x256xf32> -> vector<8x256xf32>
    %130 = arith.addf %111, %129 : vector<8x256xf32>
    %131 = vector.extract_strided_slice %51 {offsets = [0, 128], sizes = [8, 32], strides = [1, 1]} : vector<8x256xf32> to vector<8x32xf32>
    %132 = vector.extract_strided_slice %52 {offsets = [0, 128], sizes = [8, 32], strides = [1, 1]} : vector<8x256xf32> to vector<8x32xf32>
    %133 = vector.extract_strided_slice %53 {offsets = [0, 128], sizes = [8, 32], strides = [1, 1]} : vector<8x256xf32> to vector<8x32xf32>
    %cst_49 = arith.constant dense<0.000000e+00> : vector<8x8xf32>
    %134 = tpu.matmul %131, %132, %cst_49 {dimension_numbers = #tpu.dot_dimension_numbers<[1], [1], [0], [0], [0, 0, 1, 0], [], []>} : vector<8x32xf32>, vector<8x32xf32>, vector<8x8xf32> -> vector<8x8xf32>
    %cst_50 = arith.constant dense<0xFF800000> : vector<8xf32>
    %135 = vector.multi_reduction <maximumf>, %134, %cst_50 [1] : vector<8x8xf32> to vector<8xf32>
    %136 = vector.shape_cast %135 : vector<8xf32> to vector<8x1xf32>
    %137 = vector.broadcast %136 : vector<8x1xf32> to vector<8x8xf32>
    %138 = arith.subf %134, %137 : vector<8x8xf32>
    %139 = math.exp %138 : vector<8x8xf32>
    %cst_51 = arith.constant dense<0.000000e+00> : vector<8xf32>
    %140 = vector.multi_reduction <add>, %139, %cst_51 [1] : vector<8x8xf32> to vector<8xf32>
    %141 = vector.shape_cast %140 : vector<8xf32> to vector<8x1xf32>
    %142 = tpu.reciprocal %141 {approx = true} : vector<8x1xf32> -> vector<8x1xf32>
    %143 = vector.broadcast %142 : vector<8x1xf32> to vector<8x8xf32>
    %144 = arith.mulf %139, %143 : vector<8x8xf32>
    %cst_52 = arith.constant dense<0.000000e+00> : vector<8x32xf32>
    %145 = tpu.matmul %144, %133, %cst_52 {dimension_numbers = #tpu.dot_dimension_numbers<[1], [0], [0], [1], [0, 0, 1, 1], [], []>} : vector<8x8xf32>, vector<8x32xf32>, vector<8x32xf32> -> vector<8x32xf32>
    %c1152 = arith.constant 1152 : index
    %c0_53 = arith.constant 0 : index
    %146 = vector.load %arg2[%c1152, %c0_53] : memref<1280x256xbf16, #tpu.memory_space<vmem>>, vector<32x256xbf16>
    %147 = arith.truncf %145 : vector<8x32xf32> to vector<8x32xbf16>
    %cst_54 = arith.constant dense<0.000000e+00> : vector<8x256xf32>
    %148 = tpu.matmul %147, %146, %cst_54 {dimension_numbers = #tpu.dot_dimension_numbers<[1], [0], [0], [1], [0, 0, 1, 1], [], []>} : vector<8x32xbf16>, vector<32x256xbf16>, vector<8x256xf32> -> vector<8x256xf32>
    %149 = arith.addf %130, %148 : vector<8x256xf32>
    %150 = vector.extract_strided_slice %51 {offsets = [0, 160], sizes = [8, 32], strides = [1, 1]} : vector<8x256xf32> to vector<8x32xf32>
    %151 = vector.extract_strided_slice %52 {offsets = [0, 160], sizes = [8, 32], strides = [1, 1]} : vector<8x256xf32> to vector<8x32xf32>
    %152 = vector.extract_strided_slice %53 {offsets = [0, 160], sizes = [8, 32], strides = [1, 1]} : vector<8x256xf32> to vector<8x32xf32>
    %cst_55 = arith.constant dense<0.000000e+00> : vector<8x8xf32>
    %153 = tpu.matmul %150, %151, %cst_55 {dimension_numbers = #tpu.dot_dimension_numbers<[1], [1], [0], [0], [0, 0, 1, 0], [], []>} : vector<8x32xf32>, vector<8x32xf32>, vector<8x8xf32> -> vector<8x8xf32>
    %cst_56 = arith.constant dense<0xFF800000> : vector<8xf32>
    %154 = vector.multi_reduction <maximumf>, %153, %cst_56 [1] : vector<8x8xf32> to vector<8xf32>
    %155 = vector.shape_cast %154 : vector<8xf32> to vector<8x1xf32>
    %156 = vector.broadcast %155 : vector<8x1xf32> to vector<8x8xf32>
    %157 = arith.subf %153, %156 : vector<8x8xf32>
    %158 = math.exp %157 : vector<8x8xf32>
    %cst_57 = arith.constant dense<0.000000e+00> : vector<8xf32>
    %159 = vector.multi_reduction <add>, %158, %cst_57 [1] : vector<8x8xf32> to vector<8xf32>
    %160 = vector.shape_cast %159 : vector<8xf32> to vector<8x1xf32>
    %161 = tpu.reciprocal %160 {approx = true} : vector<8x1xf32> -> vector<8x1xf32>
    %162 = vector.broadcast %161 : vector<8x1xf32> to vector<8x8xf32>
    %163 = arith.mulf %158, %162 : vector<8x8xf32>
    %cst_58 = arith.constant dense<0.000000e+00> : vector<8x32xf32>
    %164 = tpu.matmul %163, %152, %cst_58 {dimension_numbers = #tpu.dot_dimension_numbers<[1], [0], [0], [1], [0, 0, 1, 1], [], []>} : vector<8x8xf32>, vector<8x32xf32>, vector<8x32xf32> -> vector<8x32xf32>
    %c1184 = arith.constant 1184 : index
    %c0_59 = arith.constant 0 : index
    %165 = vector.load %arg2[%c1184, %c0_59] : memref<1280x256xbf16, #tpu.memory_space<vmem>>, vector<32x256xbf16>
    %166 = arith.truncf %164 : vector<8x32xf32> to vector<8x32xbf16>
    %cst_60 = arith.constant dense<0.000000e+00> : vector<8x256xf32>
    %167 = tpu.matmul %166, %165, %cst_60 {dimension_numbers = #tpu.dot_dimension_numbers<[1], [0], [0], [1], [0, 0, 1, 1], [], []>} : vector<8x32xbf16>, vector<32x256xbf16>, vector<8x256xf32> -> vector<8x256xf32>
    %168 = arith.addf %149, %167 : vector<8x256xf32>
    %169 = vector.extract_strided_slice %51 {offsets = [0, 192], sizes = [8, 32], strides = [1, 1]} : vector<8x256xf32> to vector<8x32xf32>
    %170 = vector.extract_strided_slice %52 {offsets = [0, 192], sizes = [8, 32], strides = [1, 1]} : vector<8x256xf32> to vector<8x32xf32>
    %171 = vector.extract_strided_slice %53 {offsets = [0, 192], sizes = [8, 32], strides = [1, 1]} : vector<8x256xf32> to vector<8x32xf32>
    %cst_61 = arith.constant dense<0.000000e+00> : vector<8x8xf32>
    %172 = tpu.matmul %169, %170, %cst_61 {dimension_numbers = #tpu.dot_dimension_numbers<[1], [1], [0], [0], [0, 0, 1, 0], [], []>} : vector<8x32xf32>, vector<8x32xf32>, vector<8x8xf32> -> vector<8x8xf32>
    %cst_62 = arith.constant dense<0xFF800000> : vector<8xf32>
    %173 = vector.multi_reduction <maximumf>, %172, %cst_62 [1] : vector<8x8xf32> to vector<8xf32>
    %174 = vector.shape_cast %173 : vector<8xf32> to vector<8x1xf32>
    %175 = vector.broadcast %174 : vector<8x1xf32> to vector<8x8xf32>
    %176 = arith.subf %172, %175 : vector<8x8xf32>
    %177 = math.exp %176 : vector<8x8xf32>
    %cst_63 = arith.constant dense<0.000000e+00> : vector<8xf32>
    %178 = vector.multi_reduction <add>, %177, %cst_63 [1] : vector<8x8xf32> to vector<8xf32>
    %179 = vector.shape_cast %178 : vector<8xf32> to vector<8x1xf32>
    %180 = tpu.reciprocal %179 {approx = true} : vector<8x1xf32> -> vector<8x1xf32>
    %181 = vector.broadcast %180 : vector<8x1xf32> to vector<8x8xf32>
    %182 = arith.mulf %177, %181 : vector<8x8xf32>
    %cst_64 = arith.constant dense<0.000000e+00> : vector<8x32xf32>
    %183 = tpu.matmul %182, %171, %cst_64 {dimension_numbers = #tpu.dot_dimension_numbers<[1], [0], [0], [1], [0, 0, 1, 1], [], []>} : vector<8x8xf32>, vector<8x32xf32>, vector<8x32xf32> -> vector<8x32xf32>
    %c1216 = arith.constant 1216 : index
    %c0_65 = arith.constant 0 : index
    %184 = vector.load %arg2[%c1216, %c0_65] : memref<1280x256xbf16, #tpu.memory_space<vmem>>, vector<32x256xbf16>
    %185 = arith.truncf %183 : vector<8x32xf32> to vector<8x32xbf16>
    %cst_66 = arith.constant dense<0.000000e+00> : vector<8x256xf32>
    %186 = tpu.matmul %185, %184, %cst_66 {dimension_numbers = #tpu.dot_dimension_numbers<[1], [0], [0], [1], [0, 0, 1, 1], [], []>} : vector<8x32xbf16>, vector<32x256xbf16>, vector<8x256xf32> -> vector<8x256xf32>
    %187 = arith.addf %168, %186 : vector<8x256xf32>
    %188 = vector.extract_strided_slice %51 {offsets = [0, 224], sizes = [8, 32], strides = [1, 1]} : vector<8x256xf32> to vector<8x32xf32>
    %189 = vector.extract_strided_slice %52 {offsets = [0, 224], sizes = [8, 32], strides = [1, 1]} : vector<8x256xf32> to vector<8x32xf32>
    %190 = vector.extract_strided_slice %53 {offsets = [0, 224], sizes = [8, 32], strides = [1, 1]} : vector<8x256xf32> to vector<8x32xf32>
    %cst_67 = arith.constant dense<0.000000e+00> : vector<8x8xf32>
    %191 = tpu.matmul %188, %189, %cst_67 {dimension_numbers = #tpu.dot_dimension_numbers<[1], [1], [0], [0], [0, 0, 1, 0], [], []>} : vector<8x32xf32>, vector<8x32xf32>, vector<8x8xf32> -> vector<8x8xf32>
    %cst_68 = arith.constant dense<0xFF800000> : vector<8xf32>
    %192 = vector.multi_reduction <maximumf>, %191, %cst_68 [1] : vector<8x8xf32> to vector<8xf32>
    %193 = vector.shape_cast %192 : vector<8xf32> to vector<8x1xf32>
    %194 = vector.broadcast %193 : vector<8x1xf32> to vector<8x8xf32>
    %195 = arith.subf %191, %194 : vector<8x8xf32>
    %196 = math.exp %195 : vector<8x8xf32>
    %cst_69 = arith.constant dense<0.000000e+00> : vector<8xf32>
    %197 = vector.multi_reduction <add>, %196, %cst_69 [1] : vector<8x8xf32> to vector<8xf32>
    %198 = vector.shape_cast %197 : vector<8xf32> to vector<8x1xf32>
    %199 = tpu.reciprocal %198 {approx = true} : vector<8x1xf32> -> vector<8x1xf32>
    %200 = vector.broadcast %199 : vector<8x1xf32> to vector<8x8xf32>
    %201 = arith.mulf %196, %200 : vector<8x8xf32>
    %cst_70 = arith.constant dense<0.000000e+00> : vector<8x32xf32>
    %202 = tpu.matmul %201, %190, %cst_70 {dimension_numbers = #tpu.dot_dimension_numbers<[1], [0], [0], [1], [0, 0, 1, 1], [], []>} : vector<8x8xf32>, vector<8x32xf32>, vector<8x32xf32> -> vector<8x32xf32>
    %c1248 = arith.constant 1248 : index
    %c0_71 = arith.constant 0 : index
    %203 = vector.load %arg2[%c1248, %c0_71] : memref<1280x256xbf16, #tpu.memory_space<vmem>>, vector<32x256xbf16>
    %204 = arith.truncf %202 : vector<8x32xf32> to vector<8x32xbf16>
    %cst_72 = arith.constant dense<0.000000e+00> : vector<8x256xf32>
    %205 = tpu.matmul %204, %203, %cst_72 {dimension_numbers = #tpu.dot_dimension_numbers<[1], [0], [0], [1], [0, 0, 1, 1], [], []>} : vector<8x32xbf16>, vector<32x256xbf16>, vector<8x256xf32> -> vector<8x256xf32>
    %206 = arith.addf %187, %205 : vector<8x256xf32>
    %207 = arith.addf %10, %206 : vector<8x256xf32>
    %208 = vector.broadcast %8 : vector<1x256xf32> to vector<8x256xf32>
    %209 = arith.addf %207, %208 : vector<8x256xf32>
    %210 = vector.extract_strided_slice %9 {offsets = [0, 1, 0], sizes = [8, 1, 768], strides = [1, 1, 1]} : vector<8x2x768xf32> to vector<8x1x768xf32>
    %211 = vector.shape_cast %210 : vector<8x1x768xf32> to vector<8x768xf32>
    %212 = arith.truncf %211 : vector<8x768xf32> to vector<8x768xbf16>
    %cst_73 = arith.constant dense<0.000000e+00> : vector<8x256xf32>
    %213 = tpu.matmul %212, %0, %cst_73 {dimension_numbers = #tpu.dot_dimension_numbers<[1], [0], [0], [1], [0, 0, 1, 1], [], []>} : vector<8x768xbf16>, vector<768x256xbf16>, vector<8x256xf32> -> vector<8x256xf32>
    %214 = vector.broadcast %4 : vector<1x256xf32> to vector<8x256xf32>
    %215 = arith.addf %213, %214 : vector<8x256xf32>
    %cst_74 = arith.constant dense<0.000000e+00> : vector<8xf32>
    %216 = vector.multi_reduction <add>, %215, %cst_74 [1] : vector<8x256xf32> to vector<8xf32>
    %217 = vector.shape_cast %216 : vector<8xf32> to vector<8x1xf32>
    %cst_75 = arith.constant 2.560000e+02 : f32
    %218 = vector.broadcast %cst_75 : f32 to vector<8x1xf32>
    %219 = arith.divf %217, %218 : vector<8x1xf32>
    %220 = vector.broadcast %219 : vector<8x1xf32> to vector<8x256xf32>
    %221 = arith.subf %215, %220 : vector<8x256xf32>
    %222 = arith.mulf %221, %221 : vector<8x256xf32>
    %cst_76 = arith.constant dense<0.000000e+00> : vector<8xf32>
    %223 = vector.multi_reduction <add>, %222, %cst_76 [1] : vector<8x256xf32> to vector<8xf32>
    %224 = vector.shape_cast %223 : vector<8xf32> to vector<8x1xf32>
    %cst_77 = arith.constant 2.560000e+02 : f32
    %225 = vector.broadcast %cst_77 : f32 to vector<8x1xf32>
    %226 = arith.divf %224, %225 : vector<8x1xf32>
    %227 = vector.broadcast %219 : vector<8x1xf32> to vector<8x256xf32>
    %228 = arith.subf %215, %227 : vector<8x256xf32>
    %cst_78 = arith.constant 9.99999974E-6 : f32
    %229 = vector.broadcast %cst_78 : f32 to vector<8x1xf32>
    %230 = arith.addf %226, %229 : vector<8x1xf32>
    %231 = math.rsqrt %230 : vector<8x1xf32>
    %232 = vector.broadcast %231 : vector<8x1xf32> to vector<8x256xf32>
    %233 = arith.mulf %228, %232 : vector<8x256xf32>
    %234 = vector.broadcast %5 : vector<1x256xf32> to vector<8x256xf32>
    %235 = arith.mulf %233, %234 : vector<8x256xf32>
    %236 = vector.broadcast %6 : vector<1x256xf32> to vector<8x256xf32>
    %237 = arith.addf %235, %236 : vector<8x256xf32>
    %cst_79 = arith.constant 0.000000e+00 : f32
    %238 = vector.broadcast %cst_79 : f32 to vector<8x256xf32>
    %239 = arith.maximumf %237, %238 : vector<8x256xf32>
    %240 = arith.truncf %239 : vector<8x256xf32> to vector<8x256xbf16>
    %cst_80 = arith.constant dense<0.000000e+00> : vector<8x256xf32>
    %241 = tpu.matmul %240, %1, %cst_80 {dimension_numbers = #tpu.dot_dimension_numbers<[1], [0], [0], [1], [0, 0, 1, 1], [], []>} : vector<8x256xbf16>, vector<256x256xbf16>, vector<8x256xf32> -> vector<8x256xf32>
    %242 = vector.broadcast %7 : vector<1x256xf32> to vector<8x256xf32>
    %243 = arith.addf %241, %242 : vector<8x256xf32>
    %244 = arith.truncf %243 : vector<8x256xf32> to vector<8x256xbf16>
    %cst_81 = arith.constant dense<0.000000e+00> : vector<8x768xf32>
    %245 = tpu.matmul %244, %2, %cst_81 {dimension_numbers = #tpu.dot_dimension_numbers<[1], [0], [0], [1], [0, 0, 1, 1], [], []>} : vector<8x256xbf16>, vector<256x768xbf16>, vector<8x768xf32> -> vector<8x768xf32>
    %246 = vector.broadcast %3 : vector<1x768xf32> to vector<8x768xf32>
    %247 = arith.addf %245, %246 : vector<8x768xf32>
    %248 = vector.extract_strided_slice %247 {offsets = [0, 0], sizes = [8, 256], strides = [1, 1]} : vector<8x768xf32> to vector<8x256xf32>
    %cst_82 = arith.constant 0.176776692 : f32
    %249 = vector.broadcast %cst_82 : f32 to vector<8x256xf32>
    %250 = arith.mulf %248, %249 : vector<8x256xf32>
    %251 = vector.extract_strided_slice %247 {offsets = [0, 256], sizes = [8, 256], strides = [1, 1]} : vector<8x768xf32> to vector<8x256xf32>
    %252 = vector.extract_strided_slice %247 {offsets = [0, 512], sizes = [8, 256], strides = [1, 1]} : vector<8x768xf32> to vector<8x256xf32>
    %cst_83 = arith.constant 0.000000e+00 : f32
    %253 = vector.broadcast %cst_83 : f32 to vector<8x256xf32>
    %254 = vector.extract_strided_slice %250 {offsets = [0, 0], sizes = [8, 32], strides = [1, 1]} : vector<8x256xf32> to vector<8x32xf32>
    %255 = vector.extract_strided_slice %251 {offsets = [0, 0], sizes = [8, 32], strides = [1, 1]} : vector<8x256xf32> to vector<8x32xf32>
    %256 = vector.extract_strided_slice %252 {offsets = [0, 0], sizes = [8, 32], strides = [1, 1]} : vector<8x256xf32> to vector<8x32xf32>
    %cst_84 = arith.constant dense<0.000000e+00> : vector<8x8xf32>
    %257 = tpu.matmul %254, %255, %cst_84 {dimension_numbers = #tpu.dot_dimension_numbers<[1], [1], [0], [0], [0, 0, 1, 0], [], []>} : vector<8x32xf32>, vector<8x32xf32>, vector<8x8xf32> -> vector<8x8xf32>
    %cst_85 = arith.constant dense<0xFF800000> : vector<8xf32>
    %258 = vector.multi_reduction <maximumf>, %257, %cst_85 [1] : vector<8x8xf32> to vector<8xf32>
    %259 = vector.shape_cast %258 : vector<8xf32> to vector<8x1xf32>
    %260 = vector.broadcast %259 : vector<8x1xf32> to vector<8x8xf32>
    %261 = arith.subf %257, %260 : vector<8x8xf32>
    %262 = math.exp %261 : vector<8x8xf32>
    %cst_86 = arith.constant dense<0.000000e+00> : vector<8xf32>
    %263 = vector.multi_reduction <add>, %262, %cst_86 [1] : vector<8x8xf32> to vector<8xf32>
    %264 = vector.shape_cast %263 : vector<8xf32> to vector<8x1xf32>
    %265 = tpu.reciprocal %264 {approx = true} : vector<8x1xf32> -> vector<8x1xf32>
    %266 = vector.broadcast %265 : vector<8x1xf32> to vector<8x8xf32>
    %267 = arith.mulf %262, %266 : vector<8x8xf32>
    %cst_87 = arith.constant dense<0.000000e+00> : vector<8x32xf32>
    %268 = tpu.matmul %267, %256, %cst_87 {dimension_numbers = #tpu.dot_dimension_numbers<[1], [0], [0], [1], [0, 0, 1, 1], [], []>} : vector<8x8xf32>, vector<8x32xf32>, vector<8x32xf32> -> vector<8x32xf32>
    %c1024_88 = arith.constant 1024 : index
    %c0_89 = arith.constant 0 : index
    %269 = vector.load %arg2[%c1024_88, %c0_89] : memref<1280x256xbf16, #tpu.memory_space<vmem>>, vector<32x256xbf16>
    %270 = arith.truncf %268 : vector<8x32xf32> to vector<8x32xbf16>
    %cst_90 = arith.constant dense<0.000000e+00> : vector<8x256xf32>
    %271 = tpu.matmul %270, %269, %cst_90 {dimension_numbers = #tpu.dot_dimension_numbers<[1], [0], [0], [1], [0, 0, 1, 1], [], []>} : vector<8x32xbf16>, vector<32x256xbf16>, vector<8x256xf32> -> vector<8x256xf32>
    %272 = arith.addf %253, %271 : vector<8x256xf32>
    %273 = vector.extract_strided_slice %250 {offsets = [0, 32], sizes = [8, 32], strides = [1, 1]} : vector<8x256xf32> to vector<8x32xf32>
    %274 = vector.extract_strided_slice %251 {offsets = [0, 32], sizes = [8, 32], strides = [1, 1]} : vector<8x256xf32> to vector<8x32xf32>
    %275 = vector.extract_strided_slice %252 {offsets = [0, 32], sizes = [8, 32], strides = [1, 1]} : vector<8x256xf32> to vector<8x32xf32>
    %cst_91 = arith.constant dense<0.000000e+00> : vector<8x8xf32>
    %276 = tpu.matmul %273, %274, %cst_91 {dimension_numbers = #tpu.dot_dimension_numbers<[1], [1], [0], [0], [0, 0, 1, 0], [], []>} : vector<8x32xf32>, vector<8x32xf32>, vector<8x8xf32> -> vector<8x8xf32>
    %cst_92 = arith.constant dense<0xFF800000> : vector<8xf32>
    %277 = vector.multi_reduction <maximumf>, %276, %cst_92 [1] : vector<8x8xf32> to vector<8xf32>
    %278 = vector.shape_cast %277 : vector<8xf32> to vector<8x1xf32>
    %279 = vector.broadcast %278 : vector<8x1xf32> to vector<8x8xf32>
    %280 = arith.subf %276, %279 : vector<8x8xf32>
    %281 = math.exp %280 : vector<8x8xf32>
    %cst_93 = arith.constant dense<0.000000e+00> : vector<8xf32>
    %282 = vector.multi_reduction <add>, %281, %cst_93 [1] : vector<8x8xf32> to vector<8xf32>
    %283 = vector.shape_cast %282 : vector<8xf32> to vector<8x1xf32>
    %284 = tpu.reciprocal %283 {approx = true} : vector<8x1xf32> -> vector<8x1xf32>
    %285 = vector.broadcast %284 : vector<8x1xf32> to vector<8x8xf32>
    %286 = arith.mulf %281, %285 : vector<8x8xf32>
    %cst_94 = arith.constant dense<0.000000e+00> : vector<8x32xf32>
    %287 = tpu.matmul %286, %275, %cst_94 {dimension_numbers = #tpu.dot_dimension_numbers<[1], [0], [0], [1], [0, 0, 1, 1], [], []>} : vector<8x8xf32>, vector<8x32xf32>, vector<8x32xf32> -> vector<8x32xf32>
    %c1056_95 = arith.constant 1056 : index
    %c0_96 = arith.constant 0 : index
    %288 = vector.load %arg2[%c1056_95, %c0_96] : memref<1280x256xbf16, #tpu.memory_space<vmem>>, vector<32x256xbf16>
    %289 = arith.truncf %287 : vector<8x32xf32> to vector<8x32xbf16>
    %cst_97 = arith.constant dense<0.000000e+00> : vector<8x256xf32>
    %290 = tpu.matmul %289, %288, %cst_97 {dimension_numbers = #tpu.dot_dimension_numbers<[1], [0], [0], [1], [0, 0, 1, 1], [], []>} : vector<8x32xbf16>, vector<32x256xbf16>, vector<8x256xf32> -> vector<8x256xf32>
    %291 = arith.addf %272, %290 : vector<8x256xf32>
    %292 = vector.extract_strided_slice %250 {offsets = [0, 64], sizes = [8, 32], strides = [1, 1]} : vector<8x256xf32> to vector<8x32xf32>
    %293 = vector.extract_strided_slice %251 {offsets = [0, 64], sizes = [8, 32], strides = [1, 1]} : vector<8x256xf32> to vector<8x32xf32>
    %294 = vector.extract_strided_slice %252 {offsets = [0, 64], sizes = [8, 32], strides = [1, 1]} : vector<8x256xf32> to vector<8x32xf32>
    %cst_98 = arith.constant dense<0.000000e+00> : vector<8x8xf32>
    %295 = tpu.matmul %292, %293, %cst_98 {dimension_numbers = #tpu.dot_dimension_numbers<[1], [1], [0], [0], [0, 0, 1, 0], [], []>} : vector<8x32xf32>, vector<8x32xf32>, vector<8x8xf32> -> vector<8x8xf32>
    %cst_99 = arith.constant dense<0xFF800000> : vector<8xf32>
    %296 = vector.multi_reduction <maximumf>, %295, %cst_99 [1] : vector<8x8xf32> to vector<8xf32>
    %297 = vector.shape_cast %296 : vector<8xf32> to vector<8x1xf32>
    %298 = vector.broadcast %297 : vector<8x1xf32> to vector<8x8xf32>
    %299 = arith.subf %295, %298 : vector<8x8xf32>
    %300 = math.exp %299 : vector<8x8xf32>
    %cst_100 = arith.constant dense<0.000000e+00> : vector<8xf32>
    %301 = vector.multi_reduction <add>, %300, %cst_100 [1] : vector<8x8xf32> to vector<8xf32>
    %302 = vector.shape_cast %301 : vector<8xf32> to vector<8x1xf32>
    %303 = tpu.reciprocal %302 {approx = true} : vector<8x1xf32> -> vector<8x1xf32>
    %304 = vector.broadcast %303 : vector<8x1xf32> to vector<8x8xf32>
    %305 = arith.mulf %300, %304 : vector<8x8xf32>
    %cst_101 = arith.constant dense<0.000000e+00> : vector<8x32xf32>
    %306 = tpu.matmul %305, %294, %cst_101 {dimension_numbers = #tpu.dot_dimension_numbers<[1], [0], [0], [1], [0, 0, 1, 1], [], []>} : vector<8x8xf32>, vector<8x32xf32>, vector<8x32xf32> -> vector<8x32xf32>
    %c1088_102 = arith.constant 1088 : index
    %c0_103 = arith.constant 0 : index
    %307 = vector.load %arg2[%c1088_102, %c0_103] : memref<1280x256xbf16, #tpu.memory_space<vmem>>, vector<32x256xbf16>
    %308 = arith.truncf %306 : vector<8x32xf32> to vector<8x32xbf16>
    %cst_104 = arith.constant dense<0.000000e+00> : vector<8x256xf32>
    %309 = tpu.matmul %308, %307, %cst_104 {dimension_numbers = #tpu.dot_dimension_numbers<[1], [0], [0], [1], [0, 0, 1, 1], [], []>} : vector<8x32xbf16>, vector<32x256xbf16>, vector<8x256xf32> -> vector<8x256xf32>
    %310 = arith.addf %291, %309 : vector<8x256xf32>
    %311 = vector.extract_strided_slice %250 {offsets = [0, 96], sizes = [8, 32], strides = [1, 1]} : vector<8x256xf32> to vector<8x32xf32>
    %312 = vector.extract_strided_slice %251 {offsets = [0, 96], sizes = [8, 32], strides = [1, 1]} : vector<8x256xf32> to vector<8x32xf32>
    %313 = vector.extract_strided_slice %252 {offsets = [0, 96], sizes = [8, 32], strides = [1, 1]} : vector<8x256xf32> to vector<8x32xf32>
    %cst_105 = arith.constant dense<0.000000e+00> : vector<8x8xf32>
    %314 = tpu.matmul %311, %312, %cst_105 {dimension_numbers = #tpu.dot_dimension_numbers<[1], [1], [0], [0], [0, 0, 1, 0], [], []>} : vector<8x32xf32>, vector<8x32xf32>, vector<8x8xf32> -> vector<8x8xf32>
    %cst_106 = arith.constant dense<0xFF800000> : vector<8xf32>
    %315 = vector.multi_reduction <maximumf>, %314, %cst_106 [1] : vector<8x8xf32> to vector<8xf32>
    %316 = vector.shape_cast %315 : vector<8xf32> to vector<8x1xf32>
    %317 = vector.broadcast %316 : vector<8x1xf32> to vector<8x8xf32>
    %318 = arith.subf %314, %317 : vector<8x8xf32>
    %319 = math.exp %318 : vector<8x8xf32>
    %cst_107 = arith.constant dense<0.000000e+00> : vector<8xf32>
    %320 = vector.multi_reduction <add>, %319, %cst_107 [1] : vector<8x8xf32> to vector<8xf32>
    %321 = vector.shape_cast %320 : vector<8xf32> to vector<8x1xf32>
    %322 = tpu.reciprocal %321 {approx = true} : vector<8x1xf32> -> vector<8x1xf32>
    %323 = vector.broadcast %322 : vector<8x1xf32> to vector<8x8xf32>
    %324 = arith.mulf %319, %323 : vector<8x8xf32>
    %cst_108 = arith.constant dense<0.000000e+00> : vector<8x32xf32>
    %325 = tpu.matmul %324, %313, %cst_108 {dimension_numbers = #tpu.dot_dimension_numbers<[1], [0], [0], [1], [0, 0, 1, 1], [], []>} : vector<8x8xf32>, vector<8x32xf32>, vector<8x32xf32> -> vector<8x32xf32>
    %c1120_109 = arith.constant 1120 : index
    %c0_110 = arith.constant 0 : index
    %326 = vector.load %arg2[%c1120_109, %c0_110] : memref<1280x256xbf16, #tpu.memory_space<vmem>>, vector<32x256xbf16>
    %327 = arith.truncf %325 : vector<8x32xf32> to vector<8x32xbf16>
    %cst_111 = arith.constant dense<0.000000e+00> : vector<8x256xf32>
    %328 = tpu.matmul %327, %326, %cst_111 {dimension_numbers = #tpu.dot_dimension_numbers<[1], [0], [0], [1], [0, 0, 1, 1], [], []>} : vector<8x32xbf16>, vector<32x256xbf16>, vector<8x256xf32> -> vector<8x256xf32>
    %329 = arith.addf %310, %328 : vector<8x256xf32>
    %330 = vector.extract_strided_slice %250 {offsets = [0, 128], sizes = [8, 32], strides = [1, 1]} : vector<8x256xf32> to vector<8x32xf32>
    %331 = vector.extract_strided_slice %251 {offsets = [0, 128], sizes = [8, 32], strides = [1, 1]} : vector<8x256xf32> to vector<8x32xf32>
    %332 = vector.extract_strided_slice %252 {offsets = [0, 128], sizes = [8, 32], strides = [1, 1]} : vector<8x256xf32> to vector<8x32xf32>
    %cst_112 = arith.constant dense<0.000000e+00> : vector<8x8xf32>
    %333 = tpu.matmul %330, %331, %cst_112 {dimension_numbers = #tpu.dot_dimension_numbers<[1], [1], [0], [0], [0, 0, 1, 0], [], []>} : vector<8x32xf32>, vector<8x32xf32>, vector<8x8xf32> -> vector<8x8xf32>
    %cst_113 = arith.constant dense<0xFF800000> : vector<8xf32>
    %334 = vector.multi_reduction <maximumf>, %333, %cst_113 [1] : vector<8x8xf32> to vector<8xf32>
    %335 = vector.shape_cast %334 : vector<8xf32> to vector<8x1xf32>
    %336 = vector.broadcast %335 : vector<8x1xf32> to vector<8x8xf32>
    %337 = arith.subf %333, %336 : vector<8x8xf32>
    %338 = math.exp %337 : vector<8x8xf32>
    %cst_114 = arith.constant dense<0.000000e+00> : vector<8xf32>
    %339 = vector.multi_reduction <add>, %338, %cst_114 [1] : vector<8x8xf32> to vector<8xf32>
    %340 = vector.shape_cast %339 : vector<8xf32> to vector<8x1xf32>
    %341 = tpu.reciprocal %340 {approx = true} : vector<8x1xf32> -> vector<8x1xf32>
    %342 = vector.broadcast %341 : vector<8x1xf32> to vector<8x8xf32>
    %343 = arith.mulf %338, %342 : vector<8x8xf32>
    %cst_115 = arith.constant dense<0.000000e+00> : vector<8x32xf32>
    %344 = tpu.matmul %343, %332, %cst_115 {dimension_numbers = #tpu.dot_dimension_numbers<[1], [0], [0], [1], [0, 0, 1, 1], [], []>} : vector<8x8xf32>, vector<8x32xf32>, vector<8x32xf32> -> vector<8x32xf32>
    %c1152_116 = arith.constant 1152 : index
    %c0_117 = arith.constant 0 : index
    %345 = vector.load %arg2[%c1152_116, %c0_117] : memref<1280x256xbf16, #tpu.memory_space<vmem>>, vector<32x256xbf16>
    %346 = arith.truncf %344 : vector<8x32xf32> to vector<8x32xbf16>
    %cst_118 = arith.constant dense<0.000000e+00> : vector<8x256xf32>
    %347 = tpu.matmul %346, %345, %cst_118 {dimension_numbers = #tpu.dot_dimension_numbers<[1], [0], [0], [1], [0, 0, 1, 1], [], []>} : vector<8x32xbf16>, vector<32x256xbf16>, vector<8x256xf32> -> vector<8x256xf32>
    %348 = arith.addf %329, %347 : vector<8x256xf32>
    %349 = vector.extract_strided_slice %250 {offsets = [0, 160], sizes = [8, 32], strides = [1, 1]} : vector<8x256xf32> to vector<8x32xf32>
    %350 = vector.extract_strided_slice %251 {offsets = [0, 160], sizes = [8, 32], strides = [1, 1]} : vector<8x256xf32> to vector<8x32xf32>
    %351 = vector.extract_strided_slice %252 {offsets = [0, 160], sizes = [8, 32], strides = [1, 1]} : vector<8x256xf32> to vector<8x32xf32>
    %cst_119 = arith.constant dense<0.000000e+00> : vector<8x8xf32>
    %352 = tpu.matmul %349, %350, %cst_119 {dimension_numbers = #tpu.dot_dimension_numbers<[1], [1], [0], [0], [0, 0, 1, 0], [], []>} : vector<8x32xf32>, vector<8x32xf32>, vector<8x8xf32> -> vector<8x8xf32>
    %cst_120 = arith.constant dense<0xFF800000> : vector<8xf32>
    %353 = vector.multi_reduction <maximumf>, %352, %cst_120 [1] : vector<8x8xf32> to vector<8xf32>
    %354 = vector.shape_cast %353 : vector<8xf32> to vector<8x1xf32>
    %355 = vector.broadcast %354 : vector<8x1xf32> to vector<8x8xf32>
    %356 = arith.subf %352, %355 : vector<8x8xf32>
    %357 = math.exp %356 : vector<8x8xf32>
    %cst_121 = arith.constant dense<0.000000e+00> : vector<8xf32>
    %358 = vector.multi_reduction <add>, %357, %cst_121 [1] : vector<8x8xf32> to vector<8xf32>
    %359 = vector.shape_cast %358 : vector<8xf32> to vector<8x1xf32>
    %360 = tpu.reciprocal %359 {approx = true} : vector<8x1xf32> -> vector<8x1xf32>
    %361 = vector.broadcast %360 : vector<8x1xf32> to vector<8x8xf32>
    %362 = arith.mulf %357, %361 : vector<8x8xf32>
    %cst_122 = arith.constant dense<0.000000e+00> : vector<8x32xf32>
    %363 = tpu.matmul %362, %351, %cst_122 {dimension_numbers = #tpu.dot_dimension_numbers<[1], [0], [0], [1], [0, 0, 1, 1], [], []>} : vector<8x8xf32>, vector<8x32xf32>, vector<8x32xf32> -> vector<8x32xf32>
    %c1184_123 = arith.constant 1184 : index
    %c0_124 = arith.constant 0 : index
    %364 = vector.load %arg2[%c1184_123, %c0_124] : memref<1280x256xbf16, #tpu.memory_space<vmem>>, vector<32x256xbf16>
    %365 = arith.truncf %363 : vector<8x32xf32> to vector<8x32xbf16>
    %cst_125 = arith.constant dense<0.000000e+00> : vector<8x256xf32>
    %366 = tpu.matmul %365, %364, %cst_125 {dimension_numbers = #tpu.dot_dimension_numbers<[1], [0], [0], [1], [0, 0, 1, 1], [], []>} : vector<8x32xbf16>, vector<32x256xbf16>, vector<8x256xf32> -> vector<8x256xf32>
    %367 = arith.addf %348, %366 : vector<8x256xf32>
    %368 = vector.extract_strided_slice %250 {offsets = [0, 192], sizes = [8, 32], strides = [1, 1]} : vector<8x256xf32> to vector<8x32xf32>
    %369 = vector.extract_strided_slice %251 {offsets = [0, 192], sizes = [8, 32], strides = [1, 1]} : vector<8x256xf32> to vector<8x32xf32>
    %370 = vector.extract_strided_slice %252 {offsets = [0, 192], sizes = [8, 32], strides = [1, 1]} : vector<8x256xf32> to vector<8x32xf32>
    %cst_126 = arith.constant dense<0.000000e+00> : vector<8x8xf32>
    %371 = tpu.matmul %368, %369, %cst_126 {dimension_numbers = #tpu.dot_dimension_numbers<[1], [1], [0], [0], [0, 0, 1, 0], [], []>} : vector<8x32xf32>, vector<8x32xf32>, vector<8x8xf32> -> vector<8x8xf32>
    %cst_127 = arith.constant dense<0xFF800000> : vector<8xf32>
    %372 = vector.multi_reduction <maximumf>, %371, %cst_127 [1] : vector<8x8xf32> to vector<8xf32>
    %373 = vector.shape_cast %372 : vector<8xf32> to vector<8x1xf32>
    %374 = vector.broadcast %373 : vector<8x1xf32> to vector<8x8xf32>
    %375 = arith.subf %371, %374 : vector<8x8xf32>
    %376 = math.exp %375 : vector<8x8xf32>
    %cst_128 = arith.constant dense<0.000000e+00> : vector<8xf32>
    %377 = vector.multi_reduction <add>, %376, %cst_128 [1] : vector<8x8xf32> to vector<8xf32>
    %378 = vector.shape_cast %377 : vector<8xf32> to vector<8x1xf32>
    %379 = tpu.reciprocal %378 {approx = true} : vector<8x1xf32> -> vector<8x1xf32>
    %380 = vector.broadcast %379 : vector<8x1xf32> to vector<8x8xf32>
    %381 = arith.mulf %376, %380 : vector<8x8xf32>
    %cst_129 = arith.constant dense<0.000000e+00> : vector<8x32xf32>
    %382 = tpu.matmul %381, %370, %cst_129 {dimension_numbers = #tpu.dot_dimension_numbers<[1], [0], [0], [1], [0, 0, 1, 1], [], []>} : vector<8x8xf32>, vector<8x32xf32>, vector<8x32xf32> -> vector<8x32xf32>
    %c1216_130 = arith.constant 1216 : index
    %c0_131 = arith.constant 0 : index
    %383 = vector.load %arg2[%c1216_130, %c0_131] : memref<1280x256xbf16, #tpu.memory_space<vmem>>, vector<32x256xbf16>
    %384 = arith.truncf %382 : vector<8x32xf32> to vector<8x32xbf16>
    %cst_132 = arith.constant dense<0.000000e+00> : vector<8x256xf32>
    %385 = tpu.matmul %384, %383, %cst_132 {dimension_numbers = #tpu.dot_dimension_numbers<[1], [0], [0], [1], [0, 0, 1, 1], [], []>} : vector<8x32xbf16>, vector<32x256xbf16>, vector<8x256xf32> -> vector<8x256xf32>
    %386 = arith.addf %367, %385 : vector<8x256xf32>
    %387 = vector.extract_strided_slice %250 {offsets = [0, 224], sizes = [8, 32], strides = [1, 1]} : vector<8x256xf32> to vector<8x32xf32>
    %388 = vector.extract_strided_slice %251 {offsets = [0, 224], sizes = [8, 32], strides = [1, 1]} : vector<8x256xf32> to vector<8x32xf32>
    %389 = vector.extract_strided_slice %252 {offsets = [0, 224], sizes = [8, 32], strides = [1, 1]} : vector<8x256xf32> to vector<8x32xf32>
    %cst_133 = arith.constant dense<0.000000e+00> : vector<8x8xf32>
    %390 = tpu.matmul %387, %388, %cst_133 {dimension_numbers = #tpu.dot_dimension_numbers<[1], [1], [0], [0], [0, 0, 1, 0], [], []>} : vector<8x32xf32>, vector<8x32xf32>, vector<8x8xf32> -> vector<8x8xf32>
    %cst_134 = arith.constant dense<0xFF800000> : vector<8xf32>
    %391 = vector.multi_reduction <maximumf>, %390, %cst_134 [1] : vector<8x8xf32> to vector<8xf32>
    %392 = vector.shape_cast %391 : vector<8xf32> to vector<8x1xf32>
    %393 = vector.broadcast %392 : vector<8x1xf32> to vector<8x8xf32>
    %394 = arith.subf %390, %393 : vector<8x8xf32>
    %395 = math.exp %394 : vector<8x8xf32>
    %cst_135 = arith.constant dense<0.000000e+00> : vector<8xf32>
    %396 = vector.multi_reduction <add>, %395, %cst_135 [1] : vector<8x8xf32> to vector<8xf32>
    %397 = vector.shape_cast %396 : vector<8xf32> to vector<8x1xf32>
    %398 = tpu.reciprocal %397 {approx = true} : vector<8x1xf32> -> vector<8x1xf32>
    %399 = vector.broadcast %398 : vector<8x1xf32> to vector<8x8xf32>
    %400 = arith.mulf %395, %399 : vector<8x8xf32>
    %cst_136 = arith.constant dense<0.000000e+00> : vector<8x32xf32>
    %401 = tpu.matmul %400, %389, %cst_136 {dimension_numbers = #tpu.dot_dimension_numbers<[1], [0], [0], [1], [0, 0, 1, 1], [], []>} : vector<8x8xf32>, vector<8x32xf32>, vector<8x32xf32> -> vector<8x32xf32>
    %c1248_137 = arith.constant 1248 : index
    %c0_138 = arith.constant 0 : index
    %402 = vector.load %arg2[%c1248_137, %c0_138] : memref<1280x256xbf16, #tpu.memory_space<vmem>>, vector<32x256xbf16>
    %403 = arith.truncf %401 : vector<8x32xf32> to vector<8x32xbf16>
    %cst_139 = arith.constant dense<0.000000e+00> : vector<8x256xf32>
    %404 = tpu.matmul %403, %402, %cst_139 {dimension_numbers = #tpu.dot_dimension_numbers<[1], [0], [0], [1], [0, 0, 1, 1], [], []>} : vector<8x32xbf16>, vector<32x256xbf16>, vector<8x256xf32> -> vector<8x256xf32>
    %405 = arith.addf %386, %404 : vector<8x256xf32>
    %406 = arith.addf %209, %405 : vector<8x256xf32>
    %407 = vector.broadcast %8 : vector<1x256xf32> to vector<8x256xf32>
    %408 = arith.addf %406, %407 : vector<8x256xf32>
    %cst_140 = arith.constant 5.000000e-01 : f32
    %409 = vector.broadcast %cst_140 : f32 to vector<8x256xf32>
    %410 = arith.mulf %408, %409 : vector<8x256xf32>
    %c0_141 = arith.constant 0 : index
    %c0_142 = arith.constant 0 : index
    %411 = vector.load %arg5[%c0_141, %c0_142] : memref<8x256xf32, #tpu.memory_space<vmem>>, vector<8x256xf32>
    tpu.vector_store %arg5[%c0_141, %c0_142], %410 {strides = array<i32>} : memref<8x256xf32, #tpu.memory_space<vmem>>, vector<8x256xf32>,
    return
  }
  func.func @transform_0(%arg0: i32) -> (i32, i32, i32) {
    %c0_i32 = arith.constant 0 : i32
    %c0_i32_0 = arith.constant 0 : i32
    %c0_i32_1 = arith.constant 0 : i32
    %c0_i32_2 = arith.constant 0 : i32
    return %c0_i32, %c0_i32_0, %c0_i32_1 : i32, i32, i32
  }
  func.func @transform_1(%arg0: i32) -> (i32, i32) {
    %c0_i32 = arith.constant 0 : i32
    %c0_i32_0 = arith.constant 0 : i32
    %c0_i32_1 = arith.constant 0 : i32
    return %c0_i32, %c0_i32_0 : i32, i32
  }
  func.func @transform_2(%arg0: i32) -> (i32, i32) {
    %c0_i32 = arith.constant 0 : i32
    %c0_i32_0 = arith.constant 0 : i32
    %c0_i32_1 = arith.constant 0 : i32
    return %c0_i32, %c0_i32_0 : i32, i32
  }
  func.func @transform_3(%arg0: i32) -> (i32, i32) {
    %c0_i32 = arith.constant 0 : i32
    %c0_i32_0 = arith.constant 0 : i32
    %c0_i32_1 = arith.constant 0 : i32
    return %c0_i32, %c0_i32_0 : i32, i32
  }
  func.func @transform_4(%arg0: i32) -> (i32, i32) {
    %c0_i32 = arith.constant 0 : i32
    %c0_i32_0 = arith.constant 0 : i32
    %c0_i32_1 = arith.constant 0 : i32
    return %c0_i32, %c0_i32_0 : i32, i32
  }
}

</mosaic_0001>

<llo_original>
// kernel: perception_encoder.1
$region0: #{perception_encoder.1}
  #allocation0 [shape = 'u32[]', space=smem, size = 0x4, offset = 0x4, fixed_abs, tag = 'smem constant byte address 0x4 - core index']
  #allocation1 [shape = 'u32[144,128]{1,0:T(1,128)}', space=vmem, size = 0x12000, scoped, tag = 'internal scratch']
  %s0 = inlined_call_operand.hbm [shape: f32[8,2,768], index: 0, kind: input, shape index: {}]
  %s1 = inlined_call_operand.hbm [shape: bf16[1280,256], index: 1, kind: input, shape index: {}]
  %s2 = inlined_call_operand.hbm [shape: bf16[256,768], index: 2, kind: input, shape index: {}]
  %s3 = inlined_call_operand.hbm [shape: f32[8,768], index: 3, kind: input, shape index: {}]
  %s4 = inlined_call_operand.hbm [shape: f32[8,256], index: 4, kind: output, shape index: {}]
  %s5 = sld [smem:[#allocation0]]
  $region42: #{perception_encoder.1} parent=0
    _
  %s7 = ssub.s32 1, %s5
  %s8 = scalar_select 0, %s7, %s5
  $region1: #{perception_encoder.1} parent=0
    #allocation2 [shape = 'u8[49152]{0}', space=vmem, size = 0xc000, scoped, tag = 'input window, operand 0, single buffered']
    #allocation3 [shape = 's32[1]{0}', space=sflag, size = 0x4, scoped, tag = 'scoped memory for perception_encoder.1']
    #allocation4 [shape = 's32[1]{0}', space=sflag, size = 0x4, scoped, tag = 'scoped memory for perception_encoder.1']
    #allocation5 [shape = 'u8[655360]{0}', space=vmem, size = 0xa0000, scoped, tag = 'input window, operand 1, single buffered']
    #allocation6 [shape = 's32[1]{0}', space=sflag, size = 0x4, scoped, tag = 'scoped memory for perception_encoder.1']
    #allocation7 [shape = 'u8[393216]{0}', space=vmem, size = 0x60000, scoped, tag = 'input window, operand 2, single buffered']
    #allocation8 [shape = 'u8[24576]{0}', space=vmem, size = 0x6000, scoped, tag = 'input window, operand 3, single buffered']
    #allocation9 [shape = 's32[1]{0}', space=sflag, size = 0x4, scoped, tag = 'scoped memory for perception_encoder.1']
    #allocation10 [shape = 'u8[8192]{0}', space=vmem, size = 0x2000, scoped, tag = 'output window, operand 0, single buffered']
    %9 = vsyncpa [#allocation3], 0
    %10 = vsyncpa [#allocation6], 0
    %11 = vsyncpa [#allocation9], 0
    %12 = vsyncpa [#allocation4], 0
    // Predicated region
    $region2: #{perception_encoder.1} parent=1 // pred_check
      _
    $region3: #{perception_encoder.1} parent=1 // pred_check_branch
      %14 = sbr.rel (0) target = $region5
    $region4: #{perception_encoder.1} parent=1 // pred_region
      %s16 = ssub.s32 1536, 1536
      %17 = vsyncadd [#allocation3], %s16
      %s18 = sshll.u32 [#allocation2], 4
      %s19 = int_to_ptr.vmem [resolvable:$true] %s18
      %24 = dma.hbm_to_vmem [thread:$0]  %s0, 1536, %s19, [#allocation3], 192, 192, 12
    $region5: #{perception_encoder.1} parent=1 // pred_fallthru
      _
    // Predicated region
    $region6: #{perception_encoder.1} parent=1 // pred_check
      _
    $region7: #{perception_encoder.1} parent=1 // pred_check_branch
      %26 = sbr.rel (0) target = $region9
    $region8: #{perception_encoder.1} parent=1 // pred_region
      %s28 = ssub.s32 20480, 20480
      %29 = vsyncadd [#allocation6], %s28
      %s30 = sshll.u32 [#allocation5], 4
      %s31 = int_to_ptr.vmem [resolvable:$true] %s30
      %36 = dma.hbm_to_vmem [thread:$0]  %s1, 20480, %s31, [#allocation6], 128, 128, 8
    $region9: #{perception_encoder.1} parent=1 // pred_fallthru
      _
    // Predicated region
    $region10: #{perception_encoder.1} parent=1 // pred_check
      _
    $region11: #{perception_encoder.1} parent=1 // pred_check_branch
      %38 = sbr.rel (0) target = $region13
    $region12: #{perception_encoder.1} parent=1 // pred_region
      %s40 = ssub.s32 12288, 12288
      %41 = vsyncadd [#allocation6], %s40
      %s42 = sshll.u32 [#allocation7], 4
      %s43 = int_to_ptr.vmem [resolvable:$true] %s42
      %48 = dma.hbm_to_vmem [thread:$0]  %s2, 12288, %s43, [#allocation6], 384, 384, 24
    $region13: #{perception_encoder.1} parent=1 // pred_fallthru
      _
    // Predicated region
    $region14: #{perception_encoder.1} parent=1 // pred_check
      _
    $region15: #{perception_encoder.1} parent=1 // pred_check_branch
      %50 = sbr.rel (0) target = $region17
    $region16: #{perception_encoder.1} parent=1 // pred_region
      %s52 = ssub.s32 768, 768
      %53 = vsyncadd [#allocation9], %s52
      %s55 = sshll.u32 [#allocation8], 4
      %s56 = int_to_ptr.vmem [resolvable:$true] %s55
      %58 = dma.hbm_to_vmem [thread:$0]  %s3, 768, %s56, [#allocation9]
    $region17: #{perception_encoder.1} parent=1 // pred_fallthru
      _
    // Predicated region
    $region18: #{perception_encoder.1} parent=1 // pred_check
      _
    $region19: #{perception_encoder.1} parent=1 // pred_check_branch
      %60 = sbr.rel (0) target = $region21
    $region20: #{perception_encoder.1} parent=1 // pred_region
      %61 = dma.done [#allocation3], 1536
    $region21: #{perception_encoder.1} parent=1 // pred_fallthru
      _
    // Predicated region
    $region22: #{perception_encoder.1} parent=1 // pred_check
      _
    $region23: #{perception_encoder.1} parent=1 // pred_check_branch
      %63 = sbr.rel (0) target = $region25
    $region24: #{perception_encoder.1} parent=1 // pred_region
      %64 = dma.done [#allocation6], 20480
    $region25: #{perception_encoder.1} parent=1 // pred_fallthru
      _
    // Predicated region
    $region26: #{perception_encoder.1} parent=1 // pred_check
      _
    $region27: #{perception_encoder.1} parent=1 // pred_check_branch
      %66 = sbr.rel (0) target = $region29
    $region28: #{perception_encoder.1} parent=1 // pred_region
      %67 = dma.done [#allocation6], 12288
    $region29: #{perception_encoder.1} parent=1 // pred_fallthru
      _
    // Predicated region
    $region30: #{perception_encoder.1} parent=1 // pred_check
      _
    $region31: #{perception_encoder.1} parent=1 // pred_check_branch
      %69 = sbr.rel (0) target = $region33
    $region32: #{perception_encoder.1} parent=1 // pred_region
      %70 = dma.done [#allocation9], 768
    $region33: #{perception_encoder.1} parent=1 // pred_fallthru
      _
    %v72 = vld [vmem:[#allocation5] sm:$0xff]
    %v73 = vld [vmem:[#allocation5 + $0x8] sm:$0xff]
    %v74 = vld [vmem:[#allocation5 + $0x10] sm:$0xff]
    %v75 = vld [vmem:[#allocation5 + $0x18] sm:$0xff]
    %v76 = vld [vmem:[#allocation5 + $0x20] sm:$0xff]
    %v77 = vld [vmem:[#allocation5 + $0x28] sm:$0xff]
    %v78 = vld [vmem:[#allocation5 + $0x30] sm:$0xff]
    %v79 = vld [vmem:[#allocation5 + $0x38] sm:$0xff]
    %v80 = vld [vmem:[#allocation5 + $0x40] sm:$0xff]
    %v81 = vld [vmem:[#allocation5 + $0x48] sm:$0xff]
    %v82 = vld [vmem:[#allocation5 + $0x50] sm:$0xff]
    %v83 = vld [vmem:[#allocation5 + $0x58] sm:$0xff]
    %v84 = vld [vmem:[#allocation5 + $0x60] sm:$0xff]
    %v85 = vld [vmem:[#allocation5 + $0x68] sm:$0xff]
    %v86 = vld [vmem:[#allocation5 + $0x70] sm:$0xff]
    %v87 = vld [vmem:[#allocation5 + $0x78] sm:$0xff]
    %v88 = vld [vmem:[#allocation5 + $0x80] sm:$0xff]
    %v89 = vld [vmem:[#allocation5 + $0x88] sm:$0xff]
    %v90 = vld [vmem:[#allocation5 + $0x90] sm:$0xff]
    %v91 = vld [vmem:[#allocation5 + $0x98] sm:$0xff]
    %v92 = vld [vmem:[#allocation5 + $0xa0] sm:$0xff]
    %v93 = vld [vmem:[#allocation5 + $0xa8] sm:$0xff]
    %v94 = vld [vmem:[#allocation5 + $0xb0] sm:$0xff]
    %v95 = vld [vmem:[#allocation5 + $0xb8] sm:$0xff]
    %v96 = vld [vmem:[#allocation5 + $0xc0] sm:$0xff]
    %v97 = vld [vmem:[#allocation5 + $0xc8] sm:$0xff]
    %v98 = vld [vmem:[#allocation5 + $0xd0] sm:$0xff]
    %v99 = vld [vmem:[#allocation5 + $0xd8] sm:$0xff]
    %v100 = vld [vmem:[#allocation5 + $0xe0] sm:$0xff]
    %v101 = vld [vmem:[#allocation5 + $0xe8] sm:$0xff]
    %v102 = vld [vmem:[#allocation5 + $0xf0] sm:$0xff]
    %v103 = vld [vmem:[#allocation5 + $0xf8] sm:$0xff]
    %v104 = vld [vmem:[#allocation5 + $0x100] sm:$0xff]
    %v105 = vld [vmem:[#allocation5 + $0x108] sm:$0xff]
    %v106 = vld [vmem:[#allocation5 + $0x110] sm:$0xff]
    %v107 = vld [vmem:[#allocation5 + $0x118] sm:$0xff]
    %v108 = vld [vmem:[#allocation5 + $0x120] sm:$0xff]
    %v109 = vld [vmem:[#allocation5 + $0x128] sm:$0xff]
    %v110 = vld [vmem:[#allocation5 + $0x130] sm:$0xff]
    %v111 = vld [vmem:[#allocation5 + $0x138] sm:$0xff]
    %v112 = vld [vmem:[#allocation5 + $0x140] sm:$0xff]
    %v113 = vld [vmem:[#allocation5 + $0x148] sm:$0xff]
    %v114 = vld [vmem:[#allocation5 + $0x150] sm:$0xff]
    %v115 = vld [vmem:[#allocation5 + $0x158] sm:$0xff]
    %v116 = vld [vmem:[#allocation5 + $0x160] sm:$0xff]
    %v117 = vld [vmem:[#allocation5 + $0x168] sm:$0xff]
    %v118 = vld [vmem:[#allocation5 + $0x170] sm:$0xff]
    %v119 = vld [vmem:[#allocation5 + $0x178] sm:$0xff]
    %v120 = vld [vmem:[#allocation5 + $0x180] sm:$0xff]
    %v121 = vld [vmem:[#allocation5 + $0x188] sm:$0xff]
    %v122 = vld [vmem:[#allocation5 + $0x190] sm:$0xff]
    %v123 = vld [vmem:[#allocation5 + $0x198] sm:$0xff]
    %v124 = vld [vmem:[#allocation5 + $0x1a0] sm:$0xff]
    %v125 = vld [vmem:[#allocation5 + $0x1a8] sm:$0xff]
    %v126 = vld [vmem:[#allocation5 + $0x1b0] sm:$0xff]
    %v127 = vld [vmem:[#allocation5 + $0x1b8] sm:$0xff]
    %v128 = vld [vmem:[#allocation5 + $0x1c0] sm:$0xff]
    %v129 = vld [vmem:[#allocation5 + $0x1c8] sm:$0xff]
    %v130 = vld [vmem:[#allocation5 + $0x1d0] sm:$0xff]
    %v131 = vld [vmem:[#allocation5 + $0x1d8] sm:$0xff]
    %v132 = vld [vmem:[#allocation5 + $0x1e0] sm:$0xff]
    %v133 = vld [vmem:[#allocation5 + $0x1e8] sm:$0xff]
    %v134 = vld [vmem:[#allocation5 + $0x1f0] sm:$0xff]
    %v135 = vld [vmem:[#allocation5 + $0x1f8] sm:$0xff]
    %v136 = vld [vmem:[#allocation5 + $0x200] sm:$0xff]
    %v137 = vld [vmem:[#allocation5 + $0x208] sm:$0xff]
    %v138 = vld [vmem:[#allocation5 + $0x210] sm:$0xff]
    %v139 = vld [vmem:[#allocation5 + $0x218] sm:$0xff]
    %v140 = vld [vmem:[#allocation5 + $0x220] sm:$0xff]
    %v141 = vld [vmem:[#allocation5 + $0x228] sm:$0xff]
    %v142 = vld [vmem:[#allocation5 + $0x230] sm:$0xff]
    %v143 = vld [vmem:[#allocation5 + $0x238] sm:$0xff]
    %v144 = vld [vmem:[#allocation5 + $0x240] sm:$0xff]
    %v145 = vld [vmem:[#allocation5 + $0x248] sm:$0xff]
    %v146 = vld [vmem:[#allocation5 + $0x250] sm:$0xff]
    %v147 = vld [vmem:[#allocation5 + $0x258] sm:$0xff]
    %v148 = vld [vmem:[#allocation5 + $0x260] sm:$0xff]
    %v149 = vld [vmem:[#allocation5 + $0x268] sm:$0xff]
    %v150 = vld [vmem:[#allocation5 + $0x270] sm:$0xff]
    %v151 = vld [vmem:[#allocation5 + $0x278] sm:$0xff]
    %v152 = vld [vmem:[#allocation5 + $0x280] sm:$0xff]
    %v153 = vld [vmem:[#allocation5 + $0x288] sm:$0xff]
    %v154 = vld [vmem:[#allocation5 + $0x290] sm:$0xff]
    %v155 = vld [vmem:[#allocation5 + $0x298] sm:$0xff]
    %v156 = vld [vmem:[#allocation5 + $0x2a0] sm:$0xff]
    %v157 = vld [vmem:[#allocation5 + $0x2a8] sm:$0xff]
    %v158 = vld [vmem:[#allocation5 + $0x2b0] sm:$0xff]
    %v159 = vld [vmem:[#allocation5 + $0x2b8] sm:$0xff]
    %v160 = vld [vmem:[#allocation5 + $0x2c0] sm:$0xff]
    %v161 = vld [vmem:[#allocation5 + $0x2c8] sm:$0xff]
    %v162 = vld [vmem:[#allocation5 + $0x2d0] sm:$0xff]
    %v163 = vld [vmem:[#allocation5 + $0x2d8] sm:$0xff]
    %v164 = vld [vmem:[#allocation5 + $0x2e0] sm:$0xff]
    %v165 = vld [vmem:[#allocation5 + $0x2e8] sm:$0xff]
    %v166 = vld [vmem:[#allocation5 + $0x2f0] sm:$0xff]
    %v167 = vld [vmem:[#allocation5 + $0x2f8] sm:$0xff]
    %v168 = vld [vmem:[#allocation5 + $0x300] sm:$0xff]
    %v169 = vld [vmem:[#allocation5 + $0x308] sm:$0xff]
    %v170 = vld [vmem:[#allocation5 + $0x310] sm:$0xff]
    %v171 = vld [vmem:[#allocation5 + $0x318] sm:$0xff]
    %v172 = vld [vmem:[#allocation5 + $0x320] sm:$0xff]
    %v173 = vld [vmem:[#allocation5 + $0x328] sm:$0xff]
    %v174 = vld [vmem:[#allocation5 + $0x330] sm:$0xff]
    %v175 = vld [vmem:[#allocation5 + $0x338] sm:$0xff]
    %v176 = vld [vmem:[#allocation5 + $0x340] sm:$0xff]
    %v177 = vld [vmem:[#allocation5 + $0x348] sm:$0xff]
    %v178 = vld [vmem:[#allocation5 + $0x350] sm:$0xff]
    %v179 = vld [vmem:[#allocation5 + $0x358] sm:$0xff]
    %v180 = vld [vmem:[#allocation5 + $0x360] sm:$0xff]
    %v181 = vld [vmem:[#allocation5 + $0x368] sm:$0xff]
    %v182 = vld [vmem:[#allocation5 + $0x370] sm:$0xff]
    %v183 = vld [vmem:[#allocation5 + $0x378] sm:$0xff]
    %v184 = vld [vmem:[#allocation5 + $0x380] sm:$0xff]
    %v185 = vld [vmem:[#allocation5 + $0x388] sm:$0xff]
    %v186 = vld [vmem:[#allocation5 + $0x390] sm:$0xff]
    %v187 = vld [vmem:[#allocation5 + $0x398] sm:$0xff]
    %v188 = vld [vmem:[#allocation5 + $0x3a0] sm:$0xff]
    %v189 = vld [vmem:[#allocation5 + $0x3a8] sm:$0xff]
    %v190 = vld [vmem:[#allocation5 + $0x3b0] sm:$0xff]
    %v191 = vld [vmem:[#allocation5 + $0x3b8] sm:$0xff]
    %v192 = vld [vmem:[#allocation5 + $0x3c0] sm:$0xff]
    %v193 = vld [vmem:[#allocation5 + $0x3c8] sm:$0xff]
    %v194 = vld [vmem:[#allocation5 + $0x3d0] sm:$0xff]
    %v195 = vld [vmem:[#allocation5 + $0x3d8] sm:$0xff]
    %v196 = vld [vmem:[#allocation5 + $0x3e0] sm:$0xff]
    %v197 = vld [vmem:[#allocation5 + $0x3e8] sm:$0xff]
    %v198 = vld [vmem:[#allocation5 + $0x3f0] sm:$0xff]
    %v199 = vld [vmem:[#allocation5 + $0x3f8] sm:$0xff]
    %v200 = vld [vmem:[#allocation7] sm:$0xff]
    %v201 = vld [vmem:[#allocation7 + $0x8] sm:$0xff]
    %v202 = vld [vmem:[#allocation7 + $0x10] sm:$0xff]
    %v203 = vld [vmem:[#allocation7 + $0x18] sm:$0xff]
    %v204 = vld [vmem:[#allocation7 + $0x20] sm:$0xff]
    %v205 = vld [vmem:[#allocation7 + $0x28] sm:$0xff]
    %v206 = vld [vmem:[#allocation7 + $0x30] sm:$0xff]
    %v207 = vld [vmem:[#allocation7 + $0x38] sm:$0xff]
    %v208 = vld [vmem:[#allocation7 + $0x40] sm:$0xff]
    %v209 = vld [vmem:[#allocation7 + $0x48] sm:$0xff]
    %v210 = vld [vmem:[#allocation7 + $0x50] sm:$0xff]
    %v211 = vld [vmem:[#allocation7 + $0x58] sm:$0xff]
    %v212 = vld [vmem:[#allocation7 + $0x60] sm:$0xff]
    %v213 = vld [vmem:[#allocation7 + $0x68] sm:$0xff]
    %v214 = vld [vmem:[#allocation7 + $0x70] sm:$0xff]
    %v215 = vld [vmem:[#allocation7 + $0x78] sm:$0xff]
    %v216 = vld [vmem:[#allocation7 + $0x80] sm:$0xff]
    %v217 = vld [vmem:[#allocation7 + $0x88] sm:$0xff]
    %v218 = vld [vmem:[#allocation7 + $0x90] sm:$0xff]
    %v219 = vld [vmem:[#allocation7 + $0x98] sm:$0xff]
    %v220 = vld [vmem:[#allocation7 + $0xa0] sm:$0xff]
    %v221 = vld [vmem:[#allocation7 + $0xa8] sm:$0xff]
    %v222 = vld [vmem:[#allocation7 + $0xb0] sm:$0xff]
    %v223 = vld [vmem:[#allocation7 + $0xb8] sm:$0xff]
    %v224 = vld [vmem:[#allocation7 + $0xc0] sm:$0xff]
    %v225 = vld [vmem:[#allocation7 + $0xc8] sm:$0xff]
    %v226 = vld [vmem:[#allocation7 + $0xd0] sm:$0xff]
    %v227 = vld [vmem:[#allocation7 + $0xd8] sm:$0xff]
    %v228 = vld [vmem:[#allocation7 + $0xe0] sm:$0xff]
    %v229 = vld [vmem:[#allocation7 + $0xe8] sm:$0xff]
    %v230 = vld [vmem:[#allocation7 + $0xf0] sm:$0xff]
    %v231 = vld [vmem:[#allocation7 + $0xf8] sm:$0xff]
    %v232 = vld [vmem:[#allocation7 + $0x100] sm:$0xff]
    %v233 = vld [vmem:[#allocation7 + $0x108] sm:$0xff]
    %v234 = vld [vmem:[#allocation7 + $0x110] sm:$0xff]
    %v235 = vld [vmem:[#allocation7 + $0x118] sm:$0xff]
    %v236 = vld [vmem:[#allocation7 + $0x120] sm:$0xff]
    %v237 = vld [vmem:[#allocation7 + $0x128] sm:$0xff]
    %v238 = vld [vmem:[#allocation7 + $0x130] sm:$0xff]
    %v239 = vld [vmem:[#allocation7 + $0x138] sm:$0xff]
    %v240 = vld [vmem:[#allocation7 + $0x140] sm:$0xff]
    %v241 = vld [vmem:[#allocation7 + $0x148] sm:$0xff]
    %v242 = vld [vmem:[#allocation7 + $0x150] sm:$0xff]
    %v243 = vld [vmem:[#allocation7 + $0x158] sm:$0xff]
    %v244 = vld [vmem:[#allocation7 + $0x160] sm:$0xff]
    %v245 = vld [vmem:[#allocation7 + $0x168] sm:$0xff]
    %v246 = vld [vmem:[#allocation7 + $0x170] sm:$0xff]
    %v247 = vld [vmem:[#allocation7 + $0x178] sm:$0xff]
    %v248 = vld [vmem:[#allocation7 + $0x180] sm:$0xff]
    %v249 = vld [vmem:[#allocation7 + $0x188] sm:$0xff]
    %v250 = vld [vmem:[#allocation7 + $0x190] sm:$0xff]
    %v251 = vld [vmem:[#allocation7 + $0x198] sm:$0xff]
    %v252 = vld [vmem:[#allocation7 + $0x1a0] sm:$0xff]
    %v253 = vld [vmem:[#allocation7 + $0x1a8] sm:$0xff]
    %v254 = vld [vmem:[#allocation7 + $0x1b0] sm:$0xff]
    %v255 = vld [vmem:[#allocation7 + $0x1b8] sm:$0xff]
    %v256 = vld [vmem:[#allocation7 + $0x1c0] sm:$0xff]
    %v257 = vld [vmem:[#allocation7 + $0x1c8] sm:$0xff]
    %v258 = vld [vmem:[#allocation7 + $0x1d0] sm:$0xff]
    %v259 = vld [vmem:[#allocation7 + $0x1d8] sm:$0xff]
    %v260 = vld [vmem:[#allocation7 + $0x1e0] sm:$0xff]
    %v261 = vld [vmem:[#allocation7 + $0x1e8] sm:$0xff]
    %v262 = vld [vmem:[#allocation7 + $0x1f0] sm:$0xff]
    %v263 = vld [vmem:[#allocation7 + $0x1f8] sm:$0xff]
    %v264 = vld [vmem:[#allocation7 + $0x200] sm:$0xff]
    %v265 = vld [vmem:[#allocation7 + $0x208] sm:$0xff]
    %v266 = vld [vmem:[#allocation7 + $0x210] sm:$0xff]
    %v267 = vld [vmem:[#allocation7 + $0x218] sm:$0xff]
    %v268 = vld [vmem:[#allocation7 + $0x220] sm:$0xff]
    %v269 = vld [vmem:[#allocation7 + $0x228] sm:$0xff]
    %v270 = vld [vmem:[#allocation7 + $0x230] sm:$0xff]
    %v271 = vld [vmem:[#allocation7 + $0x238] sm:$0xff]
    %v272 = vld [vmem:[#allocation7 + $0x240] sm:$0xff]
    %v273 = vld [vmem:[#allocation7 + $0x248] sm:$0xff]
    %v274 = vld [vmem:[#allocation7 + $0x250] sm:$0xff]
    %v275 = vld [vmem:[#allocation7 + $0x258] sm:$0xff]
    %v276 = vld [vmem:[#allocation7 + $0x260] sm:$0xff]
    %v277 = vld [vmem:[#allocation7 + $0x268] sm:$0xff]
    %v278 = vld [vmem:[#allocation7 + $0x270] sm:$0xff]
    %v279 = vld [vmem:[#allocation7 + $0x278] sm:$0xff]
    %v280 = vld [vmem:[#allocation7 + $0x280] sm:$0xff]
    %v281 = vld [vmem:[#allocation7 + $0x288] sm:$0xff]
    %v282 = vld [vmem:[#allocation7 + $0x290] sm:$0xff]
    %v283 = vld [vmem:[#allocation7 + $0x298] sm:$0xff]
    %v284 = vld [vmem:[#allocation7 + $0x2a0] sm:$0xff]
    %v285 = vld [vmem:[#allocation7 + $0x2a8] sm:$0xff]
    %v286 = vld [vmem:[#allocation7 + $0x2b0] sm:$0xff]
    %v287 = vld [vmem:[#allocation7 + $0x2b8] sm:$0xff]
    %v288 = vld [vmem:[#allocation7 + $0x2c0] sm:$0xff]
    %v289 = vld [vmem:[#allocation7 + $0x2c8] sm:$0xff]
    %v290 = vld [vmem:[#allocation7 + $0x2d0] sm:$0xff]
    %v291 = vld [vmem:[#allocation7 + $0x2d8] sm:$0xff]
    %v292 = vld [vmem:[#allocation7 + $0x2e0] sm:$0xff]
    %v293 = vld [vmem:[#allocation7 + $0x2e8] sm:$0xff]
    %v294 = vld [vmem:[#allocation7 + $0x2f0] sm:$0xff]
    %v295 = vld [vmem:[#allocation7 + $0x2f8] sm:$0xff]
    %v296 = vld [vmem:[#allocation8] ss:$8 sm:$0xf]
    %v297 = vld [vmem:[#allocation8] ss:$8 sm:$0x30]
    %v298 = vor.u32 %v296, %v297
    %s299 = scalar_lea.vmem [#allocation8], 1
    %v300 = vld [vmem:[%s299] ss:$8 sm:$0x3]
    %s301 = scalar_lea.vmem [#allocation8], 2
    %v302 = vld [vmem:[%s301] ss:$8 sm:$0x3]
    %s303 = scalar_lea.vmem [#allocation8], 3
    %v304 = vld [vmem:[%s303] ss:$8 sm:$0x3]
    %s305 = scalar_lea.vmem [#allocation8], 4
    %v306 = vld [vmem:[%s305] ss:$8 sm:$0x3]
    %s307 = scalar_lea.vmem [#allocation8], 5
    %v308 = vld [vmem:[%s307] ss:$8 sm:$0x3]
    %v309 = vld [vmem:[#allocation2] sm:$0xff]
    %v310 = vld [vmem:[#allocation2 + $0x8] sm:$0xf]
    %v311 = vld [vmem:[#allocation2 + $0xc] sm:$0xff]
    %v312 = vld [vmem:[#allocation2 + $0x14] sm:$0xf]
    %v313 = vld [vmem:[#allocation2 + $0x18] sm:$0xff]
    %v314 = vld [vmem:[#allocation2 + $0x20] sm:$0xf]
    %v315 = vld [vmem:[#allocation2 + $0x24] sm:$0xff]
    %v316 = vld [vmem:[#allocation2 + $0x2c] sm:$0xf]
    %v317 = vld [vmem:[#allocation2 + $0x30] sm:$0xff]
    %v318 = vld [vmem:[#allocation2 + $0x38] sm:$0xf]
    %v319 = vld [vmem:[#allocation2 + $0x3c] sm:$0xff]
    %v320 = vld [vmem:[#allocation2 + $0x44] sm:$0xf]
    %v321 = vld [vmem:[#allocation2 + $0x48] sm:$0xff]
    %v322 = vld [vmem:[#allocation2 + $0x50] sm:$0xf]
    %v323 = vld [vmem:[#allocation2 + $0x54] sm:$0xff]
    %v324 = vld [vmem:[#allocation2 + $0x5c] sm:$0xf]
    %v341 = vlaneseq
    %v342 = vshrl.u32 %v341, 7
    %v343 = vsub.s32 0, %v342
    %v344 = vrot.slane %v309, %v343
    %v345 = vlaneseq
    %v346 = vshrl.u32 %v345, 7
    %v347 = vsub.s32 2, %v346
    %v348 = vrot.slane %v309, %v347
    %v349 = vlaneseq
    %v350 = vshrl.u32 %v349, 7
    %v351 = vsub.s32 4, %v350
    %v352 = vrot.slane %v309, %v351
    %v353 = vlaneseq
    %v354 = vshrl.u32 %v353, 7
    %v355 = vsub.s32 6, %v354
    %v356 = vrot.slane %v309, %v355
    %v357 = vlaneseq
    %v358 = vshrl.u32 %v357, 7
    %v359 = vsub.s32 0, %v358
    %v360 = vrot.slane %v310, %v359
    %v361 = vlaneseq
    %v362 = vshrl.u32 %v361, 7
    %v363 = vsub.s32 2, %v362
    %v364 = vrot.slane %v310, %v363
    %v365 = vlaneseq
    %v366 = vshrl.u32 %v365, 7
    %v367 = vsub.s32 0, %v366
    %v368 = vrot.slane %v311, %v367
    %v369 = vlaneseq
    %v370 = vshrl.u32 %v369, 7
    %v371 = vsub.s32 2, %v370
    %v372 = vrot.slane %v311, %v371
    %v373 = vlaneseq
    %v374 = vshrl.u32 %v373, 7
    %v375 = vsub.s32 4, %v374
    %v376 = vrot.slane %v311, %v375
    %v377 = vlaneseq
    %v378 = vshrl.u32 %v377, 7
    %v379 = vsub.s32 6, %v378
    %v380 = vrot.slane %v311, %v379
    %v381 = vlaneseq
    %v382 = vshrl.u32 %v381, 7
    %v383 = vsub.s32 0, %v382
    %v384 = vrot.slane %v312, %v383
    %v385 = vlaneseq
    %v386 = vshrl.u32 %v385, 7
    %v387 = vsub.s32 2, %v386
    %v388 = vrot.slane %v312, %v387
    %v389 = vlaneseq
    %v390 = vshrl.u32 %v389, 7
    %v391 = vsub.s32 0, %v390
    %v392 = vrot.slane %v313, %v391
    %v393 = vlaneseq
    %v394 = vshrl.u32 %v393, 7
    %v395 = vsub.s32 2, %v394
    %v396 = vrot.slane %v313, %v395
    %v397 = vlaneseq
    %v398 = vshrl.u32 %v397, 7
    %v399 = vsub.s32 4, %v398
    %v400 = vrot.slane %v313, %v399
    %v401 = vlaneseq
    %v402 = vshrl.u32 %v401, 7
    %v403 = vsub.s32 6, %v402
    %v404 = vrot.slane %v313, %v403
    %v405 = vlaneseq
    %v406 = vshrl.u32 %v405, 7
    %v407 = vsub.s32 0, %v406
    %v408 = vrot.slane %v314, %v407
    %v409 = vlaneseq
    %v410 = vshrl.u32 %v409, 7
    %v411 = vsub.s32 2, %v410
    %v412 = vrot.slane %v314, %v411
    %v413 = vlaneseq
    %v414 = vshrl.u32 %v413, 7
    %v415 = vsub.s32 0, %v414
    %v416 = vrot.slane %v315, %v415
    %v417 = vlaneseq
    %v418 = vshrl.u32 %v417, 7
    %v419 = vsub.s32 2, %v418
    %v420 = vrot.slane %v315, %v419
    %v421 = vlaneseq
    %v422 = vshrl.u32 %v421, 7
    %v423 = vsub.s32 4, %v422
    %v424 = vrot.slane %v315, %v423
    %v425 = vlaneseq
    %v426 = vshrl.u32 %v425, 7
    %v427 = vsub.s32 6, %v426
    %v428 = vrot.slane %v315, %v427
    %v429 = vlaneseq
    %v430 = vshrl.u32 %v429, 7
    %v431 = vsub.s32 0, %v430
    %v432 = vrot.slane %v316, %v431
    %v433 = vlaneseq
    %v434 = vshrl.u32 %v433, 7
    %v435 = vsub.s32 2, %v434
    %v436 = vrot.slane %v316, %v435
    %v437 = vlaneseq
    %v438 = vshrl.u32 %v437, 7
    %v439 = vsub.s32 0, %v438
    %v440 = vrot.slane %v317, %v439
    %v441 = vlaneseq
    %v442 = vshrl.u32 %v441, 7
    %v443 = vsub.s32 2, %v442
    %v444 = vrot.slane %v317, %v443
    %v445 = vlaneseq
    %v446 = vshrl.u32 %v445, 7
    %v447 = vsub.s32 4, %v446
    %v448 = vrot.slane %v317, %v447
    %v449 = vlaneseq
    %v450 = vshrl.u32 %v449, 7
    %v451 = vsub.s32 6, %v450
    %v452 = vrot.slane %v317, %v451
    %v453 = vlaneseq
    %v454 = vshrl.u32 %v453, 7
    %v455 = vsub.s32 0, %v454
    %v456 = vrot.slane %v318, %v455
    %v457 = vlaneseq
    %v458 = vshrl.u32 %v457, 7
    %v459 = vsub.s32 2, %v458
    %v460 = vrot.slane %v318, %v459
    %v461 = vlaneseq
    %v462 = vshrl.u32 %v461, 7
    %v463 = vsub.s32 0, %v462
    %v464 = vrot.slane %v319, %v463
    %v465 = vlaneseq
    %v466 = vshrl.u32 %v465, 7
    %v467 = vsub.s32 2, %v466
    %v468 = vrot.slane %v319, %v467
    %v469 = vlaneseq
    %v470 = vshrl.u32 %v469, 7
    %v471 = vsub.s32 4, %v470
    %v472 = vrot.slane %v319, %v471
    %v473 = vlaneseq
    %v474 = vshrl.u32 %v473, 7
    %v475 = vsub.s32 6, %v474
    %v476 = vrot.slane %v319, %v475
    %v477 = vlaneseq
    %v478 = vshrl.u32 %v477, 7
    %v479 = vsub.s32 0, %v478
    %v480 = vrot.slane %v320, %v479
    %v481 = vlaneseq
    %v482 = vshrl.u32 %v481, 7
    %v483 = vsub.s32 2, %v482
    %v484 = vrot.slane %v320, %v483
    %v485 = vlaneseq
    %v486 = vshrl.u32 %v485, 7
    %v487 = vsub.s32 0, %v486
    %v488 = vrot.slane %v321, %v487
    %v489 = vlaneseq
    %v490 = vshrl.u32 %v489, 7
    %v491 = vsub.s32 2, %v490
    %v492 = vrot.slane %v321, %v491
    %v493 = vlaneseq
    %v494 = vshrl.u32 %v493, 7
    %v495 = vsub.s32 4, %v494
    %v496 = vrot.slane %v321, %v495
    %v497 = vlaneseq
    %v498 = vshrl.u32 %v497, 7
    %v499 = vsub.s32 6, %v498
    %v500 = vrot.slane %v321, %v499
    %v501 = vlaneseq
    %v502 = vshrl.u32 %v501, 7
    %v503 = vsub.s32 0, %v502
    %v504 = vrot.slane %v322, %v503
    %v505 = vlaneseq
    %v506 = vshrl.u32 %v505, 7
    %v507 = vsub.s32 2, %v506
    %v508 = vrot.slane %v322, %v507
    %v509 = vlaneseq
    %v510 = vshrl.u32 %v509, 7
    %v511 = vsub.s32 0, %v510
    %v512 = vrot.slane %v323, %v511
    %v513 = vlaneseq
    %v514 = vshrl.u32 %v513, 7
    %v515 = vsub.s32 2, %v514
    %v516 = vrot.slane %v323, %v515
    %v517 = vlaneseq
    %v518 = vshrl.u32 %v517, 7
    %v519 = vsub.s32 4, %v518
    %v520 = vrot.slane %v323, %v519
    %v521 = vlaneseq
    %v522 = vshrl.u32 %v521, 7
    %v523 = vsub.s32 6, %v522
    %v524 = vrot.slane %v323, %v523
    %v525 = vlaneseq
    %v526 = vshrl.u32 %v525, 7
    %v527 = vsub.s32 0, %v526
    %v528 = vrot.slane %v324, %v527
    %v529 = vlaneseq
    %v530 = vshrl.u32 %v529, 7
    %v531 = vsub.s32 2, %v530
    %v532 = vrot.slane %v324, %v531
    %v581 = vpack.c.bf16 %v344, %v344
    %v582 = vpack.c.bf16 %v348, %v348
    %v583 = vpack.c.bf16 %v352, %v352
    %v584 = vpack.c.bf16 %v356, %v356
    %v585 = vpack.c.bf16 %v360, %v360
    %v586 = vpack.c.bf16 %v364, %v364
    %v587 = vpack.c.bf16 %v368, %v368
    %v588 = vpack.c.bf16 %v372, %v372
    %v589 = vpack.c.bf16 %v376, %v376
    %v590 = vpack.c.bf16 %v380, %v380
    %v591 = vpack.c.bf16 %v384, %v384
    %v592 = vpack.c.bf16 %v388, %v388
    %v593 = vpack.c.bf16 %v392, %v392
    %v594 = vpack.c.bf16 %v396, %v396
    %v595 = vpack.c.bf16 %v400, %v400
    %v596 = vpack.c.bf16 %v404, %v404
    %v597 = vpack.c.bf16 %v408, %v408
    %v598 = vpack.c.bf16 %v412, %v412
    %v599 = vpack.c.bf16 %v416, %v416
    %v600 = vpack.c.bf16 %v420, %v420
    %v601 = vpack.c.bf16 %v424, %v424
    %v602 = vpack.c.bf16 %v428, %v428
    %v603 = vpack.c.bf16 %v432, %v432
    %v604 = vpack.c.bf16 %v436, %v436
    %v605 = vpack.c.bf16 %v440, %v440
    %v606 = vpack.c.bf16 %v444, %v444
    %v607 = vpack.c.bf16 %v448, %v448
    %v608 = vpack.c.bf16 %v452, %v452
    %v609 = vpack.c.bf16 %v456, %v456
    %v610 = vpack.c.bf16 %v460, %v460
    %v611 = vpack.c.bf16 %v464, %v464
    %v612 = vpack.c.bf16 %v468, %v468
    %v613 = vpack.c.bf16 %v472, %v472
    %v614 = vpack.c.bf16 %v476, %v476
    %v615 = vpack.c.bf16 %v480, %v480
    %v616 = vpack.c.bf16 %v484, %v484
    %v617 = vpack.c.bf16 %v488, %v488
    %v618 = vpack.c.bf16 %v492, %v492
    %v619 = vpack.c.bf16 %v496, %v496
    %v620 = vpack.c.bf16 %v500, %v500
    %v621 = vpack.c.bf16 %v504, %v504
    %v622 = vpack.c.bf16 %v508, %v508
    %v623 = vpack.c.bf16 %v512, %v512
    %v624 = vpack.c.bf16 %v516, %v516
    %v625 = vpack.c.bf16 %v520, %v520
    %v626 = vpack.c.bf16 %v524, %v524
    %v627 = vpack.c.bf16 %v528, %v528
    %v628 = vpack.c.bf16 %v532, %v532
    %v630 = vlaneseq
    %v631 = vshrl.u32 %v630, 7
    %v632 = vsub.s32 0, %v631
    %v633 = vrot.slane %v300, %v632
    %v634 = vlaneseq
    %v635 = vshrl.u32 %v634, 7
    %v636 = vsub.s32 1, %v635
    %v637 = vrot.slane %v300, %v636
    %v688 = vunpack.c.l.b16 %v581
    %v689 = vunpack.c.l.b16 %v582
    %v690 = vunpack.c.l.b16 %v583
    %v691 = vunpack.c.l.b16 %v584
    %v692 = vunpack.c.l.b16 %v585
    %v693 = vunpack.c.l.b16 %v586
    %v694 = vunpack.c.l.b16 %v587
    %v695 = vunpack.c.l.b16 %v588
    %v696 = vunpack.c.l.b16 %v589
    %v697 = vunpack.c.l.b16 %v590
    %v698 = vunpack.c.l.b16 %v591
    %v699 = vunpack.c.l.b16 %v592
    %v700 = vunpack.c.l.b16 %v593
    %v701 = vunpack.c.l.b16 %v594
    %v702 = vunpack.c.l.b16 %v595
    %v703 = vunpack.c.l.b16 %v596
    %v704 = vunpack.c.l.b16 %v597
    %v705 = vunpack.c.l.b16 %v598
    %v706 = vunpack.c.l.b16 %v599
    %v707 = vunpack.c.l.b16 %v600
    %v708 = vunpack.c.l.b16 %v601
    %v709 = vunpack.c.l.b16 %v602
    %v710 = vunpack.c.l.b16 %v603
    %v711 = vunpack.c.l.b16 %v604
    %v712 = vunpack.c.l.b16 %v605
    %v713 = vunpack.c.l.b16 %v606
    %v714 = vunpack.c.l.b16 %v607
    %v715 = vunpack.c.l.b16 %v608
    %v716 = vunpack.c.l.b16 %v609
    %v717 = vunpack.c.l.b16 %v610
    %v718 = vunpack.c.l.b16 %v611
    %v719 = vunpack.c.l.b16 %v612
    %v720 = vunpack.c.l.b16 %v613
    %v721 = vunpack.c.l.b16 %v614
    %v722 = vunpack.c.l.b16 %v615
    %v723 = vunpack.c.l.b16 %v616
    %v724 = vunpack.c.l.b16 %v617
    %v725 = vunpack.c.l.b16 %v618
    %v726 = vunpack.c.l.b16 %v619
    %v727 = vunpack.c.l.b16 %v620
    %v728 = vunpack.c.l.b16 %v621
    %v729 = vunpack.c.l.b16 %v622
    %v730 = vunpack.c.l.b16 %v623
    %v731 = vunpack.c.l.b16 %v624
    %v732 = vunpack.c.l.b16 %v625
    %v733 = vunpack.c.l.b16 %v626
    %v734 = vunpack.c.l.b16 %v627
    %v735 = vunpack.c.l.b16 %v628
    %v736 = vrot.slane %v694, 7
    %vm737 = vcmask 1041409
    %v738 = vsel %vm737, %v736, %v688
    %v739 = vrot.slane %v700, 6
    %vm740 = vcmask 1042434
    %v741 = vsel %vm740, %v739, %v738
    %v742 = vrot.slane %v706, 5
    %vm743 = vcmask 1043459
    %v744 = vsel %vm743, %v742, %v741
    %v745 = vrot.slane %v712, 4
    %vm746 = vcmask 1044484
    %v747 = vsel %vm746, %v745, %v744
    %v748 = vrot.slane %v718, 3
    %vm749 = vcmask 1045509
    %v750 = vsel %vm749, %v748, %v747
    %v751 = vrot.slane %v724, 2
    %vm752 = vcmask 1046534
    %v753 = vsel %vm752, %v751, %v750
    %v754 = vrot.slane %v730, 1
    %vm755 = vcmask 1047559
    %v756 = vsel %vm755, %v754, %v753
    %v757 = vrot.slane %v695, 7
    %v758 = vsel %vm737, %v757, %v689
    %v759 = vrot.slane %v701, 6
    %v760 = vsel %vm740, %v759, %v758
    %v761 = vrot.slane %v707, 5
    %v762 = vsel %vm743, %v761, %v760
    %v763 = vrot.slane %v713, 4
    %v764 = vsel %vm746, %v763, %v762
    %v765 = vrot.slane %v719, 3
    %v766 = vsel %vm749, %v765, %v764
    %v767 = vrot.slane %v725, 2
    %v768 = vsel %vm752, %v767, %v766
    %v769 = vrot.slane %v731, 1
    %v770 = vsel %vm755, %v769, %v768
    %v771 = vrot.slane %v696, 7
    %v772 = vsel %vm737, %v771, %v690
    %v773 = vrot.slane %v702, 6
    %v774 = vsel %vm740, %v773, %v772
    %v775 = vrot.slane %v708, 5
    %v776 = vsel %vm743, %v775, %v774
    %v777 = vrot.slane %v714, 4
    %v778 = vsel %vm746, %v777, %v776
    %v779 = vrot.slane %v720, 3
    %v780 = vsel %vm749, %v779, %v778
    %v781 = vrot.slane %v726, 2
    %v782 = vsel %vm752, %v781, %v780
    %v783 = vrot.slane %v732, 1
    %v784 = vsel %vm755, %v783, %v782
    %v785 = vrot.slane %v697, 7
    %v786 = vsel %vm737, %v785, %v691
    %v787 = vrot.slane %v703, 6
    %v788 = vsel %vm740, %v787, %v786
    %v789 = vrot.slane %v709, 5
    %v790 = vsel %vm743, %v789, %v788
    %v791 = vrot.slane %v715, 4
    %v792 = vsel %vm746, %v791, %v790
    %v793 = vrot.slane %v721, 3
    %v794 = vsel %vm749, %v793, %v792
    %v795 = vrot.slane %v727, 2
    %v796 = vsel %vm752, %v795, %v794
    %v797 = vrot.slane %v733, 1
    %v798 = vsel %vm755, %v797, %v796
    %v799 = vrot.slane %v698, 7
    %v800 = vsel %vm737, %v799, %v692
    %v801 = vrot.slane %v704, 6
    %v802 = vsel %vm740, %v801, %v800
    %v803 = vrot.slane %v710, 5
    %v804 = vsel %vm743, %v803, %v802
    %v805 = vrot.slane %v716, 4
    %v806 = vsel %vm746, %v805, %v804
    %v807 = vrot.slane %v722, 3
    %v808 = vsel %vm749, %v807, %v806
    %v809 = vrot.slane %v728, 2
    %v810 = vsel %vm752, %v809, %v808
    %v811 = vrot.slane %v734, 1
    %v812 = vsel %vm755, %v811, %v810
    %v813 = vrot.slane %v699, 7
    %v814 = vsel %vm737, %v813, %v693
    %v815 = vrot.slane %v705, 6
    %v816 = vsel %vm740, %v815, %v814
    %v817 = vrot.slane %v711, 5
    %v818 = vsel %vm743, %v817, %v816
    %v819 = vrot.slane %v717, 4
    %v820 = vsel %vm746, %v819, %v818
    %v821 = vrot.slane %v723, 3
    %v822 = vsel %vm749, %v821, %v820
    %v823 = vrot.slane %v729, 2
    %v824 = vsel %vm752, %v823, %v822
    %v825 = vrot.slane %v735, 1
    %v826 = vsel %vm755, %v825, %v824
    %v827 = vpack.c.b16 %v756, %v756
    %v828 = vpack.c.b16 %v770, %v770
    %v829 = vpack.c.b16 %v784, %v784
    %v830 = vpack.c.b16 %v798, %v798
    %v831 = vpack.c.b16 %v812, %v812
    %v832 = vpack.c.b16 %v826, %v826
    %v935 = vunpack.c.l.b16 %v72
    %v936 = vunpack.c.h.b16 %v72
    %v937 = vunpack.c.l.b16 %v73
    %v938 = vunpack.c.h.b16 %v73
    %v939 = vunpack.c.l.b16 %v74
    %v940 = vunpack.c.h.b16 %v74
    %v941 = vunpack.c.l.b16 %v75
    %v942 = vunpack.c.h.b16 %v75
    %v943 = vunpack.c.l.b16 %v76
    %v944 = vunpack.c.h.b16 %v76
    %v945 = vunpack.c.l.b16 %v77
    %v946 = vunpack.c.h.b16 %v77
    %v947 = vunpack.c.l.b16 %v78
    %v948 = vunpack.c.h.b16 %v78
    %v949 = vunpack.c.l.b16 %v79
    %v950 = vunpack.c.h.b16 %v79
    %v951 = vunpack.c.l.b16 %v80
    %v952 = vunpack.c.h.b16 %v80
    %v953 = vunpack.c.l.b16 %v81
    %v954 = vunpack.c.h.b16 %v81
    %v955 = vunpack.c.l.b16 %v82
    %v956 = vunpack.c.h.b16 %v82
    %v957 = vunpack.c.l.b16 %v83
    %v958 = vunpack.c.h.b16 %v83
    %v959 = vunpack.c.l.b16 %v84
    %v960 = vunpack.c.h.b16 %v84
    %v961 = vunpack.c.l.b16 %v85
    %v962 = vunpack.c.h.b16 %v85
    %v963 = vunpack.c.l.b16 %v86
    %v964 = vunpack.c.h.b16 %v86
    %v965 = vunpack.c.l.b16 %v87
    %v966 = vunpack.c.h.b16 %v87
    %v967 = vunpack.c.l.b16 %v88
    %v968 = vunpack.c.h.b16 %v88
    %v969 = vunpack.c.l.b16 %v89
    %v970 = vunpack.c.h.b16 %v89
    %v971 = vunpack.c.l.b16 %v90
    %v972 = vunpack.c.h.b16 %v90
    %v973 = vunpack.c.l.b16 %v91
    %v974 = vunpack.c.h.b16 %v91
    %v975 = vunpack.c.l.b16 %v92
    %v976 = vunpack.c.h.b16 %v92
    %v977 = vunpack.c.l.b16 %v93
    %v978 = vunpack.c.h.b16 %v93
    %v979 = vunpack.c.l.b16 %v94
    %v980 = vunpack.c.h.b16 %v94
    %v981 = vunpack.c.l.b16 %v95
    %v982 = vunpack.c.h.b16 %v95
    %v983 = vunpack.c.l.b16 %v96
    %v984 = vunpack.c.h.b16 %v96
    %v985 = vunpack.c.l.b16 %v97
    %v986 = vunpack.c.h.b16 %v97
    %v987 = vunpack.c.l.b16 %v98
    %v988 = vunpack.c.h.b16 %v98
    %v989 = vunpack.c.l.b16 %v99
    %v990 = vunpack.c.h.b16 %v99
    %v991 = vunpack.c.l.b16 %v100
    %v992 = vunpack.c.h.b16 %v100
    %v993 = vunpack.c.l.b16 %v101
    %v994 = vunpack.c.h.b16 %v101
    %v995 = vunpack.c.l.b16 %v102
    %v996 = vunpack.c.h.b16 %v102
    %v997 = vunpack.c.l.b16 %v103
    %v998 = vunpack.c.h.b16 %v103
    %v999 = vunpack.c.l.b16 %v104
    %v1000 = vunpack.c.h.b16 %v104
    %v1001 = vunpack.c.l.b16 %v105
    %v1002 = vunpack.c.h.b16 %v105
    %v1003 = vunpack.c.l.b16 %v106
    %v1004 = vunpack.c.h.b16 %v106
    %v1005 = vunpack.c.l.b16 %v107
    %v1006 = vunpack.c.h.b16 %v107
    %v1007 = vunpack.c.l.b16 %v108
    %v1008 = vunpack.c.h.b16 %v108
    %v1009 = vunpack.c.l.b16 %v109
    %v1010 = vunpack.c.h.b16 %v109
    %v1011 = vunpack.c.l.b16 %v110
    %v1012 = vunpack.c.h.b16 %v110
    %v1013 = vunpack.c.l.b16 %v111
    %v1014 = vunpack.c.h.b16 %v111
    %v1015 = vunpack.c.l.b16 %v112
    %v1016 = vunpack.c.h.b16 %v112
    %v1017 = vunpack.c.l.b16 %v113
    %v1018 = vunpack.c.h.b16 %v113
    %v1019 = vunpack.c.l.b16 %v114
    %v1020 = vunpack.c.h.b16 %v114
    %v1021 = vunpack.c.l.b16 %v115
    %v1022 = vunpack.c.h.b16 %v115
    %v1023 = vunpack.c.l.b16 %v116
    %v1024 = vunpack.c.h.b16 %v116
    %v1025 = vunpack.c.l.b16 %v117
    %v1026 = vunpack.c.h.b16 %v117
    %v1027 = vunpack.c.l.b16 %v118
    %v1028 = vunpack.c.h.b16 %v118
    %v1029 = vunpack.c.l.b16 %v119
    %v1030 = vunpack.c.h.b16 %v119
    %v1031 = vunpack.c.l.b16 %v120
    %v1032 = vunpack.c.h.b16 %v120
    %v1033 = vunpack.c.l.b16 %v121
    %v1034 = vunpack.c.h.b16 %v121
    %v1035 = vunpack.c.l.b16 %v122
    %v1036 = vunpack.c.h.b16 %v122
    %v1037 = vunpack.c.l.b16 %v123
    %v1038 = vunpack.c.h.b16 %v123
    %v1039 = vunpack.c.l.b16 %v124
    %v1040 = vunpack.c.h.b16 %v124
    %v1041 = vunpack.c.l.b16 %v125
    %v1042 = vunpack.c.h.b16 %v125
    %v1043 = vunpack.c.l.b16 %v126
    %v1044 = vunpack.c.h.b16 %v126
    %v1045 = vunpack.c.l.b16 %v127
    %v1046 = vunpack.c.h.b16 %v127
    %v1047 = vunpack.c.l.b16 %v128
    %v1048 = vunpack.c.h.b16 %v128
    %v1049 = vunpack.c.l.b16 %v129
    %v1050 = vunpack.c.h.b16 %v129
    %v1051 = vunpack.c.l.b16 %v130
    %v1052 = vunpack.c.h.b16 %v130
    %v1053 = vunpack.c.l.b16 %v131
    %v1054 = vunpack.c.h.b16 %v131
    %v1055 = vunpack.c.l.b16 %v132
    %v1056 = vunpack.c.h.b16 %v132
    %v1057 = vunpack.c.l.b16 %v133
    %v1058 = vunpack.c.h.b16 %v133
    %v1059 = vunpack.c.l.b16 %v134
    %v1060 = vunpack.c.h.b16 %v134
    %v1061 = vunpack.c.l.b16 %v135
    %v1062 = vunpack.c.h.b16 %v135
    %v1063 = vunpack.c.l.b16 %v136
    %v1064 = vunpack.c.h.b16 %v136
    %v1065 = vunpack.c.l.b16 %v137
    %v1066 = vunpack.c.h.b16 %v137
    %v1067 = vunpack.c.l.b16 %v138
    %v1068 = vunpack.c.h.b16 %v138
    %v1069 = vunpack.c.l.b16 %v139
    %v1070 = vunpack.c.h.b16 %v139
    %v1071 = vunpack.c.l.b16 %v140
    %v1072 = vunpack.c.h.b16 %v140
    %v1073 = vunpack.c.l.b16 %v141
    %v1074 = vunpack.c.h.b16 %v141
    %v1075 = vunpack.c.l.b16 %v142
    %v1076 = vunpack.c.h.b16 %v142
    %v1077 = vunpack.c.l.b16 %v143
    %v1078 = vunpack.c.h.b16 %v143
    %v1079 = vunpack.c.l.b16 %v144
    %v1080 = vunpack.c.h.b16 %v144
    %v1081 = vunpack.c.l.b16 %v145
    %v1082 = vunpack.c.h.b16 %v145
    %v1083 = vunpack.c.l.b16 %v146
    %v1084 = vunpack.c.h.b16 %v146
    %v1085 = vunpack.c.l.b16 %v147
    %v1086 = vunpack.c.h.b16 %v147
    %v1087 = vunpack.c.l.b16 %v148
    %v1088 = vunpack.c.h.b16 %v148
    %v1089 = vunpack.c.l.b16 %v149
    %v1090 = vunpack.c.h.b16 %v149
    %v1091 = vunpack.c.l.b16 %v150
    %v1092 = vunpack.c.h.b16 %v150
    %v1093 = vunpack.c.l.b16 %v151
    %v1094 = vunpack.c.h.b16 %v151
    %v1095 = vunpack.c.l.b16 %v152
    %v1096 = vunpack.c.h.b16 %v152
    %v1097 = vunpack.c.l.b16 %v153
    %v1098 = vunpack.c.h.b16 %v153
    %v1099 = vunpack.c.l.b16 %v154
    %v1100 = vunpack.c.h.b16 %v154
    %v1101 = vunpack.c.l.b16 %v155
    %v1102 = vunpack.c.h.b16 %v155
    %v1103 = vunpack.c.l.b16 %v156
    %v1104 = vunpack.c.h.b16 %v156
    %v1105 = vunpack.c.l.b16 %v157
    %v1106 = vunpack.c.h.b16 %v157
    %v1107 = vunpack.c.l.b16 %v158
    %v1108 = vunpack.c.h.b16 %v158
    %v1109 = vunpack.c.l.b16 %v159
    %v1110 = vunpack.c.h.b16 %v159
    %v1111 = vunpack.c.l.b16 %v160
    %v1112 = vunpack.c.h.b16 %v160
    %v1113 = vunpack.c.l.b16 %v161
    %v1114 = vunpack.c.h.b16 %v161
    %v1115 = vunpack.c.l.b16 %v162
    %v1116 = vunpack.c.h.b16 %v162
    %v1117 = vunpack.c.l.b16 %v163
    %v1118 = vunpack.c.h.b16 %v163
    %v1119 = vunpack.c.l.b16 %v164
    %v1120 = vunpack.c.h.b16 %v164
    %v1121 = vunpack.c.l.b16 %v165
    %v1122 = vunpack.c.h.b16 %v165
    %v1123 = vunpack.c.l.b16 %v166
    %v1124 = vunpack.c.h.b16 %v166
    %v1125 = vunpack.c.l.b16 %v167
    %v1126 = vunpack.c.h.b16 %v167
    %v1127 = vpack.c.b16 %v937, %v935
    %v1128 = vpack.c.b16 %v938, %v936
    %v1129 = vpack.c.b16 %v941, %v939
    %v1130 = vpack.c.b16 %v942, %v940
    %v1131 = vpack.c.b16 %v945, %v943
    %v1132 = vpack.c.b16 %v946, %v944
    %v1133 = vpack.c.b16 %v949, %v947
    %v1134 = vpack.c.b16 %v950, %v948
    %v1135 = vpack.c.b16 %v953, %v951
    %v1136 = vpack.c.b16 %v954, %v952
    %v1137 = vpack.c.b16 %v957, %v955
    %v1138 = vpack.c.b16 %v958, %v956
    %v1139 = vpack.c.b16 %v961, %v959
    %v1140 = vpack.c.b16 %v962, %v960
    %v1141 = vpack.c.b16 %v965, %v963
    %v1142 = vpack.c.b16 %v966, %v964
    %v1143 = vpack.c.b16 %v969, %v967
    %v1144 = vpack.c.b16 %v970, %v968
    %v1145 = vpack.c.b16 %v973, %v971
    %v1146 = vpack.c.b16 %v974, %v972
    %v1147 = vpack.c.b16 %v977, %v975
    %v1148 = vpack.c.b16 %v978, %v976
    %v1149 = vpack.c.b16 %v981, %v979
    %v1150 = vpack.c.b16 %v982, %v980
    %v1151 = vpack.c.b16 %v985, %v983
    %v1152 = vpack.c.b16 %v986, %v984
    %v1153 = vpack.c.b16 %v989, %v987
    %v1154 = vpack.c.b16 %v990, %v988
    %v1155 = vpack.c.b16 %v993, %v991
    %v1156 = vpack.c.b16 %v994, %v992
    %v1157 = vpack.c.b16 %v997, %v995
    %v1158 = vpack.c.b16 %v998, %v996
    %v1159 = vpack.c.b16 %v1001, %v999
    %v1160 = vpack.c.b16 %v1002, %v1000
    %v1161 = vpack.c.b16 %v1005, %v1003
    %v1162 = vpack.c.b16 %v1006, %v1004
    %v1163 = vpack.c.b16 %v1009, %v1007
    %v1164 = vpack.c.b16 %v1010, %v1008
    %v1165 = vpack.c.b16 %v1013, %v1011
    %v1166 = vpack.c.b16 %v1014, %v1012
    %v1167 = vpack.c.b16 %v1017, %v1015
    %v1168 = vpack.c.b16 %v1018, %v1016
    %v1169 = vpack.c.b16 %v1021, %v1019
    %v1170 = vpack.c.b16 %v1022, %v1020
    %v1171 = vpack.c.b16 %v1025, %v1023
    %v1172 = vpack.c.b16 %v1026, %v1024
    %v1173 = vpack.c.b16 %v1029, %v1027
    %v1174 = vpack.c.b16 %v1030, %v1028
    %v1175 = vpack.c.b16 %v1033, %v1031
    %v1176 = vpack.c.b16 %v1034, %v1032
    %v1177 = vpack.c.b16 %v1037, %v1035
    %v1178 = vpack.c.b16 %v1038, %v1036
    %v1179 = vpack.c.b16 %v1041, %v1039
    %v1180 = vpack.c.b16 %v1042, %v1040
    %v1181 = vpack.c.b16 %v1045, %v1043
    %v1182 = vpack.c.b16 %v1046, %v1044
    %v1183 = vpack.c.b16 %v1049, %v1047
    %v1184 = vpack.c.b16 %v1050, %v1048
    %v1185 = vpack.c.b16 %v1053, %v1051
    %v1186 = vpack.c.b16 %v1054, %v1052
    %v1187 = vpack.c.b16 %v1057, %v1055
    %v1188 = vpack.c.b16 %v1058, %v1056
    %v1189 = vpack.c.b16 %v1061, %v1059
    %v1190 = vpack.c.b16 %v1062, %v1060
    %v1191 = vpack.c.b16 %v1065, %v1063
    %v1192 = vpack.c.b16 %v1066, %v1064
    %v1193 = vpack.c.b16 %v1069, %v1067
    %v1194 = vpack.c.b16 %v1070, %v1068
    %v1195 = vpack.c.b16 %v1073, %v1071
    %v1196 = vpack.c.b16 %v1074, %v1072
    %v1197 = vpack.c.b16 %v1077, %v1075
    %v1198 = vpack.c.b16 %v1078, %v1076
    %v1199 = vpack.c.b16 %v1081, %v1079
    %v1200 = vpack.c.b16 %v1082, %v1080
    %v1201 = vpack.c.b16 %v1085, %v1083
    %v1202 = vpack.c.b16 %v1086, %v1084
    %v1203 = vpack.c.b16 %v1089, %v1087
    %v1204 = vpack.c.b16 %v1090, %v1088
    %v1205 = vpack.c.b16 %v1093, %v1091
    %v1206 = vpack.c.b16 %v1094, %v1092
    %v1207 = vpack.c.b16 %v1097, %v1095
    %v1208 = vpack.c.b16 %v1098, %v1096
    %v1209 = vpack.c.b16 %v1101, %v1099
    %v1210 = vpack.c.b16 %v1102, %v1100
    %v1211 = vpack.c.b16 %v1105, %v1103
    %v1212 = vpack.c.b16 %v1106, %v1104
    %v1213 = vpack.c.b16 %v1109, %v1107
    %v1214 = vpack.c.b16 %v1110, %v1108
    %v1215 = vpack.c.b16 %v1113, %v1111
    %v1216 = vpack.c.b16 %v1114, %v1112
    %v1217 = vpack.c.b16 %v1117, %v1115
    %v1218 = vpack.c.b16 %v1118, %v1116
    %v1219 = vpack.c.b16 %v1121, %v1119
    %v1220 = vpack.c.b16 %v1122, %v1120
    %v1221 = vpack.c.b16 %v1125, %v1123
    %v1222 = vpack.c.b16 %v1126, %v1124
    %1319 = vmatprep.subr.bf16.mxu0 %v1128
    %1320 = vmatpush1.bf16.msra.mxu0 %v1127
    %1321 = vmatprep.subr.bf16.mxu0 %v1130
    %1322 = vmatpush1.bf16.msra.mxu0 %v1129
    %1323 = vmatprep.subr.bf16.mxu0 %v1132
    %1324 = vmatpush1.bf16.msra.mxu0 %v1131
    %1325 = vmatprep.subr.bf16.mxu0 %v1134
    %1326 = vmatpush1.bf16.msra.mxu0 %v1133
    %1327 = vmatprep.subr.bf16.mxu0 %v1136
    %1328 = vmatpush1.bf16.msra.mxu0 %v1135
    %1329 = vmatprep.subr.bf16.mxu0 %v1138
    %1330 = vmatpush1.bf16.msra.mxu0 %v1137
    %1331 = vmatprep.subr.bf16.mxu0 %v1140
    %1332 = vmatpush1.bf16.msra.mxu0 %v1139
    %1333 = vmatprep.subr.bf16.mxu0 %v1142
    %1334 = vmatpush1.bf16.msra.mxu0 %v1141
    %1335 = vmatprep.subr.bf16.mxu0 %v1144
    %1336 = vmatpush1.bf16.msra.mxu0 %v1143
    %1337 = vmatprep.subr.bf16.mxu0 %v1146
    %1338 = vmatpush1.bf16.msra.mxu0 %v1145
    %1339 = vmatprep.subr.bf16.mxu0 %v1148
    %1340 = vmatpush1.bf16.msra.mxu0 %v1147
    %1341 = vmatprep.subr.bf16.mxu0 %v1150
    %1342 = vmatpush1.bf16.msra.mxu0 %v1149
    %1343 = vmatprep.subr.bf16.mxu0 %v1152
    %1344 = vmatpush1.bf16.msra.mxu0 %v1151
    %1345 = vmatprep.subr.bf16.mxu0 %v1154
    %1346 = vmatpush1.bf16.msra.mxu0 %v1153
    %1347 = vmatprep.subr.bf16.mxu0 %v1156
    %1348 = vmatpush1.bf16.msra.mxu0 %v1155
    %1349 = vmatprep.subr.bf16.mxu0 %v1158
    %1350 = vmatpush1.bf16.msra.mxu0 %v1157
    %1351 = vmatprep.mubr.bf16.mxu0 %v828
    %1352 = vmatmul.mubr.bf16.gmra.mrb[0].mxu0 %v827
    %v1353 = vpop.f32.mrb[0].mxu0
    %v1354 = vadd.f32 %v633, %v1353
    %v1355 = vpop.f32.mrb[0].mxu0
    %v1356 = vadd.f32 %v637, %v1355
    %v1357 = vpop.f32.mrb[0].mxu0
    %v1358 = vpop.f32.mrb[0].mxu0
    %1359 = vdwg.mxu0
    %1360 = vmatprep.subr.bf16.mxu0 %v1160
    %1361 = vmatpush1.bf16.msra.mxu0 %v1159
    %1362 = vmatprep.subr.bf16.mxu0 %v1162
    %1363 = vmatpush1.bf16.msra.mxu0 %v1161
    %1364 = vmatprep.subr.bf16.mxu0 %v1164
    %1365 = vmatpush1.bf16.msra.mxu0 %v1163
    %1366 = vmatprep.subr.bf16.mxu0 %v1166
    %1367 = vmatpush1.bf16.msra.mxu0 %v1165
    %1368 = vmatprep.subr.bf16.mxu0 %v1168
    %1369 = vmatpush1.bf16.msra.mxu0 %v1167
    %1370 = vmatprep.subr.bf16.mxu0 %v1170
    %1371 = vmatpush1.bf16.msra.mxu0 %v1169
    %1372 = vmatprep.subr.bf16.mxu0 %v1172
    %1373 = vmatpush1.bf16.msra.mxu0 %v1171
    %1374 = vmatprep.subr.bf16.mxu0 %v1174
    %1375 = vmatpush1.bf16.msra.mxu0 %v1173
    %1376 = vmatprep.subr.bf16.mxu0 %v1176
    %1377 = vmatpush1.bf16.msra.mxu0 %v1175
    %1378 = vmatprep.subr.bf16.mxu0 %v1178
    %1379 = vmatpush1.bf16.msra.mxu0 %v1177
    %1380 = vmatprep.subr.bf16.mxu0 %v1180
    %1381 = vmatpush1.bf16.msra.mxu0 %v1179
    %1382 = vmatprep.subr.bf16.mxu0 %v1182
    %1383 = vmatpush1.bf16.msra.mxu0 %v1181
    %1384 = vmatprep.subr.bf16.mxu0 %v1184
    %1385 = vmatpush1.bf16.msra.mxu0 %v1183
    %1386 = vmatprep.subr.bf16.mxu0 %v1186
    %1387 = vmatpush1.bf16.msra.mxu0 %v1185
    %1388 = vmatprep.subr.bf16.mxu0 %v1188
    %1389 = vmatpush1.bf16.msra.mxu0 %v1187
    %1390 = vmatprep.subr.bf16.mxu0 %v1190
    %1391 = vmatpush1.bf16.msra.mxu0 %v1189
    %1392 = vmatprep.mubr.bf16.mxu0 %v830
    %1393 = vmatmul.mubr.bf16.gmra.mrb[0].mxu0 %v829
    %v1394 = vpop.f32.mrb[0].mxu0
    %v1395 = vadd.f32 %v1354, %v1394
    %v1396 = vpop.f32.mrb[0].mxu0
    %v1397 = vadd.f32 %v1356, %v1396
    %v1398 = vpop.f32.mrb[0].mxu0
    %v1399 = vpop.f32.mrb[0].mxu0
    %1400 = vdwg.mxu0
    %1401 = vmatprep.subr.bf16.mxu0 %v1192
    %1402 = vmatpush1.bf16.msra.mxu0 %v1191
    %1403 = vmatprep.subr.bf16.mxu0 %v1194
    %1404 = vmatpush1.bf16.msra.mxu0 %v1193
    %1405 = vmatprep.subr.bf16.mxu0 %v1196
    %1406 = vmatpush1.bf16.msra.mxu0 %v1195
    %1407 = vmatprep.subr.bf16.mxu0 %v1198
    %1408 = vmatpush1.bf16.msra.mxu0 %v1197
    %1409 = vmatprep.subr.bf16.mxu0 %v1200
    %1410 = vmatpush1.bf16.msra.mxu0 %v1199
    %1411 = vmatprep.subr.bf16.mxu0 %v1202
    %1412 = vmatpush1.bf16.msra.mxu0 %v1201
    %1413 = vmatprep.subr.bf16.mxu0 %v1204
    %1414 = vmatpush1.bf16.msra.mxu0 %v1203
    %1415 = vmatprep.subr.bf16.mxu0 %v1206
    %1416 = vmatpush1.bf16.msra.mxu0 %v1205
    %1417 = vmatprep.subr.bf16.mxu0 %v1208
    %1418 = vmatpush1.bf16.msra.mxu0 %v1207
    %1419 = vmatprep.subr.bf16.mxu0 %v1210
    %1420 = vmatpush1.bf16.msra.mxu0 %v1209
    %1421 = vmatprep.subr.bf16.mxu0 %v1212
    %1422 = vmatpush1.bf16.msra.mxu0 %v1211
    %1423 = vmatprep.subr.bf16.mxu0 %v1214
    %1424 = vmatpush1.bf16.msra.mxu0 %v1213
    %1425 = vmatprep.subr.bf16.mxu0 %v1216
    %1426 = vmatpush1.bf16.msra.mxu0 %v1215
    %1427 = vmatprep.subr.bf16.mxu0 %v1218
    %1428 = vmatpush1.bf16.msra.mxu0 %v1217
    %1429 = vmatprep.subr.bf16.mxu0 %v1220
    %1430 = vmatpush1.bf16.msra.mxu0 %v1219
    %1431 = vmatprep.subr.bf16.mxu0 %v1222
    %1432 = vmatpush1.bf16.msra.mxu0 %v1221
    %1433 = vmatprep.mubr.bf16.mxu0 %v832
    %1434 = vmatmul.mubr.bf16.gmra.mrb[0].mxu0 %v831
    %v1435 = vpop.f32.mrb[0].mxu0
    %v1436 = vadd.f32 %v1395, %v1435
    %v1437 = vpop.f32.mrb[0].mxu0
    %v1438 = vadd.f32 %v1397, %v1437
    %v1439 = vpop.f32.mrb[0].mxu0
    %v1440 = vpop.f32.mrb[0].mxu0
    %1441 = vdwg.mxu0
    %v1442 = vadd.f32 %v1436, %v1438
    %1443 = vadd.xlane.f32.xlu0 %v1442
    %v1444 = vpop.xlane.xlu0 %1443
    %v1445 = vrcp.pop 256.0
    %v1446 = vmul.f32 %v1444, %v1445
    %v1447 = vsub.f32 %v1436, %v1446
    %v1448 = vsub.f32 %v1438, %v1446
    %v1449 = vmul.f32 %v1447, %v1447
    %v1450 = vmul.f32 %v1448, %v1448
    %v1451 = vadd.f32 %v1449, %v1450
    %1452 = vadd.xlane.f32.xlu0 %v1451
    %v1453 = vpop.xlane.xlu0 %1452
    %v1454 = vmul.f32 %v1453, %v1445
    %v1455 = vadd.f32 %v1454, 1e-05
    %v1456 = vrsqrt.pop %v1455
    %v1457 = vmul.f32 %v1447, %v1456
    %v1458 = vmul.f32 %v1448, %v1456
    %v1460 = vlaneseq
    %v1461 = vshrl.u32 %v1460, 7
    %v1462 = vsub.s32 0, %v1461
    %v1463 = vrot.slane %v302, %v1462
    %v1464 = vlaneseq
    %v1465 = vshrl.u32 %v1464, 7
    %v1466 = vsub.s32 1, %v1465
    %v1467 = vrot.slane %v302, %v1466
    %v1470 = vmul.f32 %v1457, %v1463
    %v1471 = vmul.f32 %v1458, %v1467
    %v1473 = vlaneseq
    %v1474 = vshrl.u32 %v1473, 7
    %v1475 = vsub.s32 0, %v1474
    %v1476 = vrot.slane %v304, %v1475
    %v1477 = vlaneseq
    %v1478 = vshrl.u32 %v1477, 7
    %v1479 = vsub.s32 1, %v1478
    %v1480 = vrot.slane %v304, %v1479
    %v1483 = vadd.f32 %v1470, %v1476
    %v1484 = vadd.f32 %v1471, %v1480
    %v1485 = vmax.f32 %v1483, 0.0
    %v1486 = vmax.f32 %v1484, 0.0
    %v1487 = vpack.c.bf16 %v1485, %v1485
    %v1488 = vpack.c.bf16 %v1486, %v1486
    %v1490 = vlaneseq
    %v1491 = vshrl.u32 %v1490, 7
    %v1492 = vsub.s32 0, %v1491
    %v1493 = vrot.slane %v306, %v1492
    %v1494 = vlaneseq
    %v1495 = vshrl.u32 %v1494, 7
    %v1496 = vsub.s32 1, %v1495
    %v1497 = vrot.slane %v306, %v1496
    %v1532 = vunpack.c.l.b16 %v168
    %v1533 = vunpack.c.h.b16 %v168
    %v1534 = vunpack.c.l.b16 %v169
    %v1535 = vunpack.c.h.b16 %v169
    %v1536 = vunpack.c.l.b16 %v170
    %v1537 = vunpack.c.h.b16 %v170
    %v1538 = vunpack.c.l.b16 %v171
    %v1539 = vunpack.c.h.b16 %v171
    %v1540 = vunpack.c.l.b16 %v172
    %v1541 = vunpack.c.h.b16 %v172
    %v1542 = vunpack.c.l.b16 %v173
    %v1543 = vunpack.c.h.b16 %v173
    %v1544 = vunpack.c.l.b16 %v174
    %v1545 = vunpack.c.h.b16 %v174
    %v1546 = vunpack.c.l.b16 %v175
    %v1547 = vunpack.c.h.b16 %v175
    %v1548 = vunpack.c.l.b16 %v176
    %v1549 = vunpack.c.h.b16 %v176
    %v1550 = vunpack.c.l.b16 %v177
    %v1551 = vunpack.c.h.b16 %v177
    %v1552 = vunpack.c.l.b16 %v178
    %v1553 = vunpack.c.h.b16 %v178
    %v1554 = vunpack.c.l.b16 %v179
    %v1555 = vunpack.c.h.b16 %v179
    %v1556 = vunpack.c.l.b16 %v180
    %v1557 = vunpack.c.h.b16 %v180
    %v1558 = vunpack.c.l.b16 %v181
    %v1559 = vunpack.c.h.b16 %v181
    %v1560 = vunpack.c.l.b16 %v182
    %v1561 = vunpack.c.h.b16 %v182
    %v1562 = vunpack.c.l.b16 %v183
    %v1563 = vunpack.c.h.b16 %v183
    %v1564 = vunpack.c.l.b16 %v184
    %v1565 = vunpack.c.h.b16 %v184
    %v1566 = vunpack.c.l.b16 %v185
    %v1567 = vunpack.c.h.b16 %v185
    %v1568 = vunpack.c.l.b16 %v186
    %v1569 = vunpack.c.h.b16 %v186
    %v1570 = vunpack.c.l.b16 %v187
    %v1571 = vunpack.c.h.b16 %v187
    %v1572 = vunpack.c.l.b16 %v188
    %v1573 = vunpack.c.h.b16 %v188
    %v1574 = vunpack.c.l.b16 %v189
    %v1575 = vunpack.c.h.b16 %v189
    %v1576 = vunpack.c.l.b16 %v190
    %v1577 = vunpack.c.h.b16 %v190
    %v1578 = vunpack.c.l.b16 %v191
    %v1579 = vunpack.c.h.b16 %v191
    %v1580 = vunpack.c.l.b16 %v192
    %v1581 = vunpack.c.h.b16 %v192
    %v1582 = vunpack.c.l.b16 %v193
    %v1583 = vunpack.c.h.b16 %v193
    %v1584 = vunpack.c.l.b16 %v194
    %v1585 = vunpack.c.h.b16 %v194
    %v1586 = vunpack.c.l.b16 %v195
    %v1587 = vunpack.c.h.b16 %v195
    %v1588 = vunpack.c.l.b16 %v196
    %v1589 = vunpack.c.h.b16 %v196
    %v1590 = vunpack.c.l.b16 %v197
    %v1591 = vunpack.c.h.b16 %v197
    %v1592 = vunpack.c.l.b16 %v198
    %v1593 = vunpack.c.h.b16 %v198
    %v1594 = vunpack.c.l.b16 %v199
    %v1595 = vunpack.c.h.b16 %v199
    %v1596 = vpack.c.b16 %v1534, %v1532
    %v1597 = vpack.c.b16 %v1535, %v1533
    %v1598 = vpack.c.b16 %v1538, %v1536
    %v1599 = vpack.c.b16 %v1539, %v1537
    %v1600 = vpack.c.b16 %v1542, %v1540
    %v1601 = vpack.c.b16 %v1543, %v1541
    %v1602 = vpack.c.b16 %v1546, %v1544
    %v1603 = vpack.c.b16 %v1547, %v1545
    %v1604 = vpack.c.b16 %v1550, %v1548
    %v1605 = vpack.c.b16 %v1551, %v1549
    %v1606 = vpack.c.b16 %v1554, %v1552
    %v1607 = vpack.c.b16 %v1555, %v1553
    %v1608 = vpack.c.b16 %v1558, %v1556
    %v1609 = vpack.c.b16 %v1559, %v1557
    %v1610 = vpack.c.b16 %v1562, %v1560
    %v1611 = vpack.c.b16 %v1563, %v1561
    %v1612 = vpack.c.b16 %v1566, %v1564
    %v1613 = vpack.c.b16 %v1567, %v1565
    %v1614 = vpack.c.b16 %v1570, %v1568
    %v1615 = vpack.c.b16 %v1571, %v1569
    %v1616 = vpack.c.b16 %v1574, %v1572
    %v1617 = vpack.c.b16 %v1575, %v1573
    %v1618 = vpack.c.b16 %v1578, %v1576
    %v1619 = vpack.c.b16 %v1579, %v1577
    %v1620 = vpack.c.b16 %v1582, %v1580
    %v1621 = vpack.c.b16 %v1583, %v1581
    %v1622 = vpack.c.b16 %v1586, %v1584
    %v1623 = vpack.c.b16 %v1587, %v1585
    %v1624 = vpack.c.b16 %v1590, %v1588
    %v1625 = vpack.c.b16 %v1591, %v1589
    %v1626 = vpack.c.b16 %v1594, %v1592
    %v1627 = vpack.c.b16 %v1595, %v1593
    %1660 = vmatprep.subr.bf16.mxu0 %v1597
    %1661 = vmatpush1.bf16.msra.mxu0 %v1596
    %1662 = vmatprep.subr.bf16.mxu0 %v1599
    %1663 = vmatpush1.bf16.msra.mxu0 %v1598
    %1664 = vmatprep.subr.bf16.mxu0 %v1601
    %1665 = vmatpush1.bf16.msra.mxu0 %v1600
    %1666 = vmatprep.subr.bf16.mxu0 %v1603
    %1667 = vmatpush1.bf16.msra.mxu0 %v1602
    %1668 = vmatprep.subr.bf16.mxu0 %v1605
    %1669 = vmatpush1.bf16.msra.mxu0 %v1604
    %1670 = vmatprep.subr.bf16.mxu0 %v1607
    %1671 = vmatpush1.bf16.msra.mxu0 %v1606
    %1672 = vmatprep.subr.bf16.mxu0 %v1609
    %1673 = vmatpush1.bf16.msra.mxu0 %v1608
    %1674 = vmatprep.subr.bf16.mxu0 %v1611
    %1675 = vmatpush1.bf16.msra.mxu0 %v1610
    %1676 = vmatprep.subr.bf16.mxu0 %v1613
    %1677 = vmatpush1.bf16.msra.mxu0 %v1612
    %1678 = vmatprep.subr.bf16.mxu0 %v1615
    %1679 = vmatpush1.bf16.msra.mxu0 %v1614
    %1680 = vmatprep.subr.bf16.mxu0 %v1617
    %1681 = vmatpush1.bf16.msra.mxu0 %v1616
    %1682 = vmatprep.subr.bf16.mxu0 %v1619
    %1683 = vmatpush1.bf16.msra.mxu0 %v1618
    %1684 = vmatprep.subr.bf16.mxu0 %v1621
    %1685 = vmatpush1.bf16.msra.mxu0 %v1620
    %1686 = vmatprep.subr.bf16.mxu0 %v1623
    %1687 = vmatpush1.bf16.msra.mxu0 %v1622
    %1688 = vmatprep.subr.bf16.mxu0 %v1625
    %1689 = vmatpush1.bf16.msra.mxu0 %v1624
    %1690 = vmatprep.subr.bf16.mxu0 %v1627
    %1691 = vmatpush1.bf16.msra.mxu0 %v1626
    %1692 = vmatprep.mubr.bf16.mxu0 %v1488
    %1693 = vmatmul.mubr.bf16.gmra.mrb[0].mxu0 %v1487
    %v1694 = vpop.f32.mrb[0].mxu0
    %v1695 = vadd.f32 %v1493, %v1694
    %v1696 = vpop.f32.mrb[0].mxu0
    %v1697 = vadd.f32 %v1497, %v1696
    %v1698 = vpop.f32.mrb[0].mxu0
    %v1699 = vpop.f32.mrb[0].mxu0
    %1700 = vdwg.mxu0
    %v1701 = vpack.c.bf16 %v1695, %v1695
    %v1702 = vpack.c.bf16 %v1697, %v1697
    %v1704 = vlaneseq
    %v1705 = vshrl.u32 %v1704, 7
    %v1706 = vsub.s32 0, %v1705
    %v1707 = vrot.slane %v298, %v1706
    %v1708 = vlaneseq
    %v1709 = vshrl.u32 %v1708, 7
    %v1710 = vsub.s32 1, %v1709
    %v1711 = vrot.slane %v298, %v1710
    %v1712 = vlaneseq
    %v1713 = vshrl.u32 %v1712, 7
    %v1714 = vsub.s32 2, %v1713
    %v1715 = vrot.slane %v298, %v1714
    %v1716 = vlaneseq
    %v1717 = vshrl.u32 %v1716, 7
    %v1718 = vsub.s32 3, %v1717
    %v1719 = vrot.slane %v298, %v1718
    %v1720 = vlaneseq
    %v1721 = vshrl.u32 %v1720, 7
    %v1722 = vsub.s32 4, %v1721
    %v1723 = vrot.slane %v298, %v1722
    %v1724 = vlaneseq
    %v1725 = vshrl.u32 %v1724, 7
    %v1726 = vsub.s32 5, %v1725
    %v1727 = vrot.slane %v298, %v1726
    %v1830 = vunpack.c.l.b16 %v200
    %v1831 = vunpack.c.h.b16 %v200
    %v1832 = vunpack.c.l.b16 %v201
    %v1833 = vunpack.c.h.b16 %v201
    %v1834 = vunpack.c.l.b16 %v202
    %v1835 = vunpack.c.h.b16 %v202
    %v1836 = vunpack.c.l.b16 %v203
    %v1837 = vunpack.c.h.b16 %v203
    %v1838 = vunpack.c.l.b16 %v204
    %v1839 = vunpack.c.h.b16 %v204
    %v1840 = vunpack.c.l.b16 %v205
    %v1841 = vunpack.c.h.b16 %v205
    %v1842 = vunpack.c.l.b16 %v206
    %v1843 = vunpack.c.h.b16 %v206
    %v1844 = vunpack.c.l.b16 %v207
    %v1845 = vunpack.c.h.b16 %v207
    %v1846 = vunpack.c.l.b16 %v208
    %v1847 = vunpack.c.h.b16 %v208
    %v1848 = vunpack.c.l.b16 %v209
    %v1849 = vunpack.c.h.b16 %v209
    %v1850 = vunpack.c.l.b16 %v210
    %v1851 = vunpack.c.h.b16 %v210
    %v1852 = vunpack.c.l.b16 %v211
    %v1853 = vunpack.c.h.b16 %v211
    %v1854 = vunpack.c.l.b16 %v212
    %v1855 = vunpack.c.h.b16 %v212
    %v1856 = vunpack.c.l.b16 %v213
    %v1857 = vunpack.c.h.b16 %v213
    %v1858 = vunpack.c.l.b16 %v214
    %v1859 = vunpack.c.h.b16 %v214
    %v1860 = vunpack.c.l.b16 %v215
    %v1861 = vunpack.c.h.b16 %v215
    %v1862 = vunpack.c.l.b16 %v216
    %v1863 = vunpack.c.h.b16 %v216
    %v1864 = vunpack.c.l.b16 %v217
    %v1865 = vunpack.c.h.b16 %v217
    %v1866 = vunpack.c.l.b16 %v218
    %v1867 = vunpack.c.h.b16 %v218
    %v1868 = vunpack.c.l.b16 %v219
    %v1869 = vunpack.c.h.b16 %v219
    %v1870 = vunpack.c.l.b16 %v220
    %v1871 = vunpack.c.h.b16 %v220
    %v1872 = vunpack.c.l.b16 %v221
    %v1873 = vunpack.c.h.b16 %v221
    %v1874 = vunpack.c.l.b16 %v222
    %v1875 = vunpack.c.h.b16 %v222
    %v1876 = vunpack.c.l.b16 %v223
    %v1877 = vunpack.c.h.b16 %v223
    %v1878 = vunpack.c.l.b16 %v224
    %v1879 = vunpack.c.h.b16 %v224
    %v1880 = vunpack.c.l.b16 %v225
    %v1881 = vunpack.c.h.b16 %v225
    %v1882 = vunpack.c.l.b16 %v226
    %v1883 = vunpack.c.h.b16 %v226
    %v1884 = vunpack.c.l.b16 %v227
    %v1885 = vunpack.c.h.b16 %v227
    %v1886 = vunpack.c.l.b16 %v228
    %v1887 = vunpack.c.h.b16 %v228
    %v1888 = vunpack.c.l.b16 %v229
    %v1889 = vunpack.c.h.b16 %v229
    %v1890 = vunpack.c.l.b16 %v230
    %v1891 = vunpack.c.h.b16 %v230
    %v1892 = vunpack.c.l.b16 %v231
    %v1893 = vunpack.c.h.b16 %v231
    %v1894 = vunpack.c.l.b16 %v232
    %v1895 = vunpack.c.h.b16 %v232
    %v1896 = vunpack.c.l.b16 %v233
    %v1897 = vunpack.c.h.b16 %v233
    %v1898 = vunpack.c.l.b16 %v234
    %v1899 = vunpack.c.h.b16 %v234
    %v1900 = vunpack.c.l.b16 %v235
    %v1901 = vunpack.c.h.b16 %v235
    %v1902 = vunpack.c.l.b16 %v236
    %v1903 = vunpack.c.h.b16 %v236
    %v1904 = vunpack.c.l.b16 %v237
    %v1905 = vunpack.c.h.b16 %v237
    %v1906 = vunpack.c.l.b16 %v238
    %v1907 = vunpack.c.h.b16 %v238
    %v1908 = vunpack.c.l.b16 %v239
    %v1909 = vunpack.c.h.b16 %v239
    %v1910 = vunpack.c.l.b16 %v240
    %v1911 = vunpack.c.h.b16 %v240
    %v1912 = vunpack.c.l.b16 %v241
    %v1913 = vunpack.c.h.b16 %v241
    %v1914 = vunpack.c.l.b16 %v242
    %v1915 = vunpack.c.h.b16 %v242
    %v1916 = vunpack.c.l.b16 %v243
    %v1917 = vunpack.c.h.b16 %v243
    %v1918 = vunpack.c.l.b16 %v244
    %v1919 = vunpack.c.h.b16 %v244
    %v1920 = vunpack.c.l.b16 %v245
    %v1921 = vunpack.c.h.b16 %v245
    %v1922 = vunpack.c.l.b16 %v246
    %v1923 = vunpack.c.h.b16 %v246
    %v1924 = vunpack.c.l.b16 %v247
    %v1925 = vunpack.c.h.b16 %v247
    %v1926 = vunpack.c.l.b16 %v248
    %v1927 = vunpack.c.h.b16 %v248
    %v1928 = vunpack.c.l.b16 %v249
    %v1929 = vunpack.c.h.b16 %v249
    %v1930 = vunpack.c.l.b16 %v250
    %v1931 = vunpack.c.h.b16 %v250
    %v1932 = vunpack.c.l.b16 %v251
    %v1933 = vunpack.c.h.b16 %v251
    %v1934 = vunpack.c.l.b16 %v252
    %v1935 = vunpack.c.h.b16 %v252
    %v1936 = vunpack.c.l.b16 %v253
    %v1937 = vunpack.c.h.b16 %v253
    %v1938 = vunpack.c.l.b16 %v254
    %v1939 = vunpack.c.h.b16 %v254
    %v1940 = vunpack.c.l.b16 %v255
    %v1941 = vunpack.c.h.b16 %v255
    %v1942 = vunpack.c.l.b16 %v256
    %v1943 = vunpack.c.h.b16 %v256
    %v1944 = vunpack.c.l.b16 %v257
    %v1945 = vunpack.c.h.b16 %v257
    %v1946 = vunpack.c.l.b16 %v258
    %v1947 = vunpack.c.h.b16 %v258
    %v1948 = vunpack.c.l.b16 %v259
    %v1949 = vunpack.c.h.b16 %v259
    %v1950 = vunpack.c.l.b16 %v260
    %v1951 = vunpack.c.h.b16 %v260
    %v1952 = vunpack.c.l.b16 %v261
    %v1953 = vunpack.c.h.b16 %v261
    %v1954 = vunpack.c.l.b16 %v262
    %v1955 = vunpack.c.h.b16 %v262
    %v1956 = vunpack.c.l.b16 %v263
    %v1957 = vunpack.c.h.b16 %v263
    %v1958 = vunpack.c.l.b16 %v264
    %v1959 = vunpack.c.h.b16 %v264
    %v1960 = vunpack.c.l.b16 %v265
    %v1961 = vunpack.c.h.b16 %v265
    %v1962 = vunpack.c.l.b16 %v266
    %v1963 = vunpack.c.h.b16 %v266
    %v1964 = vunpack.c.l.b16 %v267
    %v1965 = vunpack.c.h.b16 %v267
    %v1966 = vunpack.c.l.b16 %v268
    %v1967 = vunpack.c.h.b16 %v268
    %v1968 = vunpack.c.l.b16 %v269
    %v1969 = vunpack.c.h.b16 %v269
    %v1970 = vunpack.c.l.b16 %v270
    %v1971 = vunpack.c.h.b16 %v270
    %v1972 = vunpack.c.l.b16 %v271
    %v1973 = vunpack.c.h.b16 %v271
    %v1974 = vunpack.c.l.b16 %v272
    %v1975 = vunpack.c.h.b16 %v272
    %v1976 = vunpack.c.l.b16 %v273
    %v1977 = vunpack.c.h.b16 %v273
    %v1978 = vunpack.c.l.b16 %v274
    %v1979 = vunpack.c.h.b16 %v274
    %v1980 = vunpack.c.l.b16 %v275
    %v1981 = vunpack.c.h.b16 %v275
    %v1982 = vunpack.c.l.b16 %v276
    %v1983 = vunpack.c.h.b16 %v276
    %v1984 = vunpack.c.l.b16 %v277
    %v1985 = vunpack.c.h.b16 %v277
    %v1986 = vunpack.c.l.b16 %v278
    %v1987 = vunpack.c.h.b16 %v278
    %v1988 = vunpack.c.l.b16 %v279
    %v1989 = vunpack.c.h.b16 %v279
    %v1990 = vunpack.c.l.b16 %v280
    %v1991 = vunpack.c.h.b16 %v280
    %v1992 = vunpack.c.l.b16 %v281
    %v1993 = vunpack.c.h.b16 %v281
    %v1994 = vunpack.c.l.b16 %v282
    %v1995 = vunpack.c.h.b16 %v282
    %v1996 = vunpack.c.l.b16 %v283
    %v1997 = vunpack.c.h.b16 %v283
    %v1998 = vunpack.c.l.b16 %v284
    %v1999 = vunpack.c.h.b16 %v284
    %v2000 = vunpack.c.l.b16 %v285
    %v2001 = vunpack.c.h.b16 %v285
    %v2002 = vunpack.c.l.b16 %v286
    %v2003 = vunpack.c.h.b16 %v286
    %v2004 = vunpack.c.l.b16 %v287
    %v2005 = vunpack.c.h.b16 %v287
    %v2006 = vunpack.c.l.b16 %v288
    %v2007 = vunpack.c.h.b16 %v288
    %v2008 = vunpack.c.l.b16 %v289
    %v2009 = vunpack.c.h.b16 %v289
    %v2010 = vunpack.c.l.b16 %v290
    %v2011 = vunpack.c.h.b16 %v290
    %v2012 = vunpack.c.l.b16 %v291
    %v2013 = vunpack.c.h.b16 %v291
    %v2014 = vunpack.c.l.b16 %v292
    %v2015 = vunpack.c.h.b16 %v292
    %v2016 = vunpack.c.l.b16 %v293
    %v2017 = vunpack.c.h.b16 %v293
    %v2018 = vunpack.c.l.b16 %v294
    %v2019 = vunpack.c.h.b16 %v294
    %v2020 = vunpack.c.l.b16 %v295
    %v2021 = vunpack.c.h.b16 %v295
    %v2022 = vpack.c.b16 %v1836, %v1830
    %v2023 = vpack.c.b16 %v1837, %v1831
    %v2024 = vpack.c.b16 %v1838, %v1832
    %v2025 = vpack.c.b16 %v1839, %v1833
    %v2026 = vpack.c.b16 %v1840, %v1834
    %v2027 = vpack.c.b16 %v1841, %v1835
    %v2028 = vpack.c.b16 %v1848, %v1842
    %v2029 = vpack.c.b16 %v1849, %v1843
    %v2030 = vpack.c.b16 %v1850, %v1844
    %v2031 = vpack.c.b16 %v1851, %v1845
    %v2032 = vpack.c.b16 %v1852, %v1846
    %v2033 = vpack.c.b16 %v1853, %v1847
    %v2034 = vpack.c.b16 %v1860, %v1854
    %v2035 = vpack.c.b16 %v1861, %v1855
    %v2036 = vpack.c.b16 %v1862, %v1856
    %v2037 = vpack.c.b16 %v1863, %v1857
    %v2038 = vpack.c.b16 %v1864, %v1858
    %v2039 = vpack.c.b16 %v1865, %v1859
    %v2040 = vpack.c.b16 %v1872, %v1866
    %v2041 = vpack.c.b16 %v1873, %v1867
    %v2042 = vpack.c.b16 %v1874, %v1868
    %v2043 = vpack.c.b16 %v1875, %v1869
    %v2044 = vpack.c.b16 %v1876, %v1870
    %v2045 = vpack.c.b16 %v1877, %v1871
    %v2046 = vpack.c.b16 %v1884, %v1878
    %v2047 = vpack.c.b16 %v1885, %v1879
    %v2048 = vpack.c.b16 %v1886, %v1880
    %v2049 = vpack.c.b16 %v1887, %v1881
    %v2050 = vpack.c.b16 %v1888, %v1882
    %v2051 = vpack.c.b16 %v1889, %v1883
    %v2052 = vpack.c.b16 %v1896, %v1890
    %v2053 = vpack.c.b16 %v1897, %v1891
    %v2054 = vpack.c.b16 %v1898, %v1892
    %v2055 = vpack.c.b16 %v1899, %v1893
    %v2056 = vpack.c.b16 %v1900, %v1894
    %v2057 = vpack.c.b16 %v1901, %v1895
    %v2058 = vpack.c.b16 %v1908, %v1902
    %v2059 = vpack.c.b16 %v1909, %v1903
    %v2060 = vpack.c.b16 %v1910, %v1904
    %v2061 = vpack.c.b16 %v1911, %v1905
    %v2062 = vpack.c.b16 %v1912, %v1906
    %v2063 = vpack.c.b16 %v1913, %v1907
    %v2064 = vpack.c.b16 %v1920, %v1914
    %v2065 = vpack.c.b16 %v1921, %v1915
    %v2066 = vpack.c.b16 %v1922, %v1916
    %v2067 = vpack.c.b16 %v1923, %v1917
    %v2068 = vpack.c.b16 %v1924, %v1918
    %v2069 = vpack.c.b16 %v1925, %v1919
    %v2070 = vpack.c.b16 %v1932, %v1926
    %v2071 = vpack.c.b16 %v1933, %v1927
    %v2072 = vpack.c.b16 %v1934, %v1928
    %v2073 = vpack.c.b16 %v1935, %v1929
    %v2074 = vpack.c.b16 %v1936, %v1930
    %v2075 = vpack.c.b16 %v1937, %v1931
    %v2076 = vpack.c.b16 %v1944, %v1938
    %v2077 = vpack.c.b16 %v1945, %v1939
    %v2078 = vpack.c.b16 %v1946, %v1940
    %v2079 = vpack.c.b16 %v1947, %v1941
    %v2080 = vpack.c.b16 %v1948, %v1942
    %v2081 = vpack.c.b16 %v1949, %v1943
    %v2082 = vpack.c.b16 %v1956, %v1950
    %v2083 = vpack.c.b16 %v1957, %v1951
    %v2084 = vpack.c.b16 %v1958, %v1952
    %v2085 = vpack.c.b16 %v1959, %v1953
    %v2086 = vpack.c.b16 %v1960, %v1954
    %v2087 = vpack.c.b16 %v1961, %v1955
    %v2088 = vpack.c.b16 %v1968, %v1962
    %v2089 = vpack.c.b16 %v1969, %v1963
    %v2090 = vpack.c.b16 %v1970, %v1964
    %v2091 = vpack.c.b16 %v1971, %v1965
    %v2092 = vpack.c.b16 %v1972, %v1966
    %v2093 = vpack.c.b16 %v1973, %v1967
    %v2094 = vpack.c.b16 %v1980, %v1974
    %v2095 = vpack.c.b16 %v1981, %v1975
    %v2096 = vpack.c.b16 %v1982, %v1976
    %v2097 = vpack.c.b16 %v1983, %v1977
    %v2098 = vpack.c.b16 %v1984, %v1978
    %v2099 = vpack.c.b16 %v1985, %v1979
    %v2100 = vpack.c.b16 %v1992, %v1986
    %v2101 = vpack.c.b16 %v1993, %v1987
    %v2102 = vpack.c.b16 %v1994, %v1988
    %v2103 = vpack.c.b16 %v1995, %v1989
    %v2104 = vpack.c.b16 %v1996, %v1990
    %v2105 = vpack.c.b16 %v1997, %v1991
    %v2106 = vpack.c.b16 %v2004, %v1998
    %v2107 = vpack.c.b16 %v2005, %v1999
    %v2108 = vpack.c.b16 %v2006, %v2000
    %v2109 = vpack.c.b16 %v2007, %v2001
    %v2110 = vpack.c.b16 %v2008, %v2002
    %v2111 = vpack.c.b16 %v2009, %v2003
    %v2112 = vpack.c.b16 %v2016, %v2010
    %v2113 = vpack.c.b16 %v2017, %v2011
    %v2114 = vpack.c.b16 %v2018, %v2012
    %v2115 = vpack.c.b16 %v2019, %v2013
    %v2116 = vpack.c.b16 %v2020, %v2014
    %v2117 = vpack.c.b16 %v2021, %v2015
    %2214 = vmatprep.subr.bf16.mxu0 %v2023
    %2215 = vmatpush1.bf16.msra.mxu0 %v2022
    %2216 = vmatprep.subr.bf16.mxu0 %v2029
    %2217 = vmatpush1.bf16.msra.mxu0 %v2028
    %2218 = vmatprep.subr.bf16.mxu0 %v2035
    %2219 = vmatpush1.bf16.msra.mxu0 %v2034
    %2220 = vmatprep.subr.bf16.mxu0 %v2041
    %2221 = vmatpush1.bf16.msra.mxu0 %v2040
    %2222 = vmatprep.subr.bf16.mxu0 %v2047
    %2223 = vmatpush1.bf16.msra.mxu0 %v2046
    %2224 = vmatprep.subr.bf16.mxu0 %v2053
    %2225 = vmatpush1.bf16.msra.mxu0 %v2052
    %2226 = vmatprep.subr.bf16.mxu0 %v2059
    %2227 = vmatpush1.bf16.msra.mxu0 %v2058
    %2228 = vmatprep.subr.bf16.mxu0 %v2065
    %2229 = vmatpush1.bf16.msra.mxu0 %v2064
    %2230 = vmatprep.subr.bf16.mxu0 %v2071
    %2231 = vmatpush1.bf16.msra.mxu0 %v2070
    %2232 = vmatprep.subr.bf16.mxu0 %v2077
    %2233 = vmatpush1.bf16.msra.mxu0 %v2076
    %2234 = vmatprep.subr.bf16.mxu0 %v2083
    %2235 = vmatpush1.bf16.msra.mxu0 %v2082
    %2236 = vmatprep.subr.bf16.mxu0 %v2089
    %2237 = vmatpush1.bf16.msra.mxu0 %v2088
    %2238 = vmatprep.subr.bf16.mxu0 %v2095
    %2239 = vmatpush1.bf16.msra.mxu0 %v2094
    %2240 = vmatprep.subr.bf16.mxu0 %v2101
    %2241 = vmatpush1.bf16.msra.mxu0 %v2100
    %2242 = vmatprep.subr.bf16.mxu0 %v2107
    %2243 = vmatpush1.bf16.msra.mxu0 %v2106
    %2244 = vmatprep.subr.bf16.mxu0 %v2113
    %2245 = vmatpush1.bf16.msra.mxu0 %v2112
    %2246 = vmatprep.mubr.bf16.mxu0 %v1702
    %2247 = vmatmul.mubr.bf16.gmra.mrb[0].mxu0 %v1701
    %v2248 = vpop.f32.mrb[0].mxu0
    %v2249 = vadd.f32 %v1707, %v2248
    %v2250 = vpop.f32.mrb[0].mxu0
    %v2251 = vadd.f32 %v1711, %v2250
    %v2252 = vpop.f32.mrb[0].mxu0
    %v2253 = vpop.f32.mrb[0].mxu0
    %2254 = vdwg.mxu0
    %2255 = vmatprep.subr.bf16.mxu0 %v2025
    %2256 = vmatpush1.bf16.msra.mxu0 %v2024
    %2257 = vmatprep.subr.bf16.mxu0 %v2031
    %2258 = vmatpush1.bf16.msra.mxu0 %v2030
    %2259 = vmatprep.subr.bf16.mxu0 %v2037
    %2260 = vmatpush1.bf16.msra.mxu0 %v2036
    %2261 = vmatprep.subr.bf16.mxu0 %v2043
    %2262 = vmatpush1.bf16.msra.mxu0 %v2042
    %2263 = vmatprep.subr.bf16.mxu0 %v2049
    %2264 = vmatpush1.bf16.msra.mxu0 %v2048
    %2265 = vmatprep.subr.bf16.mxu0 %v2055
    %2266 = vmatpush1.bf16.msra.mxu0 %v2054
    %2267 = vmatprep.subr.bf16.mxu0 %v2061
    %2268 = vmatpush1.bf16.msra.mxu0 %v2060
    %2269 = vmatprep.subr.bf16.mxu0 %v2067
    %2270 = vmatpush1.bf16.msra.mxu0 %v2066
    %2271 = vmatprep.subr.bf16.mxu0 %v2073
    %2272 = vmatpush1.bf16.msra.mxu0 %v2072
    %2273 = vmatprep.subr.bf16.mxu0 %v2079
    %2274 = vmatpush1.bf16.msra.mxu0 %v2078
    %2275 = vmatprep.subr.bf16.mxu0 %v2085
    %2276 = vmatpush1.bf16.msra.mxu0 %v2084
    %2277 = vmatprep.subr.bf16.mxu0 %v2091
    %2278 = vmatpush1.bf16.msra.mxu0 %v2090
    %2279 = vmatprep.subr.bf16.mxu0 %v2097
    %2280 = vmatpush1.bf16.msra.mxu0 %v2096
    %2281 = vmatprep.subr.bf16.mxu0 %v2103
    %2282 = vmatpush1.bf16.msra.mxu0 %v2102
    %2283 = vmatprep.subr.bf16.mxu0 %v2109
    %2284 = vmatpush1.bf16.msra.mxu0 %v2108
    %2285 = vmatprep.subr.bf16.mxu0 %v2115
    %2286 = vmatpush1.bf16.msra.mxu0 %v2114
    %2287 = vmatprep.mubr.bf16.mxu0 %v1702
    %2288 = vmatmul.mubr.bf16.gmra.mrb[0].mxu0 %v1701
    %v2289 = vpop.f32.mrb[0].mxu0
    %v2290 = vadd.f32 %v1715, %v2289
    %v2291 = vpop.f32.mrb[0].mxu0
    %v2292 = vadd.f32 %v1719, %v2291
    %v2293 = vpop.f32.mrb[0].mxu0
    %v2294 = vpop.f32.mrb[0].mxu0
    %2295 = vdwg.mxu0
    %2296 = vmatprep.subr.bf16.mxu0 %v2027
    %2297 = vmatpush1.bf16.msra.mxu0 %v2026
    %2298 = vmatprep.subr.bf16.mxu0 %v2033
    %2299 = vmatpush1.bf16.msra.mxu0 %v2032
    %2300 = vmatprep.subr.bf16.mxu0 %v2039
    %2301 = vmatpush1.bf16.msra.mxu0 %v2038
    %2302 = vmatprep.subr.bf16.mxu0 %v2045
    %2303 = vmatpush1.bf16.msra.mxu0 %v2044
    %2304 = vmatprep.subr.bf16.mxu0 %v2051
    %2305 = vmatpush1.bf16.msra.mxu0 %v2050
    %2306 = vmatprep.subr.bf16.mxu0 %v2057
    %2307 = vmatpush1.bf16.msra.mxu0 %v2056
    %2308 = vmatprep.subr.bf16.mxu0 %v2063
    %2309 = vmatpush1.bf16.msra.mxu0 %v2062
    %2310 = vmatprep.subr.bf16.mxu0 %v2069
    %2311 = vmatpush1.bf16.msra.mxu0 %v2068
    %2312 = vmatprep.subr.bf16.mxu0 %v2075
    %2313 = vmatpush1.bf16.msra.mxu0 %v2074
    %2314 = vmatprep.subr.bf16.mxu0 %v2081
    %2315 = vmatpush1.bf16.msra.mxu0 %v2080
    %2316 = vmatprep.subr.bf16.mxu0 %v2087
    %2317 = vmatpush1.bf16.msra.mxu0 %v2086
    %2318 = vmatprep.subr.bf16.mxu0 %v2093
    %2319 = vmatpush1.bf16.msra.mxu0 %v2092
    %2320 = vmatprep.subr.bf16.mxu0 %v2099
    %2321 = vmatpush1.bf16.msra.mxu0 %v2098
    %2322 = vmatprep.subr.bf16.mxu0 %v2105
    %2323 = vmatpush1.bf16.msra.mxu0 %v2104
    %2324 = vmatprep.subr.bf16.mxu0 %v2111
    %2325 = vmatpush1.bf16.msra.mxu0 %v2110
    %2326 = vmatprep.subr.bf16.mxu0 %v2117
    %2327 = vmatpush1.bf16.msra.mxu0 %v2116
    %2328 = vmatprep.mubr.bf16.mxu0 %v1702
    %2329 = vmatmul.mubr.bf16.gmra.mrb[0].mxu0 %v1701
    %v2330 = vpop.f32.mrb[0].mxu0
    %v2331 = vadd.f32 %v1723, %v2330
    %v2332 = vpop.f32.mrb[0].mxu0
    %v2333 = vadd.f32 %v1727, %v2332
    %v2334 = vpop.f32.mrb[0].mxu0
    %v2335 = vpop.f32.mrb[0].mxu0
    %2336 = vdwg.mxu0
    %v2337 = vmul.f32 %v2249, 0.17677669
    %v2338 = vmul.f32 %v2251, 0.17677669
    %vm2339 = vcmask 261120
    %v2341 = vsel %vm2339, %v2337, 0
    %v2344 = vsel %vm2339, %v2290, 0
    %2346 = vmatprep.subr.mxu0 0.0
    %2347 = vmatpush1.xpose.msra.mxu0 %v2344
    %2348 = vmatprep.subr.mxu0 0.0
    %2349 = vmatpush1.xpose.msra.mxu0 0.0
    %2350 = vmatprep.subr.mxu0 0.0
    %2351 = vmatpush1.xpose.msra.mxu0 0.0
    %2352 = vmatprep.subr.mxu0 0.0
    %2353 = vmatpush1.xpose.msra.mxu0 0.0
    %2354 = vmatprep.subr.mxu0 0.0
    %2355 = vmatpush1.xpose.msra.mxu0 0.0
    %2356 = vmatprep.subr.mxu0 0.0
    %2357 = vmatpush1.xpose.msra.mxu0 0.0
    %2358 = vmatprep.subr.mxu0 0.0
    %2359 = vmatpush1.xpose.msra.mxu0 0.0
    %2360 = vmatprep.subr.mxu0 0.0
    %2361 = vmatpush1.xpose.msra.mxu0 0.0
    %2362 = vmatprep.subr.mxu0 0.0
    %2363 = vmatpush1.xpose.msra.mxu0 0.0
    %2364 = vmatprep.subr.mxu0 0.0
    %2365 = vmatpush1.xpose.msra.mxu0 0.0
    %2366 = vmatprep.subr.mxu0 0.0
    %2367 = vmatpush1.xpose.msra.mxu0 0.0
    %2368 = vmatprep.subr.mxu0 0.0
    %2369 = vmatpush1.xpose.msra.mxu0 0.0
    %2370 = vmatprep.subr.mxu0 0.0
    %2371 = vmatpush1.xpose.msra.mxu0 0.0
    %2372 = vmatprep.subr.mxu0 0.0
    %2373 = vmatpush1.xpose.msra.mxu0 0.0
    %2374 = vmatprep.subr.mxu0 0.0
    %2375 = vmatpush1.xpose.msra.mxu0 0.0
    %2376 = vmatprep.subr.mxu0 0.0
    %2377 = vmatpush1.xpose.msra.mxu0 0.0
    %2378 = vmatprep.subr.mxu0 0.0
    %2379 = vmatpush1.xpose.msra.mxu0 0.0
    %2380 = vmatprep.subr.mxu0 0.0
    %2381 = vmatpush1.xpose.msra.mxu0 0.0
    %2382 = vmatprep.subr.mxu0 0.0
    %2383 = vmatpush1.xpose.msra.mxu0 0.0
    %2384 = vmatprep.subr.mxu0 0.0
    %2385 = vmatpush1.xpose.msra.mxu0 0.0
    %2386 = vmatprep.subr.mxu0 0.0
    %2387 = vmatpush1.xpose.msra.mxu0 0.0
    %2388 = vmatprep.subr.mxu0 0.0
    %2389 = vmatpush1.xpose.msra.mxu0 0.0
    %2390 = vmatprep.subr.mxu0 0.0
    %2391 = vmatpush1.xpose.msra.mxu0 0.0
    %2392 = vmatprep.subr.mxu0 0.0
    %2393 = vmatpush1.xpose.msra.mxu0 0.0
    %2394 = vmatprep.subr.mxu0 0.0
    %2395 = vmatpush1.xpose.msra.mxu0 0.0
    %2396 = vmatprep.subr.mxu0 0.0
    %2397 = vmatpush1.xpose.msra.mxu0 0.0
    %2398 = vmatprep.subr.mxu0 0.0
    %2399 = vmatpush1.xpose.msra.mxu0 0.0
    %2400 = vmatprep.subr.mxu0 0.0
    %2401 = vmatpush1.xpose.msra.mxu0 0.0
    %2402 = vmatprep.subr.mxu0 0.0
    %2403 = vmatpush1.xpose.msra.mxu0 0.0
    %2404 = vmatprep.subr.mxu0 0.0
    %2405 = vmatpush1.xpose.msra.mxu0 0.0
    %2406 = vmatprep.subr.mxu0 0.0
    %2407 = vmatpush1.xpose.msra.mxu0 0.0
    %2408 = vmatprep.subr.mxu0 0.0
    %2409 = vmatpush1.xpose.msra.mxu0 0.0
    %2410 = vmatprep.mubr.f32.mxu0 0.0
    %2411 = vmatmul.mubr.f32.gmra.mrb[0].mxu0 %v2341
    %v2412 = vpop.f32.mrb[0].mxu0
    %v2413 = vadd.f32 0.0, %v2412
    %v2414 = vpop.f32.mrb[0].mxu0
    %2415 = vdwg.mxu0
    %vm2416 = vcmask 64512
    %v2417 = vsel %vm2416, %v2413, -inf
    %2418 = vmax.xlane.f32.xlu0 %v2417
    %v2419 = vpop.xlane.xlu0 %2418
    %v2420 = vsub.f32 %v2413, %v2419
    %v2421 = vmul.f32 %v2420, 1.442695
    %v2422 = vpow.pop %v2421
    %v2423 = vsel %vm2416, %v2422, 0.0
    %2424 = vadd.xlane.f32.xlu0 %v2423
    %v2425 = vpop.xlane.xlu0 %2424
    %v2426 = vrcp.pop %v2425
    %v2427 = vmul.f32 %v2422, %v2426
    %v2429 = vsel %vm2416, %v2427, 0
    %2431 = vmatprep.subr.mxu0 0.0
    %2432 = vmatpush1.msra.mxu0 %v2331
    %2433 = vmatprep.subr.mxu0 0.0
    %2434 = vmatpush1.msra.mxu0 0.0
    %2435 = vmatprep.subr.mxu0 0.0
    %2436 = vmatpush1.msra.mxu0 0.0
    %2437 = vmatprep.subr.mxu0 0.0
    %2438 = vmatpush1.msra.mxu0 0.0
    %2439 = vmatprep.subr.mxu0 0.0
    %2440 = vmatpush1.msra.mxu0 0.0
    %2441 = vmatprep.subr.mxu0 0.0
    %2442 = vmatpush1.msra.mxu0 0.0
    %2443 = vmatprep.subr.mxu0 0.0
    %2444 = vmatpush1.msra.mxu0 0.0
    %2445 = vmatprep.subr.mxu0 0.0
    %2446 = vmatpush1.msra.mxu0 0.0
    %2447 = vmatprep.subr.mxu0 0.0
    %2448 = vmatpush1.msra.mxu0 0.0
    %2449 = vmatprep.subr.mxu0 0.0
    %2450 = vmatpush1.msra.mxu0 0.0
    %2451 = vmatprep.subr.mxu0 0.0
    %2452 = vmatpush1.msra.mxu0 0.0
    %2453 = vmatprep.subr.mxu0 0.0
    %2454 = vmatpush1.msra.mxu0 0.0
    %2455 = vmatprep.subr.mxu0 0.0
    %2456 = vmatpush1.msra.mxu0 0.0
    %2457 = vmatprep.subr.mxu0 0.0
    %2458 = vmatpush1.msra.mxu0 0.0
    %2459 = vmatprep.subr.mxu0 0.0
    %2460 = vmatpush1.msra.mxu0 0.0
    %2461 = vmatprep.subr.mxu0 0.0
    %2462 = vmatpush1.msra.mxu0 0.0
    %2463 = vmatprep.subr.mxu0 0.0
    %2464 = vmatpush1.msra.mxu0 0.0
    %2465 = vmatprep.subr.mxu0 0.0
    %2466 = vmatpush1.msra.mxu0 0.0
    %2467 = vmatprep.subr.mxu0 0.0
    %2468 = vmatpush1.msra.mxu0 0.0
    %2469 = vmatprep.subr.mxu0 0.0
    %2470 = vmatpush1.msra.mxu0 0.0
    %2471 = vmatprep.subr.mxu0 0.0
    %2472 = vmatpush1.msra.mxu0 0.0
    %2473 = vmatprep.subr.mxu0 0.0
    %2474 = vmatpush1.msra.mxu0 0.0
    %2475 = vmatprep.subr.mxu0 0.0
    %2476 = vmatpush1.msra.mxu0 0.0
    %2477 = vmatprep.subr.mxu0 0.0
    %2478 = vmatpush1.msra.mxu0 0.0
    %2479 = vmatprep.subr.mxu0 0.0
    %2480 = vmatpush1.msra.mxu0 0.0
    %2481 = vmatprep.subr.mxu0 0.0
    %2482 = vmatpush1.msra.mxu0 0.0
    %2483 = vmatprep.subr.mxu0 0.0
    %2484 = vmatpush1.msra.mxu0 0.0
    %2485 = vmatprep.subr.mxu0 0.0
    %2486 = vmatpush1.msra.mxu0 0.0
    %2487 = vmatprep.subr.mxu0 0.0
    %2488 = vmatpush1.msra.mxu0 0.0
    %2489 = vmatprep.subr.mxu0 0.0
    %2490 = vmatpush1.msra.mxu0 0.0
    %2491 = vmatprep.subr.mxu0 0.0
    %2492 = vmatpush1.msra.mxu0 0.0
    %2493 = vmatprep.subr.mxu0 0.0
    %2494 = vmatpush1.msra.mxu0 0.0
    %2495 = vmatprep.mubr.f32.mxu0 0.0
    %2496 = vmatmul.mubr.f32.gmra.mrb[0].mxu0 %v2429
    %v2497 = vpop.f32.mrb[0].mxu0
    %v2498 = vadd.f32 0.0, %v2497
    %v2499 = vpop.f32.mrb[0].mxu0
    %2500 = vdwg.mxu0
    %v2501 = vld [vmem:[#allocation5 + $0x400] sm:$0xff]
    %v2502 = vld [vmem:[#allocation5 + $0x408] sm:$0xff]
    %v2503 = vld [vmem:[#allocation5 + $0x410] sm:$0xff]
    %v2504 = vld [vmem:[#allocation5 + $0x418] sm:$0xff]
    %v2505 = vpack.c.bf16 %v2498, %v2498
    %2506 = vrot.lane.b32.xlu0 %v2337, 96
    %v2507 = vpop.permute.xlu0 %2506
    %2508 = vrot.lane.b32.xlu0 %v2290, 96
    %v2509 = vpop.permute.xlu0 %2508
    %v2510 = vsel %vm2339, %v2507, 0
    %v2512 = vsel %vm2339, %v2509, 0
    %2514 = vmatprep.subr.mxu0 0.0
    %2515 = vmatpush1.xpose.msra.mxu0 %v2512
    %2516 = vmatprep.subr.mxu0 0.0
    %2517 = vmatpush1.xpose.msra.mxu0 0.0
    %2518 = vmatprep.subr.mxu0 0.0
    %2519 = vmatpush1.xpose.msra.mxu0 0.0
    %2520 = vmatprep.subr.mxu0 0.0
    %2521 = vmatpush1.xpose.msra.mxu0 0.0
    %2522 = vmatprep.subr.mxu0 0.0
    %2523 = vmatpush1.xpose.msra.mxu0 0.0
    %2524 = vmatprep.subr.mxu0 0.0
    %2525 = vmatpush1.xpose.msra.mxu0 0.0
    %2526 = vmatprep.subr.mxu0 0.0
    %2527 = vmatpush1.xpose.msra.mxu0 0.0
    %2528 = vmatprep.subr.mxu0 0.0
    %2529 = vmatpush1.xpose.msra.mxu0 0.0
    %2530 = vmatprep.subr.mxu0 0.0
    %2531 = vmatpush1.xpose.msra.mxu0 0.0
    %2532 = vmatprep.subr.mxu0 0.0
    %2533 = vmatpush1.xpose.msra.mxu0 0.0
    %2534 = vmatprep.subr.mxu0 0.0
    %2535 = vmatpush1.xpose.msra.mxu0 0.0
    %2536 = vmatprep.subr.mxu0 0.0
    %2537 = vmatpush1.xpose.msra.mxu0 0.0
    %2538 = vmatprep.subr.mxu0 0.0
    %2539 = vmatpush1.xpose.msra.mxu0 0.0
    %2540 = vmatprep.subr.mxu0 0.0
    %2541 = vmatpush1.xpose.msra.mxu0 0.0
    %2542 = vmatprep.subr.mxu0 0.0
    %2543 = vmatpush1.xpose.msra.mxu0 0.0
    %2544 = vmatprep.subr.mxu0 0.0
    %2545 = vmatpush1.xpose.msra.mxu0 0.0
    %2546 = vmatprep.subr.mxu0 0.0
    %2547 = vmatpush1.xpose.msra.mxu0 0.0
    %2548 = vmatprep.subr.mxu0 0.0
    %2549 = vmatpush1.xpose.msra.mxu0 0.0
    %2550 = vmatprep.subr.mxu0 0.0
    %2551 = vmatpush1.xpose.msra.mxu0 0.0
    %2552 = vmatprep.subr.mxu0 0.0
    %2553 = vmatpush1.xpose.msra.mxu0 0.0
    %2554 = vmatprep.subr.mxu0 0.0
    %2555 = vmatpush1.xpose.msra.mxu0 0.0
    %2556 = vmatprep.subr.mxu0 0.0
    %2557 = vmatpush1.xpose.msra.mxu0 0.0
    %2558 = vmatprep.subr.mxu0 0.0
    %2559 = vmatpush1.xpose.msra.mxu0 0.0
    %2560 = vmatprep.subr.mxu0 0.0
    %2561 = vmatpush1.xpose.msra.mxu0 0.0
    %2562 = vmatprep.subr.mxu0 0.0
    %2563 = vmatpush1.xpose.msra.mxu0 0.0
    %2564 = vmatprep.subr.mxu0 0.0
    %2565 = vmatpush1.xpose.msra.mxu0 0.0
    %2566 = vmatprep.subr.mxu0 0.0
    %2567 = vmatpush1.xpose.msra.mxu0 0.0
    %2568 = vmatprep.subr.mxu0 0.0
    %2569 = vmatpush1.xpose.msra.mxu0 0.0
    %2570 = vmatprep.subr.mxu0 0.0
    %2571 = vmatpush1.xpose.msra.mxu0 0.0
    %2572 = vmatprep.subr.mxu0 0.0
    %2573 = vmatpush1.xpose.msra.mxu0 0.0
    %2574 = vmatprep.subr.mxu0 0.0
    %2575 = vmatpush1.xpose.msra.mxu0 0.0
    %2576 = vmatprep.subr.mxu0 0.0
    %2577 = vmatpush1.xpose.msra.mxu0 0.0
    %2578 = vmatprep.mubr.f32.mxu0 0.0
    %2579 = vmatmul.mubr.f32.gmra.mrb[0].mxu0 %v2510
    %v2580 = vpop.f32.mrb[0].mxu0
    %v2581 = vadd.f32 0.0, %v2580
    %v2582 = vpop.f32.mrb[0].mxu0
    %2583 = vdwg.mxu0
    %v2584 = vsel %vm2416, %v2581, -inf
    %2585 = vmax.xlane.f32.xlu0 %v2584
    %v2586 = vpop.xlane.xlu0 %2585
    %v2587 = vsub.f32 %v2581, %v2586
    %v2588 = vmul.f32 %v2587, 1.442695
    %v2589 = vpow.pop %v2588
    %v2590 = vsel %vm2416, %v2589, 0.0
    %2591 = vadd.xlane.f32.xlu0 %v2590
    %v2592 = vpop.xlane.xlu0 %2591
    %v2593 = vrcp.pop %v2592
    %v2594 = vmul.f32 %v2589, %v2593
    %2596 = vrot.lane.b32.xlu0 %v2331, 96
    %v2597 = vpop.permute.xlu0 %2596
    %v2600 = vsel %vm2416, %v2594, 0
    %2602 = vmatprep.subr.mxu0 0.0
    %2603 = vmatpush1.msra.mxu0 %v2597
    %2604 = vmatprep.subr.mxu0 0.0
    %2605 = vmatpush1.msra.mxu0 0.0
    %2606 = vmatprep.subr.mxu0 0.0
    %2607 = vmatpush1.msra.mxu0 0.0
    %2608 = vmatprep.subr.mxu0 0.0
    %2609 = vmatpush1.msra.mxu0 0.0
    %2610 = vmatprep.subr.mxu0 0.0
    %2611 = vmatpush1.msra.mxu0 0.0
    %2612 = vmatprep.subr.mxu0 0.0
    %2613 = vmatpush1.msra.mxu0 0.0
    %2614 = vmatprep.subr.mxu0 0.0
    %2615 = vmatpush1.msra.mxu0 0.0
    %2616 = vmatprep.subr.mxu0 0.0
    %2617 = vmatpush1.msra.mxu0 0.0
    %2618 = vmatprep.subr.mxu0 0.0
    %2619 = vmatpush1.msra.mxu0 0.0
    %2620 = vmatprep.subr.mxu0 0.0
    %2621 = vmatpush1.msra.mxu0 0.0
    %2622 = vmatprep.subr.mxu0 0.0
    %2623 = vmatpush1.msra.mxu0 0.0
    %2624 = vmatprep.subr.mxu0 0.0
    %2625 = vmatpush1.msra.mxu0 0.0
    %2626 = vmatprep.subr.mxu0 0.0
    %2627 = vmatpush1.msra.mxu0 0.0
    %2628 = vmatprep.subr.mxu0 0.0
    %2629 = vmatpush1.msra.mxu0 0.0
    %2630 = vmatprep.subr.mxu0 0.0
    %2631 = vmatpush1.msra.mxu0 0.0
    %2632 = vmatprep.subr.mxu0 0.0
    %2633 = vmatpush1.msra.mxu0 0.0
    %2634 = vmatprep.subr.mxu0 0.0
    %2635 = vmatpush1.msra.mxu0 0.0
    %2636 = vmatprep.subr.mxu0 0.0
    %2637 = vmatpush1.msra.mxu0 0.0
    %2638 = vmatprep.subr.mxu0 0.0
    %2639 = vmatpush1.msra.mxu0 0.0
    %2640 = vmatprep.subr.mxu0 0.0
    %2641 = vmatpush1.msra.mxu0 0.0
    %2642 = vmatprep.subr.mxu0 0.0
    %2643 = vmatpush1.msra.mxu0 0.0
    %2644 = vmatprep.subr.mxu0 0.0
    %2645 = vmatpush1.msra.mxu0 0.0
    %2646 = vmatprep.subr.mxu0 0.0
    %2647 = vmatpush1.msra.mxu0 0.0
    %2648 = vmatprep.subr.mxu0 0.0
    %2649 = vmatpush1.msra.mxu0 0.0
    %2650 = vmatprep.subr.mxu0 0.0
    %2651 = vmatpush1.msra.mxu0 0.0
    %2652 = vmatprep.subr.mxu0 0.0
    %2653 = vmatpush1.msra.mxu0 0.0
    %2654 = vmatprep.subr.mxu0 0.0
    %2655 = vmatpush1.msra.mxu0 0.0
    %2656 = vmatprep.subr.mxu0 0.0
    %2657 = vmatpush1.msra.mxu0 0.0
    %2658 = vmatprep.subr.mxu0 0.0
    %2659 = vmatpush1.msra.mxu0 0.0
    %2660 = vmatprep.subr.mxu0 0.0
    %2661 = vmatpush1.msra.mxu0 0.0
    %2662 = vmatprep.subr.mxu0 0.0
    %2663 = vmatpush1.msra.mxu0 0.0
    %2664 = vmatprep.subr.mxu0 0.0
    %2665 = vmatpush1.msra.mxu0 0.0
    %2666 = vmatprep.mubr.f32.mxu0 0.0
    %2667 = vmatmul.mubr.f32.gmra.mrb[0].mxu0 %v2600
    %v2668 = vpop.f32.mrb[0].mxu0
    %v2669 = vadd.f32 0.0, %v2668
    %v2670 = vpop.f32.mrb[0].mxu0
    %2671 = vdwg.mxu0
    %v2672 = vld [vmem:[#allocation5 + $0x420] sm:$0xff]
    %v2673 = vld [vmem:[#allocation5 + $0x428] sm:$0xff]
    %v2674 = vld [vmem:[#allocation5 + $0x430] sm:$0xff]
    %v2675 = vld [vmem:[#allocation5 + $0x438] sm:$0xff]
    %v2676 = vpack.c.bf16 %v2669, %v2669
    %v2681 = vunpack.c.l.b16 %v2672
    %v2682 = vunpack.c.h.b16 %v2672
    %v2683 = vunpack.c.l.b16 %v2673
    %v2684 = vunpack.c.h.b16 %v2673
    %v2685 = vunpack.c.l.b16 %v2674
    %v2686 = vunpack.c.h.b16 %v2674
    %v2687 = vunpack.c.l.b16 %v2675
    %v2688 = vunpack.c.h.b16 %v2675
    %v2689 = vpack.c.b16 %v2683, %v2681
    %v2690 = vpack.c.b16 %v2684, %v2682
    %v2691 = vpack.c.b16 %v2687, %v2685
    %v2692 = vpack.c.b16 %v2688, %v2686
    %v2698 = vsel %vm2339, %v2676, 0
    %2700 = vmatprep.subr.bf16.mxu0 %v2690
    %2701 = vmatpush1.bf16.msra.mxu0 %v2689
    %2702 = vmatprep.subr.bf16.mxu0 %v2692
    %2703 = vmatpush1.bf16.msra.mxu0 %v2691
    %2704 = vmatprep.subr.bf16.mxu0 0
    %2705 = vmatpush1.bf16.msra.mxu0 0
    %2706 = vmatprep.subr.bf16.mxu0 0
    %2707 = vmatpush1.bf16.msra.mxu0 0
    %2708 = vmatprep.subr.bf16.mxu0 0
    %2709 = vmatpush1.bf16.msra.mxu0 0
    %2710 = vmatprep.subr.bf16.mxu0 0
    %2711 = vmatpush1.bf16.msra.mxu0 0
    %2712 = vmatprep.subr.bf16.mxu0 0
    %2713 = vmatpush1.bf16.msra.mxu0 0
    %2714 = vmatprep.subr.bf16.mxu0 0
    %2715 = vmatpush1.bf16.msra.mxu0 0
    %2716 = vmatprep.subr.bf16.mxu0 0
    %2717 = vmatpush1.bf16.msra.mxu0 0
    %2718 = vmatprep.subr.bf16.mxu0 0
    %2719 = vmatpush1.bf16.msra.mxu0 0
    %2720 = vmatprep.subr.bf16.mxu0 0
    %2721 = vmatpush1.bf16.msra.mxu0 0
    %2722 = vmatprep.subr.bf16.mxu0 0
    %2723 = vmatpush1.bf16.msra.mxu0 0
    %2724 = vmatprep.subr.bf16.mxu0 0
    %2725 = vmatpush1.bf16.msra.mxu0 0
    %2726 = vmatprep.subr.bf16.mxu0 0
    %2727 = vmatpush1.bf16.msra.mxu0 0
    %2728 = vmatprep.subr.bf16.mxu0 0
    %2729 = vmatpush1.bf16.msra.mxu0 0
    %2730 = vmatprep.subr.bf16.mxu0 0
    %2731 = vmatpush1.bf16.msra.mxu0 0
    %2732 = vmatprep.mubr.bf16.mxu0 0
    %2733 = vmatmul.mubr.bf16.gmra.mrb[0].mxu0 %v2698
    %v2734 = vpop.f32.mrb[0].mxu0
    %v2735 = vadd.f32 0.0, %v2734
    %v2736 = vpop.f32.mrb[0].mxu0
    %v2737 = vadd.f32 0.0, %v2736
    %v2738 = vpop.f32.mrb[0].mxu0
    %v2739 = vpop.f32.mrb[0].mxu0
    %2740 = vdwg.mxu0
    %v2745 = vunpack.c.l.b16 %v2501
    %v2746 = vunpack.c.h.b16 %v2501
    %v2747 = vunpack.c.l.b16 %v2502
    %v2748 = vunpack.c.h.b16 %v2502
    %v2749 = vunpack.c.l.b16 %v2503
    %v2750 = vunpack.c.h.b16 %v2503
    %v2751 = vunpack.c.l.b16 %v2504
    %v2752 = vunpack.c.h.b16 %v2504
    %v2753 = vpack.c.b16 %v2747, %v2745
    %v2754 = vpack.c.b16 %v2748, %v2746
    %v2755 = vpack.c.b16 %v2751, %v2749
    %v2756 = vpack.c.b16 %v2752, %v2750
    %v2762 = vsel %vm2339, %v2505, 0
    %2764 = vmatprep.subr.bf16.mxu0 %v2754
    %2765 = vmatpush1.bf16.msra.mxu0 %v2753
    %2766 = vmatprep.subr.bf16.mxu0 %v2756
    %2767 = vmatpush1.bf16.msra.mxu0 %v2755
    %2768 = vmatprep.subr.bf16.mxu0 0
    %2769 = vmatpush1.bf16.msra.mxu0 0
    %2770 = vmatprep.subr.bf16.mxu0 0
    %2771 = vmatpush1.bf16.msra.mxu0 0
    %2772 = vmatprep.subr.bf16.mxu0 0
    %2773 = vmatpush1.bf16.msra.mxu0 0
    %2774 = vmatprep.subr.bf16.mxu0 0
    %2775 = vmatpush1.bf16.msra.mxu0 0
    %2776 = vmatprep.subr.bf16.mxu0 0
    %2777 = vmatpush1.bf16.msra.mxu0 0
    %2778 = vmatprep.subr.bf16.mxu0 0
    %2779 = vmatpush1.bf16.msra.mxu0 0
    %2780 = vmatprep.subr.bf16.mxu0 0
    %2781 = vmatpush1.bf16.msra.mxu0 0
    %2782 = vmatprep.subr.bf16.mxu0 0
    %2783 = vmatpush1.bf16.msra.mxu0 0
    %2784 = vmatprep.subr.bf16.mxu0 0
    %2785 = vmatpush1.bf16.msra.mxu0 0
    %2786 = vmatprep.subr.bf16.mxu0 0
    %2787 = vmatpush1.bf16.msra.mxu0 0
    %2788 = vmatprep.subr.bf16.mxu0 0
    %2789 = vmatpush1.bf16.msra.mxu0 0
    %2790 = vmatprep.subr.bf16.mxu0 0
    %2791 = vmatpush1.bf16.msra.mxu0 0
    %2792 = vmatprep.subr.bf16.mxu0 0
    %2793 = vmatpush1.bf16.msra.mxu0 0
    %2794 = vmatprep.subr.bf16.mxu0 0
    %2795 = vmatpush1.bf16.msra.mxu0 0
    %2796 = vmatprep.mubr.bf16.mxu0 0
    %2797 = vmatmul.mubr.bf16.gmra.mrb[0].mxu0 %v2762
    %v2798 = vpop.f32.mrb[0].mxu0
    %v2799 = vadd.f32 %v2735, %v2798
    %v2800 = vpop.f32.mrb[0].mxu0
    %v2801 = vadd.f32 %v2737, %v2800
    %v2802 = vpop.f32.mrb[0].mxu0
    %v2803 = vpop.f32.mrb[0].mxu0
    %2804 = vdwg.mxu0
    %2805 = vrot.lane.b32.xlu0 %v2337, 64
    %v2806 = vpop.permute.xlu0 %2805
    %2807 = vrot.lane.b32.xlu0 %v2290, 64
    %v2808 = vpop.permute.xlu0 %2807
    %v2809 = vsel %vm2339, %v2806, 0
    %v2811 = vsel %vm2339, %v2808, 0
    %2813 = vmatprep.subr.mxu0 0.0
    %2814 = vmatpush1.xpose.msra.mxu0 %v2811
    %2815 = vmatprep.subr.mxu0 0.0
    %2816 = vmatpush1.xpose.msra.mxu0 0.0
    %2817 = vmatprep.subr.mxu0 0.0
    %2818 = vmatpush1.xpose.msra.mxu0 0.0
    %2819 = vmatprep.subr.mxu0 0.0
    %2820 = vmatpush1.xpose.msra.mxu0 0.0
    %2821 = vmatprep.subr.mxu0 0.0
    %2822 = vmatpush1.xpose.msra.mxu0 0.0
    %2823 = vmatprep.subr.mxu0 0.0
    %2824 = vmatpush1.xpose.msra.mxu0 0.0
    %2825 = vmatprep.subr.mxu0 0.0
    %2826 = vmatpush1.xpose.msra.mxu0 0.0
    %2827 = vmatprep.subr.mxu0 0.0
    %2828 = vmatpush1.xpose.msra.mxu0 0.0
    %2829 = vmatprep.subr.mxu0 0.0
    %2830 = vmatpush1.xpose.msra.mxu0 0.0
    %2831 = vmatprep.subr.mxu0 0.0
    %2832 = vmatpush1.xpose.msra.mxu0 0.0
    %2833 = vmatprep.subr.mxu0 0.0
    %2834 = vmatpush1.xpose.msra.mxu0 0.0
    %2835 = vmatprep.subr.mxu0 0.0
    %2836 = vmatpush1.xpose.msra.mxu0 0.0
    %2837 = vmatprep.subr.mxu0 0.0
    %2838 = vmatpush1.xpose.msra.mxu0 0.0
    %2839 = vmatprep.subr.mxu0 0.0
    %2840 = vmatpush1.xpose.msra.mxu0 0.0
    %2841 = vmatprep.subr.mxu0 0.0
    %2842 = vmatpush1.xpose.msra.mxu0 0.0
    %2843 = vmatprep.subr.mxu0 0.0
    %2844 = vmatpush1.xpose.msra.mxu0 0.0
    %2845 = vmatprep.subr.mxu0 0.0
    %2846 = vmatpush1.xpose.msra.mxu0 0.0
    %2847 = vmatprep.subr.mxu0 0.0
    %2848 = vmatpush1.xpose.msra.mxu0 0.0
    %2849 = vmatprep.subr.mxu0 0.0
    %2850 = vmatpush1.xpose.msra.mxu0 0.0
    %2851 = vmatprep.subr.mxu0 0.0
    %2852 = vmatpush1.xpose.msra.mxu0 0.0
    %2853 = vmatprep.subr.mxu0 0.0
    %2854 = vmatpush1.xpose.msra.mxu0 0.0
    %2855 = vmatprep.subr.mxu0 0.0
    %2856 = vmatpush1.xpose.msra.mxu0 0.0
    %2857 = vmatprep.subr.mxu0 0.0
    %2858 = vmatpush1.xpose.msra.mxu0 0.0
    %2859 = vmatprep.subr.mxu0 0.0
    %2860 = vmatpush1.xpose.msra.mxu0 0.0
    %2861 = vmatprep.subr.mxu0 0.0
    %2862 = vmatpush1.xpose.msra.mxu0 0.0
    %2863 = vmatprep.subr.mxu0 0.0
    %2864 = vmatpush1.xpose.msra.mxu0 0.0
    %2865 = vmatprep.subr.mxu0 0.0
    %2866 = vmatpush1.xpose.msra.mxu0 0.0
    %2867 = vmatprep.subr.mxu0 0.0
    %2868 = vmatpush1.xpose.msra.mxu0 0.0
    %2869 = vmatprep.subr.mxu0 0.0
    %2870 = vmatpush1.xpose.msra.mxu0 0.0
    %2871 = vmatprep.subr.mxu0 0.0
    %2872 = vmatpush1.xpose.msra.mxu0 0.0
    %2873 = vmatprep.subr.mxu0 0.0
    %2874 = vmatpush1.xpose.msra.mxu0 0.0
    %2875 = vmatprep.subr.mxu0 0.0
    %2876 = vmatpush1.xpose.msra.mxu0 0.0
    %2877 = vmatprep.mubr.f32.mxu0 0.0
    %2878 = vmatmul.mubr.f32.gmra.mrb[0].mxu0 %v2809
    %v2879 = vpop.f32.mrb[0].mxu0
    %v2880 = vadd.f32 0.0, %v2879
    %v2881 = vpop.f32.mrb[0].mxu0
    %2882 = vdwg.mxu0
    %v2883 = vsel %vm2416, %v2880, -inf
    %2884 = vmax.xlane.f32.xlu0 %v2883
    %v2885 = vpop.xlane.xlu0 %2884
    %v2886 = vsub.f32 %v2880, %v2885
    %v2887 = vmul.f32 %v2886, 1.442695
    %v2888 = vpow.pop %v2887
    %v2889 = vsel %vm2416, %v2888, 0.0
    %2890 = vadd.xlane.f32.xlu0 %v2889
    %v2891 = vpop.xlane.xlu0 %2890
    %v2892 = vrcp.pop %v2891
    %v2893 = vmul.f32 %v2888, %v2892
    %2894 = vrot.lane.b32.xlu0 %v2331, 64
    %v2895 = vpop.permute.xlu0 %2894
    %v2898 = vsel %vm2416, %v2893, 0
    %2900 = vmatprep.subr.mxu0 0.0
    %2901 = vmatpush1.msra.mxu0 %v2895
    %2902 = vmatprep.subr.mxu0 0.0
    %2903 = vmatpush1.msra.mxu0 0.0
    %2904 = vmatprep.subr.mxu0 0.0
    %2905 = vmatpush1.msra.mxu0 0.0
    %2906 = vmatprep.subr.mxu0 0.0
    %2907 = vmatpush1.msra.mxu0 0.0
    %2908 = vmatprep.subr.mxu0 0.0
    %2909 = vmatpush1.msra.mxu0 0.0
    %2910 = vmatprep.subr.mxu0 0.0
    %2911 = vmatpush1.msra.mxu0 0.0
    %2912 = vmatprep.subr.mxu0 0.0
    %2913 = vmatpush1.msra.mxu0 0.0
    %2914 = vmatprep.subr.mxu0 0.0
    %2915 = vmatpush1.msra.mxu0 0.0
    %2916 = vmatprep.subr.mxu0 0.0
    %2917 = vmatpush1.msra.mxu0 0.0
    %2918 = vmatprep.subr.mxu0 0.0
    %2919 = vmatpush1.msra.mxu0 0.0
    %2920 = vmatprep.subr.mxu0 0.0
    %2921 = vmatpush1.msra.mxu0 0.0
    %2922 = vmatprep.subr.mxu0 0.0
    %2923 = vmatpush1.msra.mxu0 0.0
    %2924 = vmatprep.subr.mxu0 0.0
    %2925 = vmatpush1.msra.mxu0 0.0
    %2926 = vmatprep.subr.mxu0 0.0
    %2927 = vmatpush1.msra.mxu0 0.0
    %2928 = vmatprep.subr.mxu0 0.0
    %2929 = vmatpush1.msra.mxu0 0.0
    %2930 = vmatprep.subr.mxu0 0.0
    %2931 = vmatpush1.msra.mxu0 0.0
    %2932 = vmatprep.subr.mxu0 0.0
    %2933 = vmatpush1.msra.mxu0 0.0
    %2934 = vmatprep.subr.mxu0 0.0
    %2935 = vmatpush1.msra.mxu0 0.0
    %2936 = vmatprep.subr.mxu0 0.0
    %2937 = vmatpush1.msra.mxu0 0.0
    %2938 = vmatprep.subr.mxu0 0.0
    %2939 = vmatpush1.msra.mxu0 0.0
    %2940 = vmatprep.subr.mxu0 0.0
    %2941 = vmatpush1.msra.mxu0 0.0
    %2942 = vmatprep.subr.mxu0 0.0
    %2943 = vmatpush1.msra.mxu0 0.0
    %2944 = vmatprep.subr.mxu0 0.0
    %2945 = vmatpush1.msra.mxu0 0.0
    %2946 = vmatprep.subr.mxu0 0.0
    %2947 = vmatpush1.msra.mxu0 0.0
    %2948 = vmatprep.subr.mxu0 0.0
    %2949 = vmatpush1.msra.mxu0 0.0
    %2950 = vmatprep.subr.mxu0 0.0
    %2951 = vmatpush1.msra.mxu0 0.0
    %2952 = vmatprep.subr.mxu0 0.0
    %2953 = vmatpush1.msra.mxu0 0.0
    %2954 = vmatprep.subr.mxu0 0.0
    %2955 = vmatpush1.msra.mxu0 0.0
    %2956 = vmatprep.subr.mxu0 0.0
    %2957 = vmatpush1.msra.mxu0 0.0
    %2958 = vmatprep.subr.mxu0 0.0
    %2959 = vmatpush1.msra.mxu0 0.0
    %2960 = vmatprep.subr.mxu0 0.0
    %2961 = vmatpush1.msra.mxu0 0.0
    %2962 = vmatprep.subr.mxu0 0.0
    %2963 = vmatpush1.msra.mxu0 0.0
    %2964 = vmatprep.mubr.f32.mxu0 0.0
    %2965 = vmatmul.mubr.f32.gmra.mrb[0].mxu0 %v2898
    %v2966 = vpop.f32.mrb[0].mxu0
    %v2967 = vadd.f32 0.0, %v2966
    %v2968 = vpop.f32.mrb[0].mxu0
    %2969 = vdwg.mxu0
    %v2970 = vld [vmem:[#allocation5 + $0x440] sm:$0xff]
    %v2971 = vld [vmem:[#allocation5 + $0x448] sm:$0xff]
    %v2972 = vld [vmem:[#allocation5 + $0x450] sm:$0xff]
    %v2973 = vld [vmem:[#allocation5 + $0x458] sm:$0xff]
    %v2974 = vpack.c.bf16 %v2967, %v2967
    %v2979 = vunpack.c.l.b16 %v2970
    %v2980 = vunpack.c.h.b16 %v2970
    %v2981 = vunpack.c.l.b16 %v2971
    %v2982 = vunpack.c.h.b16 %v2971
    %v2983 = vunpack.c.l.b16 %v2972
    %v2984 = vunpack.c.h.b16 %v2972
    %v2985 = vunpack.c.l.b16 %v2973
    %v2986 = vunpack.c.h.b16 %v2973
    %v2987 = vpack.c.b16 %v2981, %v2979
    %v2988 = vpack.c.b16 %v2982, %v2980
    %v2989 = vpack.c.b16 %v2985, %v2983
    %v2990 = vpack.c.b16 %v2986, %v2984
    %v2996 = vsel %vm2339, %v2974, 0
    %2998 = vmatprep.subr.bf16.mxu0 %v2988
    %2999 = vmatpush1.bf16.msra.mxu0 %v2987
    %3000 = vmatprep.subr.bf16.mxu0 %v2990
    %3001 = vmatpush1.bf16.msra.mxu0 %v2989
    %3002 = vmatprep.subr.bf16.mxu0 0
    %3003 = vmatpush1.bf16.msra.mxu0 0
    %3004 = vmatprep.subr.bf16.mxu0 0
    %3005 = vmatpush1.bf16.msra.mxu0 0
    %3006 = vmatprep.subr.bf16.mxu0 0
    %3007 = vmatpush1.bf16.msra.mxu0 0
    %3008 = vmatprep.subr.bf16.mxu0 0
    %3009 = vmatpush1.bf16.msra.mxu0 0
    %3010 = vmatprep.subr.bf16.mxu0 0
    %3011 = vmatpush1.bf16.msra.mxu0 0
    %3012 = vmatprep.subr.bf16.mxu0 0
    %3013 = vmatpush1.bf16.msra.mxu0 0
    %3014 = vmatprep.subr.bf16.mxu0 0
    %3015 = vmatpush1.bf16.msra.mxu0 0
    %3016 = vmatprep.subr.bf16.mxu0 0
    %3017 = vmatpush1.bf16.msra.mxu0 0
    %3018 = vmatprep.subr.bf16.mxu0 0
    %3019 = vmatpush1.bf16.msra.mxu0 0
    %3020 = vmatprep.subr.bf16.mxu0 0
    %3021 = vmatpush1.bf16.msra.mxu0 0
    %3022 = vmatprep.subr.bf16.mxu0 0
    %3023 = vmatpush1.bf16.msra.mxu0 0
    %3024 = vmatprep.subr.bf16.mxu0 0
    %3025 = vmatpush1.bf16.msra.mxu0 0
    %3026 = vmatprep.subr.bf16.mxu0 0
    %3027 = vmatpush1.bf16.msra.mxu0 0
    %3028 = vmatprep.subr.bf16.mxu0 0
    %3029 = vmatpush1.bf16.msra.mxu0 0
    %3030 = vmatprep.mubr.bf16.mxu0 0
    %3031 = vmatmul.mubr.bf16.gmra.mrb[0].mxu0 %v2996
    %v3032 = vpop.f32.mrb[0].mxu0
    %v3033 = vadd.f32 0.0, %v3032
    %v3034 = vpop.f32.mrb[0].mxu0
    %v3035 = vadd.f32 0.0, %v3034
    %v3036 = vpop.f32.mrb[0].mxu0
    %v3037 = vpop.f32.mrb[0].mxu0
    %3038 = vdwg.mxu0
    %v3039 = vadd.f32 %v2799, %v3033
    %v3040 = vadd.f32 %v2801, %v3035
    %3041 = vrot.lane.b32.xlu0 %v2337, 32
    %v3042 = vpop.permute.xlu0 %3041
    %3043 = vrot.lane.b32.xlu0 %v2290, 32
    %v3044 = vpop.permute.xlu0 %3043
    %v3045 = vsel %vm2339, %v3042, 0
    %v3047 = vsel %vm2339, %v3044, 0
    %3049 = vmatprep.subr.mxu0 0.0
    %3050 = vmatpush1.xpose.msra.mxu0 %v3047
    %3051 = vmatprep.subr.mxu0 0.0
    %3052 = vmatpush1.xpose.msra.mxu0 0.0
    %3053 = vmatprep.subr.mxu0 0.0
    %3054 = vmatpush1.xpose.msra.mxu0 0.0
    %3055 = vmatprep.subr.mxu0 0.0
    %3056 = vmatpush1.xpose.msra.mxu0 0.0
    %3057 = vmatprep.subr.mxu0 0.0
    %3058 = vmatpush1.xpose.msra.mxu0 0.0
    %3059 = vmatprep.subr.mxu0 0.0
    %3060 = vmatpush1.xpose.msra.mxu0 0.0
    %3061 = vmatprep.subr.mxu0 0.0
    %3062 = vmatpush1.xpose.msra.mxu0 0.0
    %3063 = vmatprep.subr.mxu0 0.0
    %3064 = vmatpush1.xpose.msra.mxu0 0.0
    %3065 = vmatprep.subr.mxu0 0.0
    %3066 = vmatpush1.xpose.msra.mxu0 0.0
    %3067 = vmatprep.subr.mxu0 0.0
    %3068 = vmatpush1.xpose.msra.mxu0 0.0
    %3069 = vmatprep.subr.mxu0 0.0
    %3070 = vmatpush1.xpose.msra.mxu0 0.0
    %3071 = vmatprep.subr.mxu0 0.0
    %3072 = vmatpush1.xpose.msra.mxu0 0.0
    %3073 = vmatprep.subr.mxu0 0.0
    %3074 = vmatpush1.xpose.msra.mxu0 0.0
    %3075 = vmatprep.subr.mxu0 0.0
    %3076 = vmatpush1.xpose.msra.mxu0 0.0
    %3077 = vmatprep.subr.mxu0 0.0
    %3078 = vmatpush1.xpose.msra.mxu0 0.0
    %3079 = vmatprep.subr.mxu0 0.0
    %3080 = vmatpush1.xpose.msra.mxu0 0.0
    %3081 = vmatprep.subr.mxu0 0.0
    %3082 = vmatpush1.xpose.msra.mxu0 0.0
    %3083 = vmatprep.subr.mxu0 0.0
    %3084 = vmatpush1.xpose.msra.mxu0 0.0
    %3085 = vmatprep.subr.mxu0 0.0
    %3086 = vmatpush1.xpose.msra.mxu0 0.0
    %3087 = vmatprep.subr.mxu0 0.0
    %3088 = vmatpush1.xpose.msra.mxu0 0.0
    %3089 = vmatprep.subr.mxu0 0.0
    %3090 = vmatpush1.xpose.msra.mxu0 0.0
    %3091 = vmatprep.subr.mxu0 0.0
    %3092 = vmatpush1.xpose.msra.mxu0 0.0
    %3093 = vmatprep.subr.mxu0 0.0
    %3094 = vmatpush1.xpose.msra.mxu0 0.0
    %3095 = vmatprep.subr.mxu0 0.0
    %3096 = vmatpush1.xpose.msra.mxu0 0.0
    %3097 = vmatprep.subr.mxu0 0.0
    %3098 = vmatpush1.xpose.msra.mxu0 0.0
    %3099 = vmatprep.subr.mxu0 0.0
    %3100 = vmatpush1.xpose.msra.mxu0 0.0
    %3101 = vmatprep.subr.mxu0 0.0
    %3102 = vmatpush1.xpose.msra.mxu0 0.0
    %3103 = vmatprep.subr.mxu0 0.0
    %3104 = vmatpush1.xpose.msra.mxu0 0.0
    %3105 = vmatprep.subr.mxu0 0.0
    %3106 = vmatpush1.xpose.msra.mxu0 0.0
    %3107 = vmatprep.subr.mxu0 0.0
    %3108 = vmatpush1.xpose.msra.mxu0 0.0
    %3109 = vmatprep.subr.mxu0 0.0
    %3110 = vmatpush1.xpose.msra.mxu0 0.0
    %3111 = vmatprep.subr.mxu0 0.0
    %3112 = vmatpush1.xpose.msra.mxu0 0.0
    %3113 = vmatprep.mubr.f32.mxu0 0.0
    %3114 = vmatmul.mubr.f32.gmra.mrb[0].mxu0 %v3045
    %v3115 = vpop.f32.mrb[0].mxu0
    %v3116 = vadd.f32 0.0, %v3115
    %v3117 = vpop.f32.mrb[0].mxu0
    %3118 = vdwg.mxu0
    %v3119 = vsel %vm2416, %v3116, -inf
    %3120 = vmax.xlane.f32.xlu0 %v3119
    %v3121 = vpop.xlane.xlu0 %3120
    %v3122 = vsub.f32 %v3116, %v3121
    %v3123 = vmul.f32 %v3122, 1.442695
    %v3124 = vpow.pop %v3123
    %v3125 = vsel %vm2416, %v3124, 0.0
    %3126 = vadd.xlane.f32.xlu0 %v3125
    %v3127 = vpop.xlane.xlu0 %3126
    %v3128 = vrcp.pop %v3127
    %v3129 = vmul.f32 %v3124, %v3128
    %3130 = vrot.lane.b32.xlu0 %v2331, 32
    %v3131 = vpop.permute.xlu0 %3130
    %v3134 = vsel %vm2416, %v3129, 0
    %3136 = vmatprep.subr.mxu0 0.0
    %3137 = vmatpush1.msra.mxu0 %v3131
    %3138 = vmatprep.subr.mxu0 0.0
    %3139 = vmatpush1.msra.mxu0 0.0
    %3140 = vmatprep.subr.mxu0 0.0
    %3141 = vmatpush1.msra.mxu0 0.0
    %3142 = vmatprep.subr.mxu0 0.0
    %3143 = vmatpush1.msra.mxu0 0.0
    %3144 = vmatprep.subr.mxu0 0.0
    %3145 = vmatpush1.msra.mxu0 0.0
    %3146 = vmatprep.subr.mxu0 0.0
    %3147 = vmatpush1.msra.mxu0 0.0
    %3148 = vmatprep.subr.mxu0 0.0
    %3149 = vmatpush1.msra.mxu0 0.0
    %3150 = vmatprep.subr.mxu0 0.0
    %3151 = vmatpush1.msra.mxu0 0.0
    %3152 = vmatprep.subr.mxu0 0.0
    %3153 = vmatpush1.msra.mxu0 0.0
    %3154 = vmatprep.subr.mxu0 0.0
    %3155 = vmatpush1.msra.mxu0 0.0
    %3156 = vmatprep.subr.mxu0 0.0
    %3157 = vmatpush1.msra.mxu0 0.0
    %3158 = vmatprep.subr.mxu0 0.0
    %3159 = vmatpush1.msra.mxu0 0.0
    %3160 = vmatprep.subr.mxu0 0.0
    %3161 = vmatpush1.msra.mxu0 0.0
    %3162 = vmatprep.subr.mxu0 0.0
    %3163 = vmatpush1.msra.mxu0 0.0
    %3164 = vmatprep.subr.mxu0 0.0
    %3165 = vmatpush1.msra.mxu0 0.0
    %3166 = vmatprep.subr.mxu0 0.0
    %3167 = vmatpush1.msra.mxu0 0.0
    %3168 = vmatprep.subr.mxu0 0.0
    %3169 = vmatpush1.msra.mxu0 0.0
    %3170 = vmatprep.subr.mxu0 0.0
    %3171 = vmatpush1.msra.mxu0 0.0
    %3172 = vmatprep.subr.mxu0 0.0
    %3173 = vmatpush1.msra.mxu0 0.0
    %3174 = vmatprep.subr.mxu0 0.0
    %3175 = vmatpush1.msra.mxu0 0.0
    %3176 = vmatprep.subr.mxu0 0.0
    %3177 = vmatpush1.msra.mxu0 0.0
    %3178 = vmatprep.subr.mxu0 0.0
    %3179 = vmatpush1.msra.mxu0 0.0
    %3180 = vmatprep.subr.mxu0 0.0
    %3181 = vmatpush1.msra.mxu0 0.0
    %3182 = vmatprep.subr.mxu0 0.0
    %3183 = vmatpush1.msra.mxu0 0.0
    %3184 = vmatprep.subr.mxu0 0.0
    %3185 = vmatpush1.msra.mxu0 0.0
    %3186 = vmatprep.subr.mxu0 0.0
    %3187 = vmatpush1.msra.mxu0 0.0
    %3188 = vmatprep.subr.mxu0 0.0
    %3189 = vmatpush1.msra.mxu0 0.0
    %3190 = vmatprep.subr.mxu0 0.0
    %3191 = vmatpush1.msra.mxu0 0.0
    %3192 = vmatprep.subr.mxu0 0.0
    %3193 = vmatpush1.msra.mxu0 0.0
    %3194 = vmatprep.subr.mxu0 0.0
    %3195 = vmatpush1.msra.mxu0 0.0
    %3196 = vmatprep.subr.mxu0 0.0
    %3197 = vmatpush1.msra.mxu0 0.0
    %3198 = vmatprep.subr.mxu0 0.0
    %3199 = vmatpush1.msra.mxu0 0.0
    %3200 = vmatprep.mubr.f32.mxu0 0.0
    %3201 = vmatmul.mubr.f32.gmra.mrb[0].mxu0 %v3134
    %v3202 = vpop.f32.mrb[0].mxu0
    %v3203 = vadd.f32 0.0, %v3202
    %v3204 = vpop.f32.mrb[0].mxu0
    %3205 = vdwg.mxu0
    %v3206 = vld [vmem:[#allocation5 + $0x460] sm:$0xff]
    %v3207 = vld [vmem:[#allocation5 + $0x468] sm:$0xff]
    %v3208 = vld [vmem:[#allocation5 + $0x470] sm:$0xff]
    %v3209 = vld [vmem:[#allocation5 + $0x478] sm:$0xff]
    %v3210 = vpack.c.bf16 %v3203, %v3203
    %v3215 = vunpack.c.l.b16 %v3206
    %v3216 = vunpack.c.h.b16 %v3206
    %v3217 = vunpack.c.l.b16 %v3207
    %v3218 = vunpack.c.h.b16 %v3207
    %v3219 = vunpack.c.l.b16 %v3208
    %v3220 = vunpack.c.h.b16 %v3208
    %v3221 = vunpack.c.l.b16 %v3209
    %v3222 = vunpack.c.h.b16 %v3209
    %v3223 = vpack.c.b16 %v3217, %v3215
    %v3224 = vpack.c.b16 %v3218, %v3216
    %v3225 = vpack.c.b16 %v3221, %v3219
    %v3226 = vpack.c.b16 %v3222, %v3220
    %v3232 = vsel %vm2339, %v3210, 0
    %3234 = vmatprep.subr.bf16.mxu0 %v3224
    %3235 = vmatpush1.bf16.msra.mxu0 %v3223
    %3236 = vmatprep.subr.bf16.mxu0 %v3226
    %3237 = vmatpush1.bf16.msra.mxu0 %v3225
    %3238 = vmatprep.subr.bf16.mxu0 0
    %3239 = vmatpush1.bf16.msra.mxu0 0
    %3240 = vmatprep.subr.bf16.mxu0 0
    %3241 = vmatpush1.bf16.msra.mxu0 0
    %3242 = vmatprep.subr.bf16.mxu0 0
    %3243 = vmatpush1.bf16.msra.mxu0 0
    %3244 = vmatprep.subr.bf16.mxu0 0
    %3245 = vmatpush1.bf16.msra.mxu0 0
    %3246 = vmatprep.subr.bf16.mxu0 0
    %3247 = vmatpush1.bf16.msra.mxu0 0
    %3248 = vmatprep.subr.bf16.mxu0 0
    %3249 = vmatpush1.bf16.msra.mxu0 0
    %3250 = vmatprep.subr.bf16.mxu0 0
    %3251 = vmatpush1.bf16.msra.mxu0 0
    %3252 = vmatprep.subr.bf16.mxu0 0
    %3253 = vmatpush1.bf16.msra.mxu0 0
    %3254 = vmatprep.subr.bf16.mxu0 0
    %3255 = vmatpush1.bf16.msra.mxu0 0
    %3256 = vmatprep.subr.bf16.mxu0 0
    %3257 = vmatpush1.bf16.msra.mxu0 0
    %3258 = vmatprep.subr.bf16.mxu0 0
    %3259 = vmatpush1.bf16.msra.mxu0 0
    %3260 = vmatprep.subr.bf16.mxu0 0
    %3261 = vmatpush1.bf16.msra.mxu0 0
    %3262 = vmatprep.subr.bf16.mxu0 0
    %3263 = vmatpush1.bf16.msra.mxu0 0
    %3264 = vmatprep.subr.bf16.mxu0 0
    %3265 = vmatpush1.bf16.msra.mxu0 0
    %3266 = vmatprep.mubr.bf16.mxu0 0
    %3267 = vmatmul.mubr.bf16.gmra.mrb[0].mxu0 %v3232
    %v3268 = vpop.f32.mrb[0].mxu0
    %v3269 = vadd.f32 0.0, %v3268
    %v3270 = vpop.f32.mrb[0].mxu0
    %v3271 = vadd.f32 0.0, %v3270
    %v3272 = vpop.f32.mrb[0].mxu0
    %v3273 = vpop.f32.mrb[0].mxu0
    %3274 = vdwg.mxu0
    %v3275 = vadd.f32 %v3039, %v3269
    %v3276 = vadd.f32 %v3040, %v3271
    %v3278 = vsel %vm2339, %v2338, 0
    %v3281 = vsel %vm2339, %v2292, 0
    %3283 = vmatprep.subr.mxu0 0.0
    %3284 = vmatpush1.xpose.msra.mxu0 %v3281
    %3285 = vmatprep.subr.mxu0 0.0
    %3286 = vmatpush1.xpose.msra.mxu0 0.0
    %3287 = vmatprep.subr.mxu0 0.0
    %3288 = vmatpush1.xpose.msra.mxu0 0.0
    %3289 = vmatprep.subr.mxu0 0.0
    %3290 = vmatpush1.xpose.msra.mxu0 0.0
    %3291 = vmatprep.subr.mxu0 0.0
    %3292 = vmatpush1.xpose.msra.mxu0 0.0
    %3293 = vmatprep.subr.mxu0 0.0
    %3294 = vmatpush1.xpose.msra.mxu0 0.0
    %3295 = vmatprep.subr.mxu0 0.0
    %3296 = vmatpush1.xpose.msra.mxu0 0.0
    %3297 = vmatprep.subr.mxu0 0.0
    %3298 = vmatpush1.xpose.msra.mxu0 0.0
    %3299 = vmatprep.subr.mxu0 0.0
    %3300 = vmatpush1.xpose.msra.mxu0 0.0
    %3301 = vmatprep.subr.mxu0 0.0
    %3302 = vmatpush1.xpose.msra.mxu0 0.0
    %3303 = vmatprep.subr.mxu0 0.0
    %3304 = vmatpush1.xpose.msra.mxu0 0.0
    %3305 = vmatprep.subr.mxu0 0.0
    %3306 = vmatpush1.xpose.msra.mxu0 0.0
    %3307 = vmatprep.subr.mxu0 0.0
    %3308 = vmatpush1.xpose.msra.mxu0 0.0
    %3309 = vmatprep.subr.mxu0 0.0
    %3310 = vmatpush1.xpose.msra.mxu0 0.0
    %3311 = vmatprep.subr.mxu0 0.0
    %3312 = vmatpush1.xpose.msra.mxu0 0.0
    %3313 = vmatprep.subr.mxu0 0.0
    %3314 = vmatpush1.xpose.msra.mxu0 0.0
    %3315 = vmatprep.subr.mxu0 0.0
    %3316 = vmatpush1.xpose.msra.mxu0 0.0
    %3317 = vmatprep.subr.mxu0 0.0
    %3318 = vmatpush1.xpose.msra.mxu0 0.0
    %3319 = vmatprep.subr.mxu0 0.0
    %3320 = vmatpush1.xpose.msra.mxu0 0.0
    %3321 = vmatprep.subr.mxu0 0.0
    %3322 = vmatpush1.xpose.msra.mxu0 0.0
    %3323 = vmatprep.subr.mxu0 0.0
    %3324 = vmatpush1.xpose.msra.mxu0 0.0
    %3325 = vmatprep.subr.mxu0 0.0
    %3326 = vmatpush1.xpose.msra.mxu0 0.0
    %3327 = vmatprep.subr.mxu0 0.0
    %3328 = vmatpush1.xpose.msra.mxu0 0.0
    %3329 = vmatprep.subr.mxu0 0.0
    %3330 = vmatpush1.xpose.msra.mxu0 0.0
    %3331 = vmatprep.subr.mxu0 0.0
    %3332 = vmatpush1.xpose.msra.mxu0 0.0
    %3333 = vmatprep.subr.mxu0 0.0
    %3334 = vmatpush1.xpose.msra.mxu0 0.0
    %3335 = vmatprep.subr.mxu0 0.0
    %3336 = vmatpush1.xpose.msra.mxu0 0.0
    %3337 = vmatprep.subr.mxu0 0.0
    %3338 = vmatpush1.xpose.msra.mxu0 0.0
    %3339 = vmatprep.subr.mxu0 0.0
    %3340 = vmatpush1.xpose.msra.mxu0 0.0
    %3341 = vmatprep.subr.mxu0 0.0
    %3342 = vmatpush1.xpose.msra.mxu0 0.0
    %3343 = vmatprep.subr.mxu0 0.0
    %3344 = vmatpush1.xpose.msra.mxu0 0.0
    %3345 = vmatprep.subr.mxu0 0.0
    %3346 = vmatpush1.xpose.msra.mxu0 0.0
    %3347 = vmatprep.mubr.f32.mxu0 0.0
    %3348 = vmatmul.mubr.f32.gmra.mrb[0].mxu0 %v3278
    %v3349 = vpop.f32.mrb[0].mxu0
    %v3350 = vadd.f32 0.0, %v3349
    %v3351 = vpop.f32.mrb[0].mxu0
    %3352 = vdwg.mxu0
    %v3353 = vsel %vm2416, %v3350, -inf
    %3354 = vmax.xlane.f32.xlu0 %v3353
    %v3355 = vpop.xlane.xlu0 %3354
    %v3356 = vsub.f32 %v3350, %v3355
    %v3357 = vmul.f32 %v3356, 1.442695
    %v3358 = vpow.pop %v3357
    %v3359 = vsel %vm2416, %v3358, 0.0
    %3360 = vadd.xlane.f32.xlu0 %v3359
    %v3361 = vpop.xlane.xlu0 %3360
    %v3362 = vrcp.pop %v3361
    %v3363 = vmul.f32 %v3358, %v3362
    %v3365 = vsel %vm2416, %v3363, 0
    %3367 = vmatprep.subr.mxu0 0.0
    %3368 = vmatpush1.msra.mxu0 %v2333
    %3369 = vmatprep.subr.mxu0 0.0
    %3370 = vmatpush1.msra.mxu0 0.0
    %3371 = vmatprep.subr.mxu0 0.0
    %3372 = vmatpush1.msra.mxu0 0.0
    %3373 = vmatprep.subr.mxu0 0.0
    %3374 = vmatpush1.msra.mxu0 0.0
    %3375 = vmatprep.subr.mxu0 0.0
    %3376 = vmatpush1.msra.mxu0 0.0
    %3377 = vmatprep.subr.mxu0 0.0
    %3378 = vmatpush1.msra.mxu0 0.0
    %3379 = vmatprep.subr.mxu0 0.0
    %3380 = vmatpush1.msra.mxu0 0.0
    %3381 = vmatprep.subr.mxu0 0.0
    %3382 = vmatpush1.msra.mxu0 0.0
    %3383 = vmatprep.subr.mxu0 0.0
    %3384 = vmatpush1.msra.mxu0 0.0
    %3385 = vmatprep.subr.mxu0 0.0
    %3386 = vmatpush1.msra.mxu0 0.0
    %3387 = vmatprep.subr.mxu0 0.0
    %3388 = vmatpush1.msra.mxu0 0.0
    %3389 = vmatprep.subr.mxu0 0.0
    %3390 = vmatpush1.msra.mxu0 0.0
    %3391 = vmatprep.subr.mxu0 0.0
    %3392 = vmatpush1.msra.mxu0 0.0
    %3393 = vmatprep.subr.mxu0 0.0
    %3394 = vmatpush1.msra.mxu0 0.0
    %3395 = vmatprep.subr.mxu0 0.0
    %3396 = vmatpush1.msra.mxu0 0.0
    %3397 = vmatprep.subr.mxu0 0.0
    %3398 = vmatpush1.msra.mxu0 0.0
    %3399 = vmatprep.subr.mxu0 0.0
    %3400 = vmatpush1.msra.mxu0 0.0
    %3401 = vmatprep.subr.mxu0 0.0
    %3402 = vmatpush1.msra.mxu0 0.0
    %3403 = vmatprep.subr.mxu0 0.0
    %3404 = vmatpush1.msra.mxu0 0.0
    %3405 = vmatprep.subr.mxu0 0.0
    %3406 = vmatpush1.msra.mxu0 0.0
    %3407 = vmatprep.subr.mxu0 0.0
    %3408 = vmatpush1.msra.mxu0 0.0
    %3409 = vmatprep.subr.mxu0 0.0
    %3410 = vmatpush1.msra.mxu0 0.0
    %3411 = vmatprep.subr.mxu0 0.0
    %3412 = vmatpush1.msra.mxu0 0.0
    %3413 = vmatprep.subr.mxu0 0.0
    %3414 = vmatpush1.msra.mxu0 0.0
    %3415 = vmatprep.subr.mxu0 0.0
    %3416 = vmatpush1.msra.mxu0 0.0
    %3417 = vmatprep.subr.mxu0 0.0
    %3418 = vmatpush1.msra.mxu0 0.0
    %3419 = vmatprep.subr.mxu0 0.0
    %3420 = vmatpush1.msra.mxu0 0.0
    %3421 = vmatprep.subr.mxu0 0.0
    %3422 = vmatpush1.msra.mxu0 0.0
    %3423 = vmatprep.subr.mxu0 0.0
    %3424 = vmatpush1.msra.mxu0 0.0
    %3425 = vmatprep.subr.mxu0 0.0
    %3426 = vmatpush1.msra.mxu0 0.0
    %3427 = vmatprep.subr.mxu0 0.0
    %3428 = vmatpush1.msra.mxu0 0.0
    %3429 = vmatprep.subr.mxu0 0.0
    %3430 = vmatpush1.msra.mxu0 0.0
    %3431 = vmatprep.mubr.f32.mxu0 0.0
    %3432 = vmatmul.mubr.f32.gmra.mrb[0].mxu0 %v3365
    %v3433 = vpop.f32.mrb[0].mxu0
    %v3434 = vadd.f32 0.0, %v3433
    %v3435 = vpop.f32.mrb[0].mxu0
    %3436 = vdwg.mxu0
    %v3437 = vld [vmem:[#allocation5 + $0x480] sm:$0xff]
    %v3438 = vld [vmem:[#allocation5 + $0x488] sm:$0xff]
    %v3439 = vld [vmem:[#allocation5 + $0x490] sm:$0xff]
    %v3440 = vld [vmem:[#allocation5 + $0x498] sm:$0xff]
    %v3441 = vpack.c.bf16 %v3434, %v3434
    %v3446 = vunpack.c.l.b16 %v3437
    %v3447 = vunpack.c.h.b16 %v3437
    %v3448 = vunpack.c.l.b16 %v3438
    %v3449 = vunpack.c.h.b16 %v3438
    %v3450 = vunpack.c.l.b16 %v3439
    %v3451 = vunpack.c.h.b16 %v3439
    %v3452 = vunpack.c.l.b16 %v3440
    %v3453 = vunpack.c.h.b16 %v3440
    %v3454 = vpack.c.b16 %v3448, %v3446
    %v3455 = vpack.c.b16 %v3449, %v3447
    %v3456 = vpack.c.b16 %v3452, %v3450
    %v3457 = vpack.c.b16 %v3453, %v3451
    %v3463 = vsel %vm2339, %v3441, 0
    %3465 = vmatprep.subr.bf16.mxu0 %v3455
    %3466 = vmatpush1.bf16.msra.mxu0 %v3454
    %3467 = vmatprep.subr.bf16.mxu0 %v3457
    %3468 = vmatpush1.bf16.msra.mxu0 %v3456
    %3469 = vmatprep.subr.bf16.mxu0 0
    %3470 = vmatpush1.bf16.msra.mxu0 0
    %3471 = vmatprep.subr.bf16.mxu0 0
    %3472 = vmatpush1.bf16.msra.mxu0 0
    %3473 = vmatprep.subr.bf16.mxu0 0
    %3474 = vmatpush1.bf16.msra.mxu0 0
    %3475 = vmatprep.subr.bf16.mxu0 0
    %3476 = vmatpush1.bf16.msra.mxu0 0
    %3477 = vmatprep.subr.bf16.mxu0 0
    %3478 = vmatpush1.bf16.msra.mxu0 0
    %3479 = vmatprep.subr.bf16.mxu0 0
    %3480 = vmatpush1.bf16.msra.mxu0 0
    %3481 = vmatprep.subr.bf16.mxu0 0
    %3482 = vmatpush1.bf16.msra.mxu0 0
    %3483 = vmatprep.subr.bf16.mxu0 0
    %3484 = vmatpush1.bf16.msra.mxu0 0
    %3485 = vmatprep.subr.bf16.mxu0 0
    %3486 = vmatpush1.bf16.msra.mxu0 0
    %3487 = vmatprep.subr.bf16.mxu0 0
    %3488 = vmatpush1.bf16.msra.mxu0 0
    %3489 = vmatprep.subr.bf16.mxu0 0
    %3490 = vmatpush1.bf16.msra.mxu0 0
    %3491 = vmatprep.subr.bf16.mxu0 0
    %3492 = vmatpush1.bf16.msra.mxu0 0
    %3493 = vmatprep.subr.bf16.mxu0 0
    %3494 = vmatpush1.bf16.msra.mxu0 0
    %3495 = vmatprep.subr.bf16.mxu0 0
    %3496 = vmatpush1.bf16.msra.mxu0 0
    %3497 = vmatprep.mubr.bf16.mxu0 0
    %3498 = vmatmul.mubr.bf16.gmra.mrb[0].mxu0 %v3463
    %v3499 = vpop.f32.mrb[0].mxu0
    %v3500 = vadd.f32 0.0, %v3499
    %v3501 = vpop.f32.mrb[0].mxu0
    %v3502 = vadd.f32 0.0, %v3501
    %v3503 = vpop.f32.mrb[0].mxu0
    %v3504 = vpop.f32.mrb[0].mxu0
    %3505 = vdwg.mxu0
    %v3506 = vadd.f32 %v3275, %v3500
    %v3507 = vadd.f32 %v3276, %v3502
    %3508 = vrot.lane.b32.xlu0 %v2338, 96
    %v3509 = vpop.permute.xlu0 %3508
    %3510 = vrot.lane.b32.xlu0 %v2292, 96
    %v3511 = vpop.permute.xlu0 %3510
    %v3512 = vsel %vm2339, %v3509, 0
    %v3514 = vsel %vm2339, %v3511, 0
    %3516 = vmatprep.subr.mxu0 0.0
    %3517 = vmatpush1.xpose.msra.mxu0 %v3514
    %3518 = vmatprep.subr.mxu0 0.0
    %3519 = vmatpush1.xpose.msra.mxu0 0.0
    %3520 = vmatprep.subr.mxu0 0.0
    %3521 = vmatpush1.xpose.msra.mxu0 0.0
    %3522 = vmatprep.subr.mxu0 0.0
    %3523 = vmatpush1.xpose.msra.mxu0 0.0
    %3524 = vmatprep.subr.mxu0 0.0
    %3525 = vmatpush1.xpose.msra.mxu0 0.0
    %3526 = vmatprep.subr.mxu0 0.0
    %3527 = vmatpush1.xpose.msra.mxu0 0.0
    %3528 = vmatprep.subr.mxu0 0.0
    %3529 = vmatpush1.xpose.msra.mxu0 0.0
    %3530 = vmatprep.subr.mxu0 0.0
    %3531 = vmatpush1.xpose.msra.mxu0 0.0
    %3532 = vmatprep.subr.mxu0 0.0
    %3533 = vmatpush1.xpose.msra.mxu0 0.0
    %3534 = vmatprep.subr.mxu0 0.0
    %3535 = vmatpush1.xpose.msra.mxu0 0.0
    %3536 = vmatprep.subr.mxu0 0.0
    %3537 = vmatpush1.xpose.msra.mxu0 0.0
    %3538 = vmatprep.subr.mxu0 0.0
    %3539 = vmatpush1.xpose.msra.mxu0 0.0
    %3540 = vmatprep.subr.mxu0 0.0
    %3541 = vmatpush1.xpose.msra.mxu0 0.0
    %3542 = vmatprep.subr.mxu0 0.0
    %3543 = vmatpush1.xpose.msra.mxu0 0.0
    %3544 = vmatprep.subr.mxu0 0.0
    %3545 = vmatpush1.xpose.msra.mxu0 0.0
    %3546 = vmatprep.subr.mxu0 0.0
    %3547 = vmatpush1.xpose.msra.mxu0 0.0
    %3548 = vmatprep.subr.mxu0 0.0
    %3549 = vmatpush1.xpose.msra.mxu0 0.0
    %3550 = vmatprep.subr.mxu0 0.0
    %3551 = vmatpush1.xpose.msra.mxu0 0.0
    %3552 = vmatprep.subr.mxu0 0.0
    %3553 = vmatpush1.xpose.msra.mxu0 0.0
    %3554 = vmatprep.subr.mxu0 0.0
    %3555 = vmatpush1.xpose.msra.mxu0 0.0
    %3556 = vmatprep.subr.mxu0 0.0
    %3557 = vmatpush1.xpose.msra.mxu0 0.0
    %3558 = vmatprep.subr.mxu0 0.0
    %3559 = vmatpush1.xpose.msra.mxu0 0.0
    %3560 = vmatprep.subr.mxu0 0.0
    %3561 = vmatpush1.xpose.msra.mxu0 0.0
    %3562 = vmatprep.subr.mxu0 0.0
    %3563 = vmatpush1.xpose.msra.mxu0 0.0
    %3564 = vmatprep.subr.mxu0 0.0
    %3565 = vmatpush1.xpose.msra.mxu0 0.0
    %3566 = vmatprep.subr.mxu0 0.0
    %3567 = vmatpush1.xpose.msra.mxu0 0.0
    %3568 = vmatprep.subr.mxu0 0.0
    %3569 = vmatpush1.xpose.msra.mxu0 0.0
    %3570 = vmatprep.subr.mxu0 0.0
    %3571 = vmatpush1.xpose.msra.mxu0 0.0
    %3572 = vmatprep.subr.mxu0 0.0
    %3573 = vmatpush1.xpose.msra.mxu0 0.0
    %3574 = vmatprep.subr.mxu0 0.0
    %3575 = vmatpush1.xpose.msra.mxu0 0.0
    %3576 = vmatprep.subr.mxu0 0.0
    %3577 = vmatpush1.xpose.msra.mxu0 0.0
    %3578 = vmatprep.subr.mxu0 0.0
    %3579 = vmatpush1.xpose.msra.mxu0 0.0
    %3580 = vmatprep.mubr.f32.mxu0 0.0
    %3581 = vmatmul.mubr.f32.gmra.mrb[0].mxu0 %v3512
    %v3582 = vpop.f32.mrb[0].mxu0
    %v3583 = vadd.f32 0.0, %v3582
    %v3584 = vpop.f32.mrb[0].mxu0
    %3585 = vdwg.mxu0
    %v3586 = vsel %vm2416, %v3583, -inf
    %3587 = vmax.xlane.f32.xlu0 %v3586
    %v3588 = vpop.xlane.xlu0 %3587
    %v3589 = vsub.f32 %v3583, %v3588
    %v3590 = vmul.f32 %v3589, 1.442695
    %v3591 = vpow.pop %v3590
    %v3592 = vsel %vm2416, %v3591, 0.0
    %3593 = vadd.xlane.f32.xlu0 %v3592
    %v3594 = vpop.xlane.xlu0 %3593
    %v3595 = vrcp.pop %v3594
    %v3596 = vmul.f32 %v3591, %v3595
    %3598 = vrot.lane.b32.xlu0 %v2333, 96
    %v3599 = vpop.permute.xlu0 %3598
    %v3602 = vsel %vm2416, %v3596, 0
    %3604 = vmatprep.subr.mxu0 0.0
    %3605 = vmatpush1.msra.mxu0 %v3599
    %3606 = vmatprep.subr.mxu0 0.0
    %3607 = vmatpush1.msra.mxu0 0.0
    %3608 = vmatprep.subr.mxu0 0.0
    %3609 = vmatpush1.msra.mxu0 0.0
    %3610 = vmatprep.subr.mxu0 0.0
    %3611 = vmatpush1.msra.mxu0 0.0
    %3612 = vmatprep.subr.mxu0 0.0
    %3613 = vmatpush1.msra.mxu0 0.0
    %3614 = vmatprep.subr.mxu0 0.0
    %3615 = vmatpush1.msra.mxu0 0.0
    %3616 = vmatprep.subr.mxu0 0.0
    %3617 = vmatpush1.msra.mxu0 0.0
    %3618 = vmatprep.subr.mxu0 0.0
    %3619 = vmatpush1.msra.mxu0 0.0
    %3620 = vmatprep.subr.mxu0 0.0
    %3621 = vmatpush1.msra.mxu0 0.0
    %3622 = vmatprep.subr.mxu0 0.0
    %3623 = vmatpush1.msra.mxu0 0.0
    %3624 = vmatprep.subr.mxu0 0.0
    %3625 = vmatpush1.msra.mxu0 0.0
    %3626 = vmatprep.subr.mxu0 0.0
    %3627 = vmatpush1.msra.mxu0 0.0
    %3628 = vmatprep.subr.mxu0 0.0
    %3629 = vmatpush1.msra.mxu0 0.0
    %3630 = vmatprep.subr.mxu0 0.0
    %3631 = vmatpush1.msra.mxu0 0.0
    %3632 = vmatprep.subr.mxu0 0.0
    %3633 = vmatpush1.msra.mxu0 0.0
    %3634 = vmatprep.subr.mxu0 0.0
    %3635 = vmatpush1.msra.mxu0 0.0
    %3636 = vmatprep.subr.mxu0 0.0
    %3637 = vmatpush1.msra.mxu0 0.0
    %3638 = vmatprep.subr.mxu0 0.0
    %3639 = vmatpush1.msra.mxu0 0.0
    %3640 = vmatprep.subr.mxu0 0.0
    %3641 = vmatpush1.msra.mxu0 0.0
    %3642 = vmatprep.subr.mxu0 0.0
    %3643 = vmatpush1.msra.mxu0 0.0
    %3644 = vmatprep.subr.mxu0 0.0
    %3645 = vmatpush1.msra.mxu0 0.0
    %3646 = vmatprep.subr.mxu0 0.0
    %3647 = vmatpush1.msra.mxu0 0.0
    %3648 = vmatprep.subr.mxu0 0.0
    %3649 = vmatpush1.msra.mxu0 0.0
    %3650 = vmatprep.subr.mxu0 0.0
    %3651 = vmatpush1.msra.mxu0 0.0
    %3652 = vmatprep.subr.mxu0 0.0
    %3653 = vmatpush1.msra.mxu0 0.0
    %3654 = vmatprep.subr.mxu0 0.0
    %3655 = vmatpush1.msra.mxu0 0.0
    %3656 = vmatprep.subr.mxu0 0.0
    %3657 = vmatpush1.msra.mxu0 0.0
    %3658 = vmatprep.subr.mxu0 0.0
    %3659 = vmatpush1.msra.mxu0 0.0
    %3660 = vmatprep.subr.mxu0 0.0
    %3661 = vmatpush1.msra.mxu0 0.0
    %3662 = vmatprep.subr.mxu0 0.0
    %3663 = vmatpush1.msra.mxu0 0.0
    %3664 = vmatprep.subr.mxu0 0.0
    %3665 = vmatpush1.msra.mxu0 0.0
    %3666 = vmatprep.subr.mxu0 0.0
    %3667 = vmatpush1.msra.mxu0 0.0
    %3668 = vmatprep.mubr.f32.mxu0 0.0
    %3669 = vmatmul.mubr.f32.gmra.mrb[0].mxu0 %v3602
    %v3670 = vpop.f32.mrb[0].mxu0
    %v3671 = vadd.f32 0.0, %v3670
    %v3672 = vpop.f32.mrb[0].mxu0
    %3673 = vdwg.mxu0
    %v3674 = vld [vmem:[#allocation5 + $0x4a0] sm:$0xff]
    %v3675 = vld [vmem:[#allocation5 + $0x4a8] sm:$0xff]
    %v3676 = vld [vmem:[#allocation5 + $0x4b0] sm:$0xff]
    %v3677 = vld [vmem:[#allocation5 + $0x4b8] sm:$0xff]
    %v3678 = vpack.c.bf16 %v3671, %v3671
    %v3683 = vunpack.c.l.b16 %v3674
    %v3684 = vunpack.c.h.b16 %v3674
    %v3685 = vunpack.c.l.b16 %v3675
    %v3686 = vunpack.c.h.b16 %v3675
    %v3687 = vunpack.c.l.b16 %v3676
    %v3688 = vunpack.c.h.b16 %v3676
    %v3689 = vunpack.c.l.b16 %v3677
    %v3690 = vunpack.c.h.b16 %v3677
    %v3691 = vpack.c.b16 %v3685, %v3683
    %v3692 = vpack.c.b16 %v3686, %v3684
    %v3693 = vpack.c.b16 %v3689, %v3687
    %v3694 = vpack.c.b16 %v3690, %v3688
    %v3700 = vsel %vm2339, %v3678, 0
    %3702 = vmatprep.subr.bf16.mxu0 %v3692
    %3703 = vmatpush1.bf16.msra.mxu0 %v3691
    %3704 = vmatprep.subr.bf16.mxu0 %v3694
    %3705 = vmatpush1.bf16.msra.mxu0 %v3693
    %3706 = vmatprep.subr.bf16.mxu0 0
    %3707 = vmatpush1.bf16.msra.mxu0 0
    %3708 = vmatprep.subr.bf16.mxu0 0
    %3709 = vmatpush1.bf16.msra.mxu0 0
    %3710 = vmatprep.subr.bf16.mxu0 0
    %3711 = vmatpush1.bf16.msra.mxu0 0
    %3712 = vmatprep.subr.bf16.mxu0 0
    %3713 = vmatpush1.bf16.msra.mxu0 0
    %3714 = vmatprep.subr.bf16.mxu0 0
    %3715 = vmatpush1.bf16.msra.mxu0 0
    %3716 = vmatprep.subr.bf16.mxu0 0
    %3717 = vmatpush1.bf16.msra.mxu0 0
    %3718 = vmatprep.subr.bf16.mxu0 0
    %3719 = vmatpush1.bf16.msra.mxu0 0
    %3720 = vmatprep.subr.bf16.mxu0 0
    %3721 = vmatpush1.bf16.msra.mxu0 0
    %3722 = vmatprep.subr.bf16.mxu0 0
    %3723 = vmatpush1.bf16.msra.mxu0 0
    %3724 = vmatprep.subr.bf16.mxu0 0
    %3725 = vmatpush1.bf16.msra.mxu0 0
    %3726 = vmatprep.subr.bf16.mxu0 0
    %3727 = vmatpush1.bf16.msra.mxu0 0
    %3728 = vmatprep.subr.bf16.mxu0 0
    %3729 = vmatpush1.bf16.msra.mxu0 0
    %3730 = vmatprep.subr.bf16.mxu0 0
    %3731 = vmatpush1.bf16.msra.mxu0 0
    %3732 = vmatprep.subr.bf16.mxu0 0
    %3733 = vmatpush1.bf16.msra.mxu0 0
    %3734 = vmatprep.mubr.bf16.mxu0 0
    %3735 = vmatmul.mubr.bf16.gmra.mrb[0].mxu0 %v3700
    %v3736 = vpop.f32.mrb[0].mxu0
    %v3737 = vadd.f32 0.0, %v3736
    %v3738 = vpop.f32.mrb[0].mxu0
    %v3739 = vadd.f32 0.0, %v3738
    %v3740 = vpop.f32.mrb[0].mxu0
    %v3741 = vpop.f32.mrb[0].mxu0
    %3742 = vdwg.mxu0
    %v3743 = vadd.f32 %v3506, %v3737
    %v3744 = vadd.f32 %v3507, %v3739
    %3745 = vrot.lane.b32.xlu0 %v2338, 64
    %v3746 = vpop.permute.xlu0 %3745
    %3747 = vrot.lane.b32.xlu0 %v2292, 64
    %v3748 = vpop.permute.xlu0 %3747
    %v3749 = vsel %vm2339, %v3746, 0
    %v3751 = vsel %vm2339, %v3748, 0
    %3753 = vmatprep.subr.mxu0 0.0
    %3754 = vmatpush1.xpose.msra.mxu0 %v3751
    %3755 = vmatprep.subr.mxu0 0.0
    %3756 = vmatpush1.xpose.msra.mxu0 0.0
    %3757 = vmatprep.subr.mxu0 0.0
    %3758 = vmatpush1.xpose.msra.mxu0 0.0
    %3759 = vmatprep.subr.mxu0 0.0
    %3760 = vmatpush1.xpose.msra.mxu0 0.0
    %3761 = vmatprep.subr.mxu0 0.0
    %3762 = vmatpush1.xpose.msra.mxu0 0.0
    %3763 = vmatprep.subr.mxu0 0.0
    %3764 = vmatpush1.xpose.msra.mxu0 0.0
    %3765 = vmatprep.subr.mxu0 0.0
    %3766 = vmatpush1.xpose.msra.mxu0 0.0
    %3767 = vmatprep.subr.mxu0 0.0
    %3768 = vmatpush1.xpose.msra.mxu0 0.0
    %3769 = vmatprep.subr.mxu0 0.0
    %3770 = vmatpush1.xpose.msra.mxu0 0.0
    %3771 = vmatprep.subr.mxu0 0.0
    %3772 = vmatpush1.xpose.msra.mxu0 0.0
    %3773 = vmatprep.subr.mxu0 0.0
    %3774 = vmatpush1.xpose.msra.mxu0 0.0
    %3775 = vmatprep.subr.mxu0 0.0
    %3776 = vmatpush1.xpose.msra.mxu0 0.0
    %3777 = vmatprep.subr.mxu0 0.0
    %3778 = vmatpush1.xpose.msra.mxu0 0.0
    %3779 = vmatprep.subr.mxu0 0.0
    %3780 = vmatpush1.xpose.msra.mxu0 0.0
    %3781 = vmatprep.subr.mxu0 0.0
    %3782 = vmatpush1.xpose.msra.mxu0 0.0
    %3783 = vmatprep.subr.mxu0 0.0
    %3784 = vmatpush1.xpose.msra.mxu0 0.0
    %3785 = vmatprep.subr.mxu0 0.0
    %3786 = vmatpush1.xpose.msra.mxu0 0.0
    %3787 = vmatprep.subr.mxu0 0.0
    %3788 = vmatpush1.xpose.msra.mxu0 0.0
    %3789 = vmatprep.subr.mxu0 0.0
    %3790 = vmatpush1.xpose.msra.mxu0 0.0
    %3791 = vmatprep.subr.mxu0 0.0
    %3792 = vmatpush1.xpose.msra.mxu0 0.0
    %3793 = vmatprep.subr.mxu0 0.0
    %3794 = vmatpush1.xpose.msra.mxu0 0.0
    %3795 = vmatprep.subr.mxu0 0.0
    %3796 = vmatpush1.xpose.msra.mxu0 0.0
    %3797 = vmatprep.subr.mxu0 0.0
    %3798 = vmatpush1.xpose.msra.mxu0 0.0
    %3799 = vmatprep.subr.mxu0 0.0
    %3800 = vmatpush1.xpose.msra.mxu0 0.0
    %3801 = vmatprep.subr.mxu0 0.0
    %3802 = vmatpush1.xpose.msra.mxu0 0.0
    %3803 = vmatprep.subr.mxu0 0.0
    %3804 = vmatpush1.xpose.msra.mxu0 0.0
    %3805 = vmatprep.subr.mxu0 0.0
    %3806 = vmatpush1.xpose.msra.mxu0 0.0
    %3807 = vmatprep.subr.mxu0 0.0
    %3808 = vmatpush1.xpose.msra.mxu0 0.0
    %3809 = vmatprep.subr.mxu0 0.0
    %3810 = vmatpush1.xpose.msra.mxu0 0.0
    %3811 = vmatprep.subr.mxu0 0.0
    %3812 = vmatpush1.xpose.msra.mxu0 0.0
    %3813 = vmatprep.subr.mxu0 0.0
    %3814 = vmatpush1.xpose.msra.mxu0 0.0
    %3815 = vmatprep.subr.mxu0 0.0
    %3816 = vmatpush1.xpose.msra.mxu0 0.0
    %3817 = vmatprep.mubr.f32.mxu0 0.0
    %3818 = vmatmul.mubr.f32.gmra.mrb[0].mxu0 %v3749
    %v3819 = vpop.f32.mrb[0].mxu0
    %v3820 = vadd.f32 0.0, %v3819
    %v3821 = vpop.f32.mrb[0].mxu0
    %3822 = vdwg.mxu0
    %v3823 = vsel %vm2416, %v3820, -inf
    %3824 = vmax.xlane.f32.xlu0 %v3823
    %v3825 = vpop.xlane.xlu0 %3824
    %v3826 = vsub.f32 %v3820, %v3825
    %v3827 = vmul.f32 %v3826, 1.442695
    %v3828 = vpow.pop %v3827
    %v3829 = vsel %vm2416, %v3828, 0.0
    %3830 = vadd.xlane.f32.xlu0 %v3829
    %v3831 = vpop.xlane.xlu0 %3830
    %v3832 = vrcp.pop %v3831
    %v3833 = vmul.f32 %v3828, %v3832
    %3834 = vrot.lane.b32.xlu0 %v2333, 64
    %v3835 = vpop.permute.xlu0 %3834
    %v3838 = vsel %vm2416, %v3833, 0
    %3840 = vmatprep.subr.mxu0 0.0
    %3841 = vmatpush1.msra.mxu0 %v3835
    %3842 = vmatprep.subr.mxu0 0.0
    %3843 = vmatpush1.msra.mxu0 0.0
    %3844 = vmatprep.subr.mxu0 0.0
    %3845 = vmatpush1.msra.mxu0 0.0
    %3846 = vmatprep.subr.mxu0 0.0
    %3847 = vmatpush1.msra.mxu0 0.0
    %3848 = vmatprep.subr.mxu0 0.0
    %3849 = vmatpush1.msra.mxu0 0.0
    %3850 = vmatprep.subr.mxu0 0.0
    %3851 = vmatpush1.msra.mxu0 0.0
    %3852 = vmatprep.subr.mxu0 0.0
    %3853 = vmatpush1.msra.mxu0 0.0
    %3854 = vmatprep.subr.mxu0 0.0
    %3855 = vmatpush1.msra.mxu0 0.0
    %3856 = vmatprep.subr.mxu0 0.0
    %3857 = vmatpush1.msra.mxu0 0.0
    %3858 = vmatprep.subr.mxu0 0.0
    %3859 = vmatpush1.msra.mxu0 0.0
    %3860 = vmatprep.subr.mxu0 0.0
    %3861 = vmatpush1.msra.mxu0 0.0
    %3862 = vmatprep.subr.mxu0 0.0
    %3863 = vmatpush1.msra.mxu0 0.0
    %3864 = vmatprep.subr.mxu0 0.0
    %3865 = vmatpush1.msra.mxu0 0.0
    %3866 = vmatprep.subr.mxu0 0.0
    %3867 = vmatpush1.msra.mxu0 0.0
    %3868 = vmatprep.subr.mxu0 0.0
    %3869 = vmatpush1.msra.mxu0 0.0
    %3870 = vmatprep.subr.mxu0 0.0
    %3871 = vmatpush1.msra.mxu0 0.0
    %3872 = vmatprep.subr.mxu0 0.0
    %3873 = vmatpush1.msra.mxu0 0.0
    %3874 = vmatprep.subr.mxu0 0.0
    %3875 = vmatpush1.msra.mxu0 0.0
    %3876 = vmatprep.subr.mxu0 0.0
    %3877 = vmatpush1.msra.mxu0 0.0
    %3878 = vmatprep.subr.mxu0 0.0
    %3879 = vmatpush1.msra.mxu0 0.0
    %3880 = vmatprep.subr.mxu0 0.0
    %3881 = vmatpush1.msra.mxu0 0.0
    %3882 = vmatprep.subr.mxu0 0.0
    %3883 = vmatpush1.msra.mxu0 0.0
    %3884 = vmatprep.subr.mxu0 0.0
    %3885 = vmatpush1.msra.mxu0 0.0
    %3886 = vmatprep.subr.mxu0 0.0
    %3887 = vmatpush1.msra.mxu0 0.0
    %3888 = vmatprep.subr.mxu0 0.0
    %3889 = vmatpush1.msra.mxu0 0.0
    %3890 = vmatprep.subr.mxu0 0.0
    %3891 = vmatpush1.msra.mxu0 0.0
    %3892 = vmatprep.subr.mxu0 0.0
    %3893 = vmatpush1.msra.mxu0 0.0
    %3894 = vmatprep.subr.mxu0 0.0
    %3895 = vmatpush1.msra.mxu0 0.0
    %3896 = vmatprep.subr.mxu0 0.0
    %3897 = vmatpush1.msra.mxu0 0.0
    %3898 = vmatprep.subr.mxu0 0.0
    %3899 = vmatpush1.msra.mxu0 0.0
    %3900 = vmatprep.subr.mxu0 0.0
    %3901 = vmatpush1.msra.mxu0 0.0
    %3902 = vmatprep.subr.mxu0 0.0
    %3903 = vmatpush1.msra.mxu0 0.0
    %3904 = vmatprep.mubr.f32.mxu0 0.0
    %3905 = vmatmul.mubr.f32.gmra.mrb[0].mxu0 %v3838
    %v3906 = vpop.f32.mrb[0].mxu0
    %v3907 = vadd.f32 0.0, %v3906
    %v3908 = vpop.f32.mrb[0].mxu0
    %3909 = vdwg.mxu0
    %v3910 = vld [vmem:[#allocation5 + $0x4c0] sm:$0xff]
    %v3911 = vld [vmem:[#allocation5 + $0x4c8] sm:$0xff]
    %v3912 = vld [vmem:[#allocation5 + $0x4d0] sm:$0xff]
    %v3913 = vld [vmem:[#allocation5 + $0x4d8] sm:$0xff]
    %v3914 = vpack.c.bf16 %v3907, %v3907
    %v3919 = vunpack.c.l.b16 %v3910
    %v3920 = vunpack.c.h.b16 %v3910
    %v3921 = vunpack.c.l.b16 %v3911
    %v3922 = vunpack.c.h.b16 %v3911
    %v3923 = vunpack.c.l.b16 %v3912
    %v3924 = vunpack.c.h.b16 %v3912
    %v3925 = vunpack.c.l.b16 %v3913
    %v3926 = vunpack.c.h.b16 %v3913
    %v3927 = vpack.c.b16 %v3921, %v3919
    %v3928 = vpack.c.b16 %v3922, %v3920
    %v3929 = vpack.c.b16 %v3925, %v3923
    %v3930 = vpack.c.b16 %v3926, %v3924
    %v3936 = vsel %vm2339, %v3914, 0
    %3938 = vmatprep.subr.bf16.mxu0 %v3928
    %3939 = vmatpush1.bf16.msra.mxu0 %v3927
    %3940 = vmatprep.subr.bf16.mxu0 %v3930
    %3941 = vmatpush1.bf16.msra.mxu0 %v3929
    %3942 = vmatprep.subr.bf16.mxu0 0
    %3943 = vmatpush1.bf16.msra.mxu0 0
    %3944 = vmatprep.subr.bf16.mxu0 0
    %3945 = vmatpush1.bf16.msra.mxu0 0
    %3946 = vmatprep.subr.bf16.mxu0 0
    %3947 = vmatpush1.bf16.msra.mxu0 0
    %3948 = vmatprep.subr.bf16.mxu0 0
    %3949 = vmatpush1.bf16.msra.mxu0 0
    %3950 = vmatprep.subr.bf16.mxu0 0
    %3951 = vmatpush1.bf16.msra.mxu0 0
    %3952 = vmatprep.subr.bf16.mxu0 0
    %3953 = vmatpush1.bf16.msra.mxu0 0
    %3954 = vmatprep.subr.bf16.mxu0 0
    %3955 = vmatpush1.bf16.msra.mxu0 0
    %3956 = vmatprep.subr.bf16.mxu0 0
    %3957 = vmatpush1.bf16.msra.mxu0 0
    %3958 = vmatprep.subr.bf16.mxu0 0
    %3959 = vmatpush1.bf16.msra.mxu0 0
    %3960 = vmatprep.subr.bf16.mxu0 0
    %3961 = vmatpush1.bf16.msra.mxu0 0
    %3962 = vmatprep.subr.bf16.mxu0 0
    %3963 = vmatpush1.bf16.msra.mxu0 0
    %3964 = vmatprep.subr.bf16.mxu0 0
    %3965 = vmatpush1.bf16.msra.mxu0 0
    %3966 = vmatprep.subr.bf16.mxu0 0
    %3967 = vmatpush1.bf16.msra.mxu0 0
    %3968 = vmatprep.subr.bf16.mxu0 0
    %3969 = vmatpush1.bf16.msra.mxu0 0
    %3970 = vmatprep.mubr.bf16.mxu0 0
    %3971 = vmatmul.mubr.bf16.gmra.mrb[0].mxu0 %v3936
    %v3972 = vpop.f32.mrb[0].mxu0
    %v3973 = vadd.f32 0.0, %v3972
    %v3974 = vpop.f32.mrb[0].mxu0
    %v3975 = vadd.f32 0.0, %v3974
    %v3976 = vpop.f32.mrb[0].mxu0
    %v3977 = vpop.f32.mrb[0].mxu0
    %3978 = vdwg.mxu0
    %v3979 = vadd.f32 %v3743, %v3973
    %v3980 = vadd.f32 %v3744, %v3975
    %3981 = vrot.lane.b32.xlu0 %v2338, 32
    %v3982 = vpop.permute.xlu0 %3981
    %3983 = vrot.lane.b32.xlu0 %v2292, 32
    %v3984 = vpop.permute.xlu0 %3983
    %v3985 = vsel %vm2339, %v3982, 0
    %v3987 = vsel %vm2339, %v3984, 0
    %3989 = vmatprep.subr.mxu0 0.0
    %3990 = vmatpush1.xpose.msra.mxu0 %v3987
    %3991 = vmatprep.subr.mxu0 0.0
    %3992 = vmatpush1.xpose.msra.mxu0 0.0
    %3993 = vmatprep.subr.mxu0 0.0
    %3994 = vmatpush1.xpose.msra.mxu0 0.0
    %3995 = vmatprep.subr.mxu0 0.0
    %3996 = vmatpush1.xpose.msra.mxu0 0.0
    %3997 = vmatprep.subr.mxu0 0.0
    %3998 = vmatpush1.xpose.msra.mxu0 0.0
    %3999 = vmatprep.subr.mxu0 0.0
    %4000 = vmatpush1.xpose.msra.mxu0 0.0
    %4001 = vmatprep.subr.mxu0 0.0
    %4002 = vmatpush1.xpose.msra.mxu0 0.0
    %4003 = vmatprep.subr.mxu0 0.0
    %4004 = vmatpush1.xpose.msra.mxu0 0.0
    %4005 = vmatprep.subr.mxu0 0.0
    %4006 = vmatpush1.xpose.msra.mxu0 0.0
    %4007 = vmatprep.subr.mxu0 0.0
    %4008 = vmatpush1.xpose.msra.mxu0 0.0
    %4009 = vmatprep.subr.mxu0 0.0
    %4010 = vmatpush1.xpose.msra.mxu0 0.0
    %4011 = vmatprep.subr.mxu0 0.0
    %4012 = vmatpush1.xpose.msra.mxu0 0.0
    %4013 = vmatprep.subr.mxu0 0.0
    %4014 = vmatpush1.xpose.msra.mxu0 0.0
    %4015 = vmatprep.subr.mxu0 0.0
    %4016 = vmatpush1.xpose.msra.mxu0 0.0
    %4017 = vmatprep.subr.mxu0 0.0
    %4018 = vmatpush1.xpose.msra.mxu0 0.0
    %4019 = vmatprep.subr.mxu0 0.0
    %4020 = vmatpush1.xpose.msra.mxu0 0.0
    %4021 = vmatprep.subr.mxu0 0.0
    %4022 = vmatpush1.xpose.msra.mxu0 0.0
    %4023 = vmatprep.subr.mxu0 0.0
    %4024 = vmatpush1.xpose.msra.mxu0 0.0
    %4025 = vmatprep.subr.mxu0 0.0
    %4026 = vmatpush1.xpose.msra.mxu0 0.0
    %4027 = vmatprep.subr.mxu0 0.0
    %4028 = vmatpush1.xpose.msra.mxu0 0.0
    %4029 = vmatprep.subr.mxu0 0.0
    %4030 = vmatpush1.xpose.msra.mxu0 0.0
    %4031 = vmatprep.subr.mxu0 0.0
    %4032 = vmatpush1.xpose.msra.mxu0 0.0
    %4033 = vmatprep.subr.mxu0 0.0
    %4034 = vmatpush1.xpose.msra.mxu0 0.0
    %4035 = vmatprep.subr.mxu0 0.0
    %4036 = vmatpush1.xpose.msra.mxu0 0.0
    %4037 = vmatprep.subr.mxu0 0.0
    %4038 = vmatpush1.xpose.msra.mxu0 0.0
    %4039 = vmatprep.subr.mxu0 0.0
    %4040 = vmatpush1.xpose.msra.mxu0 0.0
    %4041 = vmatprep.subr.mxu0 0.0
    %4042 = vmatpush1.xpose.msra.mxu0 0.0
    %4043 = vmatprep.subr.mxu0 0.0
    %4044 = vmatpush1.xpose.msra.mxu0 0.0
    %4045 = vmatprep.subr.mxu0 0.0
    %4046 = vmatpush1.xpose.msra.mxu0 0.0
    %4047 = vmatprep.subr.mxu0 0.0
    %4048 = vmatpush1.xpose.msra.mxu0 0.0
    %4049 = vmatprep.subr.mxu0 0.0
    %4050 = vmatpush1.xpose.msra.mxu0 0.0
    %4051 = vmatprep.subr.mxu0 0.0
    %4052 = vmatpush1.xpose.msra.mxu0 0.0
    %4053 = vmatprep.mubr.f32.mxu0 0.0
    %4054 = vmatmul.mubr.f32.gmra.mrb[0].mxu0 %v3985
    %v4055 = vpop.f32.mrb[0].mxu0
    %v4056 = vadd.f32 0.0, %v4055
    %v4057 = vpop.f32.mrb[0].mxu0
    %4058 = vdwg.mxu0
    %v4059 = vsel %vm2416, %v4056, -inf
    %4060 = vmax.xlane.f32.xlu0 %v4059
    %v4061 = vpop.xlane.xlu0 %4060
    %v4062 = vsub.f32 %v4056, %v4061
    %v4063 = vmul.f32 %v4062, 1.442695
    %v4064 = vpow.pop %v4063
    %v4065 = vsel %vm2416, %v4064, 0.0
    %4066 = vadd.xlane.f32.xlu0 %v4065
    %v4067 = vpop.xlane.xlu0 %4066
    %v4068 = vrcp.pop %v4067
    %v4069 = vmul.f32 %v4064, %v4068
    %4070 = vrot.lane.b32.xlu0 %v2333, 32
    %v4071 = vpop.permute.xlu0 %4070
    %v4074 = vsel %vm2416, %v4069, 0
    %4076 = vmatprep.subr.mxu0 0.0
    %4077 = vmatpush1.msra.mxu0 %v4071
    %4078 = vmatprep.subr.mxu0 0.0
    %4079 = vmatpush1.msra.mxu0 0.0
    %4080 = vmatprep.subr.mxu0 0.0
    %4081 = vmatpush1.msra.mxu0 0.0
    %4082 = vmatprep.subr.mxu0 0.0
    %4083 = vmatpush1.msra.mxu0 0.0
    %4084 = vmatprep.subr.mxu0 0.0
    %4085 = vmatpush1.msra.mxu0 0.0
    %4086 = vmatprep.subr.mxu0 0.0
    %4087 = vmatpush1.msra.mxu0 0.0
    %4088 = vmatprep.subr.mxu0 0.0
    %4089 = vmatpush1.msra.mxu0 0.0
    %4090 = vmatprep.subr.mxu0 0.0
    %4091 = vmatpush1.msra.mxu0 0.0
    %4092 = vmatprep.subr.mxu0 0.0
    %4093 = vmatpush1.msra.mxu0 0.0
    %4094 = vmatprep.subr.mxu0 0.0
    %4095 = vmatpush1.msra.mxu0 0.0
    %4096 = vmatprep.subr.mxu0 0.0
    %4097 = vmatpush1.msra.mxu0 0.0
    %4098 = vmatprep.subr.mxu0 0.0
    %4099 = vmatpush1.msra.mxu0 0.0
    %4100 = vmatprep.subr.mxu0 0.0
    %4101 = vmatpush1.msra.mxu0 0.0
    %4102 = vmatprep.subr.mxu0 0.0
    %4103 = vmatpush1.msra.mxu0 0.0
    %4104 = vmatprep.subr.mxu0 0.0
    %4105 = vmatpush1.msra.mxu0 0.0
    %4106 = vmatprep.subr.mxu0 0.0
    %4107 = vmatpush1.msra.mxu0 0.0
    %4108 = vmatprep.subr.mxu0 0.0
    %4109 = vmatpush1.msra.mxu0 0.0
    %4110 = vmatprep.subr.mxu0 0.0
    %4111 = vmatpush1.msra.mxu0 0.0
    %4112 = vmatprep.subr.mxu0 0.0
    %4113 = vmatpush1.msra.mxu0 0.0
    %4114 = vmatprep.subr.mxu0 0.0
    %4115 = vmatpush1.msra.mxu0 0.0
    %4116 = vmatprep.subr.mxu0 0.0
    %4117 = vmatpush1.msra.mxu0 0.0
    %4118 = vmatprep.subr.mxu0 0.0
    %4119 = vmatpush1.msra.mxu0 0.0
    %4120 = vmatprep.subr.mxu0 0.0
    %4121 = vmatpush1.msra.mxu0 0.0
    %4122 = vmatprep.subr.mxu0 0.0
    %4123 = vmatpush1.msra.mxu0 0.0
    %4124 = vmatprep.subr.mxu0 0.0
    %4125 = vmatpush1.msra.mxu0 0.0
    %4126 = vmatprep.subr.mxu0 0.0
    %4127 = vmatpush1.msra.mxu0 0.0
    %4128 = vmatprep.subr.mxu0 0.0
    %4129 = vmatpush1.msra.mxu0 0.0
    %4130 = vmatprep.subr.mxu0 0.0
    %4131 = vmatpush1.msra.mxu0 0.0
    %4132 = vmatprep.subr.mxu0 0.0
    %4133 = vmatpush1.msra.mxu0 0.0
    %4134 = vmatprep.subr.mxu0 0.0
    %4135 = vmatpush1.msra.mxu0 0.0
    %4136 = vmatprep.subr.mxu0 0.0
    %4137 = vmatpush1.msra.mxu0 0.0
    %4138 = vmatprep.subr.mxu0 0.0
    %4139 = vmatpush1.msra.mxu0 0.0
    %4140 = vmatprep.mubr.f32.mxu0 0.0
    %4141 = vmatmul.mubr.f32.gmra.mrb[0].mxu0 %v4074
    %v4142 = vpop.f32.mrb[0].mxu0
    %v4143 = vadd.f32 0.0, %v4142
    %v4144 = vpop.f32.mrb[0].mxu0
    %4145 = vdwg.mxu0
    %v4146 = vld [vmem:[#allocation5 + $0x4e0] sm:$0xff]
    %v4147 = vld [vmem:[#allocation5 + $0x4e8] sm:$0xff]
    %v4148 = vld [vmem:[#allocation5 + $0x4f0] sm:$0xff]
    %v4149 = vld [vmem:[#allocation5 + $0x4f8] sm:$0xff]
    %v4150 = vpack.c.bf16 %v4143, %v4143
    %v4155 = vunpack.c.l.b16 %v4146
    %v4156 = vunpack.c.h.b16 %v4146
    %v4157 = vunpack.c.l.b16 %v4147
    %v4158 = vunpack.c.h.b16 %v4147
    %v4159 = vunpack.c.l.b16 %v4148
    %v4160 = vunpack.c.h.b16 %v4148
    %v4161 = vunpack.c.l.b16 %v4149
    %v4162 = vunpack.c.h.b16 %v4149
    %v4163 = vpack.c.b16 %v4157, %v4155
    %v4164 = vpack.c.b16 %v4158, %v4156
    %v4165 = vpack.c.b16 %v4161, %v4159
    %v4166 = vpack.c.b16 %v4162, %v4160
    %v4172 = vsel %vm2339, %v4150, 0
    %4174 = vmatprep.subr.bf16.mxu0 %v4164
    %4175 = vmatpush1.bf16.msra.mxu0 %v4163
    %4176 = vmatprep.subr.bf16.mxu0 %v4166
    %4177 = vmatpush1.bf16.msra.mxu0 %v4165
    %4178 = vmatprep.subr.bf16.mxu0 0
    %4179 = vmatpush1.bf16.msra.mxu0 0
    %4180 = vmatprep.subr.bf16.mxu0 0
    %4181 = vmatpush1.bf16.msra.mxu0 0
    %4182 = vmatprep.subr.bf16.mxu0 0
    %4183 = vmatpush1.bf16.msra.mxu0 0
    %4184 = vmatprep.subr.bf16.mxu0 0
    %4185 = vmatpush1.bf16.msra.mxu0 0
    %4186 = vmatprep.subr.bf16.mxu0 0
    %4187 = vmatpush1.bf16.msra.mxu0 0
    %4188 = vmatprep.subr.bf16.mxu0 0
    %4189 = vmatpush1.bf16.msra.mxu0 0
    %4190 = vmatprep.subr.bf16.mxu0 0
    %4191 = vmatpush1.bf16.msra.mxu0 0
    %4192 = vmatprep.subr.bf16.mxu0 0
    %4193 = vmatpush1.bf16.msra.mxu0 0
    %4194 = vmatprep.subr.bf16.mxu0 0
    %4195 = vmatpush1.bf16.msra.mxu0 0
    %4196 = vmatprep.subr.bf16.mxu0 0
    %4197 = vmatpush1.bf16.msra.mxu0 0
    %4198 = vmatprep.subr.bf16.mxu0 0
    %4199 = vmatpush1.bf16.msra.mxu0 0
    %4200 = vmatprep.subr.bf16.mxu0 0
    %4201 = vmatpush1.bf16.msra.mxu0 0
    %4202 = vmatprep.subr.bf16.mxu0 0
    %4203 = vmatpush1.bf16.msra.mxu0 0
    %4204 = vmatprep.subr.bf16.mxu0 0
    %4205 = vmatpush1.bf16.msra.mxu0 0
    %4206 = vmatprep.mubr.bf16.mxu0 0
    %4207 = vmatmul.mubr.bf16.gmra.mrb[0].mxu0 %v4172
    %v4208 = vpop.f32.mrb[0].mxu0
    %v4209 = vadd.f32 0.0, %v4208
    %v4210 = vpop.f32.mrb[0].mxu0
    %v4211 = vadd.f32 0.0, %v4210
    %v4212 = vpop.f32.mrb[0].mxu0
    %v4213 = vpop.f32.mrb[0].mxu0
    %4214 = vdwg.mxu0
    %v4215 = vadd.f32 %v3979, %v4209
    %v4216 = vadd.f32 %v3980, %v4211
    %v4217 = vadd.f32 %v4215, 0.0
    %v4218 = vadd.f32 %v4216, 0.0
    %v4220 = vlaneseq
    %v4221 = vshrl.u32 %v4220, 7
    %v4222 = vsub.s32 0, %v4221
    %v4223 = vrot.slane %v308, %v4222
    %v4224 = vlaneseq
    %v4225 = vshrl.u32 %v4224, 7
    %v4226 = vsub.s32 1, %v4225
    %v4227 = vrot.slane %v308, %v4226
    %v4230 = vadd.f32 %v4217, %v4223
    %v4231 = vadd.f32 %v4218, %v4227
    %v4232 = vlaneseq
    %v4233 = vshrl.u32 %v4232, 7
    %v4234 = vsub.s32 1, %v4233
    %v4235 = vrot.slane %v309, %v4234
    %v4236 = vlaneseq
    %v4237 = vshrl.u32 %v4236, 7
    %v4238 = vsub.s32 3, %v4237
    %v4239 = vrot.slane %v309, %v4238
    %v4240 = vlaneseq
    %v4241 = vshrl.u32 %v4240, 7
    %v4242 = vsub.s32 5, %v4241
    %v4243 = vrot.slane %v309, %v4242
    %v4244 = vlaneseq
    %v4245 = vshrl.u32 %v4244, 7
    %v4246 = vsub.s32 7, %v4245
    %v4247 = vrot.slane %v309, %v4246
    %v4248 = vlaneseq
    %v4249 = vshrl.u32 %v4248, 7
    %v4250 = vsub.s32 1, %v4249
    %v4251 = vrot.slane %v310, %v4250
    %v4252 = vlaneseq
    %v4253 = vshrl.u32 %v4252, 7
    %v4254 = vsub.s32 3, %v4253
    %v4255 = vrot.slane %v310, %v4254
    %v4256 = vlaneseq
    %v4257 = vshrl.u32 %v4256, 7
    %v4258 = vsub.s32 1, %v4257
    %v4259 = vrot.slane %v311, %v4258
    %v4260 = vlaneseq
    %v4261 = vshrl.u32 %v4260, 7
    %v4262 = vsub.s32 3, %v4261
    %v4263 = vrot.slane %v311, %v4262
    %v4264 = vlaneseq
    %v4265 = vshrl.u32 %v4264, 7
    %v4266 = vsub.s32 5, %v4265
    %v4267 = vrot.slane %v311, %v4266
    %v4268 = vlaneseq
    %v4269 = vshrl.u32 %v4268, 7
    %v4270 = vsub.s32 7, %v4269
    %v4271 = vrot.slane %v311, %v4270
    %v4272 = vlaneseq
    %v4273 = vshrl.u32 %v4272, 7
    %v4274 = vsub.s32 1, %v4273
    %v4275 = vrot.slane %v312, %v4274
    %v4276 = vlaneseq
    %v4277 = vshrl.u32 %v4276, 7
    %v4278 = vsub.s32 3, %v4277
    %v4279 = vrot.slane %v312, %v4278
    %v4280 = vlaneseq
    %v4281 = vshrl.u32 %v4280, 7
    %v4282 = vsub.s32 1, %v4281
    %v4283 = vrot.slane %v313, %v4282
    %v4284 = vlaneseq
    %v4285 = vshrl.u32 %v4284, 7
    %v4286 = vsub.s32 3, %v4285
    %v4287 = vrot.slane %v313, %v4286
    %v4288 = vlaneseq
    %v4289 = vshrl.u32 %v4288, 7
    %v4290 = vsub.s32 5, %v4289
    %v4291 = vrot.slane %v313, %v4290
    %v4292 = vlaneseq
    %v4293 = vshrl.u32 %v4292, 7
    %v4294 = vsub.s32 7, %v4293
    %v4295 = vrot.slane %v313, %v4294
    %v4296 = vlaneseq
    %v4297 = vshrl.u32 %v4296, 7
    %v4298 = vsub.s32 1, %v4297
    %v4299 = vrot.slane %v314, %v4298
    %v4300 = vlaneseq
    %v4301 = vshrl.u32 %v4300, 7
    %v4302 = vsub.s32 3, %v4301
    %v4303 = vrot.slane %v314, %v4302
    %v4304 = vlaneseq
    %v4305 = vshrl.u32 %v4304, 7
    %v4306 = vsub.s32 1, %v4305
    %v4307 = vrot.slane %v315, %v4306
    %v4308 = vlaneseq
    %v4309 = vshrl.u32 %v4308, 7
    %v4310 = vsub.s32 3, %v4309
    %v4311 = vrot.slane %v315, %v4310
    %v4312 = vlaneseq
    %v4313 = vshrl.u32 %v4312, 7
    %v4314 = vsub.s32 5, %v4313
    %v4315 = vrot.slane %v315, %v4314
    %v4316 = vlaneseq
    %v4317 = vshrl.u32 %v4316, 7
    %v4318 = vsub.s32 7, %v4317
    %v4319 = vrot.slane %v315, %v4318
    %v4320 = vlaneseq
    %v4321 = vshrl.u32 %v4320, 7
    %v4322 = vsub.s32 1, %v4321
    %v4323 = vrot.slane %v316, %v4322
    %v4324 = vlaneseq
    %v4325 = vshrl.u32 %v4324, 7
    %v4326 = vsub.s32 3, %v4325
    %v4327 = vrot.slane %v316, %v4326
    %v4328 = vlaneseq
    %v4329 = vshrl.u32 %v4328, 7
    %v4330 = vsub.s32 1, %v4329
    %v4331 = vrot.slane %v317, %v4330
    %v4332 = vlaneseq
    %v4333 = vshrl.u32 %v4332, 7
    %v4334 = vsub.s32 3, %v4333
    %v4335 = vrot.slane %v317, %v4334
    %v4336 = vlaneseq
    %v4337 = vshrl.u32 %v4336, 7
    %v4338 = vsub.s32 5, %v4337
    %v4339 = vrot.slane %v317, %v4338
    %v4340 = vlaneseq
    %v4341 = vshrl.u32 %v4340, 7
    %v4342 = vsub.s32 7, %v4341
    %v4343 = vrot.slane %v317, %v4342
    %v4344 = vlaneseq
    %v4345 = vshrl.u32 %v4344, 7
    %v4346 = vsub.s32 1, %v4345
    %v4347 = vrot.slane %v318, %v4346
    %v4348 = vlaneseq
    %v4349 = vshrl.u32 %v4348, 7
    %v4350 = vsub.s32 3, %v4349
    %v4351 = vrot.slane %v318, %v4350
    %v4352 = vlaneseq
    %v4353 = vshrl.u32 %v4352, 7
    %v4354 = vsub.s32 1, %v4353
    %v4355 = vrot.slane %v319, %v4354
    %v4356 = vlaneseq
    %v4357 = vshrl.u32 %v4356, 7
    %v4358 = vsub.s32 3, %v4357
    %v4359 = vrot.slane %v319, %v4358
    %v4360 = vlaneseq
    %v4361 = vshrl.u32 %v4360, 7
    %v4362 = vsub.s32 5, %v4361
    %v4363 = vrot.slane %v319, %v4362
    %v4364 = vlaneseq
    %v4365 = vshrl.u32 %v4364, 7
    %v4366 = vsub.s32 7, %v4365
    %v4367 = vrot.slane %v319, %v4366
    %v4368 = vlaneseq
    %v4369 = vshrl.u32 %v4368, 7
    %v4370 = vsub.s32 1, %v4369
    %v4371 = vrot.slane %v320, %v4370
    %v4372 = vlaneseq
    %v4373 = vshrl.u32 %v4372, 7
    %v4374 = vsub.s32 3, %v4373
    %v4375 = vrot.slane %v320, %v4374
    %v4376 = vlaneseq
    %v4377 = vshrl.u32 %v4376, 7
    %v4378 = vsub.s32 1, %v4377
    %v4379 = vrot.slane %v321, %v4378
    %v4380 = vlaneseq
    %v4381 = vshrl.u32 %v4380, 7
    %v4382 = vsub.s32 3, %v4381
    %v4383 = vrot.slane %v321, %v4382
    %v4384 = vlaneseq
    %v4385 = vshrl.u32 %v4384, 7
    %v4386 = vsub.s32 5, %v4385
    %v4387 = vrot.slane %v321, %v4386
    %v4388 = vlaneseq
    %v4389 = vshrl.u32 %v4388, 7
    %v4390 = vsub.s32 7, %v4389
    %v4391 = vrot.slane %v321, %v4390
    %v4392 = vlaneseq
    %v4393 = vshrl.u32 %v4392, 7
    %v4394 = vsub.s32 1, %v4393
    %v4395 = vrot.slane %v322, %v4394
    %v4396 = vlaneseq
    %v4397 = vshrl.u32 %v4396, 7
    %v4398 = vsub.s32 3, %v4397
    %v4399 = vrot.slane %v322, %v4398
    %v4400 = vlaneseq
    %v4401 = vshrl.u32 %v4400, 7
    %v4402 = vsub.s32 1, %v4401
    %v4403 = vrot.slane %v323, %v4402
    %v4404 = vlaneseq
    %v4405 = vshrl.u32 %v4404, 7
    %v4406 = vsub.s32 3, %v4405
    %v4407 = vrot.slane %v323, %v4406
    %v4408 = vlaneseq
    %v4409 = vshrl.u32 %v4408, 7
    %v4410 = vsub.s32 5, %v4409
    %v4411 = vrot.slane %v323, %v4410
    %v4412 = vlaneseq
    %v4413 = vshrl.u32 %v4412, 7
    %v4414 = vsub.s32 7, %v4413
    %v4415 = vrot.slane %v323, %v4414
    %v4416 = vlaneseq
    %v4417 = vshrl.u32 %v4416, 7
    %v4418 = vsub.s32 1, %v4417
    %v4419 = vrot.slane %v324, %v4418
    %v4420 = vlaneseq
    %v4421 = vshrl.u32 %v4420, 7
    %v4422 = vsub.s32 3, %v4421
    %v4423 = vrot.slane %v324, %v4422
    %v4472 = vpack.c.bf16 %v4235, %v4235
    %v4473 = vpack.c.bf16 %v4239, %v4239
    %v4474 = vpack.c.bf16 %v4243, %v4243
    %v4475 = vpack.c.bf16 %v4247, %v4247
    %v4476 = vpack.c.bf16 %v4251, %v4251
    %v4477 = vpack.c.bf16 %v4255, %v4255
    %v4478 = vpack.c.bf16 %v4259, %v4259
    %v4479 = vpack.c.bf16 %v4263, %v4263
    %v4480 = vpack.c.bf16 %v4267, %v4267
    %v4481 = vpack.c.bf16 %v4271, %v4271
    %v4482 = vpack.c.bf16 %v4275, %v4275
    %v4483 = vpack.c.bf16 %v4279, %v4279
    %v4484 = vpack.c.bf16 %v4283, %v4283
    %v4485 = vpack.c.bf16 %v4287, %v4287
    %v4486 = vpack.c.bf16 %v4291, %v4291
    %v4487 = vpack.c.bf16 %v4295, %v4295
    %v4488 = vpack.c.bf16 %v4299, %v4299
    %v4489 = vpack.c.bf16 %v4303, %v4303
    %v4490 = vpack.c.bf16 %v4307, %v4307
    %v4491 = vpack.c.bf16 %v4311, %v4311
    %v4492 = vpack.c.bf16 %v4315, %v4315
    %v4493 = vpack.c.bf16 %v4319, %v4319
    %v4494 = vpack.c.bf16 %v4323, %v4323
    %v4495 = vpack.c.bf16 %v4327, %v4327
    %v4496 = vpack.c.bf16 %v4331, %v4331
    %v4497 = vpack.c.bf16 %v4335, %v4335
    %v4498 = vpack.c.bf16 %v4339, %v4339
    %v4499 = vpack.c.bf16 %v4343, %v4343
    %v4500 = vpack.c.bf16 %v4347, %v4347
    %v4501 = vpack.c.bf16 %v4351, %v4351
    %v4502 = vpack.c.bf16 %v4355, %v4355
    %v4503 = vpack.c.bf16 %v4359, %v4359
    %v4504 = vpack.c.bf16 %v4363, %v4363
    %v4505 = vpack.c.bf16 %v4367, %v4367
    %v4506 = vpack.c.bf16 %v4371, %v4371
    %v4507 = vpack.c.bf16 %v4375, %v4375
    %v4508 = vpack.c.bf16 %v4379, %v4379
    %v4509 = vpack.c.bf16 %v4383, %v4383
    %v4510 = vpack.c.bf16 %v4387, %v4387
    %v4511 = vpack.c.bf16 %v4391, %v4391
    %v4512 = vpack.c.bf16 %v4395, %v4395
    %v4513 = vpack.c.bf16 %v4399, %v4399
    %v4514 = vpack.c.bf16 %v4403, %v4403
    %v4515 = vpack.c.bf16 %v4407, %v4407
    %v4516 = vpack.c.bf16 %v4411, %v4411
    %v4517 = vpack.c.bf16 %v4415, %v4415
    %v4518 = vpack.c.bf16 %v4419, %v4419
    %v4519 = vpack.c.bf16 %v4423, %v4423
    %v4568 = vunpack.c.l.b16 %v4472
    %v4569 = vunpack.c.l.b16 %v4473
    %v4570 = vunpack.c.l.b16 %v4474
    %v4571 = vunpack.c.l.b16 %v4475
    %v4572 = vunpack.c.l.b16 %v4476
    %v4573 = vunpack.c.l.b16 %v4477
    %v4574 = vunpack.c.l.b16 %v4478
    %v4575 = vunpack.c.l.b16 %v4479
    %v4576 = vunpack.c.l.b16 %v4480
    %v4577 = vunpack.c.l.b16 %v4481
    %v4578 = vunpack.c.l.b16 %v4482
    %v4579 = vunpack.c.l.b16 %v4483
    %v4580 = vunpack.c.l.b16 %v4484
    %v4581 = vunpack.c.l.b16 %v4485
    %v4582 = vunpack.c.l.b16 %v4486
    %v4583 = vunpack.c.l.b16 %v4487
    %v4584 = vunpack.c.l.b16 %v4488
    %v4585 = vunpack.c.l.b16 %v4489
    %v4586 = vunpack.c.l.b16 %v4490
    %v4587 = vunpack.c.l.b16 %v4491
    %v4588 = vunpack.c.l.b16 %v4492
    %v4589 = vunpack.c.l.b16 %v4493
    %v4590 = vunpack.c.l.b16 %v4494
    %v4591 = vunpack.c.l.b16 %v4495
    %v4592 = vunpack.c.l.b16 %v4496
    %v4593 = vunpack.c.l.b16 %v4497
    %v4594 = vunpack.c.l.b16 %v4498
    %v4595 = vunpack.c.l.b16 %v4499
    %v4596 = vunpack.c.l.b16 %v4500
    %v4597 = vunpack.c.l.b16 %v4501
    %v4598 = vunpack.c.l.b16 %v4502
    %v4599 = vunpack.c.l.b16 %v4503
    %v4600 = vunpack.c.l.b16 %v4504
    %v4601 = vunpack.c.l.b16 %v4505
    %v4602 = vunpack.c.l.b16 %v4506
    %v4603 = vunpack.c.l.b16 %v4507
    %v4604 = vunpack.c.l.b16 %v4508
    %v4605 = vunpack.c.l.b16 %v4509
    %v4606 = vunpack.c.l.b16 %v4510
    %v4607 = vunpack.c.l.b16 %v4511
    %v4608 = vunpack.c.l.b16 %v4512
    %v4609 = vunpack.c.l.b16 %v4513
    %v4610 = vunpack.c.l.b16 %v4514
    %v4611 = vunpack.c.l.b16 %v4515
    %v4612 = vunpack.c.l.b16 %v4516
    %v4613 = vunpack.c.l.b16 %v4517
    %v4614 = vunpack.c.l.b16 %v4518
    %v4615 = vunpack.c.l.b16 %v4519
    %v4616 = vrot.slane %v4568, 1
    %v4617 = vsel %vm737, %v4574, %v4616
    %v4618 = vrot.slane %v4580, 7
    %v4619 = vsel %vm740, %v4618, %v4617
    %v4620 = vrot.slane %v4586, 6
    %v4621 = vsel %vm743, %v4620, %v4619
    %v4622 = vrot.slane %v4592, 5
    %v4623 = vsel %vm746, %v4622, %v4621
    %v4624 = vrot.slane %v4598, 4
    %v4625 = vsel %vm749, %v4624, %v4623
    %v4626 = vrot.slane %v4604, 3
    %v4627 = vsel %vm752, %v4626, %v4625
    %v4628 = vrot.slane %v4610, 2
    %v4629 = vsel %vm755, %v4628, %v4627
    %v4630 = vrot.slane %v4569, 1
    %v4631 = vsel %vm737, %v4575, %v4630
    %v4632 = vrot.slane %v4581, 7
    %v4633 = vsel %vm740, %v4632, %v4631
    %v4634 = vrot.slane %v4587, 6
    %v4635 = vsel %vm743, %v4634, %v4633
    %v4636 = vrot.slane %v4593, 5
    %v4637 = vsel %vm746, %v4636, %v4635
    %v4638 = vrot.slane %v4599, 4
    %v4639 = vsel %vm749, %v4638, %v4637
    %v4640 = vrot.slane %v4605, 3
    %v4641 = vsel %vm752, %v4640, %v4639
    %v4642 = vrot.slane %v4611, 2
    %v4643 = vsel %vm755, %v4642, %v4641
    %v4644 = vrot.slane %v4570, 1
    %v4645 = vsel %vm737, %v4576, %v4644
    %v4646 = vrot.slane %v4582, 7
    %v4647 = vsel %vm740, %v4646, %v4645
    %v4648 = vrot.slane %v4588, 6
    %v4649 = vsel %vm743, %v4648, %v4647
    %v4650 = vrot.slane %v4594, 5
    %v4651 = vsel %vm746, %v4650, %v4649
    %v4652 = vrot.slane %v4600, 4
    %v4653 = vsel %vm749, %v4652, %v4651
    %v4654 = vrot.slane %v4606, 3
    %v4655 = vsel %vm752, %v4654, %v4653
    %v4656 = vrot.slane %v4612, 2
    %v4657 = vsel %vm755, %v4656, %v4655
    %v4658 = vrot.slane %v4571, 1
    %v4659 = vsel %vm737, %v4577, %v4658
    %v4660 = vrot.slane %v4583, 7
    %v4661 = vsel %vm740, %v4660, %v4659
    %v4662 = vrot.slane %v4589, 6
    %v4663 = vsel %vm743, %v4662, %v4661
    %v4664 = vrot.slane %v4595, 5
    %v4665 = vsel %vm746, %v4664, %v4663
    %v4666 = vrot.slane %v4601, 4
    %v4667 = vsel %vm749, %v4666, %v4665
    %v4668 = vrot.slane %v4607, 3
    %v4669 = vsel %vm752, %v4668, %v4667
    %v4670 = vrot.slane %v4613, 2
    %v4671 = vsel %vm755, %v4670, %v4669
    %v4672 = vrot.slane %v4572, 1
    %v4673 = vsel %vm737, %v4578, %v4672
    %v4674 = vrot.slane %v4584, 7
    %v4675 = vsel %vm740, %v4674, %v4673
    %v4676 = vrot.slane %v4590, 6
    %v4677 = vsel %vm743, %v4676, %v4675
    %v4678 = vrot.slane %v4596, 5
    %v4679 = vsel %vm746, %v4678, %v4677
    %v4680 = vrot.slane %v4602, 4
    %v4681 = vsel %vm749, %v4680, %v4679
    %v4682 = vrot.slane %v4608, 3
    %v4683 = vsel %vm752, %v4682, %v4681
    %v4684 = vrot.slane %v4614, 2
    %v4685 = vsel %vm755, %v4684, %v4683
    %v4686 = vrot.slane %v4573, 1
    %v4687 = vsel %vm737, %v4579, %v4686
    %v4688 = vrot.slane %v4585, 7
    %v4689 = vsel %vm740, %v4688, %v4687
    %v4690 = vrot.slane %v4591, 6
    %v4691 = vsel %vm743, %v4690, %v4689
    %v4692 = vrot.slane %v4597, 5
    %v4693 = vsel %vm746, %v4692, %v4691
    %v4694 = vrot.slane %v4603, 4
    %v4695 = vsel %vm749, %v4694, %v4693
    %v4696 = vrot.slane %v4609, 3
    %v4697 = vsel %vm752, %v4696, %v4695
    %v4698 = vrot.slane %v4615, 2
    %v4699 = vsel %vm755, %v4698, %v4697
    %v4700 = vpack.c.b16 %v4629, %v4629
    %v4701 = vpack.c.b16 %v4643, %v4643
    %v4702 = vpack.c.b16 %v4657, %v4657
    %v4703 = vpack.c.b16 %v4671, %v4671
    %v4704 = vpack.c.b16 %v4685, %v4685
    %v4705 = vpack.c.b16 %v4699, %v4699
    %4712 = vmatprep.subr.bf16.mxu0 %v1128
    %4713 = vmatpush1.bf16.msra.mxu0 %v1127
    %4714 = vmatprep.subr.bf16.mxu0 %v1130
    %4715 = vmatpush1.bf16.msra.mxu0 %v1129
    %4716 = vmatprep.subr.bf16.mxu0 %v1132
    %4717 = vmatpush1.bf16.msra.mxu0 %v1131
    %4718 = vmatprep.subr.bf16.mxu0 %v1134
    %4719 = vmatpush1.bf16.msra.mxu0 %v1133
    %4720 = vmatprep.subr.bf16.mxu0 %v1136
    %4721 = vmatpush1.bf16.msra.mxu0 %v1135
    %4722 = vmatprep.subr.bf16.mxu0 %v1138
    %4723 = vmatpush1.bf16.msra.mxu0 %v1137
    %4724 = vmatprep.subr.bf16.mxu0 %v1140
    %4725 = vmatpush1.bf16.msra.mxu0 %v1139
    %4726 = vmatprep.subr.bf16.mxu0 %v1142
    %4727 = vmatpush1.bf16.msra.mxu0 %v1141
    %4728 = vmatprep.subr.bf16.mxu0 %v1144
    %4729 = vmatpush1.bf16.msra.mxu0 %v1143
    %4730 = vmatprep.subr.bf16.mxu0 %v1146
    %4731 = vmatpush1.bf16.msra.mxu0 %v1145
    %4732 = vmatprep.subr.bf16.mxu0 %v1148
    %4733 = vmatpush1.bf16.msra.mxu0 %v1147
    %4734 = vmatprep.subr.bf16.mxu0 %v1150
    %4735 = vmatpush1.bf16.msra.mxu0 %v1149
    %4736 = vmatprep.subr.bf16.mxu0 %v1152
    %4737 = vmatpush1.bf16.msra.mxu0 %v1151
    %4738 = vmatprep.subr.bf16.mxu0 %v1154
    %4739 = vmatpush1.bf16.msra.mxu0 %v1153
    %4740 = vmatprep.subr.bf16.mxu0 %v1156
    %4741 = vmatpush1.bf16.msra.mxu0 %v1155
    %4742 = vmatprep.subr.bf16.mxu0 %v1158
    %4743 = vmatpush1.bf16.msra.mxu0 %v1157
    %4744 = vmatprep.mubr.bf16.mxu0 %v4701
    %4745 = vmatmul.mubr.bf16.gmra.mrb[0].mxu0 %v4700
    %v4746 = vpop.f32.mrb[0].mxu0
    %v4747 = vadd.f32 %v633, %v4746
    %v4748 = vpop.f32.mrb[0].mxu0
    %v4749 = vadd.f32 %v637, %v4748
    %v4750 = vpop.f32.mrb[0].mxu0
    %v4751 = vpop.f32.mrb[0].mxu0
    %4752 = vdwg.mxu0
    %4753 = vmatprep.subr.bf16.mxu0 %v1160
    %4754 = vmatpush1.bf16.msra.mxu0 %v1159
    %4755 = vmatprep.subr.bf16.mxu0 %v1162
    %4756 = vmatpush1.bf16.msra.mxu0 %v1161
    %4757 = vmatprep.subr.bf16.mxu0 %v1164
    %4758 = vmatpush1.bf16.msra.mxu0 %v1163
    %4759 = vmatprep.subr.bf16.mxu0 %v1166
    %4760 = vmatpush1.bf16.msra.mxu0 %v1165
    %4761 = vmatprep.subr.bf16.mxu0 %v1168
    %4762 = vmatpush1.bf16.msra.mxu0 %v1167
    %4763 = vmatprep.subr.bf16.mxu0 %v1170
    %4764 = vmatpush1.bf16.msra.mxu0 %v1169
    %4765 = vmatprep.subr.bf16.mxu0 %v1172
    %4766 = vmatpush1.bf16.msra.mxu0 %v1171
    %4767 = vmatprep.subr.bf16.mxu0 %v1174
    %4768 = vmatpush1.bf16.msra.mxu0 %v1173
    %4769 = vmatprep.subr.bf16.mxu0 %v1176
    %4770 = vmatpush1.bf16.msra.mxu0 %v1175
    %4771 = vmatprep.subr.bf16.mxu0 %v1178
    %4772 = vmatpush1.bf16.msra.mxu0 %v1177
    %4773 = vmatprep.subr.bf16.mxu0 %v1180
    %4774 = vmatpush1.bf16.msra.mxu0 %v1179
    %4775 = vmatprep.subr.bf16.mxu0 %v1182
    %4776 = vmatpush1.bf16.msra.mxu0 %v1181
    %4777 = vmatprep.subr.bf16.mxu0 %v1184
    %4778 = vmatpush1.bf16.msra.mxu0 %v1183
    %4779 = vmatprep.subr.bf16.mxu0 %v1186
    %4780 = vmatpush1.bf16.msra.mxu0 %v1185
    %4781 = vmatprep.subr.bf16.mxu0 %v1188
    %4782 = vmatpush1.bf16.msra.mxu0 %v1187
    %4783 = vmatprep.subr.bf16.mxu0 %v1190
    %4784 = vmatpush1.bf16.msra.mxu0 %v1189
    %4785 = vmatprep.mubr.bf16.mxu0 %v4703
    %4786 = vmatmul.mubr.bf16.gmra.mrb[0].mxu0 %v4702
    %v4787 = vpop.f32.mrb[0].mxu0
    %v4788 = vadd.f32 %v4747, %v4787
    %v4789 = vpop.f32.mrb[0].mxu0
    %v4790 = vadd.f32 %v4749, %v4789
    %v4791 = vpop.f32.mrb[0].mxu0
    %v4792 = vpop.f32.mrb[0].mxu0
    %4793 = vdwg.mxu0
    %4794 = vmatprep.subr.bf16.mxu0 %v1192
    %4795 = vmatpush1.bf16.msra.mxu0 %v1191
    %4796 = vmatprep.subr.bf16.mxu0 %v1194
    %4797 = vmatpush1.bf16.msra.mxu0 %v1193
    %4798 = vmatprep.subr.bf16.mxu0 %v1196
    %4799 = vmatpush1.bf16.msra.mxu0 %v1195
    %4800 = vmatprep.subr.bf16.mxu0 %v1198
    %4801 = vmatpush1.bf16.msra.mxu0 %v1197
    %4802 = vmatprep.subr.bf16.mxu0 %v1200
    %4803 = vmatpush1.bf16.msra.mxu0 %v1199
    %4804 = vmatprep.subr.bf16.mxu0 %v1202
    %4805 = vmatpush1.bf16.msra.mxu0 %v1201
    %4806 = vmatprep.subr.bf16.mxu0 %v1204
    %4807 = vmatpush1.bf16.msra.mxu0 %v1203
    %4808 = vmatprep.subr.bf16.mxu0 %v1206
    %4809 = vmatpush1.bf16.msra.mxu0 %v1205
    %4810 = vmatprep.subr.bf16.mxu0 %v1208
    %4811 = vmatpush1.bf16.msra.mxu0 %v1207
    %4812 = vmatprep.subr.bf16.mxu0 %v1210
    %4813 = vmatpush1.bf16.msra.mxu0 %v1209
    %4814 = vmatprep.subr.bf16.mxu0 %v1212
    %4815 = vmatpush1.bf16.msra.mxu0 %v1211
    %4816 = vmatprep.subr.bf16.mxu0 %v1214
    %4817 = vmatpush1.bf16.msra.mxu0 %v1213
    %4818 = vmatprep.subr.bf16.mxu0 %v1216
    %4819 = vmatpush1.bf16.msra.mxu0 %v1215
    %4820 = vmatprep.subr.bf16.mxu0 %v1218
    %4821 = vmatpush1.bf16.msra.mxu0 %v1217
    %4822 = vmatprep.subr.bf16.mxu0 %v1220
    %4823 = vmatpush1.bf16.msra.mxu0 %v1219
    %4824 = vmatprep.subr.bf16.mxu0 %v1222
    %4825 = vmatpush1.bf16.msra.mxu0 %v1221
    %4826 = vmatprep.mubr.bf16.mxu0 %v4705
    %4827 = vmatmul.mubr.bf16.gmra.mrb[0].mxu0 %v4704
    %v4828 = vpop.f32.mrb[0].mxu0
    %v4829 = vadd.f32 %v4788, %v4828
    %v4830 = vpop.f32.mrb[0].mxu0
    %v4831 = vadd.f32 %v4790, %v4830
    %v4832 = vpop.f32.mrb[0].mxu0
    %v4833 = vpop.f32.mrb[0].mxu0
    %4834 = vdwg.mxu0
    %v4835 = vadd.f32 %v4829, %v4831
    %4836 = vadd.xlane.f32.xlu0 %v4835
    %v4837 = vpop.xlane.xlu0 %4836
    %v4838 = vmul.f32 %v4837, %v1445
    %v4839 = vsub.f32 %v4829, %v4838
    %v4840 = vsub.f32 %v4831, %v4838
    %v4841 = vmul.f32 %v4839, %v4839
    %v4842 = vmul.f32 %v4840, %v4840
    %v4843 = vadd.f32 %v4841, %v4842
    %4844 = vadd.xlane.f32.xlu0 %v4843
    %v4845 = vpop.xlane.xlu0 %4844
    %v4846 = vmul.f32 %v4845, %v1445
    %v4847 = vadd.f32 %v4846, 1e-05
    %v4848 = vrsqrt.pop %v4847
    %v4849 = vmul.f32 %v4839, %v4848
    %v4850 = vmul.f32 %v4840, %v4848
    %v4851 = vmul.f32 %v4849, %v1463
    %v4852 = vmul.f32 %v4850, %v1467
    %v4853 = vadd.f32 %v4851, %v1476
    %v4854 = vadd.f32 %v4852, %v1480
    %v4855 = vmax.f32 %v4853, 0.0
    %v4856 = vmax.f32 %v4854, 0.0
    %v4857 = vpack.c.bf16 %v4855, %v4855
    %v4858 = vpack.c.bf16 %v4856, %v4856
    %4859 = vmatprep.subr.bf16.mxu0 %v1597
    %4860 = vmatpush1.bf16.msra.mxu0 %v1596
    %4861 = vmatprep.subr.bf16.mxu0 %v1599
    %4862 = vmatpush1.bf16.msra.mxu0 %v1598
    %4863 = vmatprep.subr.bf16.mxu0 %v1601
    %4864 = vmatpush1.bf16.msra.mxu0 %v1600
    %4865 = vmatprep.subr.bf16.mxu0 %v1603
    %4866 = vmatpush1.bf16.msra.mxu0 %v1602
    %4867 = vmatprep.subr.bf16.mxu0 %v1605
    %4868 = vmatpush1.bf16.msra.mxu0 %v1604
    %4869 = vmatprep.subr.bf16.mxu0 %v1607
    %4870 = vmatpush1.bf16.msra.mxu0 %v1606
    %4871 = vmatprep.subr.bf16.mxu0 %v1609
    %4872 = vmatpush1.bf16.msra.mxu0 %v1608
    %4873 = vmatprep.subr.bf16.mxu0 %v1611
    %4874 = vmatpush1.bf16.msra.mxu0 %v1610
    %4875 = vmatprep.subr.bf16.mxu0 %v1613
    %4876 = vmatpush1.bf16.msra.mxu0 %v1612
    %4877 = vmatprep.subr.bf16.mxu0 %v1615
    %4878 = vmatpush1.bf16.msra.mxu0 %v1614
    %4879 = vmatprep.subr.bf16.mxu0 %v1617
    %4880 = vmatpush1.bf16.msra.mxu0 %v1616
    %4881 = vmatprep.subr.bf16.mxu0 %v1619
    %4882 = vmatpush1.bf16.msra.mxu0 %v1618
    %4883 = vmatprep.subr.bf16.mxu0 %v1621
    %4884 = vmatpush1.bf16.msra.mxu0 %v1620
    %4885 = vmatprep.subr.bf16.mxu0 %v1623
    %4886 = vmatpush1.bf16.msra.mxu0 %v1622
    %4887 = vmatprep.subr.bf16.mxu0 %v1625
    %4888 = vmatpush1.bf16.msra.mxu0 %v1624
    %4889 = vmatprep.subr.bf16.mxu0 %v1627
    %4890 = vmatpush1.bf16.msra.mxu0 %v1626
    %4891 = vmatprep.mubr.bf16.mxu0 %v4858
    %4892 = vmatmul.mubr.bf16.gmra.mrb[0].mxu0 %v4857
    %v4893 = vpop.f32.mrb[0].mxu0
    %v4894 = vadd.f32 %v1493, %v4893
    %v4895 = vpop.f32.mrb[0].mxu0
    %v4896 = vadd.f32 %v1497, %v4895
    %v4897 = vpop.f32.mrb[0].mxu0
    %v4898 = vpop.f32.mrb[0].mxu0
    %4899 = vdwg.mxu0
    %v4900 = vpack.c.bf16 %v4894, %v4894
    %v4901 = vpack.c.bf16 %v4896, %v4896
    %4902 = vmatprep.subr.bf16.mxu0 %v2023
    %4903 = vmatpush1.bf16.msra.mxu0 %v2022
    %4904 = vmatprep.subr.bf16.mxu0 %v2029
    %4905 = vmatpush1.bf16.msra.mxu0 %v2028
    %4906 = vmatprep.subr.bf16.mxu0 %v2035
    %4907 = vmatpush1.bf16.msra.mxu0 %v2034
    %4908 = vmatprep.subr.bf16.mxu0 %v2041
    %4909 = vmatpush1.bf16.msra.mxu0 %v2040
    %4910 = vmatprep.subr.bf16.mxu0 %v2047
    %4911 = vmatpush1.bf16.msra.mxu0 %v2046
    %4912 = vmatprep.subr.bf16.mxu0 %v2053
    %4913 = vmatpush1.bf16.msra.mxu0 %v2052
    %4914 = vmatprep.subr.bf16.mxu0 %v2059
    %4915 = vmatpush1.bf16.msra.mxu0 %v2058
    %4916 = vmatprep.subr.bf16.mxu0 %v2065
    %4917 = vmatpush1.bf16.msra.mxu0 %v2064
    %4918 = vmatprep.subr.bf16.mxu0 %v2071
    %4919 = vmatpush1.bf16.msra.mxu0 %v2070
    %4920 = vmatprep.subr.bf16.mxu0 %v2077
    %4921 = vmatpush1.bf16.msra.mxu0 %v2076
    %4922 = vmatprep.subr.bf16.mxu0 %v2083
    %4923 = vmatpush1.bf16.msra.mxu0 %v2082
    %4924 = vmatprep.subr.bf16.mxu0 %v2089
    %4925 = vmatpush1.bf16.msra.mxu0 %v2088
    %4926 = vmatprep.subr.bf16.mxu0 %v2095
    %4927 = vmatpush1.bf16.msra.mxu0 %v2094
    %4928 = vmatprep.subr.bf16.mxu0 %v2101
    %4929 = vmatpush1.bf16.msra.mxu0 %v2100
    %4930 = vmatprep.subr.bf16.mxu0 %v2107
    %4931 = vmatpush1.bf16.msra.mxu0 %v2106
    %4932 = vmatprep.subr.bf16.mxu0 %v2113
    %4933 = vmatpush1.bf16.msra.mxu0 %v2112
    %4934 = vmatprep.mubr.bf16.mxu0 %v4901
    %4935 = vmatmul.mubr.bf16.gmra.mrb[0].mxu0 %v4900
    %v4936 = vpop.f32.mrb[0].mxu0
    %v4937 = vadd.f32 %v1707, %v4936
    %v4938 = vpop.f32.mrb[0].mxu0
    %v4939 = vadd.f32 %v1711, %v4938
    %v4940 = vpop.f32.mrb[0].mxu0
    %v4941 = vpop.f32.mrb[0].mxu0
    %4942 = vdwg.mxu0
    %4943 = vmatprep.subr.bf16.mxu0 %v2025
    %4944 = vmatpush1.bf16.msra.mxu0 %v2024
    %4945 = vmatprep.subr.bf16.mxu0 %v2031
    %4946 = vmatpush1.bf16.msra.mxu0 %v2030
    %4947 = vmatprep.subr.bf16.mxu0 %v2037
    %4948 = vmatpush1.bf16.msra.mxu0 %v2036
    %4949 = vmatprep.subr.bf16.mxu0 %v2043
    %4950 = vmatpush1.bf16.msra.mxu0 %v2042
    %4951 = vmatprep.subr.bf16.mxu0 %v2049
    %4952 = vmatpush1.bf16.msra.mxu0 %v2048
    %4953 = vmatprep.subr.bf16.mxu0 %v2055
    %4954 = vmatpush1.bf16.msra.mxu0 %v2054
    %4955 = vmatprep.subr.bf16.mxu0 %v2061
    %4956 = vmatpush1.bf16.msra.mxu0 %v2060
    %4957 = vmatprep.subr.bf16.mxu0 %v2067
    %4958 = vmatpush1.bf16.msra.mxu0 %v2066
    %4959 = vmatprep.subr.bf16.mxu0 %v2073
    %4960 = vmatpush1.bf16.msra.mxu0 %v2072
    %4961 = vmatprep.subr.bf16.mxu0 %v2079
    %4962 = vmatpush1.bf16.msra.mxu0 %v2078
    %4963 = vmatprep.subr.bf16.mxu0 %v2085
    %4964 = vmatpush1.bf16.msra.mxu0 %v2084
    %4965 = vmatprep.subr.bf16.mxu0 %v2091
    %4966 = vmatpush1.bf16.msra.mxu0 %v2090
    %4967 = vmatprep.subr.bf16.mxu0 %v2097
    %4968 = vmatpush1.bf16.msra.mxu0 %v2096
    %4969 = vmatprep.subr.bf16.mxu0 %v2103
    %4970 = vmatpush1.bf16.msra.mxu0 %v2102
    %4971 = vmatprep.subr.bf16.mxu0 %v2109
    %4972 = vmatpush1.bf16.msra.mxu0 %v2108
    %4973 = vmatprep.subr.bf16.mxu0 %v2115
    %4974 = vmatpush1.bf16.msra.mxu0 %v2114
    %4975 = vmatprep.mubr.bf16.mxu0 %v4901
    %4976 = vmatmul.mubr.bf16.gmra.mrb[0].mxu0 %v4900
    %v4977 = vpop.f32.mrb[0].mxu0
    %v4978 = vadd.f32 %v1715, %v4977
    %v4979 = vpop.f32.mrb[0].mxu0
    %v4980 = vadd.f32 %v1719, %v4979
    %v4981 = vpop.f32.mrb[0].mxu0
    %v4982 = vpop.f32.mrb[0].mxu0
    %4983 = vdwg.mxu0
    %4984 = vmatprep.subr.bf16.mxu0 %v2027
    %4985 = vmatpush1.bf16.msra.mxu0 %v2026
    %4986 = vmatprep.subr.bf16.mxu0 %v2033
    %4987 = vmatpush1.bf16.msra.mxu0 %v2032
    %4988 = vmatprep.subr.bf16.mxu0 %v2039
    %4989 = vmatpush1.bf16.msra.mxu0 %v2038
    %4990 = vmatprep.subr.bf16.mxu0 %v2045
    %4991 = vmatpush1.bf16.msra.mxu0 %v2044
    %4992 = vmatprep.subr.bf16.mxu0 %v2051
    %4993 = vmatpush1.bf16.msra.mxu0 %v2050
    %4994 = vmatprep.subr.bf16.mxu0 %v2057
    %4995 = vmatpush1.bf16.msra.mxu0 %v2056
    %4996 = vmatprep.subr.bf16.mxu0 %v2063
    %4997 = vmatpush1.bf16.msra.mxu0 %v2062
    %4998 = vmatprep.subr.bf16.mxu0 %v2069
    %4999 = vmatpush1.bf16.msra.mxu0 %v2068
    %5000 = vmatprep.subr.bf16.mxu0 %v2075
    %5001 = vmatpush1.bf16.msra.mxu0 %v2074
    %5002 = vmatprep.subr.bf16.mxu0 %v2081
    %5003 = vmatpush1.bf16.msra.mxu0 %v2080
    %5004 = vmatprep.subr.bf16.mxu0 %v2087
    %5005 = vmatpush1.bf16.msra.mxu0 %v2086
    %5006 = vmatprep.subr.bf16.mxu0 %v2093
    %5007 = vmatpush1.bf16.msra.mxu0 %v2092
    %5008 = vmatprep.subr.bf16.mxu0 %v2099
    %5009 = vmatpush1.bf16.msra.mxu0 %v2098
    %5010 = vmatprep.subr.bf16.mxu0 %v2105
    %5011 = vmatpush1.bf16.msra.mxu0 %v2104
    %5012 = vmatprep.subr.bf16.mxu0 %v2111
    %5013 = vmatpush1.bf16.msra.mxu0 %v2110
    %5014 = vmatprep.subr.bf16.mxu0 %v2117
    %5015 = vmatpush1.bf16.msra.mxu0 %v2116
    %5016 = vmatprep.mubr.bf16.mxu0 %v4901
    %5017 = vmatmul.mubr.bf16.gmra.mrb[0].mxu0 %v4900
    %v5018 = vpop.f32.mrb[0].mxu0
    %v5019 = vadd.f32 %v1723, %v5018
    %v5020 = vpop.f32.mrb[0].mxu0
    %v5021 = vadd.f32 %v1727, %v5020
    %v5022 = vpop.f32.mrb[0].mxu0
    %v5023 = vpop.f32.mrb[0].mxu0
    %5024 = vdwg.mxu0
    %v5025 = vmul.f32 %v4937, 0.17677669
    %v5026 = vmul.f32 %v4939, 0.17677669
    %v5028 = vsel %vm2339, %v5025, 0
    %v5031 = vsel %vm2339, %v4978, 0
    %5033 = vmatprep.subr.mxu0 0.0
    %5034 = vmatpush1.xpose.msra.mxu0 %v5031
    %5035 = vmatprep.subr.mxu0 0.0
    %5036 = vmatpush1.xpose.msra.mxu0 0.0
    %5037 = vmatprep.subr.mxu0 0.0
    %5038 = vmatpush1.xpose.msra.mxu0 0.0
    %5039 = vmatprep.subr.mxu0 0.0
    %5040 = vmatpush1.xpose.msra.mxu0 0.0
    %5041 = vmatprep.subr.mxu0 0.0
    %5042 = vmatpush1.xpose.msra.mxu0 0.0
    %5043 = vmatprep.subr.mxu0 0.0
    %5044 = vmatpush1.xpose.msra.mxu0 0.0
    %5045 = vmatprep.subr.mxu0 0.0
    %5046 = vmatpush1.xpose.msra.mxu0 0.0
    %5047 = vmatprep.subr.mxu0 0.0
    %5048 = vmatpush1.xpose.msra.mxu0 0.0
    %5049 = vmatprep.subr.mxu0 0.0
    %5050 = vmatpush1.xpose.msra.mxu0 0.0
    %5051 = vmatprep.subr.mxu0 0.0
    %5052 = vmatpush1.xpose.msra.mxu0 0.0
    %5053 = vmatprep.subr.mxu0 0.0
    %5054 = vmatpush1.xpose.msra.mxu0 0.0
    %5055 = vmatprep.subr.mxu0 0.0
    %5056 = vmatpush1.xpose.msra.mxu0 0.0
    %5057 = vmatprep.subr.mxu0 0.0
    %5058 = vmatpush1.xpose.msra.mxu0 0.0
    %5059 = vmatprep.subr.mxu0 0.0
    %5060 = vmatpush1.xpose.msra.mxu0 0.0
    %5061 = vmatprep.subr.mxu0 0.0
    %5062 = vmatpush1.xpose.msra.mxu0 0.0
    %5063 = vmatprep.subr.mxu0 0.0
    %5064 = vmatpush1.xpose.msra.mxu0 0.0
    %5065 = vmatprep.subr.mxu0 0.0
    %5066 = vmatpush1.xpose.msra.mxu0 0.0
    %5067 = vmatprep.subr.mxu0 0.0
    %5068 = vmatpush1.xpose.msra.mxu0 0.0
    %5069 = vmatprep.subr.mxu0 0.0
    %5070 = vmatpush1.xpose.msra.mxu0 0.0
    %5071 = vmatprep.subr.mxu0 0.0
    %5072 = vmatpush1.xpose.msra.mxu0 0.0
    %5073 = vmatprep.subr.mxu0 0.0
    %5074 = vmatpush1.xpose.msra.mxu0 0.0
    %5075 = vmatprep.subr.mxu0 0.0
    %5076 = vmatpush1.xpose.msra.mxu0 0.0
    %5077 = vmatprep.subr.mxu0 0.0
    %5078 = vmatpush1.xpose.msra.mxu0 0.0
    %5079 = vmatprep.subr.mxu0 0.0
    %5080 = vmatpush1.xpose.msra.mxu0 0.0
    %5081 = vmatprep.subr.mxu0 0.0
    %5082 = vmatpush1.xpose.msra.mxu0 0.0
    %5083 = vmatprep.subr.mxu0 0.0
    %5084 = vmatpush1.xpose.msra.mxu0 0.0
    %5085 = vmatprep.subr.mxu0 0.0
    %5086 = vmatpush1.xpose.msra.mxu0 0.0
    %5087 = vmatprep.subr.mxu0 0.0
    %5088 = vmatpush1.xpose.msra.mxu0 0.0
    %5089 = vmatprep.subr.mxu0 0.0
    %5090 = vmatpush1.xpose.msra.mxu0 0.0
    %5091 = vmatprep.subr.mxu0 0.0
    %5092 = vmatpush1.xpose.msra.mxu0 0.0
    %5093 = vmatprep.subr.mxu0 0.0
    %5094 = vmatpush1.xpose.msra.mxu0 0.0
    %5095 = vmatprep.subr.mxu0 0.0
    %5096 = vmatpush1.xpose.msra.mxu0 0.0
    %5097 = vmatprep.mubr.f32.mxu0 0.0
    %5098 = vmatmul.mubr.f32.gmra.mrb[0].mxu0 %v5028
    %v5099 = vpop.f32.mrb[0].mxu0
    %v5100 = vadd.f32 0.0, %v5099
    %v5101 = vpop.f32.mrb[0].mxu0
    %5102 = vdwg.mxu0
    %v5103 = vsel %vm2416, %v5100, -inf
    %5104 = vmax.xlane.f32.xlu0 %v5103
    %v5105 = vpop.xlane.xlu0 %5104
    %v5106 = vsub.f32 %v5100, %v5105
    %v5107 = vmul.f32 %v5106, 1.442695
    %v5108 = vpow.pop %v5107
    %v5109 = vsel %vm2416, %v5108, 0.0
    %5110 = vadd.xlane.f32.xlu0 %v5109
    %v5111 = vpop.xlane.xlu0 %5110
    %v5112 = vrcp.pop %v5111
    %v5113 = vmul.f32 %v5108, %v5112
    %v5115 = vsel %vm2416, %v5113, 0
    %5117 = vmatprep.subr.mxu0 0.0
    %5118 = vmatpush1.msra.mxu0 %v5019
    %5119 = vmatprep.subr.mxu0 0.0
    %5120 = vmatpush1.msra.mxu0 0.0
    %5121 = vmatprep.subr.mxu0 0.0
    %5122 = vmatpush1.msra.mxu0 0.0
    %5123 = vmatprep.subr.mxu0 0.0
    %5124 = vmatpush1.msra.mxu0 0.0
    %5125 = vmatprep.subr.mxu0 0.0
    %5126 = vmatpush1.msra.mxu0 0.0
    %5127 = vmatprep.subr.mxu0 0.0
    %5128 = vmatpush1.msra.mxu0 0.0
    %5129 = vmatprep.subr.mxu0 0.0
    %5130 = vmatpush1.msra.mxu0 0.0
    %5131 = vmatprep.subr.mxu0 0.0
    %5132 = vmatpush1.msra.mxu0 0.0
    %5133 = vmatprep.subr.mxu0 0.0
    %5134 = vmatpush1.msra.mxu0 0.0
    %5135 = vmatprep.subr.mxu0 0.0
    %5136 = vmatpush1.msra.mxu0 0.0
    %5137 = vmatprep.subr.mxu0 0.0
    %5138 = vmatpush1.msra.mxu0 0.0
    %5139 = vmatprep.subr.mxu0 0.0
    %5140 = vmatpush1.msra.mxu0 0.0
    %5141 = vmatprep.subr.mxu0 0.0
    %5142 = vmatpush1.msra.mxu0 0.0
    %5143 = vmatprep.subr.mxu0 0.0
    %5144 = vmatpush1.msra.mxu0 0.0
    %5145 = vmatprep.subr.mxu0 0.0
    %5146 = vmatpush1.msra.mxu0 0.0
    %5147 = vmatprep.subr.mxu0 0.0
    %5148 = vmatpush1.msra.mxu0 0.0
    %5149 = vmatprep.subr.mxu0 0.0
    %5150 = vmatpush1.msra.mxu0 0.0
    %5151 = vmatprep.subr.mxu0 0.0
    %5152 = vmatpush1.msra.mxu0 0.0
    %5153 = vmatprep.subr.mxu0 0.0
    %5154 = vmatpush1.msra.mxu0 0.0
    %5155 = vmatprep.subr.mxu0 0.0
    %5156 = vmatpush1.msra.mxu0 0.0
    %5157 = vmatprep.subr.mxu0 0.0
    %5158 = vmatpush1.msra.mxu0 0.0
    %5159 = vmatprep.subr.mxu0 0.0
    %5160 = vmatpush1.msra.mxu0 0.0
    %5161 = vmatprep.subr.mxu0 0.0
    %5162 = vmatpush1.msra.mxu0 0.0
    %5163 = vmatprep.subr.mxu0 0.0
    %5164 = vmatpush1.msra.mxu0 0.0
    %5165 = vmatprep.subr.mxu0 0.0
    %5166 = vmatpush1.msra.mxu0 0.0
    %5167 = vmatprep.subr.mxu0 0.0
    %5168 = vmatpush1.msra.mxu0 0.0
    %5169 = vmatprep.subr.mxu0 0.0
    %5170 = vmatpush1.msra.mxu0 0.0
    %5171 = vmatprep.subr.mxu0 0.0
    %5172 = vmatpush1.msra.mxu0 0.0
    %5173 = vmatprep.subr.mxu0 0.0
    %5174 = vmatpush1.msra.mxu0 0.0
    %5175 = vmatprep.subr.mxu0 0.0
    %5176 = vmatpush1.msra.mxu0 0.0
    %5177 = vmatprep.subr.mxu0 0.0
    %5178 = vmatpush1.msra.mxu0 0.0
    %5179 = vmatprep.subr.mxu0 0.0
    %5180 = vmatpush1.msra.mxu0 0.0
    %5181 = vmatprep.mubr.f32.mxu0 0.0
    %5182 = vmatmul.mubr.f32.gmra.mrb[0].mxu0 %v5115
    %v5183 = vpop.f32.mrb[0].mxu0
    %v5184 = vadd.f32 0.0, %v5183
    %v5185 = vpop.f32.mrb[0].mxu0
    %5186 = vdwg.mxu0
    %v5187 = vpack.c.bf16 %v5184, %v5184
    %5188 = vrot.lane.b32.xlu0 %v5025, 96
    %v5189 = vpop.permute.xlu0 %5188
    %5190 = vrot.lane.b32.xlu0 %v4978, 96
    %v5191 = vpop.permute.xlu0 %5190
    %v5192 = vsel %vm2339, %v5189, 0
    %v5194 = vsel %vm2339, %v5191, 0
    %5196 = vmatprep.subr.mxu0 0.0
    %5197 = vmatpush1.xpose.msra.mxu0 %v5194
    %5198 = vmatprep.subr.mxu0 0.0
    %5199 = vmatpush1.xpose.msra.mxu0 0.0
    %5200 = vmatprep.subr.mxu0 0.0
    %5201 = vmatpush1.xpose.msra.mxu0 0.0
    %5202 = vmatprep.subr.mxu0 0.0
    %5203 = vmatpush1.xpose.msra.mxu0 0.0
    %5204 = vmatprep.subr.mxu0 0.0
    %5205 = vmatpush1.xpose.msra.mxu0 0.0
    %5206 = vmatprep.subr.mxu0 0.0
    %5207 = vmatpush1.xpose.msra.mxu0 0.0
    %5208 = vmatprep.subr.mxu0 0.0
    %5209 = vmatpush1.xpose.msra.mxu0 0.0
    %5210 = vmatprep.subr.mxu0 0.0
    %5211 = vmatpush1.xpose.msra.mxu0 0.0
    %5212 = vmatprep.subr.mxu0 0.0
    %5213 = vmatpush1.xpose.msra.mxu0 0.0
    %5214 = vmatprep.subr.mxu0 0.0
    %5215 = vmatpush1.xpose.msra.mxu0 0.0
    %5216 = vmatprep.subr.mxu0 0.0
    %5217 = vmatpush1.xpose.msra.mxu0 0.0
    %5218 = vmatprep.subr.mxu0 0.0
    %5219 = vmatpush1.xpose.msra.mxu0 0.0
    %5220 = vmatprep.subr.mxu0 0.0
    %5221 = vmatpush1.xpose.msra.mxu0 0.0
    %5222 = vmatprep.subr.mxu0 0.0
    %5223 = vmatpush1.xpose.msra.mxu0 0.0
    %5224 = vmatprep.subr.mxu0 0.0
    %5225 = vmatpush1.xpose.msra.mxu0 0.0
    %5226 = vmatprep.subr.mxu0 0.0
    %5227 = vmatpush1.xpose.msra.mxu0 0.0
    %5228 = vmatprep.subr.mxu0 0.0
    %5229 = vmatpush1.xpose.msra.mxu0 0.0
    %5230 = vmatprep.subr.mxu0 0.0
    %5231 = vmatpush1.xpose.msra.mxu0 0.0
    %5232 = vmatprep.subr.mxu0 0.0
    %5233 = vmatpush1.xpose.msra.mxu0 0.0
    %5234 = vmatprep.subr.mxu0 0.0
    %5235 = vmatpush1.xpose.msra.mxu0 0.0
    %5236 = vmatprep.subr.mxu0 0.0
    %5237 = vmatpush1.xpose.msra.mxu0 0.0
    %5238 = vmatprep.subr.mxu0 0.0
    %5239 = vmatpush1.xpose.msra.mxu0 0.0
    %5240 = vmatprep.subr.mxu0 0.0
    %5241 = vmatpush1.xpose.msra.mxu0 0.0
    %5242 = vmatprep.subr.mxu0 0.0
    %5243 = vmatpush1.xpose.msra.mxu0 0.0
    %5244 = vmatprep.subr.mxu0 0.0
    %5245 = vmatpush1.xpose.msra.mxu0 0.0
    %5246 = vmatprep.subr.mxu0 0.0
    %5247 = vmatpush1.xpose.msra.mxu0 0.0
    %5248 = vmatprep.subr.mxu0 0.0
    %5249 = vmatpush1.xpose.msra.mxu0 0.0
    %5250 = vmatprep.subr.mxu0 0.0
    %5251 = vmatpush1.xpose.msra.mxu0 0.0
    %5252 = vmatprep.subr.mxu0 0.0
    %5253 = vmatpush1.xpose.msra.mxu0 0.0
    %5254 = vmatprep.subr.mxu0 0.0
    %5255 = vmatpush1.xpose.msra.mxu0 0.0
    %5256 = vmatprep.subr.mxu0 0.0
    %5257 = vmatpush1.xpose.msra.mxu0 0.0
    %5258 = vmatprep.subr.mxu0 0.0
    %5259 = vmatpush1.xpose.msra.mxu0 0.0
    %5260 = vmatprep.mubr.f32.mxu0 0.0
    %5261 = vmatmul.mubr.f32.gmra.mrb[0].mxu0 %v5192
    %v5262 = vpop.f32.mrb[0].mxu0
    %v5263 = vadd.f32 0.0, %v5262
    %v5264 = vpop.f32.mrb[0].mxu0
    %5265 = vdwg.mxu0
    %v5266 = vsel %vm2416, %v5263, -inf
    %5267 = vmax.xlane.f32.xlu0 %v5266
    %v5268 = vpop.xlane.xlu0 %5267
    %v5269 = vsub.f32 %v5263, %v5268
    %v5270 = vmul.f32 %v5269, 1.442695
    %v5271 = vpow.pop %v5270
    %v5272 = vsel %vm2416, %v5271, 0.0
    %5273 = vadd.xlane.f32.xlu0 %v5272
    %v5274 = vpop.xlane.xlu0 %5273
    %v5275 = vrcp.pop %v5274
    %v5276 = vmul.f32 %v5271, %v5275
    %5278 = vrot.lane.b32.xlu0 %v5019, 96
    %v5279 = vpop.permute.xlu0 %5278
    %v5282 = vsel %vm2416, %v5276, 0
    %5284 = vmatprep.subr.mxu0 0.0
    %5285 = vmatpush1.msra.mxu0 %v5279
    %5286 = vmatprep.subr.mxu0 0.0
    %5287 = vmatpush1.msra.mxu0 0.0
    %5288 = vmatprep.subr.mxu0 0.0
    %5289 = vmatpush1.msra.mxu0 0.0
    %5290 = vmatprep.subr.mxu0 0.0
    %5291 = vmatpush1.msra.mxu0 0.0
    %5292 = vmatprep.subr.mxu0 0.0
    %5293 = vmatpush1.msra.mxu0 0.0
    %5294 = vmatprep.subr.mxu0 0.0
    %5295 = vmatpush1.msra.mxu0 0.0
    %5296 = vmatprep.subr.mxu0 0.0
    %5297 = vmatpush1.msra.mxu0 0.0
    %5298 = vmatprep.subr.mxu0 0.0
    %5299 = vmatpush1.msra.mxu0 0.0
    %5300 = vmatprep.subr.mxu0 0.0
    %5301 = vmatpush1.msra.mxu0 0.0
    %5302 = vmatprep.subr.mxu0 0.0
    %5303 = vmatpush1.msra.mxu0 0.0
    %5304 = vmatprep.subr.mxu0 0.0
    %5305 = vmatpush1.msra.mxu0 0.0
    %5306 = vmatprep.subr.mxu0 0.0
    %5307 = vmatpush1.msra.mxu0 0.0
    %5308 = vmatprep.subr.mxu0 0.0
    %5309 = vmatpush1.msra.mxu0 0.0
    %5310 = vmatprep.subr.mxu0 0.0
    %5311 = vmatpush1.msra.mxu0 0.0
    %5312 = vmatprep.subr.mxu0 0.0
    %5313 = vmatpush1.msra.mxu0 0.0
    %5314 = vmatprep.subr.mxu0 0.0
    %5315 = vmatpush1.msra.mxu0 0.0
    %5316 = vmatprep.subr.mxu0 0.0
    %5317 = vmatpush1.msra.mxu0 0.0
    %5318 = vmatprep.subr.mxu0 0.0
    %5319 = vmatpush1.msra.mxu0 0.0
    %5320 = vmatprep.subr.mxu0 0.0
    %5321 = vmatpush1.msra.mxu0 0.0
    %5322 = vmatprep.subr.mxu0 0.0
    %5323 = vmatpush1.msra.mxu0 0.0
    %5324 = vmatprep.subr.mxu0 0.0
    %5325 = vmatpush1.msra.mxu0 0.0
    %5326 = vmatprep.subr.mxu0 0.0
    %5327 = vmatpush1.msra.mxu0 0.0
    %5328 = vmatprep.subr.mxu0 0.0
    %5329 = vmatpush1.msra.mxu0 0.0
    %5330 = vmatprep.subr.mxu0 0.0
    %5331 = vmatpush1.msra.mxu0 0.0
    %5332 = vmatprep.subr.mxu0 0.0
    %5333 = vmatpush1.msra.mxu0 0.0
    %5334 = vmatprep.subr.mxu0 0.0
    %5335 = vmatpush1.msra.mxu0 0.0
    %5336 = vmatprep.subr.mxu0 0.0
    %5337 = vmatpush1.msra.mxu0 0.0
    %5338 = vmatprep.subr.mxu0 0.0
    %5339 = vmatpush1.msra.mxu0 0.0
    %5340 = vmatprep.subr.mxu0 0.0
    %5341 = vmatpush1.msra.mxu0 0.0
    %5342 = vmatprep.subr.mxu0 0.0
    %5343 = vmatpush1.msra.mxu0 0.0
    %5344 = vmatprep.subr.mxu0 0.0
    %5345 = vmatpush1.msra.mxu0 0.0
    %5346 = vmatprep.subr.mxu0 0.0
    %5347 = vmatpush1.msra.mxu0 0.0
    %5348 = vmatprep.mubr.f32.mxu0 0.0
    %5349 = vmatmul.mubr.f32.gmra.mrb[0].mxu0 %v5282
    %v5350 = vpop.f32.mrb[0].mxu0
    %v5351 = vadd.f32 0.0, %v5350
    %v5352 = vpop.f32.mrb[0].mxu0
    %5353 = vdwg.mxu0
    %v5354 = vpack.c.bf16 %v5351, %v5351
    %v5356 = vsel %vm2339, %v5354, 0
    %5358 = vmatprep.subr.bf16.mxu0 %v2690
    %5359 = vmatpush1.bf16.msra.mxu0 %v2689
    %5360 = vmatprep.subr.bf16.mxu0 %v2692
    %5361 = vmatpush1.bf16.msra.mxu0 %v2691
    %5362 = vmatprep.subr.bf16.mxu0 0
    %5363 = vmatpush1.bf16.msra.mxu0 0
    %5364 = vmatprep.subr.bf16.mxu0 0
    %5365 = vmatpush1.bf16.msra.mxu0 0
    %5366 = vmatprep.subr.bf16.mxu0 0
    %5367 = vmatpush1.bf16.msra.mxu0 0
    %5368 = vmatprep.subr.bf16.mxu0 0
    %5369 = vmatpush1.bf16.msra.mxu0 0
    %5370 = vmatprep.subr.bf16.mxu0 0
    %5371 = vmatpush1.bf16.msra.mxu0 0
    %5372 = vmatprep.subr.bf16.mxu0 0
    %5373 = vmatpush1.bf16.msra.mxu0 0
    %5374 = vmatprep.subr.bf16.mxu0 0
    %5375 = vmatpush1.bf16.msra.mxu0 0
    %5376 = vmatprep.subr.bf16.mxu0 0
    %5377 = vmatpush1.bf16.msra.mxu0 0
    %5378 = vmatprep.subr.bf16.mxu0 0
    %5379 = vmatpush1.bf16.msra.mxu0 0
    %5380 = vmatprep.subr.bf16.mxu0 0
    %5381 = vmatpush1.bf16.msra.mxu0 0
    %5382 = vmatprep.subr.bf16.mxu0 0
    %5383 = vmatpush1.bf16.msra.mxu0 0
    %5384 = vmatprep.subr.bf16.mxu0 0
    %5385 = vmatpush1.bf16.msra.mxu0 0
    %5386 = vmatprep.subr.bf16.mxu0 0
    %5387 = vmatpush1.bf16.msra.mxu0 0
    %5388 = vmatprep.subr.bf16.mxu0 0
    %5389 = vmatpush1.bf16.msra.mxu0 0
    %5390 = vmatprep.mubr.bf16.mxu0 0
    %5391 = vmatmul.mubr.bf16.gmra.mrb[0].mxu0 %v5356
    %v5392 = vpop.f32.mrb[0].mxu0
    %v5393 = vadd.f32 0.0, %v5392
    %v5394 = vpop.f32.mrb[0].mxu0
    %v5395 = vadd.f32 0.0, %v5394
    %v5396 = vpop.f32.mrb[0].mxu0
    %v5397 = vpop.f32.mrb[0].mxu0
    %5398 = vdwg.mxu0
    %v5400 = vsel %vm2339, %v5187, 0
    %5402 = vmatprep.subr.bf16.mxu0 %v2754
    %5403 = vmatpush1.bf16.msra.mxu0 %v2753
    %5404 = vmatprep.subr.bf16.mxu0 %v2756
    %5405 = vmatpush1.bf16.msra.mxu0 %v2755
    %5406 = vmatprep.subr.bf16.mxu0 0
    %5407 = vmatpush1.bf16.msra.mxu0 0
    %5408 = vmatprep.subr.bf16.mxu0 0
    %5409 = vmatpush1.bf16.msra.mxu0 0
    %5410 = vmatprep.subr.bf16.mxu0 0
    %5411 = vmatpush1.bf16.msra.mxu0 0
    %5412 = vmatprep.subr.bf16.mxu0 0
    %5413 = vmatpush1.bf16.msra.mxu0 0
    %5414 = vmatprep.subr.bf16.mxu0 0
    %5415 = vmatpush1.bf16.msra.mxu0 0
    %5416 = vmatprep.subr.bf16.mxu0 0
    %5417 = vmatpush1.bf16.msra.mxu0 0
    %5418 = vmatprep.subr.bf16.mxu0 0
    %5419 = vmatpush1.bf16.msra.mxu0 0
    %5420 = vmatprep.subr.bf16.mxu0 0
    %5421 = vmatpush1.bf16.msra.mxu0 0
    %5422 = vmatprep.subr.bf16.mxu0 0
    %5423 = vmatpush1.bf16.msra.mxu0 0
    %5424 = vmatprep.subr.bf16.mxu0 0
    %5425 = vmatpush1.bf16.msra.mxu0 0
    %5426 = vmatprep.subr.bf16.mxu0 0
    %5427 = vmatpush1.bf16.msra.mxu0 0
    %5428 = vmatprep.subr.bf16.mxu0 0
    %5429 = vmatpush1.bf16.msra.mxu0 0
    %5430 = vmatprep.subr.bf16.mxu0 0
    %5431 = vmatpush1.bf16.msra.mxu0 0
    %5432 = vmatprep.subr.bf16.mxu0 0
    %5433 = vmatpush1.bf16.msra.mxu0 0
    %5434 = vmatprep.mubr.bf16.mxu0 0
    %5435 = vmatmul.mubr.bf16.gmra.mrb[0].mxu0 %v5400
    %v5436 = vpop.f32.mrb[0].mxu0
    %v5437 = vadd.f32 %v5393, %v5436
    %v5438 = vpop.f32.mrb[0].mxu0
    %v5439 = vadd.f32 %v5395, %v5438
    %v5440 = vpop.f32.mrb[0].mxu0
    %v5441 = vpop.f32.mrb[0].mxu0
    %5442 = vdwg.mxu0
    %5443 = vrot.lane.b32.xlu0 %v5025, 64
    %v5444 = vpop.permute.xlu0 %5443
    %5445 = vrot.lane.b32.xlu0 %v4978, 64
    %v5446 = vpop.permute.xlu0 %5445
    %v5447 = vsel %vm2339, %v5444, 0
    %v5449 = vsel %vm2339, %v5446, 0
    %5451 = vmatprep.subr.mxu0 0.0
    %5452 = vmatpush1.xpose.msra.mxu0 %v5449
    %5453 = vmatprep.subr.mxu0 0.0
    %5454 = vmatpush1.xpose.msra.mxu0 0.0
    %5455 = vmatprep.subr.mxu0 0.0
    %5456 = vmatpush1.xpose.msra.mxu0 0.0
    %5457 = vmatprep.subr.mxu0 0.0
    %5458 = vmatpush1.xpose.msra.mxu0 0.0
    %5459 = vmatprep.subr.mxu0 0.0
    %5460 = vmatpush1.xpose.msra.mxu0 0.0
    %5461 = vmatprep.subr.mxu0 0.0
    %5462 = vmatpush1.xpose.msra.mxu0 0.0
    %5463 = vmatprep.subr.mxu0 0.0
    %5464 = vmatpush1.xpose.msra.mxu0 0.0
    %5465 = vmatprep.subr.mxu0 0.0
    %5466 = vmatpush1.xpose.msra.mxu0 0.0
    %5467 = vmatprep.subr.mxu0 0.0
    %5468 = vmatpush1.xpose.msra.mxu0 0.0
    %5469 = vmatprep.subr.mxu0 0.0
    %5470 = vmatpush1.xpose.msra.mxu0 0.0
    %5471 = vmatprep.subr.mxu0 0.0
    %5472 = vmatpush1.xpose.msra.mxu0 0.0
    %5473 = vmatprep.subr.mxu0 0.0
    %5474 = vmatpush1.xpose.msra.mxu0 0.0
    %5475 = vmatprep.subr.mxu0 0.0
    %5476 = vmatpush1.xpose.msra.mxu0 0.0
    %5477 = vmatprep.subr.mxu0 0.0
    %5478 = vmatpush1.xpose.msra.mxu0 0.0
    %5479 = vmatprep.subr.mxu0 0.0
    %5480 = vmatpush1.xpose.msra.mxu0 0.0
    %5481 = vmatprep.subr.mxu0 0.0
    %5482 = vmatpush1.xpose.msra.mxu0 0.0
    %5483 = vmatprep.subr.mxu0 0.0
    %5484 = vmatpush1.xpose.msra.mxu0 0.0
    %5485 = vmatprep.subr.mxu0 0.0
    %5486 = vmatpush1.xpose.msra.mxu0 0.0
    %5487 = vmatprep.subr.mxu0 0.0
    %5488 = vmatpush1.xpose.msra.mxu0 0.0
    %5489 = vmatprep.subr.mxu0 0.0
    %5490 = vmatpush1.xpose.msra.mxu0 0.0
    %5491 = vmatprep.subr.mxu0 0.0
    %5492 = vmatpush1.xpose.msra.mxu0 0.0
    %5493 = vmatprep.subr.mxu0 0.0
    %5494 = vmatpush1.xpose.msra.mxu0 0.0
    %5495 = vmatprep.subr.mxu0 0.0
    %5496 = vmatpush1.xpose.msra.mxu0 0.0
    %5497 = vmatprep.subr.mxu0 0.0
    %5498 = vmatpush1.xpose.msra.mxu0 0.0
    %5499 = vmatprep.subr.mxu0 0.0
    %5500 = vmatpush1.xpose.msra.mxu0 0.0
    %5501 = vmatprep.subr.mxu0 0.0
    %5502 = vmatpush1.xpose.msra.mxu0 0.0
    %5503 = vmatprep.subr.mxu0 0.0
    %5504 = vmatpush1.xpose.msra.mxu0 0.0
    %5505 = vmatprep.subr.mxu0 0.0
    %5506 = vmatpush1.xpose.msra.mxu0 0.0
    %5507 = vmatprep.subr.mxu0 0.0
    %5508 = vmatpush1.xpose.msra.mxu0 0.0
    %5509 = vmatprep.subr.mxu0 0.0
    %5510 = vmatpush1.xpose.msra.mxu0 0.0
    %5511 = vmatprep.subr.mxu0 0.0
    %5512 = vmatpush1.xpose.msra.mxu0 0.0
    %5513 = vmatprep.subr.mxu0 0.0
    %5514 = vmatpush1.xpose.msra.mxu0 0.0
    %5515 = vmatprep.mubr.f32.mxu0 0.0
    %5516 = vmatmul.mubr.f32.gmra.mrb[0].mxu0 %v5447
    %v5517 = vpop.f32.mrb[0].mxu0
    %v5518 = vadd.f32 0.0, %v5517
    %v5519 = vpop.f32.mrb[0].mxu0
    %5520 = vdwg.mxu0
    %v5521 = vsel %vm2416, %v5518, -inf
    %5522 = vmax.xlane.f32.xlu0 %v5521
    %v5523 = vpop.xlane.xlu0 %5522
    %v5524 = vsub.f32 %v5518, %v5523
    %v5525 = vmul.f32 %v5524, 1.442695
    %v5526 = vpow.pop %v5525
    %v5527 = vsel %vm2416, %v5526, 0.0
    %5528 = vadd.xlane.f32.xlu0 %v5527
    %v5529 = vpop.xlane.xlu0 %5528
    %v5530 = vrcp.pop %v5529
    %v5531 = vmul.f32 %v5526, %v5530
    %5532 = vrot.lane.b32.xlu0 %v5019, 64
    %v5533 = vpop.permute.xlu0 %5532
    %v5536 = vsel %vm2416, %v5531, 0
    %5538 = vmatprep.subr.mxu0 0.0
    %5539 = vmatpush1.msra.mxu0 %v5533
    %5540 = vmatprep.subr.mxu0 0.0
    %5541 = vmatpush1.msra.mxu0 0.0
    %5542 = vmatprep.subr.mxu0 0.0
    %5543 = vmatpush1.msra.mxu0 0.0
    %5544 = vmatprep.subr.mxu0 0.0
    %5545 = vmatpush1.msra.mxu0 0.0
    %5546 = vmatprep.subr.mxu0 0.0
    %5547 = vmatpush1.msra.mxu0 0.0
    %5548 = vmatprep.subr.mxu0 0.0
    %5549 = vmatpush1.msra.mxu0 0.0
    %5550 = vmatprep.subr.mxu0 0.0
    %5551 = vmatpush1.msra.mxu0 0.0
    %5552 = vmatprep.subr.mxu0 0.0
    %5553 = vmatpush1.msra.mxu0 0.0
    %5554 = vmatprep.subr.mxu0 0.0
    %5555 = vmatpush1.msra.mxu0 0.0
    %5556 = vmatprep.subr.mxu0 0.0
    %5557 = vmatpush1.msra.mxu0 0.0
    %5558 = vmatprep.subr.mxu0 0.0
    %5559 = vmatpush1.msra.mxu0 0.0
    %5560 = vmatprep.subr.mxu0 0.0
    %5561 = vmatpush1.msra.mxu0 0.0
    %5562 = vmatprep.subr.mxu0 0.0
    %5563 = vmatpush1.msra.mxu0 0.0
    %5564 = vmatprep.subr.mxu0 0.0
    %5565 = vmatpush1.msra.mxu0 0.0
    %5566 = vmatprep.subr.mxu0 0.0
    %5567 = vmatpush1.msra.mxu0 0.0
    %5568 = vmatprep.subr.mxu0 0.0
    %5569 = vmatpush1.msra.mxu0 0.0
    %5570 = vmatprep.subr.mxu0 0.0
    %5571 = vmatpush1.msra.mxu0 0.0
    %5572 = vmatprep.subr.mxu0 0.0
    %5573 = vmatpush1.msra.mxu0 0.0
    %5574 = vmatprep.subr.mxu0 0.0
    %5575 = vmatpush1.msra.mxu0 0.0
    %5576 = vmatprep.subr.mxu0 0.0
    %5577 = vmatpush1.msra.mxu0 0.0
    %5578 = vmatprep.subr.mxu0 0.0
    %5579 = vmatpush1.msra.mxu0 0.0
    %5580 = vmatprep.subr.mxu0 0.0
    %5581 = vmatpush1.msra.mxu0 0.0
    %5582 = vmatprep.subr.mxu0 0.0
    %5583 = vmatpush1.msra.mxu0 0.0
    %5584 = vmatprep.subr.mxu0 0.0
    %5585 = vmatpush1.msra.mxu0 0.0
    %5586 = vmatprep.subr.mxu0 0.0
    %5587 = vmatpush1.msra.mxu0 0.0
    %5588 = vmatprep.subr.mxu0 0.0
    %5589 = vmatpush1.msra.mxu0 0.0
    %5590 = vmatprep.subr.mxu0 0.0
    %5591 = vmatpush1.msra.mxu0 0.0
    %5592 = vmatprep.subr.mxu0 0.0
    %5593 = vmatpush1.msra.mxu0 0.0
    %5594 = vmatprep.subr.mxu0 0.0
    %5595 = vmatpush1.msra.mxu0 0.0
    %5596 = vmatprep.subr.mxu0 0.0
    %5597 = vmatpush1.msra.mxu0 0.0
    %5598 = vmatprep.subr.mxu0 0.0
    %5599 = vmatpush1.msra.mxu0 0.0
    %5600 = vmatprep.subr.mxu0 0.0
    %5601 = vmatpush1.msra.mxu0 0.0
    %5602 = vmatprep.mubr.f32.mxu0 0.0
    %5603 = vmatmul.mubr.f32.gmra.mrb[0].mxu0 %v5536
    %v5604 = vpop.f32.mrb[0].mxu0
    %v5605 = vadd.f32 0.0, %v5604
    %v5606 = vpop.f32.mrb[0].mxu0
    %5607 = vdwg.mxu0
    %v5608 = vpack.c.bf16 %v5605, %v5605
    %v5610 = vsel %vm2339, %v5608, 0
    %5612 = vmatprep.subr.bf16.mxu0 %v2988
    %5613 = vmatpush1.bf16.msra.mxu0 %v2987
    %5614 = vmatprep.subr.bf16.mxu0 %v2990
    %5615 = vmatpush1.bf16.msra.mxu0 %v2989
    %5616 = vmatprep.subr.bf16.mxu0 0
    %5617 = vmatpush1.bf16.msra.mxu0 0
    %5618 = vmatprep.subr.bf16.mxu0 0
    %5619 = vmatpush1.bf16.msra.mxu0 0
    %5620 = vmatprep.subr.bf16.mxu0 0
    %5621 = vmatpush1.bf16.msra.mxu0 0
    %5622 = vmatprep.subr.bf16.mxu0 0
    %5623 = vmatpush1.bf16.msra.mxu0 0
    %5624 = vmatprep.subr.bf16.mxu0 0
    %5625 = vmatpush1.bf16.msra.mxu0 0
    %5626 = vmatprep.subr.bf16.mxu0 0
    %5627 = vmatpush1.bf16.msra.mxu0 0
    %5628 = vmatprep.subr.bf16.mxu0 0
    %5629 = vmatpush1.bf16.msra.mxu0 0
    %5630 = vmatprep.subr.bf16.mxu0 0
    %5631 = vmatpush1.bf16.msra.mxu0 0
    %5632 = vmatprep.subr.bf16.mxu0 0
    %5633 = vmatpush1.bf16.msra.mxu0 0
    %5634 = vmatprep.subr.bf16.mxu0 0
    %5635 = vmatpush1.bf16.msra.mxu0 0
    %5636 = vmatprep.subr.bf16.mxu0 0
    %5637 = vmatpush1.bf16.msra.mxu0 0
    %5638 = vmatprep.subr.bf16.mxu0 0
    %5639 = vmatpush1.bf16.msra.mxu0 0
    %5640 = vmatprep.subr.bf16.mxu0 0
    %5641 = vmatpush1.bf16.msra.mxu0 0
    %5642 = vmatprep.subr.bf16.mxu0 0
    %5643 = vmatpush1.bf16.msra.mxu0 0
    %5644 = vmatprep.mubr.bf16.mxu0 0
    %5645 = vmatmul.mubr.bf16.gmra.mrb[0].mxu0 %v5610
    %v5646 = vpop.f32.mrb[0].mxu0
    %v5647 = vadd.f32 0.0, %v5646
    %v5648 = vpop.f32.mrb[0].mxu0
    %v5649 = vadd.f32 0.0, %v5648
    %v5650 = vpop.f32.mrb[0].mxu0
    %v5651 = vpop.f32.mrb[0].mxu0
    %5652 = vdwg.mxu0
    %v5653 = vadd.f32 %v5437, %v5647
    %v5654 = vadd.f32 %v5439, %v5649
    %5655 = vrot.lane.b32.xlu0 %v5025, 32
    %v5656 = vpop.permute.xlu0 %5655
    %5657 = vrot.lane.b32.xlu0 %v4978, 32
    %v5658 = vpop.permute.xlu0 %5657
    %v5659 = vsel %vm2339, %v5656, 0
    %v5661 = vsel %vm2339, %v5658, 0
    %5663 = vmatprep.subr.mxu0 0.0
    %5664 = vmatpush1.xpose.msra.mxu0 %v5661
    %5665 = vmatprep.subr.mxu0 0.0
    %5666 = vmatpush1.xpose.msra.mxu0 0.0
    %5667 = vmatprep.subr.mxu0 0.0
    %5668 = vmatpush1.xpose.msra.mxu0 0.0
    %5669 = vmatprep.subr.mxu0 0.0
    %5670 = vmatpush1.xpose.msra.mxu0 0.0
    %5671 = vmatprep.subr.mxu0 0.0
    %5672 = vmatpush1.xpose.msra.mxu0 0.0
    %5673 = vmatprep.subr.mxu0 0.0
    %5674 = vmatpush1.xpose.msra.mxu0 0.0
    %5675 = vmatprep.subr.mxu0 0.0
    %5676 = vmatpush1.xpose.msra.mxu0 0.0
    %5677 = vmatprep.subr.mxu0 0.0
    %5678 = vmatpush1.xpose.msra.mxu0 0.0
    %5679 = vmatprep.subr.mxu0 0.0
    %5680 = vmatpush1.xpose.msra.mxu0 0.0
    %5681 = vmatprep.subr.mxu0 0.0
    %5682 = vmatpush1.xpose.msra.mxu0 0.0
    %5683 = vmatprep.subr.mxu0 0.0
    %5684 = vmatpush1.xpose.msra.mxu0 0.0
    %5685 = vmatprep.subr.mxu0 0.0
    %5686 = vmatpush1.xpose.msra.mxu0 0.0
    %5687 = vmatprep.subr.mxu0 0.0
    %5688 = vmatpush1.xpose.msra.mxu0 0.0
    %5689 = vmatprep.subr.mxu0 0.0
    %5690 = vmatpush1.xpose.msra.mxu0 0.0
    %5691 = vmatprep.subr.mxu0 0.0
    %5692 = vmatpush1.xpose.msra.mxu0 0.0
    %5693 = vmatprep.subr.mxu0 0.0
    %5694 = vmatpush1.xpose.msra.mxu0 0.0
    %5695 = vmatprep.subr.mxu0 0.0
    %5696 = vmatpush1.xpose.msra.mxu0 0.0
    %5697 = vmatprep.subr.mxu0 0.0
    %5698 = vmatpush1.xpose.msra.mxu0 0.0
    %5699 = vmatprep.subr.mxu0 0.0
    %5700 = vmatpush1.xpose.msra.mxu0 0.0
    %5701 = vmatprep.subr.mxu0 0.0
    %5702 = vmatpush1.xpose.msra.mxu0 0.0
    %5703 = vmatprep.subr.mxu0 0.0
    %5704 = vmatpush1.xpose.msra.mxu0 0.0
    %5705 = vmatprep.subr.mxu0 0.0
    %5706 = vmatpush1.xpose.msra.mxu0 0.0
    %5707 = vmatprep.subr.mxu0 0.0
    %5708 = vmatpush1.xpose.msra.mxu0 0.0
    %5709 = vmatprep.subr.mxu0 0.0
    %5710 = vmatpush1.xpose.msra.mxu0 0.0
    %5711 = vmatprep.subr.mxu0 0.0
    %5712 = vmatpush1.xpose.msra.mxu0 0.0
    %5713 = vmatprep.subr.mxu0 0.0
    %5714 = vmatpush1.xpose.msra.mxu0 0.0
    %5715 = vmatprep.subr.mxu0 0.0
    %5716 = vmatpush1.xpose.msra.mxu0 0.0
    %5717 = vmatprep.subr.mxu0 0.0
    %5718 = vmatpush1.xpose.msra.mxu0 0.0
    %5719 = vmatprep.subr.mxu0 0.0
    %5720 = vmatpush1.xpose.msra.mxu0 0.0
    %5721 = vmatprep.subr.mxu0 0.0
    %5722 = vmatpush1.xpose.msra.mxu0 0.0
    %5723 = vmatprep.subr.mxu0 0.0
    %5724 = vmatpush1.xpose.msra.mxu0 0.0
    %5725 = vmatprep.subr.mxu0 0.0
    %5726 = vmatpush1.xpose.msra.mxu0 0.0
    %5727 = vmatprep.mubr.f32.mxu0 0.0
    %5728 = vmatmul.mubr.f32.gmra.mrb[0].mxu0 %v5659
    %v5729 = vpop.f32.mrb[0].mxu0
    %v5730 = vadd.f32 0.0, %v5729
    %v5731 = vpop.f32.mrb[0].mxu0
    %5732 = vdwg.mxu0
    %v5733 = vsel %vm2416, %v5730, -inf
    %5734 = vmax.xlane.f32.xlu0 %v5733
    %v5735 = vpop.xlane.xlu0 %5734
    %v5736 = vsub.f32 %v5730, %v5735
    %v5737 = vmul.f32 %v5736, 1.442695
    %v5738 = vpow.pop %v5737
    %v5739 = vsel %vm2416, %v5738, 0.0
    %5740 = vadd.xlane.f32.xlu0 %v5739
    %v5741 = vpop.xlane.xlu0 %5740
    %v5742 = vrcp.pop %v5741
    %v5743 = vmul.f32 %v5738, %v5742
    %5744 = vrot.lane.b32.xlu0 %v5019, 32
    %v5745 = vpop.permute.xlu0 %5744
    %v5748 = vsel %vm2416, %v5743, 0
    %5750 = vmatprep.subr.mxu0 0.0
    %5751 = vmatpush1.msra.mxu0 %v5745
    %5752 = vmatprep.subr.mxu0 0.0
    %5753 = vmatpush1.msra.mxu0 0.0
    %5754 = vmatprep.subr.mxu0 0.0
    %5755 = vmatpush1.msra.mxu0 0.0
    %5756 = vmatprep.subr.mxu0 0.0
    %5757 = vmatpush1.msra.mxu0 0.0
    %5758 = vmatprep.subr.mxu0 0.0
    %5759 = vmatpush1.msra.mxu0 0.0
    %5760 = vmatprep.subr.mxu0 0.0
    %5761 = vmatpush1.msra.mxu0 0.0
    %5762 = vmatprep.subr.mxu0 0.0
    %5763 = vmatpush1.msra.mxu0 0.0
    %5764 = vmatprep.subr.mxu0 0.0
    %5765 = vmatpush1.msra.mxu0 0.0
    %5766 = vmatprep.subr.mxu0 0.0
    %5767 = vmatpush1.msra.mxu0 0.0
    %5768 = vmatprep.subr.mxu0 0.0
    %5769 = vmatpush1.msra.mxu0 0.0
    %5770 = vmatprep.subr.mxu0 0.0
    %5771 = vmatpush1.msra.mxu0 0.0
    %5772 = vmatprep.subr.mxu0 0.0
    %5773 = vmatpush1.msra.mxu0 0.0
    %5774 = vmatprep.subr.mxu0 0.0
    %5775 = vmatpush1.msra.mxu0 0.0
    %5776 = vmatprep.subr.mxu0 0.0
    %5777 = vmatpush1.msra.mxu0 0.0
    %5778 = vmatprep.subr.mxu0 0.0
    %5779 = vmatpush1.msra.mxu0 0.0
    %5780 = vmatprep.subr.mxu0 0.0
    %5781 = vmatpush1.msra.mxu0 0.0
    %5782 = vmatprep.subr.mxu0 0.0
    %5783 = vmatpush1.msra.mxu0 0.0
    %5784 = vmatprep.subr.mxu0 0.0
    %5785 = vmatpush1.msra.mxu0 0.0
    %5786 = vmatprep.subr.mxu0 0.0
    %5787 = vmatpush1.msra.mxu0 0.0
    %5788 = vmatprep.subr.mxu0 0.0
    %5789 = vmatpush1.msra.mxu0 0.0
    %5790 = vmatprep.subr.mxu0 0.0
    %5791 = vmatpush1.msra.mxu0 0.0
    %5792 = vmatprep.subr.mxu0 0.0
    %5793 = vmatpush1.msra.mxu0 0.0
    %5794 = vmatprep.subr.mxu0 0.0
    %5795 = vmatpush1.msra.mxu0 0.0
    %5796 = vmatprep.subr.mxu0 0.0
    %5797 = vmatpush1.msra.mxu0 0.0
    %5798 = vmatprep.subr.mxu0 0.0
    %5799 = vmatpush1.msra.mxu0 0.0
    %5800 = vmatprep.subr.mxu0 0.0
    %5801 = vmatpush1.msra.mxu0 0.0
    %5802 = vmatprep.subr.mxu0 0.0
    %5803 = vmatpush1.msra.mxu0 0.0
    %5804 = vmatprep.subr.mxu0 0.0
    %5805 = vmatpush1.msra.mxu0 0.0
    %5806 = vmatprep.subr.mxu0 0.0
    %5807 = vmatpush1.msra.mxu0 0.0
    %5808 = vmatprep.subr.mxu0 0.0
    %5809 = vmatpush1.msra.mxu0 0.0
    %5810 = vmatprep.subr.mxu0 0.0
    %5811 = vmatpush1.msra.mxu0 0.0
    %5812 = vmatprep.subr.mxu0 0.0
    %5813 = vmatpush1.msra.mxu0 0.0
    %5814 = vmatprep.mubr.f32.mxu0 0.0
    %5815 = vmatmul.mubr.f32.gmra.mrb[0].mxu0 %v5748
    %v5816 = vpop.f32.mrb[0].mxu0
    %v5817 = vadd.f32 0.0, %v5816
    %v5818 = vpop.f32.mrb[0].mxu0
    %5819 = vdwg.mxu0
    %v5820 = vpack.c.bf16 %v5817, %v5817
    %v5822 = vsel %vm2339, %v5820, 0
    %5824 = vmatprep.subr.bf16.mxu0 %v3224
    %5825 = vmatpush1.bf16.msra.mxu0 %v3223
    %5826 = vmatprep.subr.bf16.mxu0 %v3226
    %5827 = vmatpush1.bf16.msra.mxu0 %v3225
    %5828 = vmatprep.subr.bf16.mxu0 0
    %5829 = vmatpush1.bf16.msra.mxu0 0
    %5830 = vmatprep.subr.bf16.mxu0 0
    %5831 = vmatpush1.bf16.msra.mxu0 0
    %5832 = vmatprep.subr.bf16.mxu0 0
    %5833 = vmatpush1.bf16.msra.mxu0 0
    %5834 = vmatprep.subr.bf16.mxu0 0
    %5835 = vmatpush1.bf16.msra.mxu0 0
    %5836 = vmatprep.subr.bf16.mxu0 0
    %5837 = vmatpush1.bf16.msra.mxu0 0
    %5838 = vmatprep.subr.bf16.mxu0 0
    %5839 = vmatpush1.bf16.msra.mxu0 0
    %5840 = vmatprep.subr.bf16.mxu0 0
    %5841 = vmatpush1.bf16.msra.mxu0 0
    %5842 = vmatprep.subr.bf16.mxu0 0
    %5843 = vmatpush1.bf16.msra.mxu0 0
    %5844 = vmatprep.subr.bf16.mxu0 0
    %5845 = vmatpush1.bf16.msra.mxu0 0
    %5846 = vmatprep.subr.bf16.mxu0 0
    %5847 = vmatpush1.bf16.msra.mxu0 0
    %5848 = vmatprep.subr.bf16.mxu0 0
    %5849 = vmatpush1.bf16.msra.mxu0 0
    %5850 = vmatprep.subr.bf16.mxu0 0
    %5851 = vmatpush1.bf16.msra.mxu0 0
    %5852 = vmatprep.subr.bf16.mxu0 0
    %5853 = vmatpush1.bf16.msra.mxu0 0
    %5854 = vmatprep.subr.bf16.mxu0 0
    %5855 = vmatpush1.bf16.msra.mxu0 0
    %5856 = vmatprep.mubr.bf16.mxu0 0
    %5857 = vmatmul.mubr.bf16.gmra.mrb[0].mxu0 %v5822
    %v5858 = vpop.f32.mrb[0].mxu0
    %v5859 = vadd.f32 0.0, %v5858
    %v5860 = vpop.f32.mrb[0].mxu0
    %v5861 = vadd.f32 0.0, %v5860
    %v5862 = vpop.f32.mrb[0].mxu0
    %v5863 = vpop.f32.mrb[0].mxu0
    %5864 = vdwg.mxu0
    %v5865 = vadd.f32 %v5653, %v5859
    %v5866 = vadd.f32 %v5654, %v5861
    %v5868 = vsel %vm2339, %v5026, 0
    %v5871 = vsel %vm2339, %v4980, 0
    %5873 = vmatprep.subr.mxu0 0.0
    %5874 = vmatpush1.xpose.msra.mxu0 %v5871
    %5875 = vmatprep.subr.mxu0 0.0
    %5876 = vmatpush1.xpose.msra.mxu0 0.0
    %5877 = vmatprep.subr.mxu0 0.0
    %5878 = vmatpush1.xpose.msra.mxu0 0.0
    %5879 = vmatprep.subr.mxu0 0.0
    %5880 = vmatpush1.xpose.msra.mxu0 0.0
    %5881 = vmatprep.subr.mxu0 0.0
    %5882 = vmatpush1.xpose.msra.mxu0 0.0
    %5883 = vmatprep.subr.mxu0 0.0
    %5884 = vmatpush1.xpose.msra.mxu0 0.0
    %5885 = vmatprep.subr.mxu0 0.0
    %5886 = vmatpush1.xpose.msra.mxu0 0.0
    %5887 = vmatprep.subr.mxu0 0.0
    %5888 = vmatpush1.xpose.msra.mxu0 0.0
    %5889 = vmatprep.subr.mxu0 0.0
    %5890 = vmatpush1.xpose.msra.mxu0 0.0
    %5891 = vmatprep.subr.mxu0 0.0
    %5892 = vmatpush1.xpose.msra.mxu0 0.0
    %5893 = vmatprep.subr.mxu0 0.0
    %5894 = vmatpush1.xpose.msra.mxu0 0.0
    %5895 = vmatprep.subr.mxu0 0.0
    %5896 = vmatpush1.xpose.msra.mxu0 0.0
    %5897 = vmatprep.subr.mxu0 0.0
    %5898 = vmatpush1.xpose.msra.mxu0 0.0
    %5899 = vmatprep.subr.mxu0 0.0
    %5900 = vmatpush1.xpose.msra.mxu0 0.0
    %5901 = vmatprep.subr.mxu0 0.0
    %5902 = vmatpush1.xpose.msra.mxu0 0.0
    %5903 = vmatprep.subr.mxu0 0.0
    %5904 = vmatpush1.xpose.msra.mxu0 0.0
    %5905 = vmatprep.subr.mxu0 0.0
    %5906 = vmatpush1.xpose.msra.mxu0 0.0
    %5907 = vmatprep.subr.mxu0 0.0
    %5908 = vmatpush1.xpose.msra.mxu0 0.0
    %5909 = vmatprep.subr.mxu0 0.0
    %5910 = vmatpush1.xpose.msra.mxu0 0.0
    %5911 = vmatprep.subr.mxu0 0.0
    %5912 = vmatpush1.xpose.msra.mxu0 0.0
    %5913 = vmatprep.subr.mxu0 0.0
    %5914 = vmatpush1.xpose.msra.mxu0 0.0
    %5915 = vmatprep.subr.mxu0 0.0
    %5916 = vmatpush1.xpose.msra.mxu0 0.0
    %5917 = vmatprep.subr.mxu0 0.0
    %5918 = vmatpush1.xpose.msra.mxu0 0.0
    %5919 = vmatprep.subr.mxu0 0.0
    %5920 = vmatpush1.xpose.msra.mxu0 0.0
    %5921 = vmatprep.subr.mxu0 0.0
    %5922 = vmatpush1.xpose.msra.mxu0 0.0
    %5923 = vmatprep.subr.mxu0 0.0
    %5924 = vmatpush1.xpose.msra.mxu0 0.0
    %5925 = vmatprep.subr.mxu0 0.0
    %5926 = vmatpush1.xpose.msra.mxu0 0.0
    %5927 = vmatprep.subr.mxu0 0.0
    %5928 = vmatpush1.xpose.msra.mxu0 0.0
    %5929 = vmatprep.subr.mxu0 0.0
    %5930 = vmatpush1.xpose.msra.mxu0 0.0
    %5931 = vmatprep.subr.mxu0 0.0
    %5932 = vmatpush1.xpose.msra.mxu0 0.0
    %5933 = vmatprep.subr.mxu0 0.0
    %5934 = vmatpush1.xpose.msra.mxu0 0.0
    %5935 = vmatprep.subr.mxu0 0.0
    %5936 = vmatpush1.xpose.msra.mxu0 0.0
    %5937 = vmatprep.mubr.f32.mxu0 0.0
    %5938 = vmatmul.mubr.f32.gmra.mrb[0].mxu0 %v5868
    %v5939 = vpop.f32.mrb[0].mxu0
    %v5940 = vadd.f32 0.0, %v5939
    %v5941 = vpop.f32.mrb[0].mxu0
    %5942 = vdwg.mxu0
    %v5943 = vsel %vm2416, %v5940, -inf
    %5944 = vmax.xlane.f32.xlu0 %v5943
    %v5945 = vpop.xlane.xlu0 %5944
    %v5946 = vsub.f32 %v5940, %v5945
    %v5947 = vmul.f32 %v5946, 1.442695
    %v5948 = vpow.pop %v5947
    %v5949 = vsel %vm2416, %v5948, 0.0
    %5950 = vadd.xlane.f32.xlu0 %v5949
    %v5951 = vpop.xlane.xlu0 %5950
    %v5952 = vrcp.pop %v5951
    %v5953 = vmul.f32 %v5948, %v5952
    %v5955 = vsel %vm2416, %v5953, 0
    %5957 = vmatprep.subr.mxu0 0.0
    %5958 = vmatpush1.msra.mxu0 %v5021
    %5959 = vmatprep.subr.mxu0 0.0
    %5960 = vmatpush1.msra.mxu0 0.0
    %5961 = vmatprep.subr.mxu0 0.0
    %5962 = vmatpush1.msra.mxu0 0.0
    %5963 = vmatprep.subr.mxu0 0.0
    %5964 = vmatpush1.msra.mxu0 0.0
    %5965 = vmatprep.subr.mxu0 0.0
    %5966 = vmatpush1.msra.mxu0 0.0
    %5967 = vmatprep.subr.mxu0 0.0
    %5968 = vmatpush1.msra.mxu0 0.0
    %5969 = vmatprep.subr.mxu0 0.0
    %5970 = vmatpush1.msra.mxu0 0.0
    %5971 = vmatprep.subr.mxu0 0.0
    %5972 = vmatpush1.msra.mxu0 0.0
    %5973 = vmatprep.subr.mxu0 0.0
    %5974 = vmatpush1.msra.mxu0 0.0
    %5975 = vmatprep.subr.mxu0 0.0
    %5976 = vmatpush1.msra.mxu0 0.0
    %5977 = vmatprep.subr.mxu0 0.0
    %5978 = vmatpush1.msra.mxu0 0.0
    %5979 = vmatprep.subr.mxu0 0.0
    %5980 = vmatpush1.msra.mxu0 0.0
    %5981 = vmatprep.subr.mxu0 0.0
    %5982 = vmatpush1.msra.mxu0 0.0
    %5983 = vmatprep.subr.mxu0 0.0
    %5984 = vmatpush1.msra.mxu0 0.0
    %5985 = vmatprep.subr.mxu0 0.0
    %5986 = vmatpush1.msra.mxu0 0.0
    %5987 = vmatprep.subr.mxu0 0.0
    %5988 = vmatpush1.msra.mxu0 0.0
    %5989 = vmatprep.subr.mxu0 0.0
    %5990 = vmatpush1.msra.mxu0 0.0
    %5991 = vmatprep.subr.mxu0 0.0
    %5992 = vmatpush1.msra.mxu0 0.0
    %5993 = vmatprep.subr.mxu0 0.0
    %5994 = vmatpush1.msra.mxu0 0.0
    %5995 = vmatprep.subr.mxu0 0.0
    %5996 = vmatpush1.msra.mxu0 0.0
    %5997 = vmatprep.subr.mxu0 0.0
    %5998 = vmatpush1.msra.mxu0 0.0
    %5999 = vmatprep.subr.mxu0 0.0
    %6000 = vmatpush1.msra.mxu0 0.0
    %6001 = vmatprep.subr.mxu0 0.0
    %6002 = vmatpush1.msra.mxu0 0.0
    %6003 = vmatprep.subr.mxu0 0.0
    %6004 = vmatpush1.msra.mxu0 0.0
    %6005 = vmatprep.subr.mxu0 0.0
    %6006 = vmatpush1.msra.mxu0 0.0
    %6007 = vmatprep.subr.mxu0 0.0
    %6008 = vmatpush1.msra.mxu0 0.0
    %6009 = vmatprep.subr.mxu0 0.0
    %6010 = vmatpush1.msra.mxu0 0.0
    %6011 = vmatprep.subr.mxu0 0.0
    %6012 = vmatpush1.msra.mxu0 0.0
    %6013 = vmatprep.subr.mxu0 0.0
    %6014 = vmatpush1.msra.mxu0 0.0
    %6015 = vmatprep.subr.mxu0 0.0
    %6016 = vmatpush1.msra.mxu0 0.0
    %6017 = vmatprep.subr.mxu0 0.0
    %6018 = vmatpush1.msra.mxu0 0.0
    %6019 = vmatprep.subr.mxu0 0.0
    %6020 = vmatpush1.msra.mxu0 0.0
    %6021 = vmatprep.mubr.f32.mxu0 0.0
    %6022 = vmatmul.mubr.f32.gmra.mrb[0].mxu0 %v5955
    %v6023 = vpop.f32.mrb[0].mxu0
    %v6024 = vadd.f32 0.0, %v6023
    %v6025 = vpop.f32.mrb[0].mxu0
    %6026 = vdwg.mxu0
    %v6027 = vpack.c.bf16 %v6024, %v6024
    %v6029 = vsel %vm2339, %v6027, 0
    %6031 = vmatprep.subr.bf16.mxu0 %v3455
    %6032 = vmatpush1.bf16.msra.mxu0 %v3454
    %6033 = vmatprep.subr.bf16.mxu0 %v3457
    %6034 = vmatpush1.bf16.msra.mxu0 %v3456
    %6035 = vmatprep.subr.bf16.mxu0 0
    %6036 = vmatpush1.bf16.msra.mxu0 0
    %6037 = vmatprep.subr.bf16.mxu0 0
    %6038 = vmatpush1.bf16.msra.mxu0 0
    %6039 = vmatprep.subr.bf16.mxu0 0
    %6040 = vmatpush1.bf16.msra.mxu0 0
    %6041 = vmatprep.subr.bf16.mxu0 0
    %6042 = vmatpush1.bf16.msra.mxu0 0
    %6043 = vmatprep.subr.bf16.mxu0 0
    %6044 = vmatpush1.bf16.msra.mxu0 0
    %6045 = vmatprep.subr.bf16.mxu0 0
    %6046 = vmatpush1.bf16.msra.mxu0 0
    %6047 = vmatprep.subr.bf16.mxu0 0
    %6048 = vmatpush1.bf16.msra.mxu0 0
    %6049 = vmatprep.subr.bf16.mxu0 0
    %6050 = vmatpush1.bf16.msra.mxu0 0
    %6051 = vmatprep.subr.bf16.mxu0 0
    %6052 = vmatpush1.bf16.msra.mxu0 0
    %6053 = vmatprep.subr.bf16.mxu0 0
    %6054 = vmatpush1.bf16.msra.mxu0 0
    %6055 = vmatprep.subr.bf16.mxu0 0
    %6056 = vmatpush1.bf16.msra.mxu0 0
    %6057 = vmatprep.subr.bf16.mxu0 0
    %6058 = vmatpush1.bf16.msra.mxu0 0
    %6059 = vmatprep.subr.bf16.mxu0 0
    %6060 = vmatpush1.bf16.msra.mxu0 0
    %6061 = vmatprep.subr.bf16.mxu0 0
    %6062 = vmatpush1.bf16.msra.mxu0 0
    %6063 = vmatprep.mubr.bf16.mxu0 0
    %6064 = vmatmul.mubr.bf16.gmra.mrb[0].mxu0 %v6029
    %v6065 = vpop.f32.mrb[0].mxu0
    %v6066 = vadd.f32 0.0, %v6065
    %v6067 = vpop.f32.mrb[0].mxu0
    %v6068 = vadd.f32 0.0, %v6067
    %v6069 = vpop.f32.mrb[0].mxu0
    %v6070 = vpop.f32.mrb[0].mxu0
    %6071 = vdwg.mxu0
    %v6072 = vadd.f32 %v5865, %v6066
    %v6073 = vadd.f32 %v5866, %v6068
    %6074 = vrot.lane.b32.xlu0 %v5026, 96
    %v6075 = vpop.permute.xlu0 %6074
    %6076 = vrot.lane.b32.xlu0 %v4980, 96
    %v6077 = vpop.permute.xlu0 %6076
    %v6078 = vsel %vm2339, %v6075, 0
    %v6080 = vsel %vm2339, %v6077, 0
    %6082 = vmatprep.subr.mxu0 0.0
    %6083 = vmatpush1.xpose.msra.mxu0 %v6080
    %6084 = vmatprep.subr.mxu0 0.0
    %6085 = vmatpush1.xpose.msra.mxu0 0.0
    %6086 = vmatprep.subr.mxu0 0.0
    %6087 = vmatpush1.xpose.msra.mxu0 0.0
    %6088 = vmatprep.subr.mxu0 0.0
    %6089 = vmatpush1.xpose.msra.mxu0 0.0
    %6090 = vmatprep.subr.mxu0 0.0
    %6091 = vmatpush1.xpose.msra.mxu0 0.0
    %6092 = vmatprep.subr.mxu0 0.0
    %6093 = vmatpush1.xpose.msra.mxu0 0.0
    %6094 = vmatprep.subr.mxu0 0.0
    %6095 = vmatpush1.xpose.msra.mxu0 0.0
    %6096 = vmatprep.subr.mxu0 0.0
    %6097 = vmatpush1.xpose.msra.mxu0 0.0
    %6098 = vmatprep.subr.mxu0 0.0
    %6099 = vmatpush1.xpose.msra.mxu0 0.0
    %6100 = vmatprep.subr.mxu0 0.0
    %6101 = vmatpush1.xpose.msra.mxu0 0.0
    %6102 = vmatprep.subr.mxu0 0.0
    %6103 = vmatpush1.xpose.msra.mxu0 0.0
    %6104 = vmatprep.subr.mxu0 0.0
    %6105 = vmatpush1.xpose.msra.mxu0 0.0
    %6106 = vmatprep.subr.mxu0 0.0
    %6107 = vmatpush1.xpose.msra.mxu0 0.0
    %6108 = vmatprep.subr.mxu0 0.0
    %6109 = vmatpush1.xpose.msra.mxu0 0.0
    %6110 = vmatprep.subr.mxu0 0.0
    %6111 = vmatpush1.xpose.msra.mxu0 0.0
    %6112 = vmatprep.subr.mxu0 0.0
    %6113 = vmatpush1.xpose.msra.mxu0 0.0
    %6114 = vmatprep.subr.mxu0 0.0
    %6115 = vmatpush1.xpose.msra.mxu0 0.0
    %6116 = vmatprep.subr.mxu0 0.0
    %6117 = vmatpush1.xpose.msra.mxu0 0.0
    %6118 = vmatprep.subr.mxu0 0.0
    %6119 = vmatpush1.xpose.msra.mxu0 0.0
    %6120 = vmatprep.subr.mxu0 0.0
    %6121 = vmatpush1.xpose.msra.mxu0 0.0
    %6122 = vmatprep.subr.mxu0 0.0
    %6123 = vmatpush1.xpose.msra.mxu0 0.0
    %6124 = vmatprep.subr.mxu0 0.0
    %6125 = vmatpush1.xpose.msra.mxu0 0.0
    %6126 = vmatprep.subr.mxu0 0.0
    %6127 = vmatpush1.xpose.msra.mxu0 0.0
    %6128 = vmatprep.subr.mxu0 0.0
    %6129 = vmatpush1.xpose.msra.mxu0 0.0
    %6130 = vmatprep.subr.mxu0 0.0
    %6131 = vmatpush1.xpose.msra.mxu0 0.0
    %6132 = vmatprep.subr.mxu0 0.0
    %6133 = vmatpush1.xpose.msra.mxu0 0.0
    %6134 = vmatprep.subr.mxu0 0.0
    %6135 = vmatpush1.xpose.msra.mxu0 0.0
    %6136 = vmatprep.subr.mxu0 0.0
    %6137 = vmatpush1.xpose.msra.mxu0 0.0
    %6138 = vmatprep.subr.mxu0 0.0
    %6139 = vmatpush1.xpose.msra.mxu0 0.0
    %6140 = vmatprep.subr.mxu0 0.0
    %6141 = vmatpush1.xpose.msra.mxu0 0.0
    %6142 = vmatprep.subr.mxu0 0.0
    %6143 = vmatpush1.xpose.msra.mxu0 0.0
    %6144 = vmatprep.subr.mxu0 0.0
    %6145 = vmatpush1.xpose.msra.mxu0 0.0
    %6146 = vmatprep.mubr.f32.mxu0 0.0
    %6147 = vmatmul.mubr.f32.gmra.mrb[0].mxu0 %v6078
    %v6148 = vpop.f32.mrb[0].mxu0
    %v6149 = vadd.f32 0.0, %v6148
    %v6150 = vpop.f32.mrb[0].mxu0
    %6151 = vdwg.mxu0
    %v6152 = vsel %vm2416, %v6149, -inf
    %6153 = vmax.xlane.f32.xlu0 %v6152
    %v6154 = vpop.xlane.xlu0 %6153
    %v6155 = vsub.f32 %v6149, %v6154
    %v6156 = vmul.f32 %v6155, 1.442695
    %v6157 = vpow.pop %v6156
    %v6158 = vsel %vm2416, %v6157, 0.0
    %6159 = vadd.xlane.f32.xlu0 %v6158
    %v6160 = vpop.xlane.xlu0 %6159
    %v6161 = vrcp.pop %v6160
    %v6162 = vmul.f32 %v6157, %v6161
    %6164 = vrot.lane.b32.xlu0 %v5021, 96
    %v6165 = vpop.permute.xlu0 %6164
    %v6168 = vsel %vm2416, %v6162, 0
    %6170 = vmatprep.subr.mxu0 0.0
    %6171 = vmatpush1.msra.mxu0 %v6165
    %6172 = vmatprep.subr.mxu0 0.0
    %6173 = vmatpush1.msra.mxu0 0.0
    %6174 = vmatprep.subr.mxu0 0.0
    %6175 = vmatpush1.msra.mxu0 0.0
    %6176 = vmatprep.subr.mxu0 0.0
    %6177 = vmatpush1.msra.mxu0 0.0
    %6178 = vmatprep.subr.mxu0 0.0
    %6179 = vmatpush1.msra.mxu0 0.0
    %6180 = vmatprep.subr.mxu0 0.0
    %6181 = vmatpush1.msra.mxu0 0.0
    %6182 = vmatprep.subr.mxu0 0.0
    %6183 = vmatpush1.msra.mxu0 0.0
    %6184 = vmatprep.subr.mxu0 0.0
    %6185 = vmatpush1.msra.mxu0 0.0
    %6186 = vmatprep.subr.mxu0 0.0
    %6187 = vmatpush1.msra.mxu0 0.0
    %6188 = vmatprep.subr.mxu0 0.0
    %6189 = vmatpush1.msra.mxu0 0.0
    %6190 = vmatprep.subr.mxu0 0.0
    %6191 = vmatpush1.msra.mxu0 0.0
    %6192 = vmatprep.subr.mxu0 0.0
    %6193 = vmatpush1.msra.mxu0 0.0
    %6194 = vmatprep.subr.mxu0 0.0
    %6195 = vmatpush1.msra.mxu0 0.0
    %6196 = vmatprep.subr.mxu0 0.0
    %6197 = vmatpush1.msra.mxu0 0.0
    %6198 = vmatprep.subr.mxu0 0.0
    %6199 = vmatpush1.msra.mxu0 0.0
    %6200 = vmatprep.subr.mxu0 0.0
    %6201 = vmatpush1.msra.mxu0 0.0
    %6202 = vmatprep.subr.mxu0 0.0
    %6203 = vmatpush1.msra.mxu0 0.0
    %6204 = vmatprep.subr.mxu0 0.0
    %6205 = vmatpush1.msra.mxu0 0.0
    %6206 = vmatprep.subr.mxu0 0.0
    %6207 = vmatpush1.msra.mxu0 0.0
    %6208 = vmatprep.subr.mxu0 0.0
    %6209 = vmatpush1.msra.mxu0 0.0
    %6210 = vmatprep.subr.mxu0 0.0
    %6211 = vmatpush1.msra.mxu0 0.0
    %6212 = vmatprep.subr.mxu0 0.0
    %6213 = vmatpush1.msra.mxu0 0.0
    %6214 = vmatprep.subr.mxu0 0.0
    %6215 = vmatpush1.msra.mxu0 0.0
    %6216 = vmatprep.subr.mxu0 0.0
    %6217 = vmatpush1.msra.mxu0 0.0
    %6218 = vmatprep.subr.mxu0 0.0
    %6219 = vmatpush1.msra.mxu0 0.0
    %6220 = vmatprep.subr.mxu0 0.0
    %6221 = vmatpush1.msra.mxu0 0.0
    %6222 = vmatprep.subr.mxu0 0.0
    %6223 = vmatpush1.msra.mxu0 0.0
    %6224 = vmatprep.subr.mxu0 0.0
    %6225 = vmatpush1.msra.mxu0 0.0
    %6226 = vmatprep.subr.mxu0 0.0
    %6227 = vmatpush1.msra.mxu0 0.0
    %6228 = vmatprep.subr.mxu0 0.0
    %6229 = vmatpush1.msra.mxu0 0.0
    %6230 = vmatprep.subr.mxu0 0.0
    %6231 = vmatpush1.msra.mxu0 0.0
    %6232 = vmatprep.subr.mxu0 0.0
    %6233 = vmatpush1.msra.mxu0 0.0
    %6234 = vmatprep.mubr.f32.mxu0 0.0
    %6235 = vmatmul.mubr.f32.gmra.mrb[0].mxu0 %v6168
    %v6236 = vpop.f32.mrb[0].mxu0
    %v6237 = vadd.f32 0.0, %v6236
    %v6238 = vpop.f32.mrb[0].mxu0
    %6239 = vdwg.mxu0
    %v6240 = vpack.c.bf16 %v6237, %v6237
    %v6242 = vsel %vm2339, %v6240, 0
    %6244 = vmatprep.subr.bf16.mxu0 %v3692
    %6245 = vmatpush1.bf16.msra.mxu0 %v3691
    %6246 = vmatprep.subr.bf16.mxu0 %v3694
    %6247 = vmatpush1.bf16.msra.mxu0 %v3693
    %6248 = vmatprep.subr.bf16.mxu0 0
    %6249 = vmatpush1.bf16.msra.mxu0 0
    %6250 = vmatprep.subr.bf16.mxu0 0
    %6251 = vmatpush1.bf16.msra.mxu0 0
    %6252 = vmatprep.subr.bf16.mxu0 0
    %6253 = vmatpush1.bf16.msra.mxu0 0
    %6254 = vmatprep.subr.bf16.mxu0 0
    %6255 = vmatpush1.bf16.msra.mxu0 0
    %6256 = vmatprep.subr.bf16.mxu0 0
    %6257 = vmatpush1.bf16.msra.mxu0 0
    %6258 = vmatprep.subr.bf16.mxu0 0
    %6259 = vmatpush1.bf16.msra.mxu0 0
    %6260 = vmatprep.subr.bf16.mxu0 0
    %6261 = vmatpush1.bf16.msra.mxu0 0
    %6262 = vmatprep.subr.bf16.mxu0 0
    %6263 = vmatpush1.bf16.msra.mxu0 0
    %6264 = vmatprep.subr.bf16.mxu0 0
    %6265 = vmatpush1.bf16.msra.mxu0 0
    %6266 = vmatprep.subr.bf16.mxu0 0
    %6267 = vmatpush1.bf16.msra.mxu0 0
    %6268 = vmatprep.subr.bf16.mxu0 0
    %6269 = vmatpush1.bf16.msra.mxu0 0
    %6270 = vmatprep.subr.bf16.mxu0 0
    %6271 = vmatpush1.bf16.msra.mxu0 0
    %6272 = vmatprep.subr.bf16.mxu0 0
    %6273 = vmatpush1.bf16.msra.mxu0 0
    %6274 = vmatprep.subr.bf16.mxu0 0
    %6275 = vmatpush1.bf16.msra.mxu0 0
    %6276 = vmatprep.mubr.bf16.mxu0 0
    %6277 = vmatmul.mubr.bf16.gmra.mrb[0].mxu0 %v6242
    %v6278 = vpop.f32.mrb[0].mxu0
    %v6279 = vadd.f32 0.0, %v6278
    %v6280 = vpop.f32.mrb[0].mxu0
    %v6281 = vadd.f32 0.0, %v6280
    %v6282 = vpop.f32.mrb[0].mxu0
    %v6283 = vpop.f32.mrb[0].mxu0
    %6284 = vdwg.mxu0
    %v6285 = vadd.f32 %v6072, %v6279
    %v6286 = vadd.f32 %v6073, %v6281
    %6287 = vrot.lane.b32.xlu0 %v5026, 64
    %v6288 = vpop.permute.xlu0 %6287
    %6289 = vrot.lane.b32.xlu0 %v4980, 64
    %v6290 = vpop.permute.xlu0 %6289
    %v6291 = vsel %vm2339, %v6288, 0
    %v6293 = vsel %vm2339, %v6290, 0
    %6295 = vmatprep.subr.mxu0 0.0
    %6296 = vmatpush1.xpose.msra.mxu0 %v6293
    %6297 = vmatprep.subr.mxu0 0.0
    %6298 = vmatpush1.xpose.msra.mxu0 0.0
    %6299 = vmatprep.subr.mxu0 0.0
    %6300 = vmatpush1.xpose.msra.mxu0 0.0
    %6301 = vmatprep.subr.mxu0 0.0
    %6302 = vmatpush1.xpose.msra.mxu0 0.0
    %6303 = vmatprep.subr.mxu0 0.0
    %6304 = vmatpush1.xpose.msra.mxu0 0.0
    %6305 = vmatprep.subr.mxu0 0.0
    %6306 = vmatpush1.xpose.msra.mxu0 0.0
    %6307 = vmatprep.subr.mxu0 0.0
    %6308 = vmatpush1.xpose.msra.mxu0 0.0
    %6309 = vmatprep.subr.mxu0 0.0
    %6310 = vmatpush1.xpose.msra.mxu0 0.0
    %6311 = vmatprep.subr.mxu0 0.0
    %6312 = vmatpush1.xpose.msra.mxu0 0.0
    %6313 = vmatprep.subr.mxu0 0.0
    %6314 = vmatpush1.xpose.msra.mxu0 0.0
    %6315 = vmatprep.subr.mxu0 0.0
    %6316 = vmatpush1.xpose.msra.mxu0 0.0
    %6317 = vmatprep.subr.mxu0 0.0
    %6318 = vmatpush1.xpose.msra.mxu0 0.0
    %6319 = vmatprep.subr.mxu0 0.0
    %6320 = vmatpush1.xpose.msra.mxu0 0.0
    %6321 = vmatprep.subr.mxu0 0.0
    %6322 = vmatpush1.xpose.msra.mxu0 0.0
    %6323 = vmatprep.subr.mxu0 0.0
    %6324 = vmatpush1.xpose.msra.mxu0 0.0
    %6325 = vmatprep.subr.mxu0 0.0
    %6326 = vmatpush1.xpose.msra.mxu0 0.0
    %6327 = vmatprep.subr.mxu0 0.0
    %6328 = vmatpush1.xpose.msra.mxu0 0.0
    %6329 = vmatprep.subr.mxu0 0.0
    %6330 = vmatpush1.xpose.msra.mxu0 0.0
    %6331 = vmatprep.subr.mxu0 0.0
    %6332 = vmatpush1.xpose.msra.mxu0 0.0
    %6333 = vmatprep.subr.mxu0 0.0
    %6334 = vmatpush1.xpose.msra.mxu0 0.0
    %6335 = vmatprep.subr.mxu0 0.0
    %6336 = vmatpush1.xpose.msra.mxu0 0.0
    %6337 = vmatprep.subr.mxu0 0.0
    %6338 = vmatpush1.xpose.msra.mxu0 0.0
    %6339 = vmatprep.subr.mxu0 0.0
    %6340 = vmatpush1.xpose.msra.mxu0 0.0
    %6341 = vmatprep.subr.mxu0 0.0
    %6342 = vmatpush1.xpose.msra.mxu0 0.0
    %6343 = vmatprep.subr.mxu0 0.0
    %6344 = vmatpush1.xpose.msra.mxu0 0.0
    %6345 = vmatprep.subr.mxu0 0.0
    %6346 = vmatpush1.xpose.msra.mxu0 0.0
    %6347 = vmatprep.subr.mxu0 0.0
    %6348 = vmatpush1.xpose.msra.mxu0 0.0
    %6349 = vmatprep.subr.mxu0 0.0
    %6350 = vmatpush1.xpose.msra.mxu0 0.0
    %6351 = vmatprep.subr.mxu0 0.0
    %6352 = vmatpush1.xpose.msra.mxu0 0.0
    %6353 = vmatprep.subr.mxu0 0.0
    %6354 = vmatpush1.xpose.msra.mxu0 0.0
    %6355 = vmatprep.subr.mxu0 0.0
    %6356 = vmatpush1.xpose.msra.mxu0 0.0
    %6357 = vmatprep.subr.mxu0 0.0
    %6358 = vmatpush1.xpose.msra.mxu0 0.0
    %6359 = vmatprep.mubr.f32.mxu0 0.0
    %6360 = vmatmul.mubr.f32.gmra.mrb[0].mxu0 %v6291
    %v6361 = vpop.f32.mrb[0].mxu0
    %v6362 = vadd.f32 0.0, %v6361
    %v6363 = vpop.f32.mrb[0].mxu0
    %6364 = vdwg.mxu0
    %v6365 = vsel %vm2416, %v6362, -inf
    %6366 = vmax.xlane.f32.xlu0 %v6365
    %v6367 = vpop.xlane.xlu0 %6366
    %v6368 = vsub.f32 %v6362, %v6367
    %v6369 = vmul.f32 %v6368, 1.442695
    %v6370 = vpow.pop %v6369
    %v6371 = vsel %vm2416, %v6370, 0.0
    %6372 = vadd.xlane.f32.xlu0 %v6371
    %v6373 = vpop.xlane.xlu0 %6372
    %v6374 = vrcp.pop %v6373
    %v6375 = vmul.f32 %v6370, %v6374
    %6376 = vrot.lane.b32.xlu0 %v5021, 64
    %v6377 = vpop.permute.xlu0 %6376
    %v6380 = vsel %vm2416, %v6375, 0
    %6382 = vmatprep.subr.mxu0 0.0
    %6383 = vmatpush1.msra.mxu0 %v6377
    %6384 = vmatprep.subr.mxu0 0.0
    %6385 = vmatpush1.msra.mxu0 0.0
    %6386 = vmatprep.subr.mxu0 0.0
    %6387 = vmatpush1.msra.mxu0 0.0
    %6388 = vmatprep.subr.mxu0 0.0
    %6389 = vmatpush1.msra.mxu0 0.0
    %6390 = vmatprep.subr.mxu0 0.0
    %6391 = vmatpush1.msra.mxu0 0.0
    %6392 = vmatprep.subr.mxu0 0.0
    %6393 = vmatpush1.msra.mxu0 0.0
    %6394 = vmatprep.subr.mxu0 0.0
    %6395 = vmatpush1.msra.mxu0 0.0
    %6396 = vmatprep.subr.mxu0 0.0
    %6397 = vmatpush1.msra.mxu0 0.0
    %6398 = vmatprep.subr.mxu0 0.0
    %6399 = vmatpush1.msra.mxu0 0.0
    %6400 = vmatprep.subr.mxu0 0.0
    %6401 = vmatpush1.msra.mxu0 0.0
    %6402 = vmatprep.subr.mxu0 0.0
    %6403 = vmatpush1.msra.mxu0 0.0
    %6404 = vmatprep.subr.mxu0 0.0
    %6405 = vmatpush1.msra.mxu0 0.0
    %6406 = vmatprep.subr.mxu0 0.0
    %6407 = vmatpush1.msra.mxu0 0.0
    %6408 = vmatprep.subr.mxu0 0.0
    %6409 = vmatpush1.msra.mxu0 0.0
    %6410 = vmatprep.subr.mxu0 0.0
    %6411 = vmatpush1.msra.mxu0 0.0
    %6412 = vmatprep.subr.mxu0 0.0
    %6413 = vmatpush1.msra.mxu0 0.0
    %6414 = vmatprep.subr.mxu0 0.0
    %6415 = vmatpush1.msra.mxu0 0.0
    %6416 = vmatprep.subr.mxu0 0.0
    %6417 = vmatpush1.msra.mxu0 0.0
    %6418 = vmatprep.subr.mxu0 0.0
    %6419 = vmatpush1.msra.mxu0 0.0
    %6420 = vmatprep.subr.mxu0 0.0
    %6421 = vmatpush1.msra.mxu0 0.0
    %6422 = vmatprep.subr.mxu0 0.0
    %6423 = vmatpush1.msra.mxu0 0.0
    %6424 = vmatprep.subr.mxu0 0.0
    %6425 = vmatpush1.msra.mxu0 0.0
    %6426 = vmatprep.subr.mxu0 0.0
    %6427 = vmatpush1.msra.mxu0 0.0
    %6428 = vmatprep.subr.mxu0 0.0
    %6429 = vmatpush1.msra.mxu0 0.0
    %6430 = vmatprep.subr.mxu0 0.0
    %6431 = vmatpush1.msra.mxu0 0.0
    %6432 = vmatprep.subr.mxu0 0.0
    %6433 = vmatpush1.msra.mxu0 0.0
    %6434 = vmatprep.subr.mxu0 0.0
    %6435 = vmatpush1.msra.mxu0 0.0
    %6436 = vmatprep.subr.mxu0 0.0
    %6437 = vmatpush1.msra.mxu0 0.0
    %6438 = vmatprep.subr.mxu0 0.0
    %6439 = vmatpush1.msra.mxu0 0.0
    %6440 = vmatprep.subr.mxu0 0.0
    %6441 = vmatpush1.msra.mxu0 0.0
    %6442 = vmatprep.subr.mxu0 0.0
    %6443 = vmatpush1.msra.mxu0 0.0
    %6444 = vmatprep.subr.mxu0 0.0
    %6445 = vmatpush1.msra.mxu0 0.0
    %6446 = vmatprep.mubr.f32.mxu0 0.0
    %6447 = vmatmul.mubr.f32.gmra.mrb[0].mxu0 %v6380
    %v6448 = vpop.f32.mrb[0].mxu0
    %v6449 = vadd.f32 0.0, %v6448
    %v6450 = vpop.f32.mrb[0].mxu0
    %6451 = vdwg.mxu0
    %v6452 = vpack.c.bf16 %v6449, %v6449
    %v6454 = vsel %vm2339, %v6452, 0
    %6456 = vmatprep.subr.bf16.mxu0 %v3928
    %6457 = vmatpush1.bf16.msra.mxu0 %v3927
    %6458 = vmatprep.subr.bf16.mxu0 %v3930
    %6459 = vmatpush1.bf16.msra.mxu0 %v3929
    %6460 = vmatprep.subr.bf16.mxu0 0
    %6461 = vmatpush1.bf16.msra.mxu0 0
    %6462 = vmatprep.subr.bf16.mxu0 0
    %6463 = vmatpush1.bf16.msra.mxu0 0
    %6464 = vmatprep.subr.bf16.mxu0 0
    %6465 = vmatpush1.bf16.msra.mxu0 0
    %6466 = vmatprep.subr.bf16.mxu0 0
    %6467 = vmatpush1.bf16.msra.mxu0 0
    %6468 = vmatprep.subr.bf16.mxu0 0
    %6469 = vmatpush1.bf16.msra.mxu0 0
    %6470 = vmatprep.subr.bf16.mxu0 0
    %6471 = vmatpush1.bf16.msra.mxu0 0
    %6472 = vmatprep.subr.bf16.mxu0 0
    %6473 = vmatpush1.bf16.msra.mxu0 0
    %6474 = vmatprep.subr.bf16.mxu0 0
    %6475 = vmatpush1.bf16.msra.mxu0 0
    %6476 = vmatprep.subr.bf16.mxu0 0
    %6477 = vmatpush1.bf16.msra.mxu0 0
    %6478 = vmatprep.subr.bf16.mxu0 0
    %6479 = vmatpush1.bf16.msra.mxu0 0
    %6480 = vmatprep.subr.bf16.mxu0 0
    %6481 = vmatpush1.bf16.msra.mxu0 0
    %6482 = vmatprep.subr.bf16.mxu0 0
    %6483 = vmatpush1.bf16.msra.mxu0 0
    %6484 = vmatprep.subr.bf16.mxu0 0
    %6485 = vmatpush1.bf16.msra.mxu0 0
    %6486 = vmatprep.subr.bf16.mxu0 0
    %6487 = vmatpush1.bf16.msra.mxu0 0
    %6488 = vmatprep.mubr.bf16.mxu0 0
    %6489 = vmatmul.mubr.bf16.gmra.mrb[0].mxu0 %v6454
    %v6490 = vpop.f32.mrb[0].mxu0
    %v6491 = vadd.f32 0.0, %v6490
    %v6492 = vpop.f32.mrb[0].mxu0
    %v6493 = vadd.f32 0.0, %v6492
    %v6494 = vpop.f32.mrb[0].mxu0
    %v6495 = vpop.f32.mrb[0].mxu0
    %6496 = vdwg.mxu0
    %v6497 = vadd.f32 %v6285, %v6491
    %v6498 = vadd.f32 %v6286, %v6493
    %6499 = vrot.lane.b32.xlu0 %v5026, 32
    %v6500 = vpop.permute.xlu0 %6499
    %6501 = vrot.lane.b32.xlu0 %v4980, 32
    %v6502 = vpop.permute.xlu0 %6501
    %v6503 = vsel %vm2339, %v6500, 0
    %v6505 = vsel %vm2339, %v6502, 0
    %6507 = vmatprep.subr.mxu0 0.0
    %6508 = vmatpush1.xpose.msra.mxu0 %v6505
    %6509 = vmatprep.subr.mxu0 0.0
    %6510 = vmatpush1.xpose.msra.mxu0 0.0
    %6511 = vmatprep.subr.mxu0 0.0
    %6512 = vmatpush1.xpose.msra.mxu0 0.0
    %6513 = vmatprep.subr.mxu0 0.0
    %6514 = vmatpush1.xpose.msra.mxu0 0.0
    %6515 = vmatprep.subr.mxu0 0.0
    %6516 = vmatpush1.xpose.msra.mxu0 0.0
    %6517 = vmatprep.subr.mxu0 0.0
    %6518 = vmatpush1.xpose.msra.mxu0 0.0
    %6519 = vmatprep.subr.mxu0 0.0
    %6520 = vmatpush1.xpose.msra.mxu0 0.0
    %6521 = vmatprep.subr.mxu0 0.0
    %6522 = vmatpush1.xpose.msra.mxu0 0.0
    %6523 = vmatprep.subr.mxu0 0.0
    %6524 = vmatpush1.xpose.msra.mxu0 0.0
    %6525 = vmatprep.subr.mxu0 0.0
    %6526 = vmatpush1.xpose.msra.mxu0 0.0
    %6527 = vmatprep.subr.mxu0 0.0
    %6528 = vmatpush1.xpose.msra.mxu0 0.0
    %6529 = vmatprep.subr.mxu0 0.0
    %6530 = vmatpush1.xpose.msra.mxu0 0.0
    %6531 = vmatprep.subr.mxu0 0.0
    %6532 = vmatpush1.xpose.msra.mxu0 0.0
    %6533 = vmatprep.subr.mxu0 0.0
    %6534 = vmatpush1.xpose.msra.mxu0 0.0
    %6535 = vmatprep.subr.mxu0 0.0
    %6536 = vmatpush1.xpose.msra.mxu0 0.0
    %6537 = vmatprep.subr.mxu0 0.0
    %6538 = vmatpush1.xpose.msra.mxu0 0.0
    %6539 = vmatprep.subr.mxu0 0.0
    %6540 = vmatpush1.xpose.msra.mxu0 0.0
    %6541 = vmatprep.subr.mxu0 0.0
    %6542 = vmatpush1.xpose.msra.mxu0 0.0
    %6543 = vmatprep.subr.mxu0 0.0
    %6544 = vmatpush1.xpose.msra.mxu0 0.0
    %6545 = vmatprep.subr.mxu0 0.0
    %6546 = vmatpush1.xpose.msra.mxu0 0.0
    %6547 = vmatprep.subr.mxu0 0.0
    %6548 = vmatpush1.xpose.msra.mxu0 0.0
    %6549 = vmatprep.subr.mxu0 0.0
    %6550 = vmatpush1.xpose.msra.mxu0 0.0
    %6551 = vmatprep.subr.mxu0 0.0
    %6552 = vmatpush1.xpose.msra.mxu0 0.0
    %6553 = vmatprep.subr.mxu0 0.0
    %6554 = vmatpush1.xpose.msra.mxu0 0.0
    %6555 = vmatprep.subr.mxu0 0.0
    %6556 = vmatpush1.xpose.msra.mxu0 0.0
    %6557 = vmatprep.subr.mxu0 0.0
    %6558 = vmatpush1.xpose.msra.mxu0 0.0
    %6559 = vmatprep.subr.mxu0 0.0
    %6560 = vmatpush1.xpose.msra.mxu0 0.0
    %6561 = vmatprep.subr.mxu0 0.0
    %6562 = vmatpush1.xpose.msra.mxu0 0.0
    %6563 = vmatprep.subr.mxu0 0.0
    %6564 = vmatpush1.xpose.msra.mxu0 0.0
    %6565 = vmatprep.subr.mxu0 0.0
    %6566 = vmatpush1.xpose.msra.mxu0 0.0
    %6567 = vmatprep.subr.mxu0 0.0
    %6568 = vmatpush1.xpose.msra.mxu0 0.0
    %6569 = vmatprep.subr.mxu0 0.0
    %6570 = vmatpush1.xpose.msra.mxu0 0.0
    %6571 = vmatprep.mubr.f32.mxu0 0.0
    %6572 = vmatmul.mubr.f32.gmra.mrb[0].mxu0 %v6503
    %v6573 = vpop.f32.mrb[0].mxu0
    %v6574 = vadd.f32 0.0, %v6573
    %v6575 = vpop.f32.mrb[0].mxu0
    %6576 = vdwg.mxu0
    %v6577 = vsel %vm2416, %v6574, -inf
    %6578 = vmax.xlane.f32.xlu0 %v6577
    %v6579 = vpop.xlane.xlu0 %6578
    %v6580 = vsub.f32 %v6574, %v6579
    %v6581 = vmul.f32 %v6580, 1.442695
    %v6582 = vpow.pop %v6581
    %v6583 = vsel %vm2416, %v6582, 0.0
    %6584 = vadd.xlane.f32.xlu0 %v6583
    %v6585 = vpop.xlane.xlu0 %6584
    %v6586 = vrcp.pop %v6585
    %v6587 = vmul.f32 %v6582, %v6586
    %6588 = vrot.lane.b32.xlu0 %v5021, 32
    %v6589 = vpop.permute.xlu0 %6588
    %v6592 = vsel %vm2416, %v6587, 0
    %6594 = vmatprep.subr.mxu0 0.0
    %6595 = vmatpush1.msra.mxu0 %v6589
    %6596 = vmatprep.subr.mxu0 0.0
    %6597 = vmatpush1.msra.mxu0 0.0
    %6598 = vmatprep.subr.mxu0 0.0
    %6599 = vmatpush1.msra.mxu0 0.0
    %6600 = vmatprep.subr.mxu0 0.0
    %6601 = vmatpush1.msra.mxu0 0.0
    %6602 = vmatprep.subr.mxu0 0.0
    %6603 = vmatpush1.msra.mxu0 0.0
    %6604 = vmatprep.subr.mxu0 0.0
    %6605 = vmatpush1.msra.mxu0 0.0
    %6606 = vmatprep.subr.mxu0 0.0
    %6607 = vmatpush1.msra.mxu0 0.0
    %6608 = vmatprep.subr.mxu0 0.0
    %6609 = vmatpush1.msra.mxu0 0.0
    %6610 = vmatprep.subr.mxu0 0.0
    %6611 = vmatpush1.msra.mxu0 0.0
    %6612 = vmatprep.subr.mxu0 0.0
    %6613 = vmatpush1.msra.mxu0 0.0
    %6614 = vmatprep.subr.mxu0 0.0
    %6615 = vmatpush1.msra.mxu0 0.0
    %6616 = vmatprep.subr.mxu0 0.0
    %6617 = vmatpush1.msra.mxu0 0.0
    %6618 = vmatprep.subr.mxu0 0.0
    %6619 = vmatpush1.msra.mxu0 0.0
    %6620 = vmatprep.subr.mxu0 0.0
    %6621 = vmatpush1.msra.mxu0 0.0
    %6622 = vmatprep.subr.mxu0 0.0
    %6623 = vmatpush1.msra.mxu0 0.0
    %6624 = vmatprep.subr.mxu0 0.0
    %6625 = vmatpush1.msra.mxu0 0.0
    %6626 = vmatprep.subr.mxu0 0.0
    %6627 = vmatpush1.msra.mxu0 0.0
    %6628 = vmatprep.subr.mxu0 0.0
    %6629 = vmatpush1.msra.mxu0 0.0
    %6630 = vmatprep.subr.mxu0 0.0
    %6631 = vmatpush1.msra.mxu0 0.0
    %6632 = vmatprep.subr.mxu0 0.0
    %6633 = vmatpush1.msra.mxu0 0.0
    %6634 = vmatprep.subr.mxu0 0.0
    %6635 = vmatpush1.msra.mxu0 0.0
    %6636 = vmatprep.subr.mxu0 0.0
    %6637 = vmatpush1.msra.mxu0 0.0
    %6638 = vmatprep.subr.mxu0 0.0
    %6639 = vmatpush1.msra.mxu0 0.0
    %6640 = vmatprep.subr.mxu0 0.0
    %6641 = vmatpush1.msra.mxu0 0.0
    %6642 = vmatprep.subr.mxu0 0.0
    %6643 = vmatpush1.msra.mxu0 0.0
    %6644 = vmatprep.subr.mxu0 0.0
    %6645 = vmatpush1.msra.mxu0 0.0
    %6646 = vmatprep.subr.mxu0 0.0
    %6647 = vmatpush1.msra.mxu0 0.0
    %6648 = vmatprep.subr.mxu0 0.0
    %6649 = vmatpush1.msra.mxu0 0.0
    %6650 = vmatprep.subr.mxu0 0.0
    %6651 = vmatpush1.msra.mxu0 0.0
    %6652 = vmatprep.subr.mxu0 0.0
    %6653 = vmatpush1.msra.mxu0 0.0
    %6654 = vmatprep.subr.mxu0 0.0
    %6655 = vmatpush1.msra.mxu0 0.0
    %6656 = vmatprep.subr.mxu0 0.0
    %6657 = vmatpush1.msra.mxu0 0.0
    %6658 = vmatprep.mubr.f32.mxu0 0.0
    %6659 = vmatmul.mubr.f32.gmra.mrb[0].mxu0 %v6592
    %v6660 = vpop.f32.mrb[0].mxu0
    %v6661 = vadd.f32 0.0, %v6660
    %v6662 = vpop.f32.mrb[0].mxu0
    %6663 = vdwg.mxu0
    %v6664 = vpack.c.bf16 %v6661, %v6661
    %v6666 = vsel %vm2339, %v6664, 0
    %6668 = vmatprep.subr.bf16.mxu0 %v4164
    %6669 = vmatpush1.bf16.msra.mxu0 %v4163
    %6670 = vmatprep.subr.bf16.mxu0 %v4166
    %6671 = vmatpush1.bf16.msra.mxu0 %v4165
    %6672 = vmatprep.subr.bf16.mxu0 0
    %6673 = vmatpush1.bf16.msra.mxu0 0
    %6674 = vmatprep.subr.bf16.mxu0 0
    %6675 = vmatpush1.bf16.msra.mxu0 0
    %6676 = vmatprep.subr.bf16.mxu0 0
    %6677 = vmatpush1.bf16.msra.mxu0 0
    %6678 = vmatprep.subr.bf16.mxu0 0
    %6679 = vmatpush1.bf16.msra.mxu0 0
    %6680 = vmatprep.subr.bf16.mxu0 0
    %6681 = vmatpush1.bf16.msra.mxu0 0
    %6682 = vmatprep.subr.bf16.mxu0 0
    %6683 = vmatpush1.bf16.msra.mxu0 0
    %6684 = vmatprep.subr.bf16.mxu0 0
    %6685 = vmatpush1.bf16.msra.mxu0 0
    %6686 = vmatprep.subr.bf16.mxu0 0
    %6687 = vmatpush1.bf16.msra.mxu0 0
    %6688 = vmatprep.subr.bf16.mxu0 0
    %6689 = vmatpush1.bf16.msra.mxu0 0
    %6690 = vmatprep.subr.bf16.mxu0 0
    %6691 = vmatpush1.bf16.msra.mxu0 0
    %6692 = vmatprep.subr.bf16.mxu0 0
    %6693 = vmatpush1.bf16.msra.mxu0 0
    %6694 = vmatprep.subr.bf16.mxu0 0
    %6695 = vmatpush1.bf16.msra.mxu0 0
    %6696 = vmatprep.subr.bf16.mxu0 0
    %6697 = vmatpush1.bf16.msra.mxu0 0
    %6698 = vmatprep.subr.bf16.mxu0 0
    %6699 = vmatpush1.bf16.msra.mxu0 0
    %6700 = vmatprep.mubr.bf16.mxu0 0
    %6701 = vmatmul.mubr.bf16.gmra.mrb[0].mxu0 %v6666
    %v6702 = vpop.f32.mrb[0].mxu0
    %v6703 = vadd.f32 0.0, %v6702
    %v6704 = vpop.f32.mrb[0].mxu0
    %v6705 = vadd.f32 0.0, %v6704
    %v6706 = vpop.f32.mrb[0].mxu0
    %v6707 = vpop.f32.mrb[0].mxu0
    %6708 = vdwg.mxu0
    %v6709 = vadd.f32 %v6497, %v6703
    %v6710 = vadd.f32 %v6498, %v6705
    %v6711 = vadd.f32 %v4230, %v6709
    %v6712 = vadd.f32 %v4231, %v6710
    %v6713 = vadd.f32 %v6711, %v4223
    %v6714 = vadd.f32 %v6712, %v4227
    %v6715 = vmul.f32 %v6713, 0.5
    %v6716 = vmul.f32 %v6714, 0.5
    %6717 = vst [vmem:[#allocation10] sm:$0xff] %v6715
    %6718 = vst [vmem:[#allocation10 + $0x8] sm:$0xff] %v6716
    // Predicated region
    $region34: #{perception_encoder.1} parent=1 // pred_check
      _
    $region35: #{perception_encoder.1} parent=1 // pred_check_branch
      %6720 = sbr.rel (0) target = $region37
    $region36: #{perception_encoder.1} parent=1 // pred_region
      %s6722 = ssub.s32 256, 256
      %6723 = vsyncadd [#allocation4], %s6722
      %s6725 = sshll.u32 [#allocation10], 4
      %s6726 = int_to_ptr.vmem [resolvable:$true] %s6725
      %6728 = dma.vmem_to_hbm [thread:$0]  %s6726, 256, %s4, [#allocation4]
    $region37: #{perception_encoder.1} parent=1 // pred_fallthru
      _
    // Predicated region
    $region38: #{perception_encoder.1} parent=1 // pred_check
      _
    $region39: #{perception_encoder.1} parent=1 // pred_check_branch
      %6730 = sbr.rel (0) target = $region41
    $region40: #{perception_encoder.1} parent=1 // pred_region
      %6731 = dma.done [#allocation4], 256
    $region41: #{perception_encoder.1} parent=1 // pred_fallthru
      _
    %6732 = vsyncpa [#allocation3], 1
    %6733 = vsyncpa [#allocation6], 1
    %6734 = vsyncpa [#allocation9], 1
    %6735 = vsyncpa [#allocation4], 1

</llo_original>
